<compile_context>
chip_gen: v7x
topology: tpu7x:2x2x1
jax: 0.10.0
libtpu: 0.0.40
codegen_flags: <defaults>
</compile_context>

<pallas_src>
import functools

import jax
import jax.numpy as jnp
from jax import lax
from jax.experimental import pallas as pl
from jax.experimental.pallas import tpu as pltpu


def _conv3x3_bias_lrelu_kernel(w_ref, b_ref, x_ref, o_ref, *, W, slope):
    """One grid step = one (batch, row-tile) output block.

    w_ref : (9, Cout, Cin) f32   per-tap weight matrices (tap index = 3*dy + dx)
    b_ref : (Cout, 1)      f32   bias column (broadcast over lanes)
    x_ref : (Cin, (TH+2)*W + 2) bf16  row-tile window (+1-row halo), flattened
                                      row-major, one zero element pad each side
    o_ref : (Cout, TH*W)   bf16  lane-dense output tile
    """
    TN = o_ref.shape[-1]
    # Pixel-column index of every lane in the flat tile (tile starts at a row
    # boundary, so j = n mod W).  Used to zero the wrapped-around values of the
    # left/right taps at the image borders.
    col = lax.broadcasted_iota(jnp.int32, (1, TN), 1) % W
    not_first_col = col != 0
    not_last_col = col != (W - 1)

    acc = jnp.zeros(o_ref.shape, jnp.float32)
    for dy in range(3):
        for dx in range(3):
            # In-kernel im2col: shifted slab for this tap is a contiguous,
            # static-offset slice of the flattened halo window (no HBM copy).
            start = dy * W + dx
            slab = x_ref[:, start:start + TN].astype(jnp.float32)   # (Cin, TN)
            if dx == 0:
                slab = jnp.where(not_first_col, slab, 0.0)
            elif dx == 2:
                slab = jnp.where(not_last_col, slab, 0.0)
            acc = acc + jnp.dot(w_ref[3 * dy + dx], slab,
                                preferred_element_type=jnp.float32)
    acc = acc + b_ref[...]                      # (Cout,1) broadcast over lanes
    acc = jnp.maximum(acc, slope * acc)         # LeakyReLU (0 < slope < 1)
    o_ref[...] = acc.astype(o_ref.dtype)


def _pick_row_tile(H, W, max_lanes):
    """Largest divisor TH of H with TH*W a multiple of 128 and <= max_lanes."""
    best = None
    for d in range(1, H + 1):
        if H % d == 0 and (d * W) % 128 == 0 and d * W <= max_lanes:
            best = d
    return best if best is not None else H


def conv3x3_lrelu_forward(x_nchw, weight, bias, *, slope=0.2, max_tile_lanes=2048):
    """x_nchw: [B, Cin, H, W]; weight: [Cout, Cin, 3, 3] (PyTorch); bias: [Cout]."""
    B, Cin, H, W = x_nchw.shape
    Cout = weight.shape[0]

    TH = _pick_row_tile(H, W, max_tile_lanes)
    num_h = H // TH
    TN = TH * W                     # lane-dense output tile width
    L = (TH + 2) * W + 2            # flat halo-window length per row tile

    # Per-row-tile halo windows, flattened so the kernel's 9 tap-slabs are
    # contiguous slices.  Cost ~(1 + 2/TH)x of the input in bf16 -- replaces
    # the old 9x-inflated XLA im2col.
    xh = jnp.pad(x_nchw, ((0, 0), (0, 0), (1, 1), (0, 0)))        # (B,Cin,H+2,W)
    wins = jnp.stack(
        [xh[:, :, h * TH:h * TH + TH + 2, :] for h in range(num_h)], axis=1)
    wins = wins.reshape(B, num_h, Cin, (TH + 2) * W)
    wins = jnp.pad(wins, ((0, 0), (0, 0), (0, 0), (1, 1)))        # 1-elem side pads
    wins = wins.astype(jnp.bfloat16)                              # halve HBM reads

    # (Cout, Cin, 3, 3) -> (9, Cout, Cin); tap index = 3*dy + dx.  Tiny and
    # resident, so keep f32 (only activations are bf16-quantized).
    w_taps = jnp.transpose(weight, (2, 3, 0, 1)).reshape(9, Cout, Cin)
    w_taps = w_taps.astype(jnp.float32)
    b_col = bias.reshape(Cout, 1).astype(jnp.float32)

    kernel = functools.partial(_conv3x3_bias_lrelu_kernel, W=W, slope=slope)

    # Explicit VMEM budget: double-buffered input window + output tile,
    # resident weights/bias, plus margin for in-kernel f32 temporaries.
    vmem_limit = 2 * (Cin * L * 2 + Cout * TN * 2) + (9 * Cout * Cin + Cout) * 4
    vmem_limit = int(min(vmem_limit + (8 << 20), 100 << 20))

    out_flat = pl.pallas_call(
        kernel,
        out_shape=jax.ShapeDtypeStruct((B, Cout, H * W), jnp.bfloat16),
        grid_spec=pltpu.PrefetchScalarGridSpec(
            num_scalar_prefetch=0,
            grid=(B, num_h),
            in_specs=[
                pl.BlockSpec((9, Cout, Cin), lambda b, h: (0, 0, 0)),    # resident
                pl.BlockSpec((Cout, 1), lambda b, h: (0, 0)),            # resident
                pl.BlockSpec((None, None, Cin, L), lambda b, h: (b, h, 0, 0)),
            ],
            out_specs=pl.BlockSpec((None, Cout, TN), lambda b, h: (b, 0, h)),
        ),
        compiler_params=pltpu.CompilerParams(
            dimension_semantics=("parallel", "parallel"),
            vmem_limit_bytes=vmem_limit),
    )(w_taps, b_col, wins)

    # Layout-preserving reshape only -- no post-kernel transpose pass.
    return out_flat.reshape(B, Cout, H, W)


def _reference_forward(x_nchw, weight, bias, slope=0.2):
    """Pure-JAX f32 reference (lax.conv) for the correctness check."""
    y = lax.conv_general_dilated(
        x_nchw.astype(jnp.float32), weight.astype(jnp.float32),
        window_strides=(1, 1), padding=((1, 1), (1, 1)),
        dimension_numbers=("NCHW", "OIHW", "NCHW"))
    y = y + bias.astype(jnp.float32)[None, :, None, None]
    return jnp.maximum(y, slope * y)


if __name__ == "__main__":
    # Small config; H=W=64 so the row-tile grid path (TH=32, 2 tiles/batch,
    # 4 parallel grid steps) is actually exercised.
    B, Cin, Cout, H, W = 2, 5, 16, 64, 64

    key = jax.random.PRNGKey(0)
    kx, kw, kb = jax.random.split(key, 3)
    x = jax.random.normal(kx, (B, Cin, H, W), dtype=jnp.float32)
    weight = 0.1 * jax.random.normal(kw, (Cout, Cin, 3, 3), dtype=jnp.float32)
    bias = 0.05 * jax.random.normal(kb, (Cout,), dtype=jnp.float32)

    out = conv3x3_lrelu_forward(x, weight, bias)
    out = jax.block_until_ready(out)

    ref = _reference_forward(x, weight, bias)
    assert out.shape == (B, Cout, H, W)
    assert out.dtype == jnp.bfloat16
    out_f32 = out.astype(jnp.float32)
    max_err = jnp.max(jnp.abs(out_f32 - ref))
    # Tolerance accounts for bf16 quantization of the activations (input slabs
    # and the stored output); weights and accumulation stay f32.
    assert jnp.allclose(out_f32, ref, rtol=3e-2, atol=3e-2), (
        f"mismatch vs reference (max abs err {max_err})")

    print("KERNEL_OK")
</pallas_src>

<mosaic_0001>
module attributes {stable_mosaic.version = 11 : i64} {
  func.func @_conv3x3_bias_lrelu_kernel(%arg0: i32, %arg1: i32, %arg2: memref<9x16x5xf32, #tpu.memory_space<vmem>>, %arg3: memref<16x1xf32, #tpu.memory_space<vmem>>, %arg4: memref<1x1x5x2178xbf16, #tpu.memory_space<vmem>>, %arg5: memref<1x16x2048xbf16, #tpu.memory_space<vmem>>) attributes {dimension_semantics = [#tpu.dimension_semantics<parallel>, #tpu.dimension_semantics<parallel>], iteration_bounds = array<i64: 2, 2>, scalar_prefetch = 0 : i64, scratch_operands = 0 : i64, tpu.core_type = #tpu.core_type<tc>, window_params = [{pipeline_mode = #tpu.pipeline_mode<synchronous>, transform_indices = @transform_0, window_bounds = array<i64: 9, 16, 5>}, {pipeline_mode = #tpu.pipeline_mode<synchronous>, transform_indices = @transform_1, window_bounds = array<i64: 16, 1>}, {transform_indices = @transform_2, window_bounds = array<i64: 1, 1, 5, 2178>}, {transform_indices = @transform_3, window_bounds = array<i64: 1, 16, 2048>}]} {
    %0 = tpu.iota {dimensions = array<i32: 1>} : vector<1x2048xi32>
    %c64_i32 = arith.constant 64 : i32
    %c0_i32 = arith.constant 0 : i32
    %1 = arith.cmpi eq, %c64_i32, %c0_i32 : i32
    %c1_i32 = arith.constant 1 : i32
    %2 = arith.select %1, %c1_i32, %c64_i32 : i32
    %3 = vector.broadcast %2 : i32 to vector<1x2048xi32>
    %4 = arith.remsi %0, %3 : vector<1x2048xi32>
    %c0_i32_0 = arith.constant 0 : i32
    %5 = vector.broadcast %c0_i32_0 : i32 to vector<1x2048xi32>
    %6 = arith.cmpi ne, %4, %5 : vector<1x2048xi32>
    %c0_i32_1 = arith.constant 0 : i32
    %7 = vector.broadcast %c0_i32_1 : i32 to vector<1x2048xi32>
    %8 = arith.cmpi slt, %4, %7 : vector<1x2048xi32>
    %c0_i32_2 = arith.constant 0 : i32
    %9 = arith.cmpi slt, %2, %c0_i32_2 : i32
    %10 = vector.broadcast %9 : i1 to vector<1x2048xi1>
    %11 = vector.broadcast %10 : vector<1x2048xi1> to vector<1x2048xi1>
    %12 = arith.xori %8, %11 : vector<1x2048xi1>
    %13 = arith.andi %12, %6 : vector<1x2048xi1>
    %14 = vector.broadcast %2 : i32 to vector<1x2048xi32>
    %15 = arith.addi %4, %14 : vector<1x2048xi32>
    %16 = arith.select %13, %15, %4 : vector<1x2048xi1>, vector<1x2048xi32>
    %c0_i32_3 = arith.constant 0 : i32
    %17 = vector.broadcast %c0_i32_3 : i32 to vector<1x2048xi32>
    %18 = arith.cmpi ne, %16, %17 : vector<1x2048xi32>
    %c63_i32 = arith.constant 63 : i32
    %19 = vector.broadcast %c63_i32 : i32 to vector<1x2048xi32>
    %20 = arith.cmpi ne, %16, %19 : vector<1x2048xi32>
    %cst = arith.constant 0.000000e+00 : f32
    %21 = vector.broadcast %cst : f32 to vector<16x2048xf32>
    %c0 = arith.constant 0 : index
    %c0_4 = arith.constant 0 : index
    %c0_5 = arith.constant 0 : index
    %c0_6 = arith.constant 0 : index
    %22 = vector.load %arg4[%c0, %c0_4, %c0_5, %c0_6] : memref<1x1x5x2178xbf16, #tpu.memory_space<vmem>>, vector<1x1x5x2048xbf16>
    %23 = vector.shape_cast %22 : vector<1x1x5x2048xbf16> to vector<5x2048xbf16>
    %24 = arith.extf %23 : vector<5x2048xbf16> to vector<5x2048xf32>
    %cst_7 = arith.constant 0.000000e+00 : f32
    %25 = vector.shape_cast %18 : vector<1x2048xi1> to vector<1x2048xi1>
    %26 = vector.broadcast %25 : vector<1x2048xi1> to vector<5x2048xi1>
    %27 = vector.broadcast %cst_7 : f32 to vector<5x2048xf32>
    %28 = arith.select %26, %24, %27 : vector<5x2048xi1>, vector<5x2048xf32>
    %c0_8 = arith.constant 0 : index
    %c0_9 = arith.constant 0 : index
    %c0_10 = arith.constant 0 : index
    %29 = vector.load %arg2[%c0_8, %c0_9, %c0_10] : memref<9x16x5xf32, #tpu.memory_space<vmem>>, vector<1x16x5xf32>
    %30 = vector.shape_cast %29 : vector<1x16x5xf32> to vector<16x5xf32>
    %cst_11 = arith.constant dense<0.000000e+00> : vector<16x2048xf32>
    %31 = tpu.matmul %30, %28, %cst_11 {dimension_numbers = #tpu.dot_dimension_numbers<[1], [0], [0], [1], [0, 0, 1, 1], [], []>} : vector<16x5xf32>, vector<5x2048xf32>, vector<16x2048xf32> -> vector<16x2048xf32>
    %32 = arith.addf %21, %31 : vector<16x2048xf32>
    %c0_12 = arith.constant 0 : index
    %c0_13 = arith.constant 0 : index
    %c0_14 = arith.constant 0 : index
    %c1 = arith.constant 1 : index
    %33 = vector.load %arg4[%c0_12, %c0_13, %c0_14, %c1] : memref<1x1x5x2178xbf16, #tpu.memory_space<vmem>>, vector<1x1x5x2048xbf16>
    %34 = vector.shape_cast %33 : vector<1x1x5x2048xbf16> to vector<5x2048xbf16>
    %35 = arith.extf %34 : vector<5x2048xbf16> to vector<5x2048xf32>
    %c1_15 = arith.constant 1 : index
    %c0_16 = arith.constant 0 : index
    %c0_17 = arith.constant 0 : index
    %36 = vector.load %arg2[%c1_15, %c0_16, %c0_17] : memref<9x16x5xf32, #tpu.memory_space<vmem>>, vector<1x16x5xf32>
    %37 = vector.shape_cast %36 : vector<1x16x5xf32> to vector<16x5xf32>
    %cst_18 = arith.constant dense<0.000000e+00> : vector<16x2048xf32>
    %38 = tpu.matmul %37, %35, %cst_18 {dimension_numbers = #tpu.dot_dimension_numbers<[1], [0], [0], [1], [0, 0, 1, 1], [], []>} : vector<16x5xf32>, vector<5x2048xf32>, vector<16x2048xf32> -> vector<16x2048xf32>
    %39 = arith.addf %32, %38 : vector<16x2048xf32>
    %c0_19 = arith.constant 0 : index
    %c0_20 = arith.constant 0 : index
    %c0_21 = arith.constant 0 : index
    %c2 = arith.constant 2 : index
    %40 = vector.load %arg4[%c0_19, %c0_20, %c0_21, %c2] : memref<1x1x5x2178xbf16, #tpu.memory_space<vmem>>, vector<1x1x5x2048xbf16>
    %41 = vector.shape_cast %40 : vector<1x1x5x2048xbf16> to vector<5x2048xbf16>
    %42 = arith.extf %41 : vector<5x2048xbf16> to vector<5x2048xf32>
    %cst_22 = arith.constant 0.000000e+00 : f32
    %43 = vector.shape_cast %20 : vector<1x2048xi1> to vector<1x2048xi1>
    %44 = vector.broadcast %43 : vector<1x2048xi1> to vector<5x2048xi1>
    %45 = vector.broadcast %cst_22 : f32 to vector<5x2048xf32>
    %46 = arith.select %44, %42, %45 : vector<5x2048xi1>, vector<5x2048xf32>
    %c2_23 = arith.constant 2 : index
    %c0_24 = arith.constant 0 : index
    %c0_25 = arith.constant 0 : index
    %47 = vector.load %arg2[%c2_23, %c0_24, %c0_25] : memref<9x16x5xf32, #tpu.memory_space<vmem>>, vector<1x16x5xf32>
    %48 = vector.shape_cast %47 : vector<1x16x5xf32> to vector<16x5xf32>
    %cst_26 = arith.constant dense<0.000000e+00> : vector<16x2048xf32>
    %49 = tpu.matmul %48, %46, %cst_26 {dimension_numbers = #tpu.dot_dimension_numbers<[1], [0], [0], [1], [0, 0, 1, 1], [], []>} : vector<16x5xf32>, vector<5x2048xf32>, vector<16x2048xf32> -> vector<16x2048xf32>
    %50 = arith.addf %39, %49 : vector<16x2048xf32>
    %c0_27 = arith.constant 0 : index
    %c0_28 = arith.constant 0 : index
    %c0_29 = arith.constant 0 : index
    %c64 = arith.constant 64 : index
    %51 = vector.load %arg4[%c0_27, %c0_28, %c0_29, %c64] : memref<1x1x5x2178xbf16, #tpu.memory_space<vmem>>, vector<1x1x5x2048xbf16>
    %52 = vector.shape_cast %51 : vector<1x1x5x2048xbf16> to vector<5x2048xbf16>
    %53 = arith.extf %52 : vector<5x2048xbf16> to vector<5x2048xf32>
    %cst_30 = arith.constant 0.000000e+00 : f32
    %54 = vector.shape_cast %18 : vector<1x2048xi1> to vector<1x2048xi1>
    %55 = vector.broadcast %54 : vector<1x2048xi1> to vector<5x2048xi1>
    %56 = vector.broadcast %cst_30 : f32 to vector<5x2048xf32>
    %57 = arith.select %55, %53, %56 : vector<5x2048xi1>, vector<5x2048xf32>
    %c3 = arith.constant 3 : index
    %c0_31 = arith.constant 0 : index
    %c0_32 = arith.constant 0 : index
    %58 = vector.load %arg2[%c3, %c0_31, %c0_32] : memref<9x16x5xf32, #tpu.memory_space<vmem>>, vector<1x16x5xf32>
    %59 = vector.shape_cast %58 : vector<1x16x5xf32> to vector<16x5xf32>
    %cst_33 = arith.constant dense<0.000000e+00> : vector<16x2048xf32>
    %60 = tpu.matmul %59, %57, %cst_33 {dimension_numbers = #tpu.dot_dimension_numbers<[1], [0], [0], [1], [0, 0, 1, 1], [], []>} : vector<16x5xf32>, vector<5x2048xf32>, vector<16x2048xf32> -> vector<16x2048xf32>
    %61 = arith.addf %50, %60 : vector<16x2048xf32>
    %c0_34 = arith.constant 0 : index
    %c0_35 = arith.constant 0 : index
    %c0_36 = arith.constant 0 : index
    %c65 = arith.constant 65 : index
    %62 = vector.load %arg4[%c0_34, %c0_35, %c0_36, %c65] : memref<1x1x5x2178xbf16, #tpu.memory_space<vmem>>, vector<1x1x5x2048xbf16>
    %63 = vector.shape_cast %62 : vector<1x1x5x2048xbf16> to vector<5x2048xbf16>
    %64 = arith.extf %63 : vector<5x2048xbf16> to vector<5x2048xf32>
    %c4 = arith.constant 4 : index
    %c0_37 = arith.constant 0 : index
    %c0_38 = arith.constant 0 : index
    %65 = vector.load %arg2[%c4, %c0_37, %c0_38] : memref<9x16x5xf32, #tpu.memory_space<vmem>>, vector<1x16x5xf32>
    %66 = vector.shape_cast %65 : vector<1x16x5xf32> to vector<16x5xf32>
    %cst_39 = arith.constant dense<0.000000e+00> : vector<16x2048xf32>
    %67 = tpu.matmul %66, %64, %cst_39 {dimension_numbers = #tpu.dot_dimension_numbers<[1], [0], [0], [1], [0, 0, 1, 1], [], []>} : vector<16x5xf32>, vector<5x2048xf32>, vector<16x2048xf32> -> vector<16x2048xf32>
    %68 = arith.addf %61, %67 : vector<16x2048xf32>
    %c0_40 = arith.constant 0 : index
    %c0_41 = arith.constant 0 : index
    %c0_42 = arith.constant 0 : index
    %c66 = arith.constant 66 : index
    %69 = vector.load %arg4[%c0_40, %c0_41, %c0_42, %c66] : memref<1x1x5x2178xbf16, #tpu.memory_space<vmem>>, vector<1x1x5x2048xbf16>
    %70 = vector.shape_cast %69 : vector<1x1x5x2048xbf16> to vector<5x2048xbf16>
    %71 = arith.extf %70 : vector<5x2048xbf16> to vector<5x2048xf32>
    %cst_43 = arith.constant 0.000000e+00 : f32
    %72 = vector.shape_cast %20 : vector<1x2048xi1> to vector<1x2048xi1>
    %73 = vector.broadcast %72 : vector<1x2048xi1> to vector<5x2048xi1>
    %74 = vector.broadcast %cst_43 : f32 to vector<5x2048xf32>
    %75 = arith.select %73, %71, %74 : vector<5x2048xi1>, vector<5x2048xf32>
    %c5 = arith.constant 5 : index
    %c0_44 = arith.constant 0 : index
    %c0_45 = arith.constant 0 : index
    %76 = vector.load %arg2[%c5, %c0_44, %c0_45] : memref<9x16x5xf32, #tpu.memory_space<vmem>>, vector<1x16x5xf32>
    %77 = vector.shape_cast %76 : vector<1x16x5xf32> to vector<16x5xf32>
    %cst_46 = arith.constant dense<0.000000e+00> : vector<16x2048xf32>
    %78 = tpu.matmul %77, %75, %cst_46 {dimension_numbers = #tpu.dot_dimension_numbers<[1], [0], [0], [1], [0, 0, 1, 1], [], []>} : vector<16x5xf32>, vector<5x2048xf32>, vector<16x2048xf32> -> vector<16x2048xf32>
    %79 = arith.addf %68, %78 : vector<16x2048xf32>
    %c0_47 = arith.constant 0 : index
    %c0_48 = arith.constant 0 : index
    %c0_49 = arith.constant 0 : index
    %c128 = arith.constant 128 : index
    %80 = vector.load %arg4[%c0_47, %c0_48, %c0_49, %c128] : memref<1x1x5x2178xbf16, #tpu.memory_space<vmem>>, vector<1x1x5x2048xbf16>
    %81 = vector.shape_cast %80 : vector<1x1x5x2048xbf16> to vector<5x2048xbf16>
    %82 = arith.extf %81 : vector<5x2048xbf16> to vector<5x2048xf32>
    %cst_50 = arith.constant 0.000000e+00 : f32
    %83 = vector.shape_cast %18 : vector<1x2048xi1> to vector<1x2048xi1>
    %84 = vector.broadcast %83 : vector<1x2048xi1> to vector<5x2048xi1>
    %85 = vector.broadcast %cst_50 : f32 to vector<5x2048xf32>
    %86 = arith.select %84, %82, %85 : vector<5x2048xi1>, vector<5x2048xf32>
    %c6 = arith.constant 6 : index
    %c0_51 = arith.constant 0 : index
    %c0_52 = arith.constant 0 : index
    %87 = vector.load %arg2[%c6, %c0_51, %c0_52] : memref<9x16x5xf32, #tpu.memory_space<vmem>>, vector<1x16x5xf32>
    %88 = vector.shape_cast %87 : vector<1x16x5xf32> to vector<16x5xf32>
    %cst_53 = arith.constant dense<0.000000e+00> : vector<16x2048xf32>
    %89 = tpu.matmul %88, %86, %cst_53 {dimension_numbers = #tpu.dot_dimension_numbers<[1], [0], [0], [1], [0, 0, 1, 1], [], []>} : vector<16x5xf32>, vector<5x2048xf32>, vector<16x2048xf32> -> vector<16x2048xf32>
    %90 = arith.addf %79, %89 : vector<16x2048xf32>
    %c0_54 = arith.constant 0 : index
    %c0_55 = arith.constant 0 : index
    %c0_56 = arith.constant 0 : index
    %c129 = arith.constant 129 : index
    %91 = vector.load %arg4[%c0_54, %c0_55, %c0_56, %c129] : memref<1x1x5x2178xbf16, #tpu.memory_space<vmem>>, vector<1x1x5x2048xbf16>
    %92 = vector.shape_cast %91 : vector<1x1x5x2048xbf16> to vector<5x2048xbf16>
    %93 = arith.extf %92 : vector<5x2048xbf16> to vector<5x2048xf32>
    %c7 = arith.constant 7 : index
    %c0_57 = arith.constant 0 : index
    %c0_58 = arith.constant 0 : index
    %94 = vector.load %arg2[%c7, %c0_57, %c0_58] : memref<9x16x5xf32, #tpu.memory_space<vmem>>, vector<1x16x5xf32>
    %95 = vector.shape_cast %94 : vector<1x16x5xf32> to vector<16x5xf32>
    %cst_59 = arith.constant dense<0.000000e+00> : vector<16x2048xf32>
    %96 = tpu.matmul %95, %93, %cst_59 {dimension_numbers = #tpu.dot_dimension_numbers<[1], [0], [0], [1], [0, 0, 1, 1], [], []>} : vector<16x5xf32>, vector<5x2048xf32>, vector<16x2048xf32> -> vector<16x2048xf32>
    %97 = arith.addf %90, %96 : vector<16x2048xf32>
    %c0_60 = arith.constant 0 : index
    %c0_61 = arith.constant 0 : index
    %c0_62 = arith.constant 0 : index
    %c130 = arith.constant 130 : index
    %98 = vector.load %arg4[%c0_60, %c0_61, %c0_62, %c130] : memref<1x1x5x2178xbf16, #tpu.memory_space<vmem>>, vector<1x1x5x2048xbf16>
    %99 = vector.shape_cast %98 : vector<1x1x5x2048xbf16> to vector<5x2048xbf16>
    %100 = arith.extf %99 : vector<5x2048xbf16> to vector<5x2048xf32>
    %cst_63 = arith.constant 0.000000e+00 : f32
    %101 = vector.shape_cast %20 : vector<1x2048xi1> to vector<1x2048xi1>
    %102 = vector.broadcast %101 : vector<1x2048xi1> to vector<5x2048xi1>
    %103 = vector.broadcast %cst_63 : f32 to vector<5x2048xf32>
    %104 = arith.select %102, %100, %103 : vector<5x2048xi1>, vector<5x2048xf32>
    %c8 = arith.constant 8 : index
    %c0_64 = arith.constant 0 : index
    %c0_65 = arith.constant 0 : index
    %105 = vector.load %arg2[%c8, %c0_64, %c0_65] : memref<9x16x5xf32, #tpu.memory_space<vmem>>, vector<1x16x5xf32>
    %106 = vector.shape_cast %105 : vector<1x16x5xf32> to vector<16x5xf32>
    %cst_66 = arith.constant dense<0.000000e+00> : vector<16x2048xf32>
    %107 = tpu.matmul %106, %104, %cst_66 {dimension_numbers = #tpu.dot_dimension_numbers<[1], [0], [0], [1], [0, 0, 1, 1], [], []>} : vector<16x5xf32>, vector<5x2048xf32>, vector<16x2048xf32> -> vector<16x2048xf32>
    %108 = arith.addf %97, %107 : vector<16x2048xf32>
    %c0_67 = arith.constant 0 : index
    %c0_68 = arith.constant 0 : index
    %109 = vector.load %arg3[%c0_67, %c0_68] : memref<16x1xf32, #tpu.memory_space<vmem>>, vector<16x1xf32>
    %110 = vector.broadcast %109 : vector<16x1xf32> to vector<16x2048xf32>
    %111 = arith.addf %108, %110 : vector<16x2048xf32>
    %cst_69 = arith.constant 2.000000e-01 : f32
    %112 = vector.broadcast %cst_69 : f32 to vector<16x2048xf32>
    %113 = arith.mulf %112, %111 : vector<16x2048xf32>
    %114 = arith.maximumf %111, %113 : vector<16x2048xf32>
    %115 = arith.truncf %114 : vector<16x2048xf32> to vector<16x2048xbf16>
    %c0_70 = arith.constant 0 : index
    %c0_71 = arith.constant 0 : index
    %c0_72 = arith.constant 0 : index
    %116 = vector.load %arg5[%c0_70, %c0_71, %c0_72] : memref<1x16x2048xbf16, #tpu.memory_space<vmem>>, vector<1x16x2048xbf16>
    %117 = vector.shape_cast %116 : vector<1x16x2048xbf16> to vector<16x2048xbf16>
    %118 = vector.shape_cast %115 : vector<16x2048xbf16> to vector<1x16x2048xbf16>
    tpu.vector_store %arg5[%c0_70, %c0_71, %c0_72], %118 {strides = array<i32>} : memref<1x16x2048xbf16, #tpu.memory_space<vmem>>, vector<1x16x2048xbf16>,
    return
  }
  func.func @transform_0(%arg0: i32, %arg1: i32) -> (i32, i32, i32) {
    %c0_i32 = arith.constant 0 : i32
    %c0_i32_0 = arith.constant 0 : i32
    %c0_i32_1 = arith.constant 0 : i32
    %c0_i32_2 = arith.constant 0 : i32
    return %c0_i32, %c0_i32_0, %c0_i32_1 : i32, i32, i32
  }
  func.func @transform_1(%arg0: i32, %arg1: i32) -> (i32, i32) {
    %c0_i32 = arith.constant 0 : i32
    %c0_i32_0 = arith.constant 0 : i32
    %c0_i32_1 = arith.constant 0 : i32
    return %c0_i32, %c0_i32_0 : i32, i32
  }
  func.func @transform_2(%arg0: i32, %arg1: i32) -> (i32, i32, i32, i32) {
    %c0_i32 = arith.constant 0 : i32
    %c0_i32_0 = arith.constant 0 : i32
    %c0_i32_1 = arith.constant 0 : i32
    return %arg0, %arg1, %c0_i32, %c0_i32_0 : i32, i32, i32, i32
  }
  func.func @transform_3(%arg0: i32, %arg1: i32) -> (i32, i32, i32) {
    %c0_i32 = arith.constant 0 : i32
    %c0_i32_0 = arith.constant 0 : i32
    return %arg0, %c0_i32, %arg1 : i32, i32, i32
  }
}

</mosaic_0001>

<llo_original>
// kernel: tpu_custom_call.1
$region0: #{tpu_custom_call.1}
  #allocation0 [shape = 'u32[]', space=smem, size = 0x4, offset = 0x4, fixed_abs, tag = 'smem constant byte address 0x4 - core index']
  #allocation1 [shape = 'u32[144,128]{1,0:T(1,128)}', space=vmem, size = 0x12000, scoped, tag = 'internal scratch']
  %s0 = inlined_call_operand.vmem [shape: f32[9,16,5], index: 0, kind: input, shape index: {}]
  %s1 = inlined_call_operand.vmem [shape: f32[16,1], index: 1, kind: input, shape index: {}]
  %s2 = inlined_call_operand.vmem [shape: bf16[2,2,5,2178], index: 2, kind: input, shape index: {}]
  %s3 = inlined_call_operand.hbm [shape: bf16[2,16,4096], index: 3, kind: output, shape index: {}]
  %s4 = sld [smem:[#allocation0]]
  $region45: #{tpu_custom_call.1} parent=0
    _
  %s6 = ssub.s32 1, %s4
  %s7 = scalar_select 0, %s6, %s4
  $region1: #{tpu_custom_call.1} parent=0
    #allocation2 [shape = 'u8[131072]{0}', space=vmem, size = 0x20000, scoped, tag = 'output window, operand 0']
    #allocation3 [shape = 's32[2]{0}', space=sflag, size = 0x8, scoped, tag = 'scoped memory for tpu_custom_call.1']
    %8 = vsyncpa [#allocation3], 0
    %s9 = scalar_lea.sflag [#allocation3], 1
    %10 = vsyncpa %s9, 0
    loop: start=0, step=1, limit=6
    $region2: #{tpu_custom_call.1} parent=1 // loop_pre_header
      _
    $region3: #{tpu_custom_call.1} parent=1 // loop_header
      %s12 = sphi 0, %s16
      %p13 = scmp.ge.s32.totalorder %s12, 6
      %s19 = sphi 0, %s31
      %s20 = sphi 0, %s27
      %s21 = sphi 0, %s19
      %s22 = sphi 0, %s20
      %s23 = sphi 0, %s21
      %s24 = sphi 0, %s22
      %s32 = sphi 0, %s32
      %s34 = sphi 0, %s32
      %s35 = sphi 0, %s34
      %s49 = sphi 0, %s35
      %s53 = sphi 0, %s53
      %s55 = sphi 0, %s53
      %s56 = sphi 0, %s55
      %s70 = sphi 0, %s56
      %s78 = sphi 0, %s80
      %s81 = sphi 0, %s78
      %s82 = sphi 0, %s81
      %s98 = sphi 0, %s82
      %s106 = sphi 0, %s108
      %s109 = sphi 0, %s106
      %s110 = sphi 0, %s109
      %s126 = sphi 0, %s110
    $region4: #{tpu_custom_call.1} parent=1 // loop_header_branch
      %15 = sbr.rel (%p13) target = $region8
    $region5: #{tpu_custom_call.1} parent=1 // loop_body
      %s17 = ssub.s32 %s12, 1
      %s18 = ssub.s32 %s12, 2
      %s25 = sadd.s32 1, %s20
      %p26 = scmp.ge.s32.totalorder %s25, 2
      %s27 = scalar_select %p26, 0, %s25
      %s28 = sadd.s32 1, %s19
      %s29 = scalar_select %p26, %s28, %s19
      %p30 = scmp.ge.s32.totalorder %s29, 2
      %s31 = scalar_select %p30, 0, %s29
      %s33 = sadd.s32 %s32, 1
      %p36 = scmp.eq.s32.totalorder %s12, 3
      %p37 = scmp.ne.s32.totalorder %s32, %s34
      %p38 = scmp.eq.s32.totalorder %s12, 0
      %p39 = por %p37, %p38
      %p40 = scmp.ne.s32.totalorder %s32, %s34
      %p41 = scmp.eq.s32.totalorder %s17, 3
      %p42 = por %p40, %p41
      %p43 = scmp.ne.s32.totalorder %s34, %s35
      %p44 = scmp.eq.s32.totalorder %s17, 0
      %p45 = por %p43, %p44
      %p46 = scmp.ne.s32.totalorder %s34, %s35
      %p47 = scmp.eq.s32.totalorder %s18, 3
      %p48 = por %p46, %p47
      %p50 = scmp.ne.s32.totalorder %s35, %s49
      %p51 = scmp.eq.s32.totalorder %s18, 0
      %p52 = por %p50, %p51
      %s54 = sadd.s32 %s53, 1
      %p57 = scmp.eq.s32.totalorder %s12, 3
      %p58 = scmp.ne.s32.totalorder %s53, %s55
      %p59 = scmp.eq.s32.totalorder %s12, 0
      %p60 = por %p58, %p59
      %p61 = scmp.ne.s32.totalorder %s53, %s55
      %p62 = scmp.eq.s32.totalorder %s17, 3
      %p63 = por %p61, %p62
      %p64 = scmp.ne.s32.totalorder %s55, %s56
      %p65 = scmp.eq.s32.totalorder %s17, 0
      %p66 = por %p64, %p65
      %p67 = scmp.ne.s32.totalorder %s55, %s56
      %p68 = scmp.eq.s32.totalorder %s18, 3
      %p69 = por %p67, %p68
      %p71 = scmp.ne.s32.totalorder %s56, %s70
      %p72 = scmp.eq.s32.totalorder %s18, 0
      %p73 = por %p71, %p72
      %s74 = ssub.s32 %s19, %s31
      %s75 = ssub.s32 %s20, %s27
      %s76 = sor.u32 %s74, %s75
      %p77 = scmp.eq.s32.totalorder %s76, 0
      %s79 = sadd.s32 %s78, 1
      %s80 = scalar_select %p77, %s78, %s79
      %p83 = pneg %p77
      %p84 = scmp.eq.s32.totalorder %s12, 3
      %p85 = por %p83, %p84
      %p86 = scmp.ne.s32.totalorder %s78, %s81
      %p87 = scmp.eq.s32.totalorder %s12, 0
      %p88 = por %p86, %p87
      %p89 = scmp.ne.s32.totalorder %s78, %s81
      %p90 = scmp.eq.s32.totalorder %s17, 3
      %p91 = por %p89, %p90
      %p92 = scmp.ne.s32.totalorder %s81, %s82
      %p93 = scmp.eq.s32.totalorder %s17, 0
      %p94 = por %p92, %p93
      %p95 = scmp.ne.s32.totalorder %s81, %s82
      %p96 = scmp.eq.s32.totalorder %s18, 3
      %p97 = por %p95, %p96
      %p99 = scmp.ne.s32.totalorder %s82, %s98
      %p100 = scmp.eq.s32.totalorder %s18, 0
      %p101 = por %p99, %p100
      %s102 = ssub.s32 %s19, %s31
      %s103 = ssub.s32 %s20, %s27
      %s104 = sor.u32 %s102, %s103
      %p105 = scmp.eq.s32.totalorder %s104, 0
      %s107 = sadd.s32 %s106, 1
      %s108 = scalar_select %p105, %s106, %s107
      %p111 = pneg %p105
      %p112 = scmp.eq.s32.totalorder %s12, 3
      %p113 = por %p111, %p112
      %p114 = scmp.ne.s32.totalorder %s106, %s109
      %p115 = scmp.eq.s32.totalorder %s12, 0
      %p116 = por %p114, %p115
      %p117 = scmp.ne.s32.totalorder %s106, %s109
      %p118 = scmp.eq.s32.totalorder %s17, 3
      %p119 = por %p117, %p118
      %p120 = scmp.ne.s32.totalorder %s109, %s110
      %p121 = scmp.eq.s32.totalorder %s17, 0
      %p122 = por %p120, %p121
      %p123 = scmp.ne.s32.totalorder %s109, %s110
      %p124 = scmp.eq.s32.totalorder %s18, 3
      %p125 = por %p123, %p124
      %p127 = scmp.ne.s32.totalorder %s110, %s126
      %p128 = scmp.eq.s32.totalorder %s18, 0
      %p129 = por %p127, %p128
      %p130 = scmp.le.s32.totalorder 1, %s12
      %p131 = scmp.lt.s32.totalorder %s12, 5
      %p132 = pnand %p130, %p131
      %p133 = pneg %p132
      // Predicated region
      $region9: #{tpu_custom_call.1} parent=5 // pred_check
        _
      $region10: #{tpu_custom_call.1} parent=5 // pred_check_branch
        %135 = sbr.rel (%p132) target = $region12
      $region11: #{tpu_custom_call.1} parent=5 // pred_region
        %s136 = ssub.s32 %s12, 1
        // Predicated region
        $region13: #{tpu_custom_call.1} parent=11 // pred_check
          %p137 = pneg %p45
        $region14: #{tpu_custom_call.1} parent=11 // pred_check_branch
          %139 = sbr.rel (%p137) target = $region16
        $region15: #{tpu_custom_call.1} parent=11 // pred_region
          _
        $region16: #{tpu_custom_call.1} parent=11 // pred_fallthru
          _
        // Predicated region
        $region17: #{tpu_custom_call.1} parent=11 // pred_check
          %p140 = pneg %p66
        $region18: #{tpu_custom_call.1} parent=11 // pred_check_branch
          %142 = sbr.rel (%p140) target = $region20
        $region19: #{tpu_custom_call.1} parent=11 // pred_region
          _
        $region20: #{tpu_custom_call.1} parent=11 // pred_fallthru
          _
      $region12: #{tpu_custom_call.1} parent=5 // pred_fallthru
        _
      %p143 = scmp.lt.s32.totalorder %s12, 4
      // Predicated region
      $region21: #{tpu_custom_call.1} parent=5 // pred_check
        %p144 = pneg %p143
      $region22: #{tpu_custom_call.1} parent=5 // pred_check_branch
        %146 = sbr.rel (%p144) target = $region24
      $region23: #{tpu_custom_call.1} parent=5 // pred_region
        // Predicated region
        $region25: #{tpu_custom_call.1} parent=23 // pred_check
          %p147 = pneg %p88
        $region26: #{tpu_custom_call.1} parent=23 // pred_check_branch
          %149 = sbr.rel (%p147) target = $region28
        $region27: #{tpu_custom_call.1} parent=23 // pred_region
          %p150 = scmp.lt.s32.totalorder %s19, 1
          %s151 = scalar_select %p150, %s19, 1
          %p152 = scmp.lt.s32.totalorder %s20, 1
          %s153 = scalar_select %p152, %s20, 1
          %s154 = smul.addr %s153, 18
          %s155 = smul.addr %s151, 36
          %s156 = sadd.s32 %s154, %s155
          %s157 = smul.addr %s156, 4
          %s158 = scalar_lea.vmem %s2, %s157
        $region28: #{tpu_custom_call.1} parent=23 // pred_fallthru
          _
      $region24: #{tpu_custom_call.1} parent=5 // pred_fallthru
        _
      %p159 = scmp.le.s32.totalorder 1, %s12
      %p160 = scmp.lt.s32.totalorder %s12, 5
      %p161 = pnand %p159, %p160
      %p162 = pneg %p161
      // Predicated region
      $region29: #{tpu_custom_call.1} parent=5 // pred_check
        _
      $region30: #{tpu_custom_call.1} parent=5 // pred_check_branch
        %164 = sbr.rel (%p161) target = $region32
      $region31: #{tpu_custom_call.1} parent=5 // pred_region
        %s165 = ssub.s32 %s12, 1
        %p166 = pneg %p45
        %p167 = pneg %p42
        %p168 = pneg %p66
        %p169 = pneg %p63
        %p170 = scmp.lt.s32.totalorder %s21, 1
        %s171 = scalar_select %p170, %s21, 1
        %p172 = scmp.lt.s32.totalorder %s22, 1
        %s173 = scalar_select %p172, %s22, 1
        %s174 = smul.addr %s173, 18
        %s175 = smul.addr %s171, 36
        %s176 = sadd.s32 %s174, %s175
        %s177 = smul.addr %s176, 4
        %s178 = scalar_lea.vmem %s2, %s177
        %p179 = pneg %p94
        %p180 = pneg %p91
        %p181 = pneg %p122
        %p182 = pneg %p119
        %s183 = sand.u32 %s109, 1
        %s184 = scalar_lea.sflag [#allocation3], %s183
        %s185 = sand.u32 %s109, 1
        %s186 = smul.addr %s185, 128
        %s187 = scalar_lea.vmem [#allocation2], %s186
        %p188 = scmp.lt.s32.totalorder %s21, 1
        %s189 = scalar_select %p188, %s21, 1
        %p190 = scmp.lt.s32.totalorder %s22, 1
        %s191 = scalar_select %p190, %s22, 1
        %s192 = smul.addr %s191, 18
        %s193 = smul.addr %s189, 36
        %s194 = sadd.s32 %s192, %s193
        %s195 = smul.addr %s194, 4
        %s196 = scalar_lea.vmem %s2, %s195
        %s197 = smul.u32 16, %s22
        %v198 = vlaneseq
        %v199 = vand.u32 %v198, 127
        %v200 = vadd.s32 %v199, 128
        %v201 = vadd.s32 %v199, 256
        %v202 = vadd.s32 %v199, 384
        %v203 = vadd.s32 %v199, 512
        %v204 = vadd.s32 %v199, 640
        %v205 = vadd.s32 %v199, 768
        %v206 = vadd.s32 %v199, 896
        %v207 = vadd.s32 %v199, 1024
        %v208 = vadd.s32 %v199, 1152
        %v209 = vadd.s32 %v199, 1280
        %v210 = vadd.s32 %v199, 1408
        %v211 = vadd.s32 %v199, 1536
        %v212 = vadd.s32 %v199, 1664
        %v213 = vadd.s32 %v199, 1792
        %v214 = vadd.s32 %v199, 1920
        %vm215 = vcmp.lt.s32.totalorder %v199, 0
        %v216 = vsub.s32 0, %v199
        %v217 = vsel %vm215, %v216, %v199
        %v218 = vshrl.u32 %v217, 6
        %v219 = vand.u32 %v217, 63
        %v220 = vsub.s32 0, %v219
        %v221 = vsel %vm215, %v220, %v219
        %vm222 = vcmp.lt.s32.totalorder %v200, 0
        %v223 = vsub.s32 0, %v200
        %v224 = vsel %vm222, %v223, %v200
        %v225 = vshrl.u32 %v224, 6
        %v226 = vand.u32 %v224, 63
        %v227 = vsub.s32 0, %v226
        %v228 = vsel %vm222, %v227, %v226
        %vm229 = vcmp.lt.s32.totalorder %v201, 0
        %v230 = vsub.s32 0, %v201
        %v231 = vsel %vm229, %v230, %v201
        %v232 = vshrl.u32 %v231, 6
        %v233 = vand.u32 %v231, 63
        %v234 = vsub.s32 0, %v233
        %v235 = vsel %vm229, %v234, %v233
        %vm236 = vcmp.lt.s32.totalorder %v202, 0
        %v237 = vsub.s32 0, %v202
        %v238 = vsel %vm236, %v237, %v202
        %v239 = vshrl.u32 %v238, 6
        %v240 = vand.u32 %v238, 63
        %v241 = vsub.s32 0, %v240
        %v242 = vsel %vm236, %v241, %v240
        %vm243 = vcmp.lt.s32.totalorder %v203, 0
        %v244 = vsub.s32 0, %v203
        %v245 = vsel %vm243, %v244, %v203
        %v246 = vshrl.u32 %v245, 6
        %v247 = vand.u32 %v245, 63
        %v248 = vsub.s32 0, %v247
        %v249 = vsel %vm243, %v248, %v247
        %vm250 = vcmp.lt.s32.totalorder %v204, 0
        %v251 = vsub.s32 0, %v204
        %v252 = vsel %vm250, %v251, %v204
        %v253 = vshrl.u32 %v252, 6
        %v254 = vand.u32 %v252, 63
        %v255 = vsub.s32 0, %v254
        %v256 = vsel %vm250, %v255, %v254
        %vm257 = vcmp.lt.s32.totalorder %v205, 0
        %v258 = vsub.s32 0, %v205
        %v259 = vsel %vm257, %v258, %v205
        %v260 = vshrl.u32 %v259, 6
        %v261 = vand.u32 %v259, 63
        %v262 = vsub.s32 0, %v261
        %v263 = vsel %vm257, %v262, %v261
        %vm264 = vcmp.lt.s32.totalorder %v206, 0
        %v265 = vsub.s32 0, %v206
        %v266 = vsel %vm264, %v265, %v206
        %v267 = vshrl.u32 %v266, 6
        %v268 = vand.u32 %v266, 63
        %v269 = vsub.s32 0, %v268
        %v270 = vsel %vm264, %v269, %v268
        %vm271 = vcmp.lt.s32.totalorder %v207, 0
        %v272 = vsub.s32 0, %v207
        %v273 = vsel %vm271, %v272, %v207
        %v274 = vshrl.u32 %v273, 6
        %v275 = vand.u32 %v273, 63
        %v276 = vsub.s32 0, %v275
        %v277 = vsel %vm271, %v276, %v275
        %vm278 = vcmp.lt.s32.totalorder %v208, 0
        %v279 = vsub.s32 0, %v208
        %v280 = vsel %vm278, %v279, %v208
        %v281 = vshrl.u32 %v280, 6
        %v282 = vand.u32 %v280, 63
        %v283 = vsub.s32 0, %v282
        %v284 = vsel %vm278, %v283, %v282
        %vm285 = vcmp.lt.s32.totalorder %v209, 0
        %v286 = vsub.s32 0, %v209
        %v287 = vsel %vm285, %v286, %v209
        %v288 = vshrl.u32 %v287, 6
        %v289 = vand.u32 %v287, 63
        %v290 = vsub.s32 0, %v289
        %v291 = vsel %vm285, %v290, %v289
        %vm292 = vcmp.lt.s32.totalorder %v210, 0
        %v293 = vsub.s32 0, %v210
        %v294 = vsel %vm292, %v293, %v210
        %v295 = vshrl.u32 %v294, 6
        %v296 = vand.u32 %v294, 63
        %v297 = vsub.s32 0, %v296
        %v298 = vsel %vm292, %v297, %v296
        %vm299 = vcmp.lt.s32.totalorder %v211, 0
        %v300 = vsub.s32 0, %v211
        %v301 = vsel %vm299, %v300, %v211
        %v302 = vshrl.u32 %v301, 6
        %v303 = vand.u32 %v301, 63
        %v304 = vsub.s32 0, %v303
        %v305 = vsel %vm299, %v304, %v303
        %vm306 = vcmp.lt.s32.totalorder %v212, 0
        %v307 = vsub.s32 0, %v212
        %v308 = vsel %vm306, %v307, %v212
        %v309 = vshrl.u32 %v308, 6
        %v310 = vand.u32 %v308, 63
        %v311 = vsub.s32 0, %v310
        %v312 = vsel %vm306, %v311, %v310
        %vm313 = vcmp.lt.s32.totalorder %v213, 0
        %v314 = vsub.s32 0, %v213
        %v315 = vsel %vm313, %v314, %v213
        %v316 = vshrl.u32 %v315, 6
        %v317 = vand.u32 %v315, 63
        %v318 = vsub.s32 0, %v317
        %v319 = vsel %vm313, %v318, %v317
        %vm320 = vcmp.lt.s32.totalorder %v214, 0
        %v321 = vsub.s32 0, %v214
        %v322 = vsel %vm320, %v321, %v214
        %v323 = vshrl.u32 %v322, 6
        %v324 = vand.u32 %v322, 63
        %v325 = vsub.s32 0, %v324
        %v326 = vsel %vm320, %v325, %v324
        %vm327 = vcmp.ne.s32.totalorder %v221, 0
        %vm328 = vcmp.ne.s32.totalorder %v228, 0
        %vm329 = vcmp.ne.s32.totalorder %v235, 0
        %vm330 = vcmp.ne.s32.totalorder %v242, 0
        %vm331 = vcmp.ne.s32.totalorder %v249, 0
        %vm332 = vcmp.ne.s32.totalorder %v256, 0
        %vm333 = vcmp.ne.s32.totalorder %v263, 0
        %vm334 = vcmp.ne.s32.totalorder %v270, 0
        %vm335 = vcmp.ne.s32.totalorder %v277, 0
        %vm336 = vcmp.ne.s32.totalorder %v284, 0
        %vm337 = vcmp.ne.s32.totalorder %v291, 0
        %vm338 = vcmp.ne.s32.totalorder %v298, 0
        %vm339 = vcmp.ne.s32.totalorder %v305, 0
        %vm340 = vcmp.ne.s32.totalorder %v312, 0
        %vm341 = vcmp.ne.s32.totalorder %v319, 0
        %vm342 = vcmp.ne.s32.totalorder %v326, 0
        %vm343 = vcmp.lt.s32.totalorder %v221, 0
        %vm344 = vcmp.lt.s32.totalorder %v228, 0
        %vm345 = vcmp.lt.s32.totalorder %v235, 0
        %vm346 = vcmp.lt.s32.totalorder %v242, 0
        %vm347 = vcmp.lt.s32.totalorder %v249, 0
        %vm348 = vcmp.lt.s32.totalorder %v256, 0
        %vm349 = vcmp.lt.s32.totalorder %v263, 0
        %vm350 = vcmp.lt.s32.totalorder %v270, 0
        %vm351 = vcmp.lt.s32.totalorder %v277, 0
        %vm352 = vcmp.lt.s32.totalorder %v284, 0
        %vm353 = vcmp.lt.s32.totalorder %v291, 0
        %vm354 = vcmp.lt.s32.totalorder %v298, 0
        %vm355 = vcmp.lt.s32.totalorder %v305, 0
        %vm356 = vcmp.lt.s32.totalorder %v312, 0
        %vm357 = vcmp.lt.s32.totalorder %v319, 0
        %vm358 = vcmp.lt.s32.totalorder %v326, 0
        %vm359 = vmand %vm343, %vm327
        %vm360 = vmand %vm344, %vm328
        %vm361 = vmand %vm345, %vm329
        %vm362 = vmand %vm346, %vm330
        %vm363 = vmand %vm347, %vm331
        %vm364 = vmand %vm348, %vm332
        %vm365 = vmand %vm349, %vm333
        %vm366 = vmand %vm350, %vm334
        %vm367 = vmand %vm351, %vm335
        %vm368 = vmand %vm352, %vm336
        %vm369 = vmand %vm353, %vm337
        %vm370 = vmand %vm354, %vm338
        %vm371 = vmand %vm355, %vm339
        %vm372 = vmand %vm356, %vm340
        %vm373 = vmand %vm357, %vm341
        %vm374 = vmand %vm358, %vm342
        %v375 = vadd.s32 %v221, 64
        %v376 = vadd.s32 %v228, 64
        %v377 = vadd.s32 %v235, 64
        %v378 = vadd.s32 %v242, 64
        %v379 = vadd.s32 %v249, 64
        %v380 = vadd.s32 %v256, 64
        %v381 = vadd.s32 %v263, 64
        %v382 = vadd.s32 %v270, 64
        %v383 = vadd.s32 %v277, 64
        %v384 = vadd.s32 %v284, 64
        %v385 = vadd.s32 %v291, 64
        %v386 = vadd.s32 %v298, 64
        %v387 = vadd.s32 %v305, 64
        %v388 = vadd.s32 %v312, 64
        %v389 = vadd.s32 %v319, 64
        %v390 = vadd.s32 %v326, 64
        %v391 = vsel %vm359, %v375, %v221
        %v392 = vsel %vm360, %v376, %v228
        %v393 = vsel %vm361, %v377, %v235
        %v394 = vsel %vm362, %v378, %v242
        %v395 = vsel %vm363, %v379, %v249
        %v396 = vsel %vm364, %v380, %v256
        %v397 = vsel %vm365, %v381, %v263
        %v398 = vsel %vm366, %v382, %v270
        %v399 = vsel %vm367, %v383, %v277
        %v400 = vsel %vm368, %v384, %v284
        %v401 = vsel %vm369, %v385, %v291
        %v402 = vsel %vm370, %v386, %v298
        %v403 = vsel %vm371, %v387, %v305
        %v404 = vsel %vm372, %v388, %v312
        %v405 = vsel %vm373, %v389, %v319
        %v406 = vsel %vm374, %v390, %v326
        %vm407 = vcmp.ne.s32.totalorder %v391, 0
        %vm408 = vcmp.ne.s32.totalorder %v392, 0
        %vm409 = vcmp.ne.s32.totalorder %v393, 0
        %vm410 = vcmp.ne.s32.totalorder %v394, 0
        %vm411 = vcmp.ne.s32.totalorder %v395, 0
        %vm412 = vcmp.ne.s32.totalorder %v396, 0
        %vm413 = vcmp.ne.s32.totalorder %v397, 0
        %vm414 = vcmp.ne.s32.totalorder %v398, 0
        %vm415 = vcmp.ne.s32.totalorder %v399, 0
        %vm416 = vcmp.ne.s32.totalorder %v400, 0
        %vm417 = vcmp.ne.s32.totalorder %v401, 0
        %vm418 = vcmp.ne.s32.totalorder %v402, 0
        %vm419 = vcmp.ne.s32.totalorder %v403, 0
        %vm420 = vcmp.ne.s32.totalorder %v404, 0
        %vm421 = vcmp.ne.s32.totalorder %v405, 0
        %vm422 = vcmp.ne.s32.totalorder %v406, 0
        %vm423 = vcmp.ne.s32.totalorder %v391, 63
        %vm424 = vcmp.ne.s32.totalorder %v392, 63
        %vm425 = vcmp.ne.s32.totalorder %v393, 63
        %vm426 = vcmp.ne.s32.totalorder %v394, 63
        %vm427 = vcmp.ne.s32.totalorder %v395, 63
        %vm428 = vcmp.ne.s32.totalorder %v396, 63
        %vm429 = vcmp.ne.s32.totalorder %v397, 63
        %vm430 = vcmp.ne.s32.totalorder %v398, 63
        %vm431 = vcmp.ne.s32.totalorder %v399, 63
        %vm432 = vcmp.ne.s32.totalorder %v400, 63
        %vm433 = vcmp.ne.s32.totalorder %v401, 63
        %vm434 = vcmp.ne.s32.totalorder %v402, 63
        %vm435 = vcmp.ne.s32.totalorder %v403, 63
        %vm436 = vcmp.ne.s32.totalorder %v404, 63
        %vm437 = vcmp.ne.s32.totalorder %v405, 63
        %vm438 = vcmp.ne.s32.totalorder %v406, 63
        %v439 = vld [vmem:[%s196] sm:$0x77]
        %v440 = vld [vmem:[%s196 + $0x8] sm:$0x77]
        %v441 = vld [vmem:[%s196 + $0x10] sm:$0x77]
        %v442 = vld [vmem:[%s196 + $0x18] sm:$0x77]
        %v443 = vld [vmem:[%s196 + $0x20] sm:$0x77]
        %v444 = vld [vmem:[%s196 + $0x28] sm:$0x77]
        %v445 = vld [vmem:[%s196 + $0x30] sm:$0x77]
        %v446 = vld [vmem:[%s196 + $0x38] sm:$0x77]
        %v447 = vunpack.c.l.bf16 %v439
        %v448 = vunpack.c.h.bf16 %v439
        %v449 = vunpack.c.l.bf16 %v440
        %v450 = vunpack.c.h.bf16 %v440
        %v451 = vunpack.c.l.bf16 %v441
        %v452 = vunpack.c.h.bf16 %v441
        %v453 = vunpack.c.l.bf16 %v442
        %v454 = vunpack.c.h.bf16 %v442
        %v455 = vunpack.c.l.bf16 %v443
        %v456 = vunpack.c.h.bf16 %v443
        %v457 = vunpack.c.l.bf16 %v444
        %v458 = vunpack.c.h.bf16 %v444
        %v459 = vunpack.c.l.bf16 %v445
        %v460 = vunpack.c.h.bf16 %v445
        %v461 = vunpack.c.l.bf16 %v446
        %v462 = vunpack.c.h.bf16 %v446
        %v463 = vsel %vm407, 1, 0
        %v464 = vsel %vm408, 1, 0
        %v465 = vsel %vm409, 1, 0
        %v466 = vsel %vm410, 1, 0
        %v467 = vsel %vm411, 1, 0
        %v468 = vsel %vm412, 1, 0
        %v469 = vsel %vm413, 1, 0
        %v470 = vsel %vm414, 1, 0
        %v471 = vsel %vm415, 1, 0
        %v472 = vsel %vm416, 1, 0
        %v473 = vsel %vm417, 1, 0
        %v474 = vsel %vm418, 1, 0
        %v475 = vsel %vm419, 1, 0
        %v476 = vsel %vm420, 1, 0
        %v477 = vsel %vm421, 1, 0
        %v478 = vsel %vm422, 1, 0
        %vm479 = vcmp.eq.s32.totalorder %v463, 1
        %vm480 = vcmp.eq.s32.totalorder %v464, 1
        %vm481 = vcmp.eq.s32.totalorder %v465, 1
        %vm482 = vcmp.eq.s32.totalorder %v466, 1
        %vm483 = vcmp.eq.s32.totalorder %v467, 1
        %vm484 = vcmp.eq.s32.totalorder %v468, 1
        %vm485 = vcmp.eq.s32.totalorder %v469, 1
        %vm486 = vcmp.eq.s32.totalorder %v470, 1
        %vm487 = vcmp.eq.s32.totalorder %v471, 1
        %vm488 = vcmp.eq.s32.totalorder %v472, 1
        %vm489 = vcmp.eq.s32.totalorder %v473, 1
        %vm490 = vcmp.eq.s32.totalorder %v474, 1
        %vm491 = vcmp.eq.s32.totalorder %v475, 1
        %vm492 = vcmp.eq.s32.totalorder %v476, 1
        %vm493 = vcmp.eq.s32.totalorder %v477, 1
        %vm494 = vcmp.eq.s32.totalorder %v478, 1
        %v495 = vsel %vm479, %v447, 0.0
        %v496 = vsel %vm480, %v448, 0.0
        %v497 = vsel %vm481, %v449, 0.0
        %v498 = vsel %vm482, %v450, 0.0
        %v499 = vsel %vm483, %v451, 0.0
        %v500 = vsel %vm484, %v452, 0.0
        %v501 = vsel %vm485, %v453, 0.0
        %v502 = vsel %vm486, %v454, 0.0
        %v503 = vsel %vm487, %v455, 0.0
        %v504 = vsel %vm488, %v456, 0.0
        %v505 = vsel %vm489, %v457, 0.0
        %v506 = vsel %vm490, %v458, 0.0
        %v507 = vsel %vm491, %v459, 0.0
        %v508 = vsel %vm492, %v460, 0.0
        %v509 = vsel %vm493, %v461, 0.0
        %v510 = vsel %vm494, %v462, 0.0
        %v511 = vld [vmem:[%s0] sm:$0xff]
        %v512 = vld [vmem:[%s0 + $0x8] sm:$0xff]
        %v513 = vld [vmem:[%s196 + $0x40] sm:$0x7]
        %v514 = vunpack.c.l.bf16 %v513
        %s515 = scalar_lea.vmem %s0, 16
        %v516 = vld [vmem:[%s515] sm:$0xff]
        %v517 = vld [vmem:[%s515 + $0x8] sm:$0xff]
        %535 = vrot.lane.b32.xlu0 %v447, 127
        %v536 = vpop.permute.xlu0 %535
        %537 = vrot.lane.b32.xlu0 %v448, 127
        %v538 = vpop.permute.xlu0 %537
        %539 = vrot.lane.b32.xlu0 %v449, 127
        %v540 = vpop.permute.xlu0 %539
        %541 = vrot.lane.b32.xlu0 %v450, 127
        %v542 = vpop.permute.xlu0 %541
        %543 = vrot.lane.b32.xlu0 %v451, 127
        %v544 = vpop.permute.xlu0 %543
        %545 = vrot.lane.b32.xlu0 %v452, 127
        %v546 = vpop.permute.xlu0 %545
        %547 = vrot.lane.b32.xlu0 %v453, 127
        %v548 = vpop.permute.xlu0 %547
        %549 = vrot.lane.b32.xlu0 %v454, 127
        %v550 = vpop.permute.xlu0 %549
        %551 = vrot.lane.b32.xlu0 %v455, 127
        %v552 = vpop.permute.xlu0 %551
        %553 = vrot.lane.b32.xlu0 %v456, 127
        %v554 = vpop.permute.xlu0 %553
        %555 = vrot.lane.b32.xlu0 %v457, 127
        %v556 = vpop.permute.xlu0 %555
        %557 = vrot.lane.b32.xlu0 %v458, 127
        %v558 = vpop.permute.xlu0 %557
        %559 = vrot.lane.b32.xlu0 %v459, 127
        %v560 = vpop.permute.xlu0 %559
        %561 = vrot.lane.b32.xlu0 %v460, 127
        %v562 = vpop.permute.xlu0 %561
        %563 = vrot.lane.b32.xlu0 %v461, 127
        %v564 = vpop.permute.xlu0 %563
        %565 = vrot.lane.b32.xlu0 %v462, 127
        %v566 = vpop.permute.xlu0 %565
        %567 = vrot.lane.b32.xlu0 %v514, 127
        %v568 = vpop.permute.xlu0 %567
        %vm569 = vcmask 1039360
        %v570 = vsel %vm569, %v536, %v538
        %v571 = vsel %vm569, %v538, %v540
        %v572 = vsel %vm569, %v540, %v542
        %v573 = vsel %vm569, %v542, %v544
        %v574 = vsel %vm569, %v544, %v546
        %v575 = vsel %vm569, %v546, %v548
        %v576 = vsel %vm569, %v548, %v550
        %v577 = vsel %vm569, %v550, %v552
        %v578 = vsel %vm569, %v552, %v554
        %v579 = vsel %vm569, %v554, %v556
        %v580 = vsel %vm569, %v556, %v558
        %v581 = vsel %vm569, %v558, %v560
        %v582 = vsel %vm569, %v560, %v562
        %v583 = vsel %vm569, %v562, %v564
        %v584 = vsel %vm569, %v564, %v566
        %v585 = vsel %vm569, %v566, %v568
        %vm586 = vcmask 39936
        %v588 = vsel %vm586, %v516, 0
        %v591 = vsel %vm586, %v517, 0
        %vm593 = vcmask 1044480
        %v594 = vsel %vm593, %v570, 0
        %v596 = vsel %vm593, %v571, 0
        %v598 = vsel %vm593, %v572, 0
        %v600 = vsel %vm593, %v573, 0
        %v602 = vsel %vm593, %v574, 0
        %v604 = vsel %vm593, %v575, 0
        %v606 = vsel %vm593, %v576, 0
        %v608 = vsel %vm593, %v577, 0
        %v610 = vsel %vm593, %v578, 0
        %v612 = vsel %vm593, %v579, 0
        %v614 = vsel %vm593, %v580, 0
        %v616 = vsel %vm593, %v581, 0
        %v618 = vsel %vm593, %v582, 0
        %v620 = vsel %vm593, %v583, 0
        %v622 = vsel %vm593, %v584, 0
        %v624 = vsel %vm593, %v585, 0
        %626 = vmatprep.subr.mxu0 %v596
        %627 = vmatpush1.msra.mxu0 %v594
        %628 = vmatprep.subr.mxu0 0.0
        %629 = vmatpush1.msra.mxu0 0.0
        %630 = vmatprep.subr.mxu0 0.0
        %631 = vmatpush1.msra.mxu0 0.0
        %632 = vmatprep.subr.mxu0 0.0
        %633 = vmatpush1.msra.mxu0 0.0
        %634 = vmatprep.subr.mxu0 0.0
        %635 = vmatpush1.msra.mxu0 0.0
        %636 = vmatprep.subr.mxu0 0.0
        %637 = vmatpush1.msra.mxu0 0.0
        %638 = vmatprep.subr.mxu0 0.0
        %639 = vmatpush1.msra.mxu0 0.0
        %640 = vmatprep.subr.mxu0 0.0
        %641 = vmatpush1.msra.mxu0 0.0
        %642 = vmatprep.subr.mxu0 0.0
        %643 = vmatpush1.msra.mxu0 0.0
        %644 = vmatprep.subr.mxu0 0.0
        %645 = vmatpush1.msra.mxu0 0.0
        %646 = vmatprep.subr.mxu0 0.0
        %647 = vmatpush1.msra.mxu0 0.0
        %648 = vmatprep.subr.mxu0 0.0
        %649 = vmatpush1.msra.mxu0 0.0
        %650 = vmatprep.subr.mxu0 0.0
        %651 = vmatpush1.msra.mxu0 0.0
        %652 = vmatprep.subr.mxu0 0.0
        %653 = vmatpush1.msra.mxu0 0.0
        %654 = vmatprep.subr.mxu0 0.0
        %655 = vmatpush1.msra.mxu0 0.0
        %656 = vmatprep.subr.mxu0 0.0
        %657 = vmatpush1.msra.mxu0 0.0
        %658 = vmatprep.subr.mxu0 0.0
        %659 = vmatpush1.msra.mxu0 0.0
        %660 = vmatprep.subr.mxu0 0.0
        %661 = vmatpush1.msra.mxu0 0.0
        %662 = vmatprep.subr.mxu0 0.0
        %663 = vmatpush1.msra.mxu0 0.0
        %664 = vmatprep.subr.mxu0 0.0
        %665 = vmatpush1.msra.mxu0 0.0
        %666 = vmatprep.subr.mxu0 0.0
        %667 = vmatpush1.msra.mxu0 0.0
        %668 = vmatprep.subr.mxu0 0.0
        %669 = vmatpush1.msra.mxu0 0.0
        %670 = vmatprep.subr.mxu0 0.0
        %671 = vmatpush1.msra.mxu0 0.0
        %672 = vmatprep.subr.mxu0 0.0
        %673 = vmatpush1.msra.mxu0 0.0
        %674 = vmatprep.subr.mxu0 0.0
        %675 = vmatpush1.msra.mxu0 0.0
        %676 = vmatprep.subr.mxu0 0.0
        %677 = vmatpush1.msra.mxu0 0.0
        %678 = vmatprep.subr.mxu0 0.0
        %679 = vmatpush1.msra.mxu0 0.0
        %680 = vmatprep.subr.mxu0 0.0
        %681 = vmatpush1.msra.mxu0 0.0
        %682 = vmatprep.subr.mxu0 0.0
        %683 = vmatpush1.msra.mxu0 0.0
        %684 = vmatprep.subr.mxu0 0.0
        %685 = vmatpush1.msra.mxu0 0.0
        %686 = vmatprep.subr.mxu0 0.0
        %687 = vmatpush1.msra.mxu0 0.0
        %688 = vmatprep.subr.mxu0 0.0
        %689 = vmatpush1.msra.mxu0 0.0
        %690 = vmatprep.mubr.f32.mxu0 0.0
        %691 = vmatmul.mubr.f32.gmra.mrb[0].mxu0 %v588
        %v692 = vpop.f32.mrb[0].mxu0
        %v693 = vadd.f32 0.0, %v692
        %v694 = vpop.f32.mrb[0].mxu0
        %v695 = vadd.f32 0.0, %v694
        %696 = vmatprep.mubr.f32.mxu0 0.0
        %697 = vmatmul.mubr.f32.gmra.mrb[0].mxu0 %v591
        %v698 = vpop.f32.mrb[0].mxu0
        %v699 = vadd.f32 0.0, %v698
        %v700 = vpop.f32.mrb[0].mxu0
        %v701 = vadd.f32 0.0, %v700
        %702 = vdwg.mxu0
        %703 = vmatprep.subr.mxu0 %v600
        %704 = vmatpush1.msra.mxu0 %v598
        %705 = vmatprep.subr.mxu0 0.0
        %706 = vmatpush1.msra.mxu0 0.0
        %707 = vmatprep.subr.mxu0 0.0
        %708 = vmatpush1.msra.mxu0 0.0
        %709 = vmatprep.subr.mxu0 0.0
        %710 = vmatpush1.msra.mxu0 0.0
        %711 = vmatprep.subr.mxu0 0.0
        %712 = vmatpush1.msra.mxu0 0.0
        %713 = vmatprep.subr.mxu0 0.0
        %714 = vmatpush1.msra.mxu0 0.0
        %715 = vmatprep.subr.mxu0 0.0
        %716 = vmatpush1.msra.mxu0 0.0
        %717 = vmatprep.subr.mxu0 0.0
        %718 = vmatpush1.msra.mxu0 0.0
        %719 = vmatprep.subr.mxu0 0.0
        %720 = vmatpush1.msra.mxu0 0.0
        %721 = vmatprep.subr.mxu0 0.0
        %722 = vmatpush1.msra.mxu0 0.0
        %723 = vmatprep.subr.mxu0 0.0
        %724 = vmatpush1.msra.mxu0 0.0
        %725 = vmatprep.subr.mxu0 0.0
        %726 = vmatpush1.msra.mxu0 0.0
        %727 = vmatprep.subr.mxu0 0.0
        %728 = vmatpush1.msra.mxu0 0.0
        %729 = vmatprep.subr.mxu0 0.0
        %730 = vmatpush1.msra.mxu0 0.0
        %731 = vmatprep.subr.mxu0 0.0
        %732 = vmatpush1.msra.mxu0 0.0
        %733 = vmatprep.subr.mxu0 0.0
        %734 = vmatpush1.msra.mxu0 0.0
        %735 = vmatprep.subr.mxu0 0.0
        %736 = vmatpush1.msra.mxu0 0.0
        %737 = vmatprep.subr.mxu0 0.0
        %738 = vmatpush1.msra.mxu0 0.0
        %739 = vmatprep.subr.mxu0 0.0
        %740 = vmatpush1.msra.mxu0 0.0
        %741 = vmatprep.subr.mxu0 0.0
        %742 = vmatpush1.msra.mxu0 0.0
        %743 = vmatprep.subr.mxu0 0.0
        %744 = vmatpush1.msra.mxu0 0.0
        %745 = vmatprep.subr.mxu0 0.0
        %746 = vmatpush1.msra.mxu0 0.0
        %747 = vmatprep.subr.mxu0 0.0
        %748 = vmatpush1.msra.mxu0 0.0
        %749 = vmatprep.subr.mxu0 0.0
        %750 = vmatpush1.msra.mxu0 0.0
        %751 = vmatprep.subr.mxu0 0.0
        %752 = vmatpush1.msra.mxu0 0.0
        %753 = vmatprep.subr.mxu0 0.0
        %754 = vmatpush1.msra.mxu0 0.0
        %755 = vmatprep.subr.mxu0 0.0
        %756 = vmatpush1.msra.mxu0 0.0
        %757 = vmatprep.subr.mxu0 0.0
        %758 = vmatpush1.msra.mxu0 0.0
        %759 = vmatprep.subr.mxu0 0.0
        %760 = vmatpush1.msra.mxu0 0.0
        %761 = vmatprep.subr.mxu0 0.0
        %762 = vmatpush1.msra.mxu0 0.0
        %763 = vmatprep.subr.mxu0 0.0
        %764 = vmatpush1.msra.mxu0 0.0
        %765 = vmatprep.subr.mxu0 0.0
        %766 = vmatpush1.msra.mxu0 0.0
        %767 = vmatprep.mubr.f32.mxu0 0.0
        %768 = vmatmul.mubr.f32.gmra.mrb[0].mxu0 %v588
        %v769 = vpop.f32.mrb[0].mxu0
        %v770 = vadd.f32 0.0, %v769
        %v771 = vpop.f32.mrb[0].mxu0
        %v772 = vadd.f32 0.0, %v771
        %773 = vmatprep.mubr.f32.mxu0 0.0
        %774 = vmatmul.mubr.f32.gmra.mrb[0].mxu0 %v591
        %v775 = vpop.f32.mrb[0].mxu0
        %v776 = vadd.f32 0.0, %v775
        %v777 = vpop.f32.mrb[0].mxu0
        %v778 = vadd.f32 0.0, %v777
        %779 = vdwg.mxu0
        %780 = vmatprep.subr.mxu0 %v604
        %781 = vmatpush1.msra.mxu0 %v602
        %782 = vmatprep.subr.mxu0 0.0
        %783 = vmatpush1.msra.mxu0 0.0
        %784 = vmatprep.subr.mxu0 0.0
        %785 = vmatpush1.msra.mxu0 0.0
        %786 = vmatprep.subr.mxu0 0.0
        %787 = vmatpush1.msra.mxu0 0.0
        %788 = vmatprep.subr.mxu0 0.0
        %789 = vmatpush1.msra.mxu0 0.0
        %790 = vmatprep.subr.mxu0 0.0
        %791 = vmatpush1.msra.mxu0 0.0
        %792 = vmatprep.subr.mxu0 0.0
        %793 = vmatpush1.msra.mxu0 0.0
        %794 = vmatprep.subr.mxu0 0.0
        %795 = vmatpush1.msra.mxu0 0.0
        %796 = vmatprep.subr.mxu0 0.0
        %797 = vmatpush1.msra.mxu0 0.0
        %798 = vmatprep.subr.mxu0 0.0
        %799 = vmatpush1.msra.mxu0 0.0
        %800 = vmatprep.subr.mxu0 0.0
        %801 = vmatpush1.msra.mxu0 0.0
        %802 = vmatprep.subr.mxu0 0.0
        %803 = vmatpush1.msra.mxu0 0.0
        %804 = vmatprep.subr.mxu0 0.0
        %805 = vmatpush1.msra.mxu0 0.0
        %806 = vmatprep.subr.mxu0 0.0
        %807 = vmatpush1.msra.mxu0 0.0
        %808 = vmatprep.subr.mxu0 0.0
        %809 = vmatpush1.msra.mxu0 0.0
        %810 = vmatprep.subr.mxu0 0.0
        %811 = vmatpush1.msra.mxu0 0.0
        %812 = vmatprep.subr.mxu0 0.0
        %813 = vmatpush1.msra.mxu0 0.0
        %814 = vmatprep.subr.mxu0 0.0
        %815 = vmatpush1.msra.mxu0 0.0
        %816 = vmatprep.subr.mxu0 0.0
        %817 = vmatpush1.msra.mxu0 0.0
        %818 = vmatprep.subr.mxu0 0.0
        %819 = vmatpush1.msra.mxu0 0.0
        %820 = vmatprep.subr.mxu0 0.0
        %821 = vmatpush1.msra.mxu0 0.0
        %822 = vmatprep.subr.mxu0 0.0
        %823 = vmatpush1.msra.mxu0 0.0
        %824 = vmatprep.subr.mxu0 0.0
        %825 = vmatpush1.msra.mxu0 0.0
        %826 = vmatprep.subr.mxu0 0.0
        %827 = vmatpush1.msra.mxu0 0.0
        %828 = vmatprep.subr.mxu0 0.0
        %829 = vmatpush1.msra.mxu0 0.0
        %830 = vmatprep.subr.mxu0 0.0
        %831 = vmatpush1.msra.mxu0 0.0
        %832 = vmatprep.subr.mxu0 0.0
        %833 = vmatpush1.msra.mxu0 0.0
        %834 = vmatprep.subr.mxu0 0.0
        %835 = vmatpush1.msra.mxu0 0.0
        %836 = vmatprep.subr.mxu0 0.0
        %837 = vmatpush1.msra.mxu0 0.0
        %838 = vmatprep.subr.mxu0 0.0
        %839 = vmatpush1.msra.mxu0 0.0
        %840 = vmatprep.subr.mxu0 0.0
        %841 = vmatpush1.msra.mxu0 0.0
        %842 = vmatprep.subr.mxu0 0.0
        %843 = vmatpush1.msra.mxu0 0.0
        %844 = vmatprep.mubr.f32.mxu0 0.0
        %845 = vmatmul.mubr.f32.gmra.mrb[0].mxu0 %v588
        %v846 = vpop.f32.mrb[0].mxu0
        %v847 = vadd.f32 0.0, %v846
        %v848 = vpop.f32.mrb[0].mxu0
        %v849 = vadd.f32 0.0, %v848
        %850 = vmatprep.mubr.f32.mxu0 0.0
        %851 = vmatmul.mubr.f32.gmra.mrb[0].mxu0 %v591
        %v852 = vpop.f32.mrb[0].mxu0
        %v853 = vadd.f32 0.0, %v852
        %v854 = vpop.f32.mrb[0].mxu0
        %v855 = vadd.f32 0.0, %v854
        %856 = vdwg.mxu0
        %857 = vmatprep.subr.mxu0 %v608
        %858 = vmatpush1.msra.mxu0 %v606
        %859 = vmatprep.subr.mxu0 0.0
        %860 = vmatpush1.msra.mxu0 0.0
        %861 = vmatprep.subr.mxu0 0.0
        %862 = vmatpush1.msra.mxu0 0.0
        %863 = vmatprep.subr.mxu0 0.0
        %864 = vmatpush1.msra.mxu0 0.0
        %865 = vmatprep.subr.mxu0 0.0
        %866 = vmatpush1.msra.mxu0 0.0
        %867 = vmatprep.subr.mxu0 0.0
        %868 = vmatpush1.msra.mxu0 0.0
        %869 = vmatprep.subr.mxu0 0.0
        %870 = vmatpush1.msra.mxu0 0.0
        %871 = vmatprep.subr.mxu0 0.0
        %872 = vmatpush1.msra.mxu0 0.0
        %873 = vmatprep.subr.mxu0 0.0
        %874 = vmatpush1.msra.mxu0 0.0
        %875 = vmatprep.subr.mxu0 0.0
        %876 = vmatpush1.msra.mxu0 0.0
        %877 = vmatprep.subr.mxu0 0.0
        %878 = vmatpush1.msra.mxu0 0.0
        %879 = vmatprep.subr.mxu0 0.0
        %880 = vmatpush1.msra.mxu0 0.0
        %881 = vmatprep.subr.mxu0 0.0
        %882 = vmatpush1.msra.mxu0 0.0
        %883 = vmatprep.subr.mxu0 0.0
        %884 = vmatpush1.msra.mxu0 0.0
        %885 = vmatprep.subr.mxu0 0.0
        %886 = vmatpush1.msra.mxu0 0.0
        %887 = vmatprep.subr.mxu0 0.0
        %888 = vmatpush1.msra.mxu0 0.0
        %889 = vmatprep.subr.mxu0 0.0
        %890 = vmatpush1.msra.mxu0 0.0
        %891 = vmatprep.subr.mxu0 0.0
        %892 = vmatpush1.msra.mxu0 0.0
        %893 = vmatprep.subr.mxu0 0.0
        %894 = vmatpush1.msra.mxu0 0.0
        %895 = vmatprep.subr.mxu0 0.0
        %896 = vmatpush1.msra.mxu0 0.0
        %897 = vmatprep.subr.mxu0 0.0
        %898 = vmatpush1.msra.mxu0 0.0
        %899 = vmatprep.subr.mxu0 0.0
        %900 = vmatpush1.msra.mxu0 0.0
        %901 = vmatprep.subr.mxu0 0.0
        %902 = vmatpush1.msra.mxu0 0.0
        %903 = vmatprep.subr.mxu0 0.0
        %904 = vmatpush1.msra.mxu0 0.0
        %905 = vmatprep.subr.mxu0 0.0
        %906 = vmatpush1.msra.mxu0 0.0
        %907 = vmatprep.subr.mxu0 0.0
        %908 = vmatpush1.msra.mxu0 0.0
        %909 = vmatprep.subr.mxu0 0.0
        %910 = vmatpush1.msra.mxu0 0.0
        %911 = vmatprep.subr.mxu0 0.0
        %912 = vmatpush1.msra.mxu0 0.0
        %913 = vmatprep.subr.mxu0 0.0
        %914 = vmatpush1.msra.mxu0 0.0
        %915 = vmatprep.subr.mxu0 0.0
        %916 = vmatpush1.msra.mxu0 0.0
        %917 = vmatprep.subr.mxu0 0.0
        %918 = vmatpush1.msra.mxu0 0.0
        %919 = vmatprep.subr.mxu0 0.0
        %920 = vmatpush1.msra.mxu0 0.0
        %921 = vmatprep.mubr.f32.mxu0 0.0
        %922 = vmatmul.mubr.f32.gmra.mrb[0].mxu0 %v588
        %v923 = vpop.f32.mrb[0].mxu0
        %v924 = vadd.f32 0.0, %v923
        %v925 = vpop.f32.mrb[0].mxu0
        %v926 = vadd.f32 0.0, %v925
        %927 = vmatprep.mubr.f32.mxu0 0.0
        %928 = vmatmul.mubr.f32.gmra.mrb[0].mxu0 %v591
        %v929 = vpop.f32.mrb[0].mxu0
        %v930 = vadd.f32 0.0, %v929
        %v931 = vpop.f32.mrb[0].mxu0
        %v932 = vadd.f32 0.0, %v931
        %933 = vdwg.mxu0
        %934 = vmatprep.subr.mxu0 %v612
        %935 = vmatpush1.msra.mxu0 %v610
        %936 = vmatprep.subr.mxu0 0.0
        %937 = vmatpush1.msra.mxu0 0.0
        %938 = vmatprep.subr.mxu0 0.0
        %939 = vmatpush1.msra.mxu0 0.0
        %940 = vmatprep.subr.mxu0 0.0
        %941 = vmatpush1.msra.mxu0 0.0
        %942 = vmatprep.subr.mxu0 0.0
        %943 = vmatpush1.msra.mxu0 0.0
        %944 = vmatprep.subr.mxu0 0.0
        %945 = vmatpush1.msra.mxu0 0.0
        %946 = vmatprep.subr.mxu0 0.0
        %947 = vmatpush1.msra.mxu0 0.0
        %948 = vmatprep.subr.mxu0 0.0
        %949 = vmatpush1.msra.mxu0 0.0
        %950 = vmatprep.subr.mxu0 0.0
        %951 = vmatpush1.msra.mxu0 0.0
        %952 = vmatprep.subr.mxu0 0.0
        %953 = vmatpush1.msra.mxu0 0.0
        %954 = vmatprep.subr.mxu0 0.0
        %955 = vmatpush1.msra.mxu0 0.0
        %956 = vmatprep.subr.mxu0 0.0
        %957 = vmatpush1.msra.mxu0 0.0
        %958 = vmatprep.subr.mxu0 0.0
        %959 = vmatpush1.msra.mxu0 0.0
        %960 = vmatprep.subr.mxu0 0.0
        %961 = vmatpush1.msra.mxu0 0.0
        %962 = vmatprep.subr.mxu0 0.0
        %963 = vmatpush1.msra.mxu0 0.0
        %964 = vmatprep.subr.mxu0 0.0
        %965 = vmatpush1.msra.mxu0 0.0
        %966 = vmatprep.subr.mxu0 0.0
        %967 = vmatpush1.msra.mxu0 0.0
        %968 = vmatprep.subr.mxu0 0.0
        %969 = vmatpush1.msra.mxu0 0.0
        %970 = vmatprep.subr.mxu0 0.0
        %971 = vmatpush1.msra.mxu0 0.0
        %972 = vmatprep.subr.mxu0 0.0
        %973 = vmatpush1.msra.mxu0 0.0
        %974 = vmatprep.subr.mxu0 0.0
        %975 = vmatpush1.msra.mxu0 0.0
        %976 = vmatprep.subr.mxu0 0.0
        %977 = vmatpush1.msra.mxu0 0.0
        %978 = vmatprep.subr.mxu0 0.0
        %979 = vmatpush1.msra.mxu0 0.0
        %980 = vmatprep.subr.mxu0 0.0
        %981 = vmatpush1.msra.mxu0 0.0
        %982 = vmatprep.subr.mxu0 0.0
        %983 = vmatpush1.msra.mxu0 0.0
        %984 = vmatprep.subr.mxu0 0.0
        %985 = vmatpush1.msra.mxu0 0.0
        %986 = vmatprep.subr.mxu0 0.0
        %987 = vmatpush1.msra.mxu0 0.0
        %988 = vmatprep.subr.mxu0 0.0
        %989 = vmatpush1.msra.mxu0 0.0
        %990 = vmatprep.subr.mxu0 0.0
        %991 = vmatpush1.msra.mxu0 0.0
        %992 = vmatprep.subr.mxu0 0.0
        %993 = vmatpush1.msra.mxu0 0.0
        %994 = vmatprep.subr.mxu0 0.0
        %995 = vmatpush1.msra.mxu0 0.0
        %996 = vmatprep.subr.mxu0 0.0
        %997 = vmatpush1.msra.mxu0 0.0
        %998 = vmatprep.mubr.f32.mxu0 0.0
        %999 = vmatmul.mubr.f32.gmra.mrb[0].mxu0 %v588
        %v1000 = vpop.f32.mrb[0].mxu0
        %v1001 = vadd.f32 0.0, %v1000
        %v1002 = vpop.f32.mrb[0].mxu0
        %v1003 = vadd.f32 0.0, %v1002
        %1004 = vmatprep.mubr.f32.mxu0 0.0
        %1005 = vmatmul.mubr.f32.gmra.mrb[0].mxu0 %v591
        %v1006 = vpop.f32.mrb[0].mxu0
        %v1007 = vadd.f32 0.0, %v1006
        %v1008 = vpop.f32.mrb[0].mxu0
        %v1009 = vadd.f32 0.0, %v1008
        %1010 = vdwg.mxu0
        %1011 = vmatprep.subr.mxu0 %v616
        %1012 = vmatpush1.msra.mxu0 %v614
        %1013 = vmatprep.subr.mxu0 0.0
        %1014 = vmatpush1.msra.mxu0 0.0
        %1015 = vmatprep.subr.mxu0 0.0
        %1016 = vmatpush1.msra.mxu0 0.0
        %1017 = vmatprep.subr.mxu0 0.0
        %1018 = vmatpush1.msra.mxu0 0.0
        %1019 = vmatprep.subr.mxu0 0.0
        %1020 = vmatpush1.msra.mxu0 0.0
        %1021 = vmatprep.subr.mxu0 0.0
        %1022 = vmatpush1.msra.mxu0 0.0
        %1023 = vmatprep.subr.mxu0 0.0
        %1024 = vmatpush1.msra.mxu0 0.0
        %1025 = vmatprep.subr.mxu0 0.0
        %1026 = vmatpush1.msra.mxu0 0.0
        %1027 = vmatprep.subr.mxu0 0.0
        %1028 = vmatpush1.msra.mxu0 0.0
        %1029 = vmatprep.subr.mxu0 0.0
        %1030 = vmatpush1.msra.mxu0 0.0
        %1031 = vmatprep.subr.mxu0 0.0
        %1032 = vmatpush1.msra.mxu0 0.0
        %1033 = vmatprep.subr.mxu0 0.0
        %1034 = vmatpush1.msra.mxu0 0.0
        %1035 = vmatprep.subr.mxu0 0.0
        %1036 = vmatpush1.msra.mxu0 0.0
        %1037 = vmatprep.subr.mxu0 0.0
        %1038 = vmatpush1.msra.mxu0 0.0
        %1039 = vmatprep.subr.mxu0 0.0
        %1040 = vmatpush1.msra.mxu0 0.0
        %1041 = vmatprep.subr.mxu0 0.0
        %1042 = vmatpush1.msra.mxu0 0.0
        %1043 = vmatprep.subr.mxu0 0.0
        %1044 = vmatpush1.msra.mxu0 0.0
        %1045 = vmatprep.subr.mxu0 0.0
        %1046 = vmatpush1.msra.mxu0 0.0
        %1047 = vmatprep.subr.mxu0 0.0
        %1048 = vmatpush1.msra.mxu0 0.0
        %1049 = vmatprep.subr.mxu0 0.0
        %1050 = vmatpush1.msra.mxu0 0.0
        %1051 = vmatprep.subr.mxu0 0.0
        %1052 = vmatpush1.msra.mxu0 0.0
        %1053 = vmatprep.subr.mxu0 0.0
        %1054 = vmatpush1.msra.mxu0 0.0
        %1055 = vmatprep.subr.mxu0 0.0
        %1056 = vmatpush1.msra.mxu0 0.0
        %1057 = vmatprep.subr.mxu0 0.0
        %1058 = vmatpush1.msra.mxu0 0.0
        %1059 = vmatprep.subr.mxu0 0.0
        %1060 = vmatpush1.msra.mxu0 0.0
        %1061 = vmatprep.subr.mxu0 0.0
        %1062 = vmatpush1.msra.mxu0 0.0
        %1063 = vmatprep.subr.mxu0 0.0
        %1064 = vmatpush1.msra.mxu0 0.0
        %1065 = vmatprep.subr.mxu0 0.0
        %1066 = vmatpush1.msra.mxu0 0.0
        %1067 = vmatprep.subr.mxu0 0.0
        %1068 = vmatpush1.msra.mxu0 0.0
        %1069 = vmatprep.subr.mxu0 0.0
        %1070 = vmatpush1.msra.mxu0 0.0
        %1071 = vmatprep.subr.mxu0 0.0
        %1072 = vmatpush1.msra.mxu0 0.0
        %1073 = vmatprep.subr.mxu0 0.0
        %1074 = vmatpush1.msra.mxu0 0.0
        %1075 = vmatprep.mubr.f32.mxu0 0.0
        %1076 = vmatmul.mubr.f32.gmra.mrb[0].mxu0 %v588
        %v1077 = vpop.f32.mrb[0].mxu0
        %v1078 = vadd.f32 0.0, %v1077
        %v1079 = vpop.f32.mrb[0].mxu0
        %v1080 = vadd.f32 0.0, %v1079
        %1081 = vmatprep.mubr.f32.mxu0 0.0
        %1082 = vmatmul.mubr.f32.gmra.mrb[0].mxu0 %v591
        %v1083 = vpop.f32.mrb[0].mxu0
        %v1084 = vadd.f32 0.0, %v1083
        %v1085 = vpop.f32.mrb[0].mxu0
        %v1086 = vadd.f32 0.0, %v1085
        %1087 = vdwg.mxu0
        %1088 = vmatprep.subr.mxu0 %v620
        %1089 = vmatpush1.msra.mxu0 %v618
        %1090 = vmatprep.subr.mxu0 0.0
        %1091 = vmatpush1.msra.mxu0 0.0
        %1092 = vmatprep.subr.mxu0 0.0
        %1093 = vmatpush1.msra.mxu0 0.0
        %1094 = vmatprep.subr.mxu0 0.0
        %1095 = vmatpush1.msra.mxu0 0.0
        %1096 = vmatprep.subr.mxu0 0.0
        %1097 = vmatpush1.msra.mxu0 0.0
        %1098 = vmatprep.subr.mxu0 0.0
        %1099 = vmatpush1.msra.mxu0 0.0
        %1100 = vmatprep.subr.mxu0 0.0
        %1101 = vmatpush1.msra.mxu0 0.0
        %1102 = vmatprep.subr.mxu0 0.0
        %1103 = vmatpush1.msra.mxu0 0.0
        %1104 = vmatprep.subr.mxu0 0.0
        %1105 = vmatpush1.msra.mxu0 0.0
        %1106 = vmatprep.subr.mxu0 0.0
        %1107 = vmatpush1.msra.mxu0 0.0
        %1108 = vmatprep.subr.mxu0 0.0
        %1109 = vmatpush1.msra.mxu0 0.0
        %1110 = vmatprep.subr.mxu0 0.0
        %1111 = vmatpush1.msra.mxu0 0.0
        %1112 = vmatprep.subr.mxu0 0.0
        %1113 = vmatpush1.msra.mxu0 0.0
        %1114 = vmatprep.subr.mxu0 0.0
        %1115 = vmatpush1.msra.mxu0 0.0
        %1116 = vmatprep.subr.mxu0 0.0
        %1117 = vmatpush1.msra.mxu0 0.0
        %1118 = vmatprep.subr.mxu0 0.0
        %1119 = vmatpush1.msra.mxu0 0.0
        %1120 = vmatprep.subr.mxu0 0.0
        %1121 = vmatpush1.msra.mxu0 0.0
        %1122 = vmatprep.subr.mxu0 0.0
        %1123 = vmatpush1.msra.mxu0 0.0
        %1124 = vmatprep.subr.mxu0 0.0
        %1125 = vmatpush1.msra.mxu0 0.0
        %1126 = vmatprep.subr.mxu0 0.0
        %1127 = vmatpush1.msra.mxu0 0.0
        %1128 = vmatprep.subr.mxu0 0.0
        %1129 = vmatpush1.msra.mxu0 0.0
        %1130 = vmatprep.subr.mxu0 0.0
        %1131 = vmatpush1.msra.mxu0 0.0
        %1132 = vmatprep.subr.mxu0 0.0
        %1133 = vmatpush1.msra.mxu0 0.0
        %1134 = vmatprep.subr.mxu0 0.0
        %1135 = vmatpush1.msra.mxu0 0.0
        %1136 = vmatprep.subr.mxu0 0.0
        %1137 = vmatpush1.msra.mxu0 0.0
        %1138 = vmatprep.subr.mxu0 0.0
        %1139 = vmatpush1.msra.mxu0 0.0
        %1140 = vmatprep.subr.mxu0 0.0
        %1141 = vmatpush1.msra.mxu0 0.0
        %1142 = vmatprep.subr.mxu0 0.0
        %1143 = vmatpush1.msra.mxu0 0.0
        %1144 = vmatprep.subr.mxu0 0.0
        %1145 = vmatpush1.msra.mxu0 0.0
        %1146 = vmatprep.subr.mxu0 0.0
        %1147 = vmatpush1.msra.mxu0 0.0
        %1148 = vmatprep.subr.mxu0 0.0
        %1149 = vmatpush1.msra.mxu0 0.0
        %1150 = vmatprep.subr.mxu0 0.0
        %1151 = vmatpush1.msra.mxu0 0.0
        %1152 = vmatprep.mubr.f32.mxu0 0.0
        %1153 = vmatmul.mubr.f32.gmra.mrb[0].mxu0 %v588
        %v1154 = vpop.f32.mrb[0].mxu0
        %v1155 = vadd.f32 0.0, %v1154
        %v1156 = vpop.f32.mrb[0].mxu0
        %v1157 = vadd.f32 0.0, %v1156
        %1158 = vmatprep.mubr.f32.mxu0 0.0
        %1159 = vmatmul.mubr.f32.gmra.mrb[0].mxu0 %v591
        %v1160 = vpop.f32.mrb[0].mxu0
        %v1161 = vadd.f32 0.0, %v1160
        %v1162 = vpop.f32.mrb[0].mxu0
        %v1163 = vadd.f32 0.0, %v1162
        %1164 = vdwg.mxu0
        %1165 = vmatprep.subr.mxu0 %v624
        %1166 = vmatpush1.msra.mxu0 %v622
        %1167 = vmatprep.subr.mxu0 0.0
        %1168 = vmatpush1.msra.mxu0 0.0
        %1169 = vmatprep.subr.mxu0 0.0
        %1170 = vmatpush1.msra.mxu0 0.0
        %1171 = vmatprep.subr.mxu0 0.0
        %1172 = vmatpush1.msra.mxu0 0.0
        %1173 = vmatprep.subr.mxu0 0.0
        %1174 = vmatpush1.msra.mxu0 0.0
        %1175 = vmatprep.subr.mxu0 0.0
        %1176 = vmatpush1.msra.mxu0 0.0
        %1177 = vmatprep.subr.mxu0 0.0
        %1178 = vmatpush1.msra.mxu0 0.0
        %1179 = vmatprep.subr.mxu0 0.0
        %1180 = vmatpush1.msra.mxu0 0.0
        %1181 = vmatprep.subr.mxu0 0.0
        %1182 = vmatpush1.msra.mxu0 0.0
        %1183 = vmatprep.subr.mxu0 0.0
        %1184 = vmatpush1.msra.mxu0 0.0
        %1185 = vmatprep.subr.mxu0 0.0
        %1186 = vmatpush1.msra.mxu0 0.0
        %1187 = vmatprep.subr.mxu0 0.0
        %1188 = vmatpush1.msra.mxu0 0.0
        %1189 = vmatprep.subr.mxu0 0.0
        %1190 = vmatpush1.msra.mxu0 0.0
        %1191 = vmatprep.subr.mxu0 0.0
        %1192 = vmatpush1.msra.mxu0 0.0
        %1193 = vmatprep.subr.mxu0 0.0
        %1194 = vmatpush1.msra.mxu0 0.0
        %1195 = vmatprep.subr.mxu0 0.0
        %1196 = vmatpush1.msra.mxu0 0.0
        %1197 = vmatprep.subr.mxu0 0.0
        %1198 = vmatpush1.msra.mxu0 0.0
        %1199 = vmatprep.subr.mxu0 0.0
        %1200 = vmatpush1.msra.mxu0 0.0
        %1201 = vmatprep.subr.mxu0 0.0
        %1202 = vmatpush1.msra.mxu0 0.0
        %1203 = vmatprep.subr.mxu0 0.0
        %1204 = vmatpush1.msra.mxu0 0.0
        %1205 = vmatprep.subr.mxu0 0.0
        %1206 = vmatpush1.msra.mxu0 0.0
        %1207 = vmatprep.subr.mxu0 0.0
        %1208 = vmatpush1.msra.mxu0 0.0
        %1209 = vmatprep.subr.mxu0 0.0
        %1210 = vmatpush1.msra.mxu0 0.0
        %1211 = vmatprep.subr.mxu0 0.0
        %1212 = vmatpush1.msra.mxu0 0.0
        %1213 = vmatprep.subr.mxu0 0.0
        %1214 = vmatpush1.msra.mxu0 0.0
        %1215 = vmatprep.subr.mxu0 0.0
        %1216 = vmatpush1.msra.mxu0 0.0
        %1217 = vmatprep.subr.mxu0 0.0
        %1218 = vmatpush1.msra.mxu0 0.0
        %1219 = vmatprep.subr.mxu0 0.0
        %1220 = vmatpush1.msra.mxu0 0.0
        %1221 = vmatprep.subr.mxu0 0.0
        %1222 = vmatpush1.msra.mxu0 0.0
        %1223 = vmatprep.subr.mxu0 0.0
        %1224 = vmatpush1.msra.mxu0 0.0
        %1225 = vmatprep.subr.mxu0 0.0
        %1226 = vmatpush1.msra.mxu0 0.0
        %1227 = vmatprep.subr.mxu0 0.0
        %1228 = vmatpush1.msra.mxu0 0.0
        %1229 = vmatprep.mubr.f32.mxu0 0.0
        %1230 = vmatmul.mubr.f32.gmra.mrb[0].mxu0 %v588
        %v1231 = vpop.f32.mrb[0].mxu0
        %v1232 = vadd.f32 0.0, %v1231
        %v1233 = vpop.f32.mrb[0].mxu0
        %v1234 = vadd.f32 0.0, %v1233
        %1235 = vmatprep.mubr.f32.mxu0 0.0
        %1236 = vmatmul.mubr.f32.gmra.mrb[0].mxu0 %v591
        %v1237 = vpop.f32.mrb[0].mxu0
        %v1238 = vadd.f32 0.0, %v1237
        %v1239 = vpop.f32.mrb[0].mxu0
        %v1240 = vadd.f32 0.0, %v1239
        %1241 = vdwg.mxu0
        %v1243 = vsel %vm586, %v511, 0
        %v1246 = vsel %vm586, %v512, 0
        %v1249 = vsel %vm593, %v495, 0
        %v1252 = vsel %vm593, %v496, 0
        %v1255 = vsel %vm593, %v497, 0
        %v1258 = vsel %vm593, %v498, 0
        %v1261 = vsel %vm593, %v499, 0
        %v1264 = vsel %vm593, %v500, 0
        %v1267 = vsel %vm593, %v501, 0
        %v1270 = vsel %vm593, %v502, 0
        %v1273 = vsel %vm593, %v503, 0
        %v1276 = vsel %vm593, %v504, 0
        %v1279 = vsel %vm593, %v505, 0
        %v1282 = vsel %vm593, %v506, 0
        %v1285 = vsel %vm593, %v507, 0
        %v1288 = vsel %vm593, %v508, 0
        %v1291 = vsel %vm593, %v509, 0
        %v1294 = vsel %vm593, %v510, 0
        %1296 = vmatprep.subr.mxu0 %v1252
        %1297 = vmatpush1.msra.mxu0 %v1249
        %1298 = vmatprep.subr.mxu0 0.0
        %1299 = vmatpush1.msra.mxu0 0.0
        %1300 = vmatprep.subr.mxu0 0.0
        %1301 = vmatpush1.msra.mxu0 0.0
        %1302 = vmatprep.subr.mxu0 0.0
        %1303 = vmatpush1.msra.mxu0 0.0
        %1304 = vmatprep.subr.mxu0 0.0
        %1305 = vmatpush1.msra.mxu0 0.0
        %1306 = vmatprep.subr.mxu0 0.0
        %1307 = vmatpush1.msra.mxu0 0.0
        %1308 = vmatprep.subr.mxu0 0.0
        %1309 = vmatpush1.msra.mxu0 0.0
        %1310 = vmatprep.subr.mxu0 0.0
        %1311 = vmatpush1.msra.mxu0 0.0
        %1312 = vmatprep.subr.mxu0 0.0
        %1313 = vmatpush1.msra.mxu0 0.0
        %1314 = vmatprep.subr.mxu0 0.0
        %1315 = vmatpush1.msra.mxu0 0.0
        %1316 = vmatprep.subr.mxu0 0.0
        %1317 = vmatpush1.msra.mxu0 0.0
        %1318 = vmatprep.subr.mxu0 0.0
        %1319 = vmatpush1.msra.mxu0 0.0
        %1320 = vmatprep.subr.mxu0 0.0
        %1321 = vmatpush1.msra.mxu0 0.0
        %1322 = vmatprep.subr.mxu0 0.0
        %1323 = vmatpush1.msra.mxu0 0.0
        %1324 = vmatprep.subr.mxu0 0.0
        %1325 = vmatpush1.msra.mxu0 0.0
        %1326 = vmatprep.subr.mxu0 0.0
        %1327 = vmatpush1.msra.mxu0 0.0
        %1328 = vmatprep.subr.mxu0 0.0
        %1329 = vmatpush1.msra.mxu0 0.0
        %1330 = vmatprep.subr.mxu0 0.0
        %1331 = vmatpush1.msra.mxu0 0.0
        %1332 = vmatprep.subr.mxu0 0.0
        %1333 = vmatpush1.msra.mxu0 0.0
        %1334 = vmatprep.subr.mxu0 0.0
        %1335 = vmatpush1.msra.mxu0 0.0
        %1336 = vmatprep.subr.mxu0 0.0
        %1337 = vmatpush1.msra.mxu0 0.0
        %1338 = vmatprep.subr.mxu0 0.0
        %1339 = vmatpush1.msra.mxu0 0.0
        %1340 = vmatprep.subr.mxu0 0.0
        %1341 = vmatpush1.msra.mxu0 0.0
        %1342 = vmatprep.subr.mxu0 0.0
        %1343 = vmatpush1.msra.mxu0 0.0
        %1344 = vmatprep.subr.mxu0 0.0
        %1345 = vmatpush1.msra.mxu0 0.0
        %1346 = vmatprep.subr.mxu0 0.0
        %1347 = vmatpush1.msra.mxu0 0.0
        %1348 = vmatprep.subr.mxu0 0.0
        %1349 = vmatpush1.msra.mxu0 0.0
        %1350 = vmatprep.subr.mxu0 0.0
        %1351 = vmatpush1.msra.mxu0 0.0
        %1352 = vmatprep.subr.mxu0 0.0
        %1353 = vmatpush1.msra.mxu0 0.0
        %1354 = vmatprep.subr.mxu0 0.0
        %1355 = vmatpush1.msra.mxu0 0.0
        %1356 = vmatprep.subr.mxu0 0.0
        %1357 = vmatpush1.msra.mxu0 0.0
        %1358 = vmatprep.subr.mxu0 0.0
        %1359 = vmatpush1.msra.mxu0 0.0
        %1360 = vmatprep.mubr.f32.mxu0 0.0
        %1361 = vmatmul.mubr.f32.gmra.mrb[0].mxu0 %v1243
        %v1362 = vpop.f32.mrb[0].mxu0
        %v1363 = vadd.f32 %v693, %v1362
        %v1364 = vpop.f32.mrb[0].mxu0
        %v1365 = vadd.f32 %v695, %v1364
        %1366 = vmatprep.mubr.f32.mxu0 0.0
        %1367 = vmatmul.mubr.f32.gmra.mrb[0].mxu0 %v1246
        %v1368 = vpop.f32.mrb[0].mxu0
        %v1369 = vadd.f32 %v699, %v1368
        %v1370 = vpop.f32.mrb[0].mxu0
        %v1371 = vadd.f32 %v701, %v1370
        %1372 = vdwg.mxu0
        %1373 = vmatprep.subr.mxu0 %v1258
        %1374 = vmatpush1.msra.mxu0 %v1255
        %1375 = vmatprep.subr.mxu0 0.0
        %1376 = vmatpush1.msra.mxu0 0.0
        %1377 = vmatprep.subr.mxu0 0.0
        %1378 = vmatpush1.msra.mxu0 0.0
        %1379 = vmatprep.subr.mxu0 0.0
        %1380 = vmatpush1.msra.mxu0 0.0
        %1381 = vmatprep.subr.mxu0 0.0
        %1382 = vmatpush1.msra.mxu0 0.0
        %1383 = vmatprep.subr.mxu0 0.0
        %1384 = vmatpush1.msra.mxu0 0.0
        %1385 = vmatprep.subr.mxu0 0.0
        %1386 = vmatpush1.msra.mxu0 0.0
        %1387 = vmatprep.subr.mxu0 0.0
        %1388 = vmatpush1.msra.mxu0 0.0
        %1389 = vmatprep.subr.mxu0 0.0
        %1390 = vmatpush1.msra.mxu0 0.0
        %1391 = vmatprep.subr.mxu0 0.0
        %1392 = vmatpush1.msra.mxu0 0.0
        %1393 = vmatprep.subr.mxu0 0.0
        %1394 = vmatpush1.msra.mxu0 0.0
        %1395 = vmatprep.subr.mxu0 0.0
        %1396 = vmatpush1.msra.mxu0 0.0
        %1397 = vmatprep.subr.mxu0 0.0
        %1398 = vmatpush1.msra.mxu0 0.0
        %1399 = vmatprep.subr.mxu0 0.0
        %1400 = vmatpush1.msra.mxu0 0.0
        %1401 = vmatprep.subr.mxu0 0.0
        %1402 = vmatpush1.msra.mxu0 0.0
        %1403 = vmatprep.subr.mxu0 0.0
        %1404 = vmatpush1.msra.mxu0 0.0
        %1405 = vmatprep.subr.mxu0 0.0
        %1406 = vmatpush1.msra.mxu0 0.0
        %1407 = vmatprep.subr.mxu0 0.0
        %1408 = vmatpush1.msra.mxu0 0.0
        %1409 = vmatprep.subr.mxu0 0.0
        %1410 = vmatpush1.msra.mxu0 0.0
        %1411 = vmatprep.subr.mxu0 0.0
        %1412 = vmatpush1.msra.mxu0 0.0
        %1413 = vmatprep.subr.mxu0 0.0
        %1414 = vmatpush1.msra.mxu0 0.0
        %1415 = vmatprep.subr.mxu0 0.0
        %1416 = vmatpush1.msra.mxu0 0.0
        %1417 = vmatprep.subr.mxu0 0.0
        %1418 = vmatpush1.msra.mxu0 0.0
        %1419 = vmatprep.subr.mxu0 0.0
        %1420 = vmatpush1.msra.mxu0 0.0
        %1421 = vmatprep.subr.mxu0 0.0
        %1422 = vmatpush1.msra.mxu0 0.0
        %1423 = vmatprep.subr.mxu0 0.0
        %1424 = vmatpush1.msra.mxu0 0.0
        %1425 = vmatprep.subr.mxu0 0.0
        %1426 = vmatpush1.msra.mxu0 0.0
        %1427 = vmatprep.subr.mxu0 0.0
        %1428 = vmatpush1.msra.mxu0 0.0
        %1429 = vmatprep.subr.mxu0 0.0
        %1430 = vmatpush1.msra.mxu0 0.0
        %1431 = vmatprep.subr.mxu0 0.0
        %1432 = vmatpush1.msra.mxu0 0.0
        %1433 = vmatprep.subr.mxu0 0.0
        %1434 = vmatpush1.msra.mxu0 0.0
        %1435 = vmatprep.subr.mxu0 0.0
        %1436 = vmatpush1.msra.mxu0 0.0
        %1437 = vmatprep.mubr.f32.mxu0 0.0
        %1438 = vmatmul.mubr.f32.gmra.mrb[0].mxu0 %v1243
        %v1439 = vpop.f32.mrb[0].mxu0
        %v1440 = vadd.f32 %v770, %v1439
        %v1441 = vpop.f32.mrb[0].mxu0
        %v1442 = vadd.f32 %v772, %v1441
        %1443 = vmatprep.mubr.f32.mxu0 0.0
        %1444 = vmatmul.mubr.f32.gmra.mrb[0].mxu0 %v1246
        %v1445 = vpop.f32.mrb[0].mxu0
        %v1446 = vadd.f32 %v776, %v1445
        %v1447 = vpop.f32.mrb[0].mxu0
        %v1448 = vadd.f32 %v778, %v1447
        %1449 = vdwg.mxu0
        %1450 = vmatprep.subr.mxu0 %v1264
        %1451 = vmatpush1.msra.mxu0 %v1261
        %1452 = vmatprep.subr.mxu0 0.0
        %1453 = vmatpush1.msra.mxu0 0.0
        %1454 = vmatprep.subr.mxu0 0.0
        %1455 = vmatpush1.msra.mxu0 0.0
        %1456 = vmatprep.subr.mxu0 0.0
        %1457 = vmatpush1.msra.mxu0 0.0
        %1458 = vmatprep.subr.mxu0 0.0
        %1459 = vmatpush1.msra.mxu0 0.0
        %1460 = vmatprep.subr.mxu0 0.0
        %1461 = vmatpush1.msra.mxu0 0.0
        %1462 = vmatprep.subr.mxu0 0.0
        %1463 = vmatpush1.msra.mxu0 0.0
        %1464 = vmatprep.subr.mxu0 0.0
        %1465 = vmatpush1.msra.mxu0 0.0
        %1466 = vmatprep.subr.mxu0 0.0
        %1467 = vmatpush1.msra.mxu0 0.0
        %1468 = vmatprep.subr.mxu0 0.0
        %1469 = vmatpush1.msra.mxu0 0.0
        %1470 = vmatprep.subr.mxu0 0.0
        %1471 = vmatpush1.msra.mxu0 0.0
        %1472 = vmatprep.subr.mxu0 0.0
        %1473 = vmatpush1.msra.mxu0 0.0
        %1474 = vmatprep.subr.mxu0 0.0
        %1475 = vmatpush1.msra.mxu0 0.0
        %1476 = vmatprep.subr.mxu0 0.0
        %1477 = vmatpush1.msra.mxu0 0.0
        %1478 = vmatprep.subr.mxu0 0.0
        %1479 = vmatpush1.msra.mxu0 0.0
        %1480 = vmatprep.subr.mxu0 0.0
        %1481 = vmatpush1.msra.mxu0 0.0
        %1482 = vmatprep.subr.mxu0 0.0
        %1483 = vmatpush1.msra.mxu0 0.0
        %1484 = vmatprep.subr.mxu0 0.0
        %1485 = vmatpush1.msra.mxu0 0.0
        %1486 = vmatprep.subr.mxu0 0.0
        %1487 = vmatpush1.msra.mxu0 0.0
        %1488 = vmatprep.subr.mxu0 0.0
        %1489 = vmatpush1.msra.mxu0 0.0
        %1490 = vmatprep.subr.mxu0 0.0
        %1491 = vmatpush1.msra.mxu0 0.0
        %1492 = vmatprep.subr.mxu0 0.0
        %1493 = vmatpush1.msra.mxu0 0.0
        %1494 = vmatprep.subr.mxu0 0.0
        %1495 = vmatpush1.msra.mxu0 0.0
        %1496 = vmatprep.subr.mxu0 0.0
        %1497 = vmatpush1.msra.mxu0 0.0
        %1498 = vmatprep.subr.mxu0 0.0
        %1499 = vmatpush1.msra.mxu0 0.0
        %1500 = vmatprep.subr.mxu0 0.0
        %1501 = vmatpush1.msra.mxu0 0.0
        %1502 = vmatprep.subr.mxu0 0.0
        %1503 = vmatpush1.msra.mxu0 0.0
        %1504 = vmatprep.subr.mxu0 0.0
        %1505 = vmatpush1.msra.mxu0 0.0
        %1506 = vmatprep.subr.mxu0 0.0
        %1507 = vmatpush1.msra.mxu0 0.0
        %1508 = vmatprep.subr.mxu0 0.0
        %1509 = vmatpush1.msra.mxu0 0.0
        %1510 = vmatprep.subr.mxu0 0.0
        %1511 = vmatpush1.msra.mxu0 0.0
        %1512 = vmatprep.subr.mxu0 0.0
        %1513 = vmatpush1.msra.mxu0 0.0
        %1514 = vmatprep.mubr.f32.mxu0 0.0
        %1515 = vmatmul.mubr.f32.gmra.mrb[0].mxu0 %v1243
        %v1516 = vpop.f32.mrb[0].mxu0
        %v1517 = vadd.f32 %v847, %v1516
        %v1518 = vpop.f32.mrb[0].mxu0
        %v1519 = vadd.f32 %v849, %v1518
        %1520 = vmatprep.mubr.f32.mxu0 0.0
        %1521 = vmatmul.mubr.f32.gmra.mrb[0].mxu0 %v1246
        %v1522 = vpop.f32.mrb[0].mxu0
        %v1523 = vadd.f32 %v853, %v1522
        %v1524 = vpop.f32.mrb[0].mxu0
        %v1525 = vadd.f32 %v855, %v1524
        %1526 = vdwg.mxu0
        %1527 = vmatprep.subr.mxu0 %v1270
        %1528 = vmatpush1.msra.mxu0 %v1267
        %1529 = vmatprep.subr.mxu0 0.0
        %1530 = vmatpush1.msra.mxu0 0.0
        %1531 = vmatprep.subr.mxu0 0.0
        %1532 = vmatpush1.msra.mxu0 0.0
        %1533 = vmatprep.subr.mxu0 0.0
        %1534 = vmatpush1.msra.mxu0 0.0
        %1535 = vmatprep.subr.mxu0 0.0
        %1536 = vmatpush1.msra.mxu0 0.0
        %1537 = vmatprep.subr.mxu0 0.0
        %1538 = vmatpush1.msra.mxu0 0.0
        %1539 = vmatprep.subr.mxu0 0.0
        %1540 = vmatpush1.msra.mxu0 0.0
        %1541 = vmatprep.subr.mxu0 0.0
        %1542 = vmatpush1.msra.mxu0 0.0
        %1543 = vmatprep.subr.mxu0 0.0
        %1544 = vmatpush1.msra.mxu0 0.0
        %1545 = vmatprep.subr.mxu0 0.0
        %1546 = vmatpush1.msra.mxu0 0.0
        %1547 = vmatprep.subr.mxu0 0.0
        %1548 = vmatpush1.msra.mxu0 0.0
        %1549 = vmatprep.subr.mxu0 0.0
        %1550 = vmatpush1.msra.mxu0 0.0
        %1551 = vmatprep.subr.mxu0 0.0
        %1552 = vmatpush1.msra.mxu0 0.0
        %1553 = vmatprep.subr.mxu0 0.0
        %1554 = vmatpush1.msra.mxu0 0.0
        %1555 = vmatprep.subr.mxu0 0.0
        %1556 = vmatpush1.msra.mxu0 0.0
        %1557 = vmatprep.subr.mxu0 0.0
        %1558 = vmatpush1.msra.mxu0 0.0
        %1559 = vmatprep.subr.mxu0 0.0
        %1560 = vmatpush1.msra.mxu0 0.0
        %1561 = vmatprep.subr.mxu0 0.0
        %1562 = vmatpush1.msra.mxu0 0.0
        %1563 = vmatprep.subr.mxu0 0.0
        %1564 = vmatpush1.msra.mxu0 0.0
        %1565 = vmatprep.subr.mxu0 0.0
        %1566 = vmatpush1.msra.mxu0 0.0
        %1567 = vmatprep.subr.mxu0 0.0
        %1568 = vmatpush1.msra.mxu0 0.0
        %1569 = vmatprep.subr.mxu0 0.0
        %1570 = vmatpush1.msra.mxu0 0.0
        %1571 = vmatprep.subr.mxu0 0.0
        %1572 = vmatpush1.msra.mxu0 0.0
        %1573 = vmatprep.subr.mxu0 0.0
        %1574 = vmatpush1.msra.mxu0 0.0
        %1575 = vmatprep.subr.mxu0 0.0
        %1576 = vmatpush1.msra.mxu0 0.0
        %1577 = vmatprep.subr.mxu0 0.0
        %1578 = vmatpush1.msra.mxu0 0.0
        %1579 = vmatprep.subr.mxu0 0.0
        %1580 = vmatpush1.msra.mxu0 0.0
        %1581 = vmatprep.subr.mxu0 0.0
        %1582 = vmatpush1.msra.mxu0 0.0
        %1583 = vmatprep.subr.mxu0 0.0
        %1584 = vmatpush1.msra.mxu0 0.0
        %1585 = vmatprep.subr.mxu0 0.0
        %1586 = vmatpush1.msra.mxu0 0.0
        %1587 = vmatprep.subr.mxu0 0.0
        %1588 = vmatpush1.msra.mxu0 0.0
        %1589 = vmatprep.subr.mxu0 0.0
        %1590 = vmatpush1.msra.mxu0 0.0
        %1591 = vmatprep.mubr.f32.mxu0 0.0
        %1592 = vmatmul.mubr.f32.gmra.mrb[0].mxu0 %v1243
        %v1593 = vpop.f32.mrb[0].mxu0
        %v1594 = vadd.f32 %v924, %v1593
        %v1595 = vpop.f32.mrb[0].mxu0
        %v1596 = vadd.f32 %v926, %v1595
        %1597 = vmatprep.mubr.f32.mxu0 0.0
        %1598 = vmatmul.mubr.f32.gmra.mrb[0].mxu0 %v1246
        %v1599 = vpop.f32.mrb[0].mxu0
        %v1600 = vadd.f32 %v930, %v1599
        %v1601 = vpop.f32.mrb[0].mxu0
        %v1602 = vadd.f32 %v932, %v1601
        %1603 = vdwg.mxu0
        %1604 = vmatprep.subr.mxu0 %v1276
        %1605 = vmatpush1.msra.mxu0 %v1273
        %1606 = vmatprep.subr.mxu0 0.0
        %1607 = vmatpush1.msra.mxu0 0.0
        %1608 = vmatprep.subr.mxu0 0.0
        %1609 = vmatpush1.msra.mxu0 0.0
        %1610 = vmatprep.subr.mxu0 0.0
        %1611 = vmatpush1.msra.mxu0 0.0
        %1612 = vmatprep.subr.mxu0 0.0
        %1613 = vmatpush1.msra.mxu0 0.0
        %1614 = vmatprep.subr.mxu0 0.0
        %1615 = vmatpush1.msra.mxu0 0.0
        %1616 = vmatprep.subr.mxu0 0.0
        %1617 = vmatpush1.msra.mxu0 0.0
        %1618 = vmatprep.subr.mxu0 0.0
        %1619 = vmatpush1.msra.mxu0 0.0
        %1620 = vmatprep.subr.mxu0 0.0
        %1621 = vmatpush1.msra.mxu0 0.0
        %1622 = vmatprep.subr.mxu0 0.0
        %1623 = vmatpush1.msra.mxu0 0.0
        %1624 = vmatprep.subr.mxu0 0.0
        %1625 = vmatpush1.msra.mxu0 0.0
        %1626 = vmatprep.subr.mxu0 0.0
        %1627 = vmatpush1.msra.mxu0 0.0
        %1628 = vmatprep.subr.mxu0 0.0
        %1629 = vmatpush1.msra.mxu0 0.0
        %1630 = vmatprep.subr.mxu0 0.0
        %1631 = vmatpush1.msra.mxu0 0.0
        %1632 = vmatprep.subr.mxu0 0.0
        %1633 = vmatpush1.msra.mxu0 0.0
        %1634 = vmatprep.subr.mxu0 0.0
        %1635 = vmatpush1.msra.mxu0 0.0
        %1636 = vmatprep.subr.mxu0 0.0
        %1637 = vmatpush1.msra.mxu0 0.0
        %1638 = vmatprep.subr.mxu0 0.0
        %1639 = vmatpush1.msra.mxu0 0.0
        %1640 = vmatprep.subr.mxu0 0.0
        %1641 = vmatpush1.msra.mxu0 0.0
        %1642 = vmatprep.subr.mxu0 0.0
        %1643 = vmatpush1.msra.mxu0 0.0
        %1644 = vmatprep.subr.mxu0 0.0
        %1645 = vmatpush1.msra.mxu0 0.0
        %1646 = vmatprep.subr.mxu0 0.0
        %1647 = vmatpush1.msra.mxu0 0.0
        %1648 = vmatprep.subr.mxu0 0.0
        %1649 = vmatpush1.msra.mxu0 0.0
        %1650 = vmatprep.subr.mxu0 0.0
        %1651 = vmatpush1.msra.mxu0 0.0
        %1652 = vmatprep.subr.mxu0 0.0
        %1653 = vmatpush1.msra.mxu0 0.0
        %1654 = vmatprep.subr.mxu0 0.0
        %1655 = vmatpush1.msra.mxu0 0.0
        %1656 = vmatprep.subr.mxu0 0.0
        %1657 = vmatpush1.msra.mxu0 0.0
        %1658 = vmatprep.subr.mxu0 0.0
        %1659 = vmatpush1.msra.mxu0 0.0
        %1660 = vmatprep.subr.mxu0 0.0
        %1661 = vmatpush1.msra.mxu0 0.0
        %1662 = vmatprep.subr.mxu0 0.0
        %1663 = vmatpush1.msra.mxu0 0.0
        %1664 = vmatprep.subr.mxu0 0.0
        %1665 = vmatpush1.msra.mxu0 0.0
        %1666 = vmatprep.subr.mxu0 0.0
        %1667 = vmatpush1.msra.mxu0 0.0
        %1668 = vmatprep.mubr.f32.mxu0 0.0
        %1669 = vmatmul.mubr.f32.gmra.mrb[0].mxu0 %v1243
        %v1670 = vpop.f32.mrb[0].mxu0
        %v1671 = vadd.f32 %v1001, %v1670
        %v1672 = vpop.f32.mrb[0].mxu0
        %v1673 = vadd.f32 %v1003, %v1672
        %1674 = vmatprep.mubr.f32.mxu0 0.0
        %1675 = vmatmul.mubr.f32.gmra.mrb[0].mxu0 %v1246
        %v1676 = vpop.f32.mrb[0].mxu0
        %v1677 = vadd.f32 %v1007, %v1676
        %v1678 = vpop.f32.mrb[0].mxu0
        %v1679 = vadd.f32 %v1009, %v1678
        %1680 = vdwg.mxu0
        %1681 = vmatprep.subr.mxu0 %v1282
        %1682 = vmatpush1.msra.mxu0 %v1279
        %1683 = vmatprep.subr.mxu0 0.0
        %1684 = vmatpush1.msra.mxu0 0.0
        %1685 = vmatprep.subr.mxu0 0.0
        %1686 = vmatpush1.msra.mxu0 0.0
        %1687 = vmatprep.subr.mxu0 0.0
        %1688 = vmatpush1.msra.mxu0 0.0
        %1689 = vmatprep.subr.mxu0 0.0
        %1690 = vmatpush1.msra.mxu0 0.0
        %1691 = vmatprep.subr.mxu0 0.0
        %1692 = vmatpush1.msra.mxu0 0.0
        %1693 = vmatprep.subr.mxu0 0.0
        %1694 = vmatpush1.msra.mxu0 0.0
        %1695 = vmatprep.subr.mxu0 0.0
        %1696 = vmatpush1.msra.mxu0 0.0
        %1697 = vmatprep.subr.mxu0 0.0
        %1698 = vmatpush1.msra.mxu0 0.0
        %1699 = vmatprep.subr.mxu0 0.0
        %1700 = vmatpush1.msra.mxu0 0.0
        %1701 = vmatprep.subr.mxu0 0.0
        %1702 = vmatpush1.msra.mxu0 0.0
        %1703 = vmatprep.subr.mxu0 0.0
        %1704 = vmatpush1.msra.mxu0 0.0
        %1705 = vmatprep.subr.mxu0 0.0
        %1706 = vmatpush1.msra.mxu0 0.0
        %1707 = vmatprep.subr.mxu0 0.0
        %1708 = vmatpush1.msra.mxu0 0.0
        %1709 = vmatprep.subr.mxu0 0.0
        %1710 = vmatpush1.msra.mxu0 0.0
        %1711 = vmatprep.subr.mxu0 0.0
        %1712 = vmatpush1.msra.mxu0 0.0
        %1713 = vmatprep.subr.mxu0 0.0
        %1714 = vmatpush1.msra.mxu0 0.0
        %1715 = vmatprep.subr.mxu0 0.0
        %1716 = vmatpush1.msra.mxu0 0.0
        %1717 = vmatprep.subr.mxu0 0.0
        %1718 = vmatpush1.msra.mxu0 0.0
        %1719 = vmatprep.subr.mxu0 0.0
        %1720 = vmatpush1.msra.mxu0 0.0
        %1721 = vmatprep.subr.mxu0 0.0
        %1722 = vmatpush1.msra.mxu0 0.0
        %1723 = vmatprep.subr.mxu0 0.0
        %1724 = vmatpush1.msra.mxu0 0.0
        %1725 = vmatprep.subr.mxu0 0.0
        %1726 = vmatpush1.msra.mxu0 0.0
        %1727 = vmatprep.subr.mxu0 0.0
        %1728 = vmatpush1.msra.mxu0 0.0
        %1729 = vmatprep.subr.mxu0 0.0
        %1730 = vmatpush1.msra.mxu0 0.0
        %1731 = vmatprep.subr.mxu0 0.0
        %1732 = vmatpush1.msra.mxu0 0.0
        %1733 = vmatprep.subr.mxu0 0.0
        %1734 = vmatpush1.msra.mxu0 0.0
        %1735 = vmatprep.subr.mxu0 0.0
        %1736 = vmatpush1.msra.mxu0 0.0
        %1737 = vmatprep.subr.mxu0 0.0
        %1738 = vmatpush1.msra.mxu0 0.0
        %1739 = vmatprep.subr.mxu0 0.0
        %1740 = vmatpush1.msra.mxu0 0.0
        %1741 = vmatprep.subr.mxu0 0.0
        %1742 = vmatpush1.msra.mxu0 0.0
        %1743 = vmatprep.subr.mxu0 0.0
        %1744 = vmatpush1.msra.mxu0 0.0
        %1745 = vmatprep.mubr.f32.mxu0 0.0
        %1746 = vmatmul.mubr.f32.gmra.mrb[0].mxu0 %v1243
        %v1747 = vpop.f32.mrb[0].mxu0
        %v1748 = vadd.f32 %v1078, %v1747
        %v1749 = vpop.f32.mrb[0].mxu0
        %v1750 = vadd.f32 %v1080, %v1749
        %1751 = vmatprep.mubr.f32.mxu0 0.0
        %1752 = vmatmul.mubr.f32.gmra.mrb[0].mxu0 %v1246
        %v1753 = vpop.f32.mrb[0].mxu0
        %v1754 = vadd.f32 %v1084, %v1753
        %v1755 = vpop.f32.mrb[0].mxu0
        %v1756 = vadd.f32 %v1086, %v1755
        %1757 = vdwg.mxu0
        %1758 = vmatprep.subr.mxu0 %v1288
        %1759 = vmatpush1.msra.mxu0 %v1285
        %1760 = vmatprep.subr.mxu0 0.0
        %1761 = vmatpush1.msra.mxu0 0.0
        %1762 = vmatprep.subr.mxu0 0.0
        %1763 = vmatpush1.msra.mxu0 0.0
        %1764 = vmatprep.subr.mxu0 0.0
        %1765 = vmatpush1.msra.mxu0 0.0
        %1766 = vmatprep.subr.mxu0 0.0
        %1767 = vmatpush1.msra.mxu0 0.0
        %1768 = vmatprep.subr.mxu0 0.0
        %1769 = vmatpush1.msra.mxu0 0.0
        %1770 = vmatprep.subr.mxu0 0.0
        %1771 = vmatpush1.msra.mxu0 0.0
        %1772 = vmatprep.subr.mxu0 0.0
        %1773 = vmatpush1.msra.mxu0 0.0
        %1774 = vmatprep.subr.mxu0 0.0
        %1775 = vmatpush1.msra.mxu0 0.0
        %1776 = vmatprep.subr.mxu0 0.0
        %1777 = vmatpush1.msra.mxu0 0.0
        %1778 = vmatprep.subr.mxu0 0.0
        %1779 = vmatpush1.msra.mxu0 0.0
        %1780 = vmatprep.subr.mxu0 0.0
        %1781 = vmatpush1.msra.mxu0 0.0
        %1782 = vmatprep.subr.mxu0 0.0
        %1783 = vmatpush1.msra.mxu0 0.0
        %1784 = vmatprep.subr.mxu0 0.0
        %1785 = vmatpush1.msra.mxu0 0.0
        %1786 = vmatprep.subr.mxu0 0.0
        %1787 = vmatpush1.msra.mxu0 0.0
        %1788 = vmatprep.subr.mxu0 0.0
        %1789 = vmatpush1.msra.mxu0 0.0
        %1790 = vmatprep.subr.mxu0 0.0
        %1791 = vmatpush1.msra.mxu0 0.0
        %1792 = vmatprep.subr.mxu0 0.0
        %1793 = vmatpush1.msra.mxu0 0.0
        %1794 = vmatprep.subr.mxu0 0.0
        %1795 = vmatpush1.msra.mxu0 0.0
        %1796 = vmatprep.subr.mxu0 0.0
        %1797 = vmatpush1.msra.mxu0 0.0
        %1798 = vmatprep.subr.mxu0 0.0
        %1799 = vmatpush1.msra.mxu0 0.0
        %1800 = vmatprep.subr.mxu0 0.0
        %1801 = vmatpush1.msra.mxu0 0.0
        %1802 = vmatprep.subr.mxu0 0.0
        %1803 = vmatpush1.msra.mxu0 0.0
        %1804 = vmatprep.subr.mxu0 0.0
        %1805 = vmatpush1.msra.mxu0 0.0
        %1806 = vmatprep.subr.mxu0 0.0
        %1807 = vmatpush1.msra.mxu0 0.0
        %1808 = vmatprep.subr.mxu0 0.0
        %1809 = vmatpush1.msra.mxu0 0.0
        %1810 = vmatprep.subr.mxu0 0.0
        %1811 = vmatpush1.msra.mxu0 0.0
        %1812 = vmatprep.subr.mxu0 0.0
        %1813 = vmatpush1.msra.mxu0 0.0
        %1814 = vmatprep.subr.mxu0 0.0
        %1815 = vmatpush1.msra.mxu0 0.0
        %1816 = vmatprep.subr.mxu0 0.0
        %1817 = vmatpush1.msra.mxu0 0.0
        %1818 = vmatprep.subr.mxu0 0.0
        %1819 = vmatpush1.msra.mxu0 0.0
        %1820 = vmatprep.subr.mxu0 0.0
        %1821 = vmatpush1.msra.mxu0 0.0
        %1822 = vmatprep.mubr.f32.mxu0 0.0
        %1823 = vmatmul.mubr.f32.gmra.mrb[0].mxu0 %v1243
        %v1824 = vpop.f32.mrb[0].mxu0
        %v1825 = vadd.f32 %v1155, %v1824
        %v1826 = vpop.f32.mrb[0].mxu0
        %v1827 = vadd.f32 %v1157, %v1826
        %1828 = vmatprep.mubr.f32.mxu0 0.0
        %1829 = vmatmul.mubr.f32.gmra.mrb[0].mxu0 %v1246
        %v1830 = vpop.f32.mrb[0].mxu0
        %v1831 = vadd.f32 %v1161, %v1830
        %v1832 = vpop.f32.mrb[0].mxu0
        %v1833 = vadd.f32 %v1163, %v1832
        %1834 = vdwg.mxu0
        %1835 = vmatprep.subr.mxu0 %v1294
        %1836 = vmatpush1.msra.mxu0 %v1291
        %1837 = vmatprep.subr.mxu0 0.0
        %1838 = vmatpush1.msra.mxu0 0.0
        %1839 = vmatprep.subr.mxu0 0.0
        %1840 = vmatpush1.msra.mxu0 0.0
        %1841 = vmatprep.subr.mxu0 0.0
        %1842 = vmatpush1.msra.mxu0 0.0
        %1843 = vmatprep.subr.mxu0 0.0
        %1844 = vmatpush1.msra.mxu0 0.0
        %1845 = vmatprep.subr.mxu0 0.0
        %1846 = vmatpush1.msra.mxu0 0.0
        %1847 = vmatprep.subr.mxu0 0.0
        %1848 = vmatpush1.msra.mxu0 0.0
        %1849 = vmatprep.subr.mxu0 0.0
        %1850 = vmatpush1.msra.mxu0 0.0
        %1851 = vmatprep.subr.mxu0 0.0
        %1852 = vmatpush1.msra.mxu0 0.0
        %1853 = vmatprep.subr.mxu0 0.0
        %1854 = vmatpush1.msra.mxu0 0.0
        %1855 = vmatprep.subr.mxu0 0.0
        %1856 = vmatpush1.msra.mxu0 0.0
        %1857 = vmatprep.subr.mxu0 0.0
        %1858 = vmatpush1.msra.mxu0 0.0
        %1859 = vmatprep.subr.mxu0 0.0
        %1860 = vmatpush1.msra.mxu0 0.0
        %1861 = vmatprep.subr.mxu0 0.0
        %1862 = vmatpush1.msra.mxu0 0.0
        %1863 = vmatprep.subr.mxu0 0.0
        %1864 = vmatpush1.msra.mxu0 0.0
        %1865 = vmatprep.subr.mxu0 0.0
        %1866 = vmatpush1.msra.mxu0 0.0
        %1867 = vmatprep.subr.mxu0 0.0
        %1868 = vmatpush1.msra.mxu0 0.0
        %1869 = vmatprep.subr.mxu0 0.0
        %1870 = vmatpush1.msra.mxu0 0.0
        %1871 = vmatprep.subr.mxu0 0.0
        %1872 = vmatpush1.msra.mxu0 0.0
        %1873 = vmatprep.subr.mxu0 0.0
        %1874 = vmatpush1.msra.mxu0 0.0
        %1875 = vmatprep.subr.mxu0 0.0
        %1876 = vmatpush1.msra.mxu0 0.0
        %1877 = vmatprep.subr.mxu0 0.0
        %1878 = vmatpush1.msra.mxu0 0.0
        %1879 = vmatprep.subr.mxu0 0.0
        %1880 = vmatpush1.msra.mxu0 0.0
        %1881 = vmatprep.subr.mxu0 0.0
        %1882 = vmatpush1.msra.mxu0 0.0
        %1883 = vmatprep.subr.mxu0 0.0
        %1884 = vmatpush1.msra.mxu0 0.0
        %1885 = vmatprep.subr.mxu0 0.0
        %1886 = vmatpush1.msra.mxu0 0.0
        %1887 = vmatprep.subr.mxu0 0.0
        %1888 = vmatpush1.msra.mxu0 0.0
        %1889 = vmatprep.subr.mxu0 0.0
        %1890 = vmatpush1.msra.mxu0 0.0
        %1891 = vmatprep.subr.mxu0 0.0
        %1892 = vmatpush1.msra.mxu0 0.0
        %1893 = vmatprep.subr.mxu0 0.0
        %1894 = vmatpush1.msra.mxu0 0.0
        %1895 = vmatprep.subr.mxu0 0.0
        %1896 = vmatpush1.msra.mxu0 0.0
        %1897 = vmatprep.subr.mxu0 0.0
        %1898 = vmatpush1.msra.mxu0 0.0
        %1899 = vmatprep.mubr.f32.mxu0 0.0
        %1900 = vmatmul.mubr.f32.gmra.mrb[0].mxu0 %v1243
        %v1901 = vpop.f32.mrb[0].mxu0
        %v1902 = vadd.f32 %v1232, %v1901
        %v1903 = vpop.f32.mrb[0].mxu0
        %v1904 = vadd.f32 %v1234, %v1903
        %1905 = vmatprep.mubr.f32.mxu0 0.0
        %1906 = vmatmul.mubr.f32.gmra.mrb[0].mxu0 %v1246
        %v1907 = vpop.f32.mrb[0].mxu0
        %v1908 = vadd.f32 %v1238, %v1907
        %v1909 = vpop.f32.mrb[0].mxu0
        %v1910 = vadd.f32 %v1240, %v1909
        %1911 = vdwg.mxu0
        %v1912 = vsel %vm423, 1, 0
        %v1913 = vsel %vm424, 1, 0
        %v1914 = vsel %vm425, 1, 0
        %v1915 = vsel %vm426, 1, 0
        %v1916 = vsel %vm427, 1, 0
        %v1917 = vsel %vm428, 1, 0
        %v1918 = vsel %vm429, 1, 0
        %v1919 = vsel %vm430, 1, 0
        %v1920 = vsel %vm431, 1, 0
        %v1921 = vsel %vm432, 1, 0
        %v1922 = vsel %vm433, 1, 0
        %v1923 = vsel %vm434, 1, 0
        %v1924 = vsel %vm435, 1, 0
        %v1925 = vsel %vm436, 1, 0
        %v1926 = vsel %vm437, 1, 0
        %v1927 = vsel %vm438, 1, 0
        %vm1928 = vcmp.eq.s32.totalorder %v1912, 1
        %vm1929 = vcmp.eq.s32.totalorder %v1913, 1
        %vm1930 = vcmp.eq.s32.totalorder %v1914, 1
        %vm1931 = vcmp.eq.s32.totalorder %v1915, 1
        %vm1932 = vcmp.eq.s32.totalorder %v1916, 1
        %vm1933 = vcmp.eq.s32.totalorder %v1917, 1
        %vm1934 = vcmp.eq.s32.totalorder %v1918, 1
        %vm1935 = vcmp.eq.s32.totalorder %v1919, 1
        %vm1936 = vcmp.eq.s32.totalorder %v1920, 1
        %vm1937 = vcmp.eq.s32.totalorder %v1921, 1
        %vm1938 = vcmp.eq.s32.totalorder %v1922, 1
        %vm1939 = vcmp.eq.s32.totalorder %v1923, 1
        %vm1940 = vcmp.eq.s32.totalorder %v1924, 1
        %vm1941 = vcmp.eq.s32.totalorder %v1925, 1
        %vm1942 = vcmp.eq.s32.totalorder %v1926, 1
        %vm1943 = vcmp.eq.s32.totalorder %v1927, 1
        %1944 = vrot.lane.b32.xlu0 %v447, 126
        %v1945 = vpop.permute.xlu0 %1944
        %1946 = vrot.lane.b32.xlu0 %v448, 126
        %v1947 = vpop.permute.xlu0 %1946
        %1948 = vrot.lane.b32.xlu0 %v449, 126
        %v1949 = vpop.permute.xlu0 %1948
        %1950 = vrot.lane.b32.xlu0 %v450, 126
        %v1951 = vpop.permute.xlu0 %1950
        %1952 = vrot.lane.b32.xlu0 %v451, 126
        %v1953 = vpop.permute.xlu0 %1952
        %1954 = vrot.lane.b32.xlu0 %v452, 126
        %v1955 = vpop.permute.xlu0 %1954
        %1956 = vrot.lane.b32.xlu0 %v453, 126
        %v1957 = vpop.permute.xlu0 %1956
        %1958 = vrot.lane.b32.xlu0 %v454, 126
        %v1959 = vpop.permute.xlu0 %1958
        %1960 = vrot.lane.b32.xlu0 %v455, 126
        %v1961 = vpop.permute.xlu0 %1960
        %1962 = vrot.lane.b32.xlu0 %v456, 126
        %v1963 = vpop.permute.xlu0 %1962
        %1964 = vrot.lane.b32.xlu0 %v457, 126
        %v1965 = vpop.permute.xlu0 %1964
        %1966 = vrot.lane.b32.xlu0 %v458, 126
        %v1967 = vpop.permute.xlu0 %1966
        %1968 = vrot.lane.b32.xlu0 %v459, 126
        %v1969 = vpop.permute.xlu0 %1968
        %1970 = vrot.lane.b32.xlu0 %v460, 126
        %v1971 = vpop.permute.xlu0 %1970
        %1972 = vrot.lane.b32.xlu0 %v461, 126
        %v1973 = vpop.permute.xlu0 %1972
        %1974 = vrot.lane.b32.xlu0 %v462, 126
        %v1975 = vpop.permute.xlu0 %1974
        %1976 = vrot.lane.b32.xlu0 %v514, 126
        %v1977 = vpop.permute.xlu0 %1976
        %vm1978 = vcmask 1031168
        %v1979 = vsel %vm1978, %v1945, %v1947
        %v1980 = vsel %vm1978, %v1947, %v1949
        %v1981 = vsel %vm1978, %v1949, %v1951
        %v1982 = vsel %vm1978, %v1951, %v1953
        %v1983 = vsel %vm1978, %v1953, %v1955
        %v1984 = vsel %vm1978, %v1955, %v1957
        %v1985 = vsel %vm1978, %v1957, %v1959
        %v1986 = vsel %vm1978, %v1959, %v1961
        %v1987 = vsel %vm1978, %v1961, %v1963
        %v1988 = vsel %vm1978, %v1963, %v1965
        %v1989 = vsel %vm1978, %v1965, %v1967
        %v1990 = vsel %vm1978, %v1967, %v1969
        %v1991 = vsel %vm1978, %v1969, %v1971
        %v1992 = vsel %vm1978, %v1971, %v1973
        %v1993 = vsel %vm1978, %v1973, %v1975
        %v1994 = vsel %vm1978, %v1975, %v1977
        %v2011 = vsel %vm1928, %v1979, 0.0
        %v2012 = vsel %vm1929, %v1980, 0.0
        %v2013 = vsel %vm1930, %v1981, 0.0
        %v2014 = vsel %vm1931, %v1982, 0.0
        %v2015 = vsel %vm1932, %v1983, 0.0
        %v2016 = vsel %vm1933, %v1984, 0.0
        %v2017 = vsel %vm1934, %v1985, 0.0
        %v2018 = vsel %vm1935, %v1986, 0.0
        %v2019 = vsel %vm1936, %v1987, 0.0
        %v2020 = vsel %vm1937, %v1988, 0.0
        %v2021 = vsel %vm1938, %v1989, 0.0
        %v2022 = vsel %vm1939, %v1990, 0.0
        %v2023 = vsel %vm1940, %v1991, 0.0
        %v2024 = vsel %vm1941, %v1992, 0.0
        %v2025 = vsel %vm1942, %v1993, 0.0
        %v2026 = vsel %vm1943, %v1994, 0.0
        %s2027 = scalar_lea.vmem %s0, 32
        %v2028 = vld [vmem:[%s2027] sm:$0xff]
        %v2029 = vld [vmem:[%s2027 + $0x8] sm:$0xff]
        %v2031 = vsel %vm586, %v2028, 0
        %v2034 = vsel %vm586, %v2029, 0
        %v2037 = vsel %vm593, %v2011, 0
        %v2040 = vsel %vm593, %v2012, 0
        %v2043 = vsel %vm593, %v2013, 0
        %v2046 = vsel %vm593, %v2014, 0
        %v2049 = vsel %vm593, %v2015, 0
        %v2052 = vsel %vm593, %v2016, 0
        %v2055 = vsel %vm593, %v2017, 0
        %v2058 = vsel %vm593, %v2018, 0
        %v2061 = vsel %vm593, %v2019, 0
        %v2064 = vsel %vm593, %v2020, 0
        %v2067 = vsel %vm593, %v2021, 0
        %v2070 = vsel %vm593, %v2022, 0
        %v2073 = vsel %vm593, %v2023, 0
        %v2076 = vsel %vm593, %v2024, 0
        %v2079 = vsel %vm593, %v2025, 0
        %v2082 = vsel %vm593, %v2026, 0
        %2084 = vmatprep.subr.mxu0 %v2040
        %2085 = vmatpush1.msra.mxu0 %v2037
        %2086 = vmatprep.subr.mxu0 0.0
        %2087 = vmatpush1.msra.mxu0 0.0
        %2088 = vmatprep.subr.mxu0 0.0
        %2089 = vmatpush1.msra.mxu0 0.0
        %2090 = vmatprep.subr.mxu0 0.0
        %2091 = vmatpush1.msra.mxu0 0.0
        %2092 = vmatprep.subr.mxu0 0.0
        %2093 = vmatpush1.msra.mxu0 0.0
        %2094 = vmatprep.subr.mxu0 0.0
        %2095 = vmatpush1.msra.mxu0 0.0
        %2096 = vmatprep.subr.mxu0 0.0
        %2097 = vmatpush1.msra.mxu0 0.0
        %2098 = vmatprep.subr.mxu0 0.0
        %2099 = vmatpush1.msra.mxu0 0.0
        %2100 = vmatprep.subr.mxu0 0.0
        %2101 = vmatpush1.msra.mxu0 0.0
        %2102 = vmatprep.subr.mxu0 0.0
        %2103 = vmatpush1.msra.mxu0 0.0
        %2104 = vmatprep.subr.mxu0 0.0
        %2105 = vmatpush1.msra.mxu0 0.0
        %2106 = vmatprep.subr.mxu0 0.0
        %2107 = vmatpush1.msra.mxu0 0.0
        %2108 = vmatprep.subr.mxu0 0.0
        %2109 = vmatpush1.msra.mxu0 0.0
        %2110 = vmatprep.subr.mxu0 0.0
        %2111 = vmatpush1.msra.mxu0 0.0
        %2112 = vmatprep.subr.mxu0 0.0
        %2113 = vmatpush1.msra.mxu0 0.0
        %2114 = vmatprep.subr.mxu0 0.0
        %2115 = vmatpush1.msra.mxu0 0.0
        %2116 = vmatprep.subr.mxu0 0.0
        %2117 = vmatpush1.msra.mxu0 0.0
        %2118 = vmatprep.subr.mxu0 0.0
        %2119 = vmatpush1.msra.mxu0 0.0
        %2120 = vmatprep.subr.mxu0 0.0
        %2121 = vmatpush1.msra.mxu0 0.0
        %2122 = vmatprep.subr.mxu0 0.0
        %2123 = vmatpush1.msra.mxu0 0.0
        %2124 = vmatprep.subr.mxu0 0.0
        %2125 = vmatpush1.msra.mxu0 0.0
        %2126 = vmatprep.subr.mxu0 0.0
        %2127 = vmatpush1.msra.mxu0 0.0
        %2128 = vmatprep.subr.mxu0 0.0
        %2129 = vmatpush1.msra.mxu0 0.0
        %2130 = vmatprep.subr.mxu0 0.0
        %2131 = vmatpush1.msra.mxu0 0.0
        %2132 = vmatprep.subr.mxu0 0.0
        %2133 = vmatpush1.msra.mxu0 0.0
        %2134 = vmatprep.subr.mxu0 0.0
        %2135 = vmatpush1.msra.mxu0 0.0
        %2136 = vmatprep.subr.mxu0 0.0
        %2137 = vmatpush1.msra.mxu0 0.0
        %2138 = vmatprep.subr.mxu0 0.0
        %2139 = vmatpush1.msra.mxu0 0.0
        %2140 = vmatprep.subr.mxu0 0.0
        %2141 = vmatpush1.msra.mxu0 0.0
        %2142 = vmatprep.subr.mxu0 0.0
        %2143 = vmatpush1.msra.mxu0 0.0
        %2144 = vmatprep.subr.mxu0 0.0
        %2145 = vmatpush1.msra.mxu0 0.0
        %2146 = vmatprep.subr.mxu0 0.0
        %2147 = vmatpush1.msra.mxu0 0.0
        %2148 = vmatprep.mubr.f32.mxu0 0.0
        %2149 = vmatmul.mubr.f32.gmra.mrb[0].mxu0 %v2031
        %v2150 = vpop.f32.mrb[0].mxu0
        %v2151 = vadd.f32 0.0, %v2150
        %v2152 = vpop.f32.mrb[0].mxu0
        %v2153 = vadd.f32 0.0, %v2152
        %2154 = vmatprep.mubr.f32.mxu0 0.0
        %2155 = vmatmul.mubr.f32.gmra.mrb[0].mxu0 %v2034
        %v2156 = vpop.f32.mrb[0].mxu0
        %v2157 = vadd.f32 0.0, %v2156
        %v2158 = vpop.f32.mrb[0].mxu0
        %v2159 = vadd.f32 0.0, %v2158
        %2160 = vdwg.mxu0
        %2161 = vmatprep.subr.mxu0 %v2046
        %2162 = vmatpush1.msra.mxu0 %v2043
        %2163 = vmatprep.subr.mxu0 0.0
        %2164 = vmatpush1.msra.mxu0 0.0
        %2165 = vmatprep.subr.mxu0 0.0
        %2166 = vmatpush1.msra.mxu0 0.0
        %2167 = vmatprep.subr.mxu0 0.0
        %2168 = vmatpush1.msra.mxu0 0.0
        %2169 = vmatprep.subr.mxu0 0.0
        %2170 = vmatpush1.msra.mxu0 0.0
        %2171 = vmatprep.subr.mxu0 0.0
        %2172 = vmatpush1.msra.mxu0 0.0
        %2173 = vmatprep.subr.mxu0 0.0
        %2174 = vmatpush1.msra.mxu0 0.0
        %2175 = vmatprep.subr.mxu0 0.0
        %2176 = vmatpush1.msra.mxu0 0.0
        %2177 = vmatprep.subr.mxu0 0.0
        %2178 = vmatpush1.msra.mxu0 0.0
        %2179 = vmatprep.subr.mxu0 0.0
        %2180 = vmatpush1.msra.mxu0 0.0
        %2181 = vmatprep.subr.mxu0 0.0
        %2182 = vmatpush1.msra.mxu0 0.0
        %2183 = vmatprep.subr.mxu0 0.0
        %2184 = vmatpush1.msra.mxu0 0.0
        %2185 = vmatprep.subr.mxu0 0.0
        %2186 = vmatpush1.msra.mxu0 0.0
        %2187 = vmatprep.subr.mxu0 0.0
        %2188 = vmatpush1.msra.mxu0 0.0
        %2189 = vmatprep.subr.mxu0 0.0
        %2190 = vmatpush1.msra.mxu0 0.0
        %2191 = vmatprep.subr.mxu0 0.0
        %2192 = vmatpush1.msra.mxu0 0.0
        %2193 = vmatprep.subr.mxu0 0.0
        %2194 = vmatpush1.msra.mxu0 0.0
        %2195 = vmatprep.subr.mxu0 0.0
        %2196 = vmatpush1.msra.mxu0 0.0
        %2197 = vmatprep.subr.mxu0 0.0
        %2198 = vmatpush1.msra.mxu0 0.0
        %2199 = vmatprep.subr.mxu0 0.0
        %2200 = vmatpush1.msra.mxu0 0.0
        %2201 = vmatprep.subr.mxu0 0.0
        %2202 = vmatpush1.msra.mxu0 0.0
        %2203 = vmatprep.subr.mxu0 0.0
        %2204 = vmatpush1.msra.mxu0 0.0
        %2205 = vmatprep.subr.mxu0 0.0
        %2206 = vmatpush1.msra.mxu0 0.0
        %2207 = vmatprep.subr.mxu0 0.0
        %2208 = vmatpush1.msra.mxu0 0.0
        %2209 = vmatprep.subr.mxu0 0.0
        %2210 = vmatpush1.msra.mxu0 0.0
        %2211 = vmatprep.subr.mxu0 0.0
        %2212 = vmatpush1.msra.mxu0 0.0
        %2213 = vmatprep.subr.mxu0 0.0
        %2214 = vmatpush1.msra.mxu0 0.0
        %2215 = vmatprep.subr.mxu0 0.0
        %2216 = vmatpush1.msra.mxu0 0.0
        %2217 = vmatprep.subr.mxu0 0.0
        %2218 = vmatpush1.msra.mxu0 0.0
        %2219 = vmatprep.subr.mxu0 0.0
        %2220 = vmatpush1.msra.mxu0 0.0
        %2221 = vmatprep.subr.mxu0 0.0
        %2222 = vmatpush1.msra.mxu0 0.0
        %2223 = vmatprep.subr.mxu0 0.0
        %2224 = vmatpush1.msra.mxu0 0.0
        %2225 = vmatprep.mubr.f32.mxu0 0.0
        %2226 = vmatmul.mubr.f32.gmra.mrb[0].mxu0 %v2031
        %v2227 = vpop.f32.mrb[0].mxu0
        %v2228 = vadd.f32 0.0, %v2227
        %v2229 = vpop.f32.mrb[0].mxu0
        %v2230 = vadd.f32 0.0, %v2229
        %2231 = vmatprep.mubr.f32.mxu0 0.0
        %2232 = vmatmul.mubr.f32.gmra.mrb[0].mxu0 %v2034
        %v2233 = vpop.f32.mrb[0].mxu0
        %v2234 = vadd.f32 0.0, %v2233
        %v2235 = vpop.f32.mrb[0].mxu0
        %v2236 = vadd.f32 0.0, %v2235
        %2237 = vdwg.mxu0
        %2238 = vmatprep.subr.mxu0 %v2052
        %2239 = vmatpush1.msra.mxu0 %v2049
        %2240 = vmatprep.subr.mxu0 0.0
        %2241 = vmatpush1.msra.mxu0 0.0
        %2242 = vmatprep.subr.mxu0 0.0
        %2243 = vmatpush1.msra.mxu0 0.0
        %2244 = vmatprep.subr.mxu0 0.0
        %2245 = vmatpush1.msra.mxu0 0.0
        %2246 = vmatprep.subr.mxu0 0.0
        %2247 = vmatpush1.msra.mxu0 0.0
        %2248 = vmatprep.subr.mxu0 0.0
        %2249 = vmatpush1.msra.mxu0 0.0
        %2250 = vmatprep.subr.mxu0 0.0
        %2251 = vmatpush1.msra.mxu0 0.0
        %2252 = vmatprep.subr.mxu0 0.0
        %2253 = vmatpush1.msra.mxu0 0.0
        %2254 = vmatprep.subr.mxu0 0.0
        %2255 = vmatpush1.msra.mxu0 0.0
        %2256 = vmatprep.subr.mxu0 0.0
        %2257 = vmatpush1.msra.mxu0 0.0
        %2258 = vmatprep.subr.mxu0 0.0
        %2259 = vmatpush1.msra.mxu0 0.0
        %2260 = vmatprep.subr.mxu0 0.0
        %2261 = vmatpush1.msra.mxu0 0.0
        %2262 = vmatprep.subr.mxu0 0.0
        %2263 = vmatpush1.msra.mxu0 0.0
        %2264 = vmatprep.subr.mxu0 0.0
        %2265 = vmatpush1.msra.mxu0 0.0
        %2266 = vmatprep.subr.mxu0 0.0
        %2267 = vmatpush1.msra.mxu0 0.0
        %2268 = vmatprep.subr.mxu0 0.0
        %2269 = vmatpush1.msra.mxu0 0.0
        %2270 = vmatprep.subr.mxu0 0.0
        %2271 = vmatpush1.msra.mxu0 0.0
        %2272 = vmatprep.subr.mxu0 0.0
        %2273 = vmatpush1.msra.mxu0 0.0
        %2274 = vmatprep.subr.mxu0 0.0
        %2275 = vmatpush1.msra.mxu0 0.0
        %2276 = vmatprep.subr.mxu0 0.0
        %2277 = vmatpush1.msra.mxu0 0.0
        %2278 = vmatprep.subr.mxu0 0.0
        %2279 = vmatpush1.msra.mxu0 0.0
        %2280 = vmatprep.subr.mxu0 0.0
        %2281 = vmatpush1.msra.mxu0 0.0
        %2282 = vmatprep.subr.mxu0 0.0
        %2283 = vmatpush1.msra.mxu0 0.0
        %2284 = vmatprep.subr.mxu0 0.0
        %2285 = vmatpush1.msra.mxu0 0.0
        %2286 = vmatprep.subr.mxu0 0.0
        %2287 = vmatpush1.msra.mxu0 0.0
        %2288 = vmatprep.subr.mxu0 0.0
        %2289 = vmatpush1.msra.mxu0 0.0
        %2290 = vmatprep.subr.mxu0 0.0
        %2291 = vmatpush1.msra.mxu0 0.0
        %2292 = vmatprep.subr.mxu0 0.0
        %2293 = vmatpush1.msra.mxu0 0.0
        %2294 = vmatprep.subr.mxu0 0.0
        %2295 = vmatpush1.msra.mxu0 0.0
        %2296 = vmatprep.subr.mxu0 0.0
        %2297 = vmatpush1.msra.mxu0 0.0
        %2298 = vmatprep.subr.mxu0 0.0
        %2299 = vmatpush1.msra.mxu0 0.0
        %2300 = vmatprep.subr.mxu0 0.0
        %2301 = vmatpush1.msra.mxu0 0.0
        %2302 = vmatprep.mubr.f32.mxu0 0.0
        %2303 = vmatmul.mubr.f32.gmra.mrb[0].mxu0 %v2031
        %v2304 = vpop.f32.mrb[0].mxu0
        %v2305 = vadd.f32 0.0, %v2304
        %v2306 = vpop.f32.mrb[0].mxu0
        %v2307 = vadd.f32 0.0, %v2306
        %2308 = vmatprep.mubr.f32.mxu0 0.0
        %2309 = vmatmul.mubr.f32.gmra.mrb[0].mxu0 %v2034
        %v2310 = vpop.f32.mrb[0].mxu0
        %v2311 = vadd.f32 0.0, %v2310
        %v2312 = vpop.f32.mrb[0].mxu0
        %v2313 = vadd.f32 0.0, %v2312
        %2314 = vdwg.mxu0
        %2315 = vmatprep.subr.mxu0 %v2058
        %2316 = vmatpush1.msra.mxu0 %v2055
        %2317 = vmatprep.subr.mxu0 0.0
        %2318 = vmatpush1.msra.mxu0 0.0
        %2319 = vmatprep.subr.mxu0 0.0
        %2320 = vmatpush1.msra.mxu0 0.0
        %2321 = vmatprep.subr.mxu0 0.0
        %2322 = vmatpush1.msra.mxu0 0.0
        %2323 = vmatprep.subr.mxu0 0.0
        %2324 = vmatpush1.msra.mxu0 0.0
        %2325 = vmatprep.subr.mxu0 0.0
        %2326 = vmatpush1.msra.mxu0 0.0
        %2327 = vmatprep.subr.mxu0 0.0
        %2328 = vmatpush1.msra.mxu0 0.0
        %2329 = vmatprep.subr.mxu0 0.0
        %2330 = vmatpush1.msra.mxu0 0.0
        %2331 = vmatprep.subr.mxu0 0.0
        %2332 = vmatpush1.msra.mxu0 0.0
        %2333 = vmatprep.subr.mxu0 0.0
        %2334 = vmatpush1.msra.mxu0 0.0
        %2335 = vmatprep.subr.mxu0 0.0
        %2336 = vmatpush1.msra.mxu0 0.0
        %2337 = vmatprep.subr.mxu0 0.0
        %2338 = vmatpush1.msra.mxu0 0.0
        %2339 = vmatprep.subr.mxu0 0.0
        %2340 = vmatpush1.msra.mxu0 0.0
        %2341 = vmatprep.subr.mxu0 0.0
        %2342 = vmatpush1.msra.mxu0 0.0
        %2343 = vmatprep.subr.mxu0 0.0
        %2344 = vmatpush1.msra.mxu0 0.0
        %2345 = vmatprep.subr.mxu0 0.0
        %2346 = vmatpush1.msra.mxu0 0.0
        %2347 = vmatprep.subr.mxu0 0.0
        %2348 = vmatpush1.msra.mxu0 0.0
        %2349 = vmatprep.subr.mxu0 0.0
        %2350 = vmatpush1.msra.mxu0 0.0
        %2351 = vmatprep.subr.mxu0 0.0
        %2352 = vmatpush1.msra.mxu0 0.0
        %2353 = vmatprep.subr.mxu0 0.0
        %2354 = vmatpush1.msra.mxu0 0.0
        %2355 = vmatprep.subr.mxu0 0.0
        %2356 = vmatpush1.msra.mxu0 0.0
        %2357 = vmatprep.subr.mxu0 0.0
        %2358 = vmatpush1.msra.mxu0 0.0
        %2359 = vmatprep.subr.mxu0 0.0
        %2360 = vmatpush1.msra.mxu0 0.0
        %2361 = vmatprep.subr.mxu0 0.0
        %2362 = vmatpush1.msra.mxu0 0.0
        %2363 = vmatprep.subr.mxu0 0.0
        %2364 = vmatpush1.msra.mxu0 0.0
        %2365 = vmatprep.subr.mxu0 0.0
        %2366 = vmatpush1.msra.mxu0 0.0
        %2367 = vmatprep.subr.mxu0 0.0
        %2368 = vmatpush1.msra.mxu0 0.0
        %2369 = vmatprep.subr.mxu0 0.0
        %2370 = vmatpush1.msra.mxu0 0.0
        %2371 = vmatprep.subr.mxu0 0.0
        %2372 = vmatpush1.msra.mxu0 0.0
        %2373 = vmatprep.subr.mxu0 0.0
        %2374 = vmatpush1.msra.mxu0 0.0
        %2375 = vmatprep.subr.mxu0 0.0
        %2376 = vmatpush1.msra.mxu0 0.0
        %2377 = vmatprep.subr.mxu0 0.0
        %2378 = vmatpush1.msra.mxu0 0.0
        %2379 = vmatprep.mubr.f32.mxu0 0.0
        %2380 = vmatmul.mubr.f32.gmra.mrb[0].mxu0 %v2031
        %v2381 = vpop.f32.mrb[0].mxu0
        %v2382 = vadd.f32 0.0, %v2381
        %v2383 = vpop.f32.mrb[0].mxu0
        %v2384 = vadd.f32 0.0, %v2383
        %2385 = vmatprep.mubr.f32.mxu0 0.0
        %2386 = vmatmul.mubr.f32.gmra.mrb[0].mxu0 %v2034
        %v2387 = vpop.f32.mrb[0].mxu0
        %v2388 = vadd.f32 0.0, %v2387
        %v2389 = vpop.f32.mrb[0].mxu0
        %v2390 = vadd.f32 0.0, %v2389
        %2391 = vdwg.mxu0
        %2392 = vmatprep.subr.mxu0 %v2064
        %2393 = vmatpush1.msra.mxu0 %v2061
        %2394 = vmatprep.subr.mxu0 0.0
        %2395 = vmatpush1.msra.mxu0 0.0
        %2396 = vmatprep.subr.mxu0 0.0
        %2397 = vmatpush1.msra.mxu0 0.0
        %2398 = vmatprep.subr.mxu0 0.0
        %2399 = vmatpush1.msra.mxu0 0.0
        %2400 = vmatprep.subr.mxu0 0.0
        %2401 = vmatpush1.msra.mxu0 0.0
        %2402 = vmatprep.subr.mxu0 0.0
        %2403 = vmatpush1.msra.mxu0 0.0
        %2404 = vmatprep.subr.mxu0 0.0
        %2405 = vmatpush1.msra.mxu0 0.0
        %2406 = vmatprep.subr.mxu0 0.0
        %2407 = vmatpush1.msra.mxu0 0.0
        %2408 = vmatprep.subr.mxu0 0.0
        %2409 = vmatpush1.msra.mxu0 0.0
        %2410 = vmatprep.subr.mxu0 0.0
        %2411 = vmatpush1.msra.mxu0 0.0
        %2412 = vmatprep.subr.mxu0 0.0
        %2413 = vmatpush1.msra.mxu0 0.0
        %2414 = vmatprep.subr.mxu0 0.0
        %2415 = vmatpush1.msra.mxu0 0.0
        %2416 = vmatprep.subr.mxu0 0.0
        %2417 = vmatpush1.msra.mxu0 0.0
        %2418 = vmatprep.subr.mxu0 0.0
        %2419 = vmatpush1.msra.mxu0 0.0
        %2420 = vmatprep.subr.mxu0 0.0
        %2421 = vmatpush1.msra.mxu0 0.0
        %2422 = vmatprep.subr.mxu0 0.0
        %2423 = vmatpush1.msra.mxu0 0.0
        %2424 = vmatprep.subr.mxu0 0.0
        %2425 = vmatpush1.msra.mxu0 0.0
        %2426 = vmatprep.subr.mxu0 0.0
        %2427 = vmatpush1.msra.mxu0 0.0
        %2428 = vmatprep.subr.mxu0 0.0
        %2429 = vmatpush1.msra.mxu0 0.0
        %2430 = vmatprep.subr.mxu0 0.0
        %2431 = vmatpush1.msra.mxu0 0.0
        %2432 = vmatprep.subr.mxu0 0.0
        %2433 = vmatpush1.msra.mxu0 0.0
        %2434 = vmatprep.subr.mxu0 0.0
        %2435 = vmatpush1.msra.mxu0 0.0
        %2436 = vmatprep.subr.mxu0 0.0
        %2437 = vmatpush1.msra.mxu0 0.0
        %2438 = vmatprep.subr.mxu0 0.0
        %2439 = vmatpush1.msra.mxu0 0.0
        %2440 = vmatprep.subr.mxu0 0.0
        %2441 = vmatpush1.msra.mxu0 0.0
        %2442 = vmatprep.subr.mxu0 0.0
        %2443 = vmatpush1.msra.mxu0 0.0
        %2444 = vmatprep.subr.mxu0 0.0
        %2445 = vmatpush1.msra.mxu0 0.0
        %2446 = vmatprep.subr.mxu0 0.0
        %2447 = vmatpush1.msra.mxu0 0.0
        %2448 = vmatprep.subr.mxu0 0.0
        %2449 = vmatpush1.msra.mxu0 0.0
        %2450 = vmatprep.subr.mxu0 0.0
        %2451 = vmatpush1.msra.mxu0 0.0
        %2452 = vmatprep.subr.mxu0 0.0
        %2453 = vmatpush1.msra.mxu0 0.0
        %2454 = vmatprep.subr.mxu0 0.0
        %2455 = vmatpush1.msra.mxu0 0.0
        %2456 = vmatprep.mubr.f32.mxu0 0.0
        %2457 = vmatmul.mubr.f32.gmra.mrb[0].mxu0 %v2031
        %v2458 = vpop.f32.mrb[0].mxu0
        %v2459 = vadd.f32 0.0, %v2458
        %v2460 = vpop.f32.mrb[0].mxu0
        %v2461 = vadd.f32 0.0, %v2460
        %2462 = vmatprep.mubr.f32.mxu0 0.0
        %2463 = vmatmul.mubr.f32.gmra.mrb[0].mxu0 %v2034
        %v2464 = vpop.f32.mrb[0].mxu0
        %v2465 = vadd.f32 0.0, %v2464
        %v2466 = vpop.f32.mrb[0].mxu0
        %v2467 = vadd.f32 0.0, %v2466
        %2468 = vdwg.mxu0
        %2469 = vmatprep.subr.mxu0 %v2070
        %2470 = vmatpush1.msra.mxu0 %v2067
        %2471 = vmatprep.subr.mxu0 0.0
        %2472 = vmatpush1.msra.mxu0 0.0
        %2473 = vmatprep.subr.mxu0 0.0
        %2474 = vmatpush1.msra.mxu0 0.0
        %2475 = vmatprep.subr.mxu0 0.0
        %2476 = vmatpush1.msra.mxu0 0.0
        %2477 = vmatprep.subr.mxu0 0.0
        %2478 = vmatpush1.msra.mxu0 0.0
        %2479 = vmatprep.subr.mxu0 0.0
        %2480 = vmatpush1.msra.mxu0 0.0
        %2481 = vmatprep.subr.mxu0 0.0
        %2482 = vmatpush1.msra.mxu0 0.0
        %2483 = vmatprep.subr.mxu0 0.0
        %2484 = vmatpush1.msra.mxu0 0.0
        %2485 = vmatprep.subr.mxu0 0.0
        %2486 = vmatpush1.msra.mxu0 0.0
        %2487 = vmatprep.subr.mxu0 0.0
        %2488 = vmatpush1.msra.mxu0 0.0
        %2489 = vmatprep.subr.mxu0 0.0
        %2490 = vmatpush1.msra.mxu0 0.0
        %2491 = vmatprep.subr.mxu0 0.0
        %2492 = vmatpush1.msra.mxu0 0.0
        %2493 = vmatprep.subr.mxu0 0.0
        %2494 = vmatpush1.msra.mxu0 0.0
        %2495 = vmatprep.subr.mxu0 0.0
        %2496 = vmatpush1.msra.mxu0 0.0
        %2497 = vmatprep.subr.mxu0 0.0
        %2498 = vmatpush1.msra.mxu0 0.0
        %2499 = vmatprep.subr.mxu0 0.0
        %2500 = vmatpush1.msra.mxu0 0.0
        %2501 = vmatprep.subr.mxu0 0.0
        %2502 = vmatpush1.msra.mxu0 0.0
        %2503 = vmatprep.subr.mxu0 0.0
        %2504 = vmatpush1.msra.mxu0 0.0
        %2505 = vmatprep.subr.mxu0 0.0
        %2506 = vmatpush1.msra.mxu0 0.0
        %2507 = vmatprep.subr.mxu0 0.0
        %2508 = vmatpush1.msra.mxu0 0.0
        %2509 = vmatprep.subr.mxu0 0.0
        %2510 = vmatpush1.msra.mxu0 0.0
        %2511 = vmatprep.subr.mxu0 0.0
        %2512 = vmatpush1.msra.mxu0 0.0
        %2513 = vmatprep.subr.mxu0 0.0
        %2514 = vmatpush1.msra.mxu0 0.0
        %2515 = vmatprep.subr.mxu0 0.0
        %2516 = vmatpush1.msra.mxu0 0.0
        %2517 = vmatprep.subr.mxu0 0.0
        %2518 = vmatpush1.msra.mxu0 0.0
        %2519 = vmatprep.subr.mxu0 0.0
        %2520 = vmatpush1.msra.mxu0 0.0
        %2521 = vmatprep.subr.mxu0 0.0
        %2522 = vmatpush1.msra.mxu0 0.0
        %2523 = vmatprep.subr.mxu0 0.0
        %2524 = vmatpush1.msra.mxu0 0.0
        %2525 = vmatprep.subr.mxu0 0.0
        %2526 = vmatpush1.msra.mxu0 0.0
        %2527 = vmatprep.subr.mxu0 0.0
        %2528 = vmatpush1.msra.mxu0 0.0
        %2529 = vmatprep.subr.mxu0 0.0
        %2530 = vmatpush1.msra.mxu0 0.0
        %2531 = vmatprep.subr.mxu0 0.0
        %2532 = vmatpush1.msra.mxu0 0.0
        %2533 = vmatprep.mubr.f32.mxu0 0.0
        %2534 = vmatmul.mubr.f32.gmra.mrb[0].mxu0 %v2031
        %v2535 = vpop.f32.mrb[0].mxu0
        %v2536 = vadd.f32 0.0, %v2535
        %v2537 = vpop.f32.mrb[0].mxu0
        %v2538 = vadd.f32 0.0, %v2537
        %2539 = vmatprep.mubr.f32.mxu0 0.0
        %2540 = vmatmul.mubr.f32.gmra.mrb[0].mxu0 %v2034
        %v2541 = vpop.f32.mrb[0].mxu0
        %v2542 = vadd.f32 0.0, %v2541
        %v2543 = vpop.f32.mrb[0].mxu0
        %v2544 = vadd.f32 0.0, %v2543
        %2545 = vdwg.mxu0
        %2546 = vmatprep.subr.mxu0 %v2076
        %2547 = vmatpush1.msra.mxu0 %v2073
        %2548 = vmatprep.subr.mxu0 0.0
        %2549 = vmatpush1.msra.mxu0 0.0
        %2550 = vmatprep.subr.mxu0 0.0
        %2551 = vmatpush1.msra.mxu0 0.0
        %2552 = vmatprep.subr.mxu0 0.0
        %2553 = vmatpush1.msra.mxu0 0.0
        %2554 = vmatprep.subr.mxu0 0.0
        %2555 = vmatpush1.msra.mxu0 0.0
        %2556 = vmatprep.subr.mxu0 0.0
        %2557 = vmatpush1.msra.mxu0 0.0
        %2558 = vmatprep.subr.mxu0 0.0
        %2559 = vmatpush1.msra.mxu0 0.0
        %2560 = vmatprep.subr.mxu0 0.0
        %2561 = vmatpush1.msra.mxu0 0.0
        %2562 = vmatprep.subr.mxu0 0.0
        %2563 = vmatpush1.msra.mxu0 0.0
        %2564 = vmatprep.subr.mxu0 0.0
        %2565 = vmatpush1.msra.mxu0 0.0
        %2566 = vmatprep.subr.mxu0 0.0
        %2567 = vmatpush1.msra.mxu0 0.0
        %2568 = vmatprep.subr.mxu0 0.0
        %2569 = vmatpush1.msra.mxu0 0.0
        %2570 = vmatprep.subr.mxu0 0.0
        %2571 = vmatpush1.msra.mxu0 0.0
        %2572 = vmatprep.subr.mxu0 0.0
        %2573 = vmatpush1.msra.mxu0 0.0
        %2574 = vmatprep.subr.mxu0 0.0
        %2575 = vmatpush1.msra.mxu0 0.0
        %2576 = vmatprep.subr.mxu0 0.0
        %2577 = vmatpush1.msra.mxu0 0.0
        %2578 = vmatprep.subr.mxu0 0.0
        %2579 = vmatpush1.msra.mxu0 0.0
        %2580 = vmatprep.subr.mxu0 0.0
        %2581 = vmatpush1.msra.mxu0 0.0
        %2582 = vmatprep.subr.mxu0 0.0
        %2583 = vmatpush1.msra.mxu0 0.0
        %2584 = vmatprep.subr.mxu0 0.0
        %2585 = vmatpush1.msra.mxu0 0.0
        %2586 = vmatprep.subr.mxu0 0.0
        %2587 = vmatpush1.msra.mxu0 0.0
        %2588 = vmatprep.subr.mxu0 0.0
        %2589 = vmatpush1.msra.mxu0 0.0
        %2590 = vmatprep.subr.mxu0 0.0
        %2591 = vmatpush1.msra.mxu0 0.0
        %2592 = vmatprep.subr.mxu0 0.0
        %2593 = vmatpush1.msra.mxu0 0.0
        %2594 = vmatprep.subr.mxu0 0.0
        %2595 = vmatpush1.msra.mxu0 0.0
        %2596 = vmatprep.subr.mxu0 0.0
        %2597 = vmatpush1.msra.mxu0 0.0
        %2598 = vmatprep.subr.mxu0 0.0
        %2599 = vmatpush1.msra.mxu0 0.0
        %2600 = vmatprep.subr.mxu0 0.0
        %2601 = vmatpush1.msra.mxu0 0.0
        %2602 = vmatprep.subr.mxu0 0.0
        %2603 = vmatpush1.msra.mxu0 0.0
        %2604 = vmatprep.subr.mxu0 0.0
        %2605 = vmatpush1.msra.mxu0 0.0
        %2606 = vmatprep.subr.mxu0 0.0
        %2607 = vmatpush1.msra.mxu0 0.0
        %2608 = vmatprep.subr.mxu0 0.0
        %2609 = vmatpush1.msra.mxu0 0.0
        %2610 = vmatprep.mubr.f32.mxu0 0.0
        %2611 = vmatmul.mubr.f32.gmra.mrb[0].mxu0 %v2031
        %v2612 = vpop.f32.mrb[0].mxu0
        %v2613 = vadd.f32 0.0, %v2612
        %v2614 = vpop.f32.mrb[0].mxu0
        %v2615 = vadd.f32 0.0, %v2614
        %2616 = vmatprep.mubr.f32.mxu0 0.0
        %2617 = vmatmul.mubr.f32.gmra.mrb[0].mxu0 %v2034
        %v2618 = vpop.f32.mrb[0].mxu0
        %v2619 = vadd.f32 0.0, %v2618
        %v2620 = vpop.f32.mrb[0].mxu0
        %v2621 = vadd.f32 0.0, %v2620
        %2622 = vdwg.mxu0
        %2623 = vmatprep.subr.mxu0 %v2082
        %2624 = vmatpush1.msra.mxu0 %v2079
        %2625 = vmatprep.subr.mxu0 0.0
        %2626 = vmatpush1.msra.mxu0 0.0
        %2627 = vmatprep.subr.mxu0 0.0
        %2628 = vmatpush1.msra.mxu0 0.0
        %2629 = vmatprep.subr.mxu0 0.0
        %2630 = vmatpush1.msra.mxu0 0.0
        %2631 = vmatprep.subr.mxu0 0.0
        %2632 = vmatpush1.msra.mxu0 0.0
        %2633 = vmatprep.subr.mxu0 0.0
        %2634 = vmatpush1.msra.mxu0 0.0
        %2635 = vmatprep.subr.mxu0 0.0
        %2636 = vmatpush1.msra.mxu0 0.0
        %2637 = vmatprep.subr.mxu0 0.0
        %2638 = vmatpush1.msra.mxu0 0.0
        %2639 = vmatprep.subr.mxu0 0.0
        %2640 = vmatpush1.msra.mxu0 0.0
        %2641 = vmatprep.subr.mxu0 0.0
        %2642 = vmatpush1.msra.mxu0 0.0
        %2643 = vmatprep.subr.mxu0 0.0
        %2644 = vmatpush1.msra.mxu0 0.0
        %2645 = vmatprep.subr.mxu0 0.0
        %2646 = vmatpush1.msra.mxu0 0.0
        %2647 = vmatprep.subr.mxu0 0.0
        %2648 = vmatpush1.msra.mxu0 0.0
        %2649 = vmatprep.subr.mxu0 0.0
        %2650 = vmatpush1.msra.mxu0 0.0
        %2651 = vmatprep.subr.mxu0 0.0
        %2652 = vmatpush1.msra.mxu0 0.0
        %2653 = vmatprep.subr.mxu0 0.0
        %2654 = vmatpush1.msra.mxu0 0.0
        %2655 = vmatprep.subr.mxu0 0.0
        %2656 = vmatpush1.msra.mxu0 0.0
        %2657 = vmatprep.subr.mxu0 0.0
        %2658 = vmatpush1.msra.mxu0 0.0
        %2659 = vmatprep.subr.mxu0 0.0
        %2660 = vmatpush1.msra.mxu0 0.0
        %2661 = vmatprep.subr.mxu0 0.0
        %2662 = vmatpush1.msra.mxu0 0.0
        %2663 = vmatprep.subr.mxu0 0.0
        %2664 = vmatpush1.msra.mxu0 0.0
        %2665 = vmatprep.subr.mxu0 0.0
        %2666 = vmatpush1.msra.mxu0 0.0
        %2667 = vmatprep.subr.mxu0 0.0
        %2668 = vmatpush1.msra.mxu0 0.0
        %2669 = vmatprep.subr.mxu0 0.0
        %2670 = vmatpush1.msra.mxu0 0.0
        %2671 = vmatprep.subr.mxu0 0.0
        %2672 = vmatpush1.msra.mxu0 0.0
        %2673 = vmatprep.subr.mxu0 0.0
        %2674 = vmatpush1.msra.mxu0 0.0
        %2675 = vmatprep.subr.mxu0 0.0
        %2676 = vmatpush1.msra.mxu0 0.0
        %2677 = vmatprep.subr.mxu0 0.0
        %2678 = vmatpush1.msra.mxu0 0.0
        %2679 = vmatprep.subr.mxu0 0.0
        %2680 = vmatpush1.msra.mxu0 0.0
        %2681 = vmatprep.subr.mxu0 0.0
        %2682 = vmatpush1.msra.mxu0 0.0
        %2683 = vmatprep.subr.mxu0 0.0
        %2684 = vmatpush1.msra.mxu0 0.0
        %2685 = vmatprep.subr.mxu0 0.0
        %2686 = vmatpush1.msra.mxu0 0.0
        %2687 = vmatprep.mubr.f32.mxu0 0.0
        %2688 = vmatmul.mubr.f32.gmra.mrb[0].mxu0 %v2031
        %v2689 = vpop.f32.mrb[0].mxu0
        %v2690 = vadd.f32 0.0, %v2689
        %v2691 = vpop.f32.mrb[0].mxu0
        %v2692 = vadd.f32 0.0, %v2691
        %2693 = vmatprep.mubr.f32.mxu0 0.0
        %2694 = vmatmul.mubr.f32.gmra.mrb[0].mxu0 %v2034
        %v2695 = vpop.f32.mrb[0].mxu0
        %v2696 = vadd.f32 0.0, %v2695
        %v2697 = vpop.f32.mrb[0].mxu0
        %v2698 = vadd.f32 0.0, %v2697
        %2699 = vdwg.mxu0
        %v2700 = vadd.f32 %v1363, %v2151
        %v2701 = vadd.f32 %v1365, %v2153
        %v2702 = vadd.f32 %v1440, %v2228
        %v2703 = vadd.f32 %v1442, %v2230
        %v2704 = vadd.f32 %v1517, %v2305
        %v2705 = vadd.f32 %v1519, %v2307
        %v2706 = vadd.f32 %v1594, %v2382
        %v2707 = vadd.f32 %v1596, %v2384
        %v2708 = vadd.f32 %v1671, %v2459
        %v2709 = vadd.f32 %v1673, %v2461
        %v2710 = vadd.f32 %v1748, %v2536
        %v2711 = vadd.f32 %v1750, %v2538
        %v2712 = vadd.f32 %v1825, %v2613
        %v2713 = vadd.f32 %v1827, %v2615
        %v2714 = vadd.f32 %v1902, %v2690
        %v2715 = vadd.f32 %v1904, %v2692
        %v2716 = vadd.f32 %v1369, %v2157
        %v2717 = vadd.f32 %v1371, %v2159
        %v2718 = vadd.f32 %v1446, %v2234
        %v2719 = vadd.f32 %v1448, %v2236
        %v2720 = vadd.f32 %v1523, %v2311
        %v2721 = vadd.f32 %v1525, %v2313
        %v2722 = vadd.f32 %v1600, %v2388
        %v2723 = vadd.f32 %v1602, %v2390
        %v2724 = vadd.f32 %v1677, %v2465
        %v2725 = vadd.f32 %v1679, %v2467
        %v2726 = vadd.f32 %v1754, %v2542
        %v2727 = vadd.f32 %v1756, %v2544
        %v2728 = vadd.f32 %v1831, %v2619
        %v2729 = vadd.f32 %v1833, %v2621
        %v2730 = vadd.f32 %v1908, %v2696
        %v2731 = vadd.f32 %v1910, %v2698
        %2732 = vrot.lane.b32.xlu0 %v447, 64
        %v2733 = vpop.permute.xlu0 %2732
        %2734 = vrot.lane.b32.xlu0 %v448, 64
        %v2735 = vpop.permute.xlu0 %2734
        %2736 = vrot.lane.b32.xlu0 %v449, 64
        %v2737 = vpop.permute.xlu0 %2736
        %2738 = vrot.lane.b32.xlu0 %v450, 64
        %v2739 = vpop.permute.xlu0 %2738
        %2740 = vrot.lane.b32.xlu0 %v451, 64
        %v2741 = vpop.permute.xlu0 %2740
        %2742 = vrot.lane.b32.xlu0 %v452, 64
        %v2743 = vpop.permute.xlu0 %2742
        %2744 = vrot.lane.b32.xlu0 %v453, 64
        %v2745 = vpop.permute.xlu0 %2744
        %2746 = vrot.lane.b32.xlu0 %v454, 64
        %v2747 = vpop.permute.xlu0 %2746
        %2748 = vrot.lane.b32.xlu0 %v455, 64
        %v2749 = vpop.permute.xlu0 %2748
        %2750 = vrot.lane.b32.xlu0 %v456, 64
        %v2751 = vpop.permute.xlu0 %2750
        %2752 = vrot.lane.b32.xlu0 %v457, 64
        %v2753 = vpop.permute.xlu0 %2752
        %2754 = vrot.lane.b32.xlu0 %v458, 64
        %v2755 = vpop.permute.xlu0 %2754
        %2756 = vrot.lane.b32.xlu0 %v459, 64
        %v2757 = vpop.permute.xlu0 %2756
        %2758 = vrot.lane.b32.xlu0 %v460, 64
        %v2759 = vpop.permute.xlu0 %2758
        %2760 = vrot.lane.b32.xlu0 %v461, 64
        %v2761 = vpop.permute.xlu0 %2760
        %2762 = vrot.lane.b32.xlu0 %v462, 64
        %v2763 = vpop.permute.xlu0 %2762
        %2764 = vrot.lane.b32.xlu0 %v514, 64
        %v2765 = vpop.permute.xlu0 %2764
        %vm2766 = vcmask 523264
        %v2767 = vsel %vm2766, %v2733, %v2735
        %v2768 = vsel %vm2766, %v2735, %v2737
        %v2769 = vsel %vm2766, %v2737, %v2739
        %v2770 = vsel %vm2766, %v2739, %v2741
        %v2771 = vsel %vm2766, %v2741, %v2743
        %v2772 = vsel %vm2766, %v2743, %v2745
        %v2773 = vsel %vm2766, %v2745, %v2747
        %v2774 = vsel %vm2766, %v2747, %v2749
        %v2775 = vsel %vm2766, %v2749, %v2751
        %v2776 = vsel %vm2766, %v2751, %v2753
        %v2777 = vsel %vm2766, %v2753, %v2755
        %v2778 = vsel %vm2766, %v2755, %v2757
        %v2779 = vsel %vm2766, %v2757, %v2759
        %v2780 = vsel %vm2766, %v2759, %v2761
        %v2781 = vsel %vm2766, %v2761, %v2763
        %v2782 = vsel %vm2766, %v2763, %v2765
        %v2799 = vsel %vm479, %v2767, 0.0
        %v2800 = vsel %vm480, %v2768, 0.0
        %v2801 = vsel %vm481, %v2769, 0.0
        %v2802 = vsel %vm482, %v2770, 0.0
        %v2803 = vsel %vm483, %v2771, 0.0
        %v2804 = vsel %vm484, %v2772, 0.0
        %v2805 = vsel %vm485, %v2773, 0.0
        %v2806 = vsel %vm486, %v2774, 0.0
        %v2807 = vsel %vm487, %v2775, 0.0
        %v2808 = vsel %vm488, %v2776, 0.0
        %v2809 = vsel %vm489, %v2777, 0.0
        %v2810 = vsel %vm490, %v2778, 0.0
        %v2811 = vsel %vm491, %v2779, 0.0
        %v2812 = vsel %vm492, %v2780, 0.0
        %v2813 = vsel %vm493, %v2781, 0.0
        %v2814 = vsel %vm494, %v2782, 0.0
        %s2815 = scalar_lea.vmem %s0, 48
        %v2816 = vld [vmem:[%s2815] sm:$0xff]
        %v2817 = vld [vmem:[%s2815 + $0x8] sm:$0xff]
        %v2819 = vsel %vm586, %v2816, 0
        %v2822 = vsel %vm586, %v2817, 0
        %v2825 = vsel %vm593, %v2799, 0
        %v2828 = vsel %vm593, %v2800, 0
        %v2831 = vsel %vm593, %v2801, 0
        %v2834 = vsel %vm593, %v2802, 0
        %v2837 = vsel %vm593, %v2803, 0
        %v2840 = vsel %vm593, %v2804, 0
        %v2843 = vsel %vm593, %v2805, 0
        %v2846 = vsel %vm593, %v2806, 0
        %v2849 = vsel %vm593, %v2807, 0
        %v2852 = vsel %vm593, %v2808, 0
        %v2855 = vsel %vm593, %v2809, 0
        %v2858 = vsel %vm593, %v2810, 0
        %v2861 = vsel %vm593, %v2811, 0
        %v2864 = vsel %vm593, %v2812, 0
        %v2867 = vsel %vm593, %v2813, 0
        %v2870 = vsel %vm593, %v2814, 0
        %2872 = vmatprep.subr.mxu0 %v2828
        %2873 = vmatpush1.msra.mxu0 %v2825
        %2874 = vmatprep.subr.mxu0 0.0
        %2875 = vmatpush1.msra.mxu0 0.0
        %2876 = vmatprep.subr.mxu0 0.0
        %2877 = vmatpush1.msra.mxu0 0.0
        %2878 = vmatprep.subr.mxu0 0.0
        %2879 = vmatpush1.msra.mxu0 0.0
        %2880 = vmatprep.subr.mxu0 0.0
        %2881 = vmatpush1.msra.mxu0 0.0
        %2882 = vmatprep.subr.mxu0 0.0
        %2883 = vmatpush1.msra.mxu0 0.0
        %2884 = vmatprep.subr.mxu0 0.0
        %2885 = vmatpush1.msra.mxu0 0.0
        %2886 = vmatprep.subr.mxu0 0.0
        %2887 = vmatpush1.msra.mxu0 0.0
        %2888 = vmatprep.subr.mxu0 0.0
        %2889 = vmatpush1.msra.mxu0 0.0
        %2890 = vmatprep.subr.mxu0 0.0
        %2891 = vmatpush1.msra.mxu0 0.0
        %2892 = vmatprep.subr.mxu0 0.0
        %2893 = vmatpush1.msra.mxu0 0.0
        %2894 = vmatprep.subr.mxu0 0.0
        %2895 = vmatpush1.msra.mxu0 0.0
        %2896 = vmatprep.subr.mxu0 0.0
        %2897 = vmatpush1.msra.mxu0 0.0
        %2898 = vmatprep.subr.mxu0 0.0
        %2899 = vmatpush1.msra.mxu0 0.0
        %2900 = vmatprep.subr.mxu0 0.0
        %2901 = vmatpush1.msra.mxu0 0.0
        %2902 = vmatprep.subr.mxu0 0.0
        %2903 = vmatpush1.msra.mxu0 0.0
        %2904 = vmatprep.subr.mxu0 0.0
        %2905 = vmatpush1.msra.mxu0 0.0
        %2906 = vmatprep.subr.mxu0 0.0
        %2907 = vmatpush1.msra.mxu0 0.0
        %2908 = vmatprep.subr.mxu0 0.0
        %2909 = vmatpush1.msra.mxu0 0.0
        %2910 = vmatprep.subr.mxu0 0.0
        %2911 = vmatpush1.msra.mxu0 0.0
        %2912 = vmatprep.subr.mxu0 0.0
        %2913 = vmatpush1.msra.mxu0 0.0
        %2914 = vmatprep.subr.mxu0 0.0
        %2915 = vmatpush1.msra.mxu0 0.0
        %2916 = vmatprep.subr.mxu0 0.0
        %2917 = vmatpush1.msra.mxu0 0.0
        %2918 = vmatprep.subr.mxu0 0.0
        %2919 = vmatpush1.msra.mxu0 0.0
        %2920 = vmatprep.subr.mxu0 0.0
        %2921 = vmatpush1.msra.mxu0 0.0
        %2922 = vmatprep.subr.mxu0 0.0
        %2923 = vmatpush1.msra.mxu0 0.0
        %2924 = vmatprep.subr.mxu0 0.0
        %2925 = vmatpush1.msra.mxu0 0.0
        %2926 = vmatprep.subr.mxu0 0.0
        %2927 = vmatpush1.msra.mxu0 0.0
        %2928 = vmatprep.subr.mxu0 0.0
        %2929 = vmatpush1.msra.mxu0 0.0
        %2930 = vmatprep.subr.mxu0 0.0
        %2931 = vmatpush1.msra.mxu0 0.0
        %2932 = vmatprep.subr.mxu0 0.0
        %2933 = vmatpush1.msra.mxu0 0.0
        %2934 = vmatprep.subr.mxu0 0.0
        %2935 = vmatpush1.msra.mxu0 0.0
        %2936 = vmatprep.mubr.f32.mxu0 0.0
        %2937 = vmatmul.mubr.f32.gmra.mrb[0].mxu0 %v2819
        %v2938 = vpop.f32.mrb[0].mxu0
        %v2939 = vadd.f32 0.0, %v2938
        %v2940 = vpop.f32.mrb[0].mxu0
        %v2941 = vadd.f32 0.0, %v2940
        %2942 = vmatprep.mubr.f32.mxu0 0.0
        %2943 = vmatmul.mubr.f32.gmra.mrb[0].mxu0 %v2822
        %v2944 = vpop.f32.mrb[0].mxu0
        %v2945 = vadd.f32 0.0, %v2944
        %v2946 = vpop.f32.mrb[0].mxu0
        %v2947 = vadd.f32 0.0, %v2946
        %2948 = vdwg.mxu0
        %2949 = vmatprep.subr.mxu0 %v2834
        %2950 = vmatpush1.msra.mxu0 %v2831
        %2951 = vmatprep.subr.mxu0 0.0
        %2952 = vmatpush1.msra.mxu0 0.0
        %2953 = vmatprep.subr.mxu0 0.0
        %2954 = vmatpush1.msra.mxu0 0.0
        %2955 = vmatprep.subr.mxu0 0.0
        %2956 = vmatpush1.msra.mxu0 0.0
        %2957 = vmatprep.subr.mxu0 0.0
        %2958 = vmatpush1.msra.mxu0 0.0
        %2959 = vmatprep.subr.mxu0 0.0
        %2960 = vmatpush1.msra.mxu0 0.0
        %2961 = vmatprep.subr.mxu0 0.0
        %2962 = vmatpush1.msra.mxu0 0.0
        %2963 = vmatprep.subr.mxu0 0.0
        %2964 = vmatpush1.msra.mxu0 0.0
        %2965 = vmatprep.subr.mxu0 0.0
        %2966 = vmatpush1.msra.mxu0 0.0
        %2967 = vmatprep.subr.mxu0 0.0
        %2968 = vmatpush1.msra.mxu0 0.0
        %2969 = vmatprep.subr.mxu0 0.0
        %2970 = vmatpush1.msra.mxu0 0.0
        %2971 = vmatprep.subr.mxu0 0.0
        %2972 = vmatpush1.msra.mxu0 0.0
        %2973 = vmatprep.subr.mxu0 0.0
        %2974 = vmatpush1.msra.mxu0 0.0
        %2975 = vmatprep.subr.mxu0 0.0
        %2976 = vmatpush1.msra.mxu0 0.0
        %2977 = vmatprep.subr.mxu0 0.0
        %2978 = vmatpush1.msra.mxu0 0.0
        %2979 = vmatprep.subr.mxu0 0.0
        %2980 = vmatpush1.msra.mxu0 0.0
        %2981 = vmatprep.subr.mxu0 0.0
        %2982 = vmatpush1.msra.mxu0 0.0
        %2983 = vmatprep.subr.mxu0 0.0
        %2984 = vmatpush1.msra.mxu0 0.0
        %2985 = vmatprep.subr.mxu0 0.0
        %2986 = vmatpush1.msra.mxu0 0.0
        %2987 = vmatprep.subr.mxu0 0.0
        %2988 = vmatpush1.msra.mxu0 0.0
        %2989 = vmatprep.subr.mxu0 0.0
        %2990 = vmatpush1.msra.mxu0 0.0
        %2991 = vmatprep.subr.mxu0 0.0
        %2992 = vmatpush1.msra.mxu0 0.0
        %2993 = vmatprep.subr.mxu0 0.0
        %2994 = vmatpush1.msra.mxu0 0.0
        %2995 = vmatprep.subr.mxu0 0.0
        %2996 = vmatpush1.msra.mxu0 0.0
        %2997 = vmatprep.subr.mxu0 0.0
        %2998 = vmatpush1.msra.mxu0 0.0
        %2999 = vmatprep.subr.mxu0 0.0
        %3000 = vmatpush1.msra.mxu0 0.0
        %3001 = vmatprep.subr.mxu0 0.0
        %3002 = vmatpush1.msra.mxu0 0.0
        %3003 = vmatprep.subr.mxu0 0.0
        %3004 = vmatpush1.msra.mxu0 0.0
        %3005 = vmatprep.subr.mxu0 0.0
        %3006 = vmatpush1.msra.mxu0 0.0
        %3007 = vmatprep.subr.mxu0 0.0
        %3008 = vmatpush1.msra.mxu0 0.0
        %3009 = vmatprep.subr.mxu0 0.0
        %3010 = vmatpush1.msra.mxu0 0.0
        %3011 = vmatprep.subr.mxu0 0.0
        %3012 = vmatpush1.msra.mxu0 0.0
        %3013 = vmatprep.mubr.f32.mxu0 0.0
        %3014 = vmatmul.mubr.f32.gmra.mrb[0].mxu0 %v2819
        %v3015 = vpop.f32.mrb[0].mxu0
        %v3016 = vadd.f32 0.0, %v3015
        %v3017 = vpop.f32.mrb[0].mxu0
        %v3018 = vadd.f32 0.0, %v3017
        %3019 = vmatprep.mubr.f32.mxu0 0.0
        %3020 = vmatmul.mubr.f32.gmra.mrb[0].mxu0 %v2822
        %v3021 = vpop.f32.mrb[0].mxu0
        %v3022 = vadd.f32 0.0, %v3021
        %v3023 = vpop.f32.mrb[0].mxu0
        %v3024 = vadd.f32 0.0, %v3023
        %3025 = vdwg.mxu0
        %3026 = vmatprep.subr.mxu0 %v2840
        %3027 = vmatpush1.msra.mxu0 %v2837
        %3028 = vmatprep.subr.mxu0 0.0
        %3029 = vmatpush1.msra.mxu0 0.0
        %3030 = vmatprep.subr.mxu0 0.0
        %3031 = vmatpush1.msra.mxu0 0.0
        %3032 = vmatprep.subr.mxu0 0.0
        %3033 = vmatpush1.msra.mxu0 0.0
        %3034 = vmatprep.subr.mxu0 0.0
        %3035 = vmatpush1.msra.mxu0 0.0
        %3036 = vmatprep.subr.mxu0 0.0
        %3037 = vmatpush1.msra.mxu0 0.0
        %3038 = vmatprep.subr.mxu0 0.0
        %3039 = vmatpush1.msra.mxu0 0.0
        %3040 = vmatprep.subr.mxu0 0.0
        %3041 = vmatpush1.msra.mxu0 0.0
        %3042 = vmatprep.subr.mxu0 0.0
        %3043 = vmatpush1.msra.mxu0 0.0
        %3044 = vmatprep.subr.mxu0 0.0
        %3045 = vmatpush1.msra.mxu0 0.0
        %3046 = vmatprep.subr.mxu0 0.0
        %3047 = vmatpush1.msra.mxu0 0.0
        %3048 = vmatprep.subr.mxu0 0.0
        %3049 = vmatpush1.msra.mxu0 0.0
        %3050 = vmatprep.subr.mxu0 0.0
        %3051 = vmatpush1.msra.mxu0 0.0
        %3052 = vmatprep.subr.mxu0 0.0
        %3053 = vmatpush1.msra.mxu0 0.0
        %3054 = vmatprep.subr.mxu0 0.0
        %3055 = vmatpush1.msra.mxu0 0.0
        %3056 = vmatprep.subr.mxu0 0.0
        %3057 = vmatpush1.msra.mxu0 0.0
        %3058 = vmatprep.subr.mxu0 0.0
        %3059 = vmatpush1.msra.mxu0 0.0
        %3060 = vmatprep.subr.mxu0 0.0
        %3061 = vmatpush1.msra.mxu0 0.0
        %3062 = vmatprep.subr.mxu0 0.0
        %3063 = vmatpush1.msra.mxu0 0.0
        %3064 = vmatprep.subr.mxu0 0.0
        %3065 = vmatpush1.msra.mxu0 0.0
        %3066 = vmatprep.subr.mxu0 0.0
        %3067 = vmatpush1.msra.mxu0 0.0
        %3068 = vmatprep.subr.mxu0 0.0
        %3069 = vmatpush1.msra.mxu0 0.0
        %3070 = vmatprep.subr.mxu0 0.0
        %3071 = vmatpush1.msra.mxu0 0.0
        %3072 = vmatprep.subr.mxu0 0.0
        %3073 = vmatpush1.msra.mxu0 0.0
        %3074 = vmatprep.subr.mxu0 0.0
        %3075 = vmatpush1.msra.mxu0 0.0
        %3076 = vmatprep.subr.mxu0 0.0
        %3077 = vmatpush1.msra.mxu0 0.0
        %3078 = vmatprep.subr.mxu0 0.0
        %3079 = vmatpush1.msra.mxu0 0.0
        %3080 = vmatprep.subr.mxu0 0.0
        %3081 = vmatpush1.msra.mxu0 0.0
        %3082 = vmatprep.subr.mxu0 0.0
        %3083 = vmatpush1.msra.mxu0 0.0
        %3084 = vmatprep.subr.mxu0 0.0
        %3085 = vmatpush1.msra.mxu0 0.0
        %3086 = vmatprep.subr.mxu0 0.0
        %3087 = vmatpush1.msra.mxu0 0.0
        %3088 = vmatprep.subr.mxu0 0.0
        %3089 = vmatpush1.msra.mxu0 0.0
        %3090 = vmatprep.mubr.f32.mxu0 0.0
        %3091 = vmatmul.mubr.f32.gmra.mrb[0].mxu0 %v2819
        %v3092 = vpop.f32.mrb[0].mxu0
        %v3093 = vadd.f32 0.0, %v3092
        %v3094 = vpop.f32.mrb[0].mxu0
        %v3095 = vadd.f32 0.0, %v3094
        %3096 = vmatprep.mubr.f32.mxu0 0.0
        %3097 = vmatmul.mubr.f32.gmra.mrb[0].mxu0 %v2822
        %v3098 = vpop.f32.mrb[0].mxu0
        %v3099 = vadd.f32 0.0, %v3098
        %v3100 = vpop.f32.mrb[0].mxu0
        %v3101 = vadd.f32 0.0, %v3100
        %3102 = vdwg.mxu0
        %3103 = vmatprep.subr.mxu0 %v2846
        %3104 = vmatpush1.msra.mxu0 %v2843
        %3105 = vmatprep.subr.mxu0 0.0
        %3106 = vmatpush1.msra.mxu0 0.0
        %3107 = vmatprep.subr.mxu0 0.0
        %3108 = vmatpush1.msra.mxu0 0.0
        %3109 = vmatprep.subr.mxu0 0.0
        %3110 = vmatpush1.msra.mxu0 0.0
        %3111 = vmatprep.subr.mxu0 0.0
        %3112 = vmatpush1.msra.mxu0 0.0
        %3113 = vmatprep.subr.mxu0 0.0
        %3114 = vmatpush1.msra.mxu0 0.0
        %3115 = vmatprep.subr.mxu0 0.0
        %3116 = vmatpush1.msra.mxu0 0.0
        %3117 = vmatprep.subr.mxu0 0.0
        %3118 = vmatpush1.msra.mxu0 0.0
        %3119 = vmatprep.subr.mxu0 0.0
        %3120 = vmatpush1.msra.mxu0 0.0
        %3121 = vmatprep.subr.mxu0 0.0
        %3122 = vmatpush1.msra.mxu0 0.0
        %3123 = vmatprep.subr.mxu0 0.0
        %3124 = vmatpush1.msra.mxu0 0.0
        %3125 = vmatprep.subr.mxu0 0.0
        %3126 = vmatpush1.msra.mxu0 0.0
        %3127 = vmatprep.subr.mxu0 0.0
        %3128 = vmatpush1.msra.mxu0 0.0
        %3129 = vmatprep.subr.mxu0 0.0
        %3130 = vmatpush1.msra.mxu0 0.0
        %3131 = vmatprep.subr.mxu0 0.0
        %3132 = vmatpush1.msra.mxu0 0.0
        %3133 = vmatprep.subr.mxu0 0.0
        %3134 = vmatpush1.msra.mxu0 0.0
        %3135 = vmatprep.subr.mxu0 0.0
        %3136 = vmatpush1.msra.mxu0 0.0
        %3137 = vmatprep.subr.mxu0 0.0
        %3138 = vmatpush1.msra.mxu0 0.0
        %3139 = vmatprep.subr.mxu0 0.0
        %3140 = vmatpush1.msra.mxu0 0.0
        %3141 = vmatprep.subr.mxu0 0.0
        %3142 = vmatpush1.msra.mxu0 0.0
        %3143 = vmatprep.subr.mxu0 0.0
        %3144 = vmatpush1.msra.mxu0 0.0
        %3145 = vmatprep.subr.mxu0 0.0
        %3146 = vmatpush1.msra.mxu0 0.0
        %3147 = vmatprep.subr.mxu0 0.0
        %3148 = vmatpush1.msra.mxu0 0.0
        %3149 = vmatprep.subr.mxu0 0.0
        %3150 = vmatpush1.msra.mxu0 0.0
        %3151 = vmatprep.subr.mxu0 0.0
        %3152 = vmatpush1.msra.mxu0 0.0
        %3153 = vmatprep.subr.mxu0 0.0
        %3154 = vmatpush1.msra.mxu0 0.0
        %3155 = vmatprep.subr.mxu0 0.0
        %3156 = vmatpush1.msra.mxu0 0.0
        %3157 = vmatprep.subr.mxu0 0.0
        %3158 = vmatpush1.msra.mxu0 0.0
        %3159 = vmatprep.subr.mxu0 0.0
        %3160 = vmatpush1.msra.mxu0 0.0
        %3161 = vmatprep.subr.mxu0 0.0
        %3162 = vmatpush1.msra.mxu0 0.0
        %3163 = vmatprep.subr.mxu0 0.0
        %3164 = vmatpush1.msra.mxu0 0.0
        %3165 = vmatprep.subr.mxu0 0.0
        %3166 = vmatpush1.msra.mxu0 0.0
        %3167 = vmatprep.mubr.f32.mxu0 0.0
        %3168 = vmatmul.mubr.f32.gmra.mrb[0].mxu0 %v2819
        %v3169 = vpop.f32.mrb[0].mxu0
        %v3170 = vadd.f32 0.0, %v3169
        %v3171 = vpop.f32.mrb[0].mxu0
        %v3172 = vadd.f32 0.0, %v3171
        %3173 = vmatprep.mubr.f32.mxu0 0.0
        %3174 = vmatmul.mubr.f32.gmra.mrb[0].mxu0 %v2822
        %v3175 = vpop.f32.mrb[0].mxu0
        %v3176 = vadd.f32 0.0, %v3175
        %v3177 = vpop.f32.mrb[0].mxu0
        %v3178 = vadd.f32 0.0, %v3177
        %3179 = vdwg.mxu0
        %3180 = vmatprep.subr.mxu0 %v2852
        %3181 = vmatpush1.msra.mxu0 %v2849
        %3182 = vmatprep.subr.mxu0 0.0
        %3183 = vmatpush1.msra.mxu0 0.0
        %3184 = vmatprep.subr.mxu0 0.0
        %3185 = vmatpush1.msra.mxu0 0.0
        %3186 = vmatprep.subr.mxu0 0.0
        %3187 = vmatpush1.msra.mxu0 0.0
        %3188 = vmatprep.subr.mxu0 0.0
        %3189 = vmatpush1.msra.mxu0 0.0
        %3190 = vmatprep.subr.mxu0 0.0
        %3191 = vmatpush1.msra.mxu0 0.0
        %3192 = vmatprep.subr.mxu0 0.0
        %3193 = vmatpush1.msra.mxu0 0.0
        %3194 = vmatprep.subr.mxu0 0.0
        %3195 = vmatpush1.msra.mxu0 0.0
        %3196 = vmatprep.subr.mxu0 0.0
        %3197 = vmatpush1.msra.mxu0 0.0
        %3198 = vmatprep.subr.mxu0 0.0
        %3199 = vmatpush1.msra.mxu0 0.0
        %3200 = vmatprep.subr.mxu0 0.0
        %3201 = vmatpush1.msra.mxu0 0.0
        %3202 = vmatprep.subr.mxu0 0.0
        %3203 = vmatpush1.msra.mxu0 0.0
        %3204 = vmatprep.subr.mxu0 0.0
        %3205 = vmatpush1.msra.mxu0 0.0
        %3206 = vmatprep.subr.mxu0 0.0
        %3207 = vmatpush1.msra.mxu0 0.0
        %3208 = vmatprep.subr.mxu0 0.0
        %3209 = vmatpush1.msra.mxu0 0.0
        %3210 = vmatprep.subr.mxu0 0.0
        %3211 = vmatpush1.msra.mxu0 0.0
        %3212 = vmatprep.subr.mxu0 0.0
        %3213 = vmatpush1.msra.mxu0 0.0
        %3214 = vmatprep.subr.mxu0 0.0
        %3215 = vmatpush1.msra.mxu0 0.0
        %3216 = vmatprep.subr.mxu0 0.0
        %3217 = vmatpush1.msra.mxu0 0.0
        %3218 = vmatprep.subr.mxu0 0.0
        %3219 = vmatpush1.msra.mxu0 0.0
        %3220 = vmatprep.subr.mxu0 0.0
        %3221 = vmatpush1.msra.mxu0 0.0
        %3222 = vmatprep.subr.mxu0 0.0
        %3223 = vmatpush1.msra.mxu0 0.0
        %3224 = vmatprep.subr.mxu0 0.0
        %3225 = vmatpush1.msra.mxu0 0.0
        %3226 = vmatprep.subr.mxu0 0.0
        %3227 = vmatpush1.msra.mxu0 0.0
        %3228 = vmatprep.subr.mxu0 0.0
        %3229 = vmatpush1.msra.mxu0 0.0
        %3230 = vmatprep.subr.mxu0 0.0
        %3231 = vmatpush1.msra.mxu0 0.0
        %3232 = vmatprep.subr.mxu0 0.0
        %3233 = vmatpush1.msra.mxu0 0.0
        %3234 = vmatprep.subr.mxu0 0.0
        %3235 = vmatpush1.msra.mxu0 0.0
        %3236 = vmatprep.subr.mxu0 0.0
        %3237 = vmatpush1.msra.mxu0 0.0
        %3238 = vmatprep.subr.mxu0 0.0
        %3239 = vmatpush1.msra.mxu0 0.0
        %3240 = vmatprep.subr.mxu0 0.0
        %3241 = vmatpush1.msra.mxu0 0.0
        %3242 = vmatprep.subr.mxu0 0.0
        %3243 = vmatpush1.msra.mxu0 0.0
        %3244 = vmatprep.mubr.f32.mxu0 0.0
        %3245 = vmatmul.mubr.f32.gmra.mrb[0].mxu0 %v2819
        %v3246 = vpop.f32.mrb[0].mxu0
        %v3247 = vadd.f32 0.0, %v3246
        %v3248 = vpop.f32.mrb[0].mxu0
        %v3249 = vadd.f32 0.0, %v3248
        %3250 = vmatprep.mubr.f32.mxu0 0.0
        %3251 = vmatmul.mubr.f32.gmra.mrb[0].mxu0 %v2822
        %v3252 = vpop.f32.mrb[0].mxu0
        %v3253 = vadd.f32 0.0, %v3252
        %v3254 = vpop.f32.mrb[0].mxu0
        %v3255 = vadd.f32 0.0, %v3254
        %3256 = vdwg.mxu0
        %3257 = vmatprep.subr.mxu0 %v2858
        %3258 = vmatpush1.msra.mxu0 %v2855
        %3259 = vmatprep.subr.mxu0 0.0
        %3260 = vmatpush1.msra.mxu0 0.0
        %3261 = vmatprep.subr.mxu0 0.0
        %3262 = vmatpush1.msra.mxu0 0.0
        %3263 = vmatprep.subr.mxu0 0.0
        %3264 = vmatpush1.msra.mxu0 0.0
        %3265 = vmatprep.subr.mxu0 0.0
        %3266 = vmatpush1.msra.mxu0 0.0
        %3267 = vmatprep.subr.mxu0 0.0
        %3268 = vmatpush1.msra.mxu0 0.0
        %3269 = vmatprep.subr.mxu0 0.0
        %3270 = vmatpush1.msra.mxu0 0.0
        %3271 = vmatprep.subr.mxu0 0.0
        %3272 = vmatpush1.msra.mxu0 0.0
        %3273 = vmatprep.subr.mxu0 0.0
        %3274 = vmatpush1.msra.mxu0 0.0
        %3275 = vmatprep.subr.mxu0 0.0
        %3276 = vmatpush1.msra.mxu0 0.0
        %3277 = vmatprep.subr.mxu0 0.0
        %3278 = vmatpush1.msra.mxu0 0.0
        %3279 = vmatprep.subr.mxu0 0.0
        %3280 = vmatpush1.msra.mxu0 0.0
        %3281 = vmatprep.subr.mxu0 0.0
        %3282 = vmatpush1.msra.mxu0 0.0
        %3283 = vmatprep.subr.mxu0 0.0
        %3284 = vmatpush1.msra.mxu0 0.0
        %3285 = vmatprep.subr.mxu0 0.0
        %3286 = vmatpush1.msra.mxu0 0.0
        %3287 = vmatprep.subr.mxu0 0.0
        %3288 = vmatpush1.msra.mxu0 0.0
        %3289 = vmatprep.subr.mxu0 0.0
        %3290 = vmatpush1.msra.mxu0 0.0
        %3291 = vmatprep.subr.mxu0 0.0
        %3292 = vmatpush1.msra.mxu0 0.0
        %3293 = vmatprep.subr.mxu0 0.0
        %3294 = vmatpush1.msra.mxu0 0.0
        %3295 = vmatprep.subr.mxu0 0.0
        %3296 = vmatpush1.msra.mxu0 0.0
        %3297 = vmatprep.subr.mxu0 0.0
        %3298 = vmatpush1.msra.mxu0 0.0
        %3299 = vmatprep.subr.mxu0 0.0
        %3300 = vmatpush1.msra.mxu0 0.0
        %3301 = vmatprep.subr.mxu0 0.0
        %3302 = vmatpush1.msra.mxu0 0.0
        %3303 = vmatprep.subr.mxu0 0.0
        %3304 = vmatpush1.msra.mxu0 0.0
        %3305 = vmatprep.subr.mxu0 0.0
        %3306 = vmatpush1.msra.mxu0 0.0
        %3307 = vmatprep.subr.mxu0 0.0
        %3308 = vmatpush1.msra.mxu0 0.0
        %3309 = vmatprep.subr.mxu0 0.0
        %3310 = vmatpush1.msra.mxu0 0.0
        %3311 = vmatprep.subr.mxu0 0.0
        %3312 = vmatpush1.msra.mxu0 0.0
        %3313 = vmatprep.subr.mxu0 0.0
        %3314 = vmatpush1.msra.mxu0 0.0
        %3315 = vmatprep.subr.mxu0 0.0
        %3316 = vmatpush1.msra.mxu0 0.0
        %3317 = vmatprep.subr.mxu0 0.0
        %3318 = vmatpush1.msra.mxu0 0.0
        %3319 = vmatprep.subr.mxu0 0.0
        %3320 = vmatpush1.msra.mxu0 0.0
        %3321 = vmatprep.mubr.f32.mxu0 0.0
        %3322 = vmatmul.mubr.f32.gmra.mrb[0].mxu0 %v2819
        %v3323 = vpop.f32.mrb[0].mxu0
        %v3324 = vadd.f32 0.0, %v3323
        %v3325 = vpop.f32.mrb[0].mxu0
        %v3326 = vadd.f32 0.0, %v3325
        %3327 = vmatprep.mubr.f32.mxu0 0.0
        %3328 = vmatmul.mubr.f32.gmra.mrb[0].mxu0 %v2822
        %v3329 = vpop.f32.mrb[0].mxu0
        %v3330 = vadd.f32 0.0, %v3329
        %v3331 = vpop.f32.mrb[0].mxu0
        %v3332 = vadd.f32 0.0, %v3331
        %3333 = vdwg.mxu0
        %3334 = vmatprep.subr.mxu0 %v2864
        %3335 = vmatpush1.msra.mxu0 %v2861
        %3336 = vmatprep.subr.mxu0 0.0
        %3337 = vmatpush1.msra.mxu0 0.0
        %3338 = vmatprep.subr.mxu0 0.0
        %3339 = vmatpush1.msra.mxu0 0.0
        %3340 = vmatprep.subr.mxu0 0.0
        %3341 = vmatpush1.msra.mxu0 0.0
        %3342 = vmatprep.subr.mxu0 0.0
        %3343 = vmatpush1.msra.mxu0 0.0
        %3344 = vmatprep.subr.mxu0 0.0
        %3345 = vmatpush1.msra.mxu0 0.0
        %3346 = vmatprep.subr.mxu0 0.0
        %3347 = vmatpush1.msra.mxu0 0.0
        %3348 = vmatprep.subr.mxu0 0.0
        %3349 = vmatpush1.msra.mxu0 0.0
        %3350 = vmatprep.subr.mxu0 0.0
        %3351 = vmatpush1.msra.mxu0 0.0
        %3352 = vmatprep.subr.mxu0 0.0
        %3353 = vmatpush1.msra.mxu0 0.0
        %3354 = vmatprep.subr.mxu0 0.0
        %3355 = vmatpush1.msra.mxu0 0.0
        %3356 = vmatprep.subr.mxu0 0.0
        %3357 = vmatpush1.msra.mxu0 0.0
        %3358 = vmatprep.subr.mxu0 0.0
        %3359 = vmatpush1.msra.mxu0 0.0
        %3360 = vmatprep.subr.mxu0 0.0
        %3361 = vmatpush1.msra.mxu0 0.0
        %3362 = vmatprep.subr.mxu0 0.0
        %3363 = vmatpush1.msra.mxu0 0.0
        %3364 = vmatprep.subr.mxu0 0.0
        %3365 = vmatpush1.msra.mxu0 0.0
        %3366 = vmatprep.subr.mxu0 0.0
        %3367 = vmatpush1.msra.mxu0 0.0
        %3368 = vmatprep.subr.mxu0 0.0
        %3369 = vmatpush1.msra.mxu0 0.0
        %3370 = vmatprep.subr.mxu0 0.0
        %3371 = vmatpush1.msra.mxu0 0.0
        %3372 = vmatprep.subr.mxu0 0.0
        %3373 = vmatpush1.msra.mxu0 0.0
        %3374 = vmatprep.subr.mxu0 0.0
        %3375 = vmatpush1.msra.mxu0 0.0
        %3376 = vmatprep.subr.mxu0 0.0
        %3377 = vmatpush1.msra.mxu0 0.0
        %3378 = vmatprep.subr.mxu0 0.0
        %3379 = vmatpush1.msra.mxu0 0.0
        %3380 = vmatprep.subr.mxu0 0.0
        %3381 = vmatpush1.msra.mxu0 0.0
        %3382 = vmatprep.subr.mxu0 0.0
        %3383 = vmatpush1.msra.mxu0 0.0
        %3384 = vmatprep.subr.mxu0 0.0
        %3385 = vmatpush1.msra.mxu0 0.0
        %3386 = vmatprep.subr.mxu0 0.0
        %3387 = vmatpush1.msra.mxu0 0.0
        %3388 = vmatprep.subr.mxu0 0.0
        %3389 = vmatpush1.msra.mxu0 0.0
        %3390 = vmatprep.subr.mxu0 0.0
        %3391 = vmatpush1.msra.mxu0 0.0
        %3392 = vmatprep.subr.mxu0 0.0
        %3393 = vmatpush1.msra.mxu0 0.0
        %3394 = vmatprep.subr.mxu0 0.0
        %3395 = vmatpush1.msra.mxu0 0.0
        %3396 = vmatprep.subr.mxu0 0.0
        %3397 = vmatpush1.msra.mxu0 0.0
        %3398 = vmatprep.mubr.f32.mxu0 0.0
        %3399 = vmatmul.mubr.f32.gmra.mrb[0].mxu0 %v2819
        %v3400 = vpop.f32.mrb[0].mxu0
        %v3401 = vadd.f32 0.0, %v3400
        %v3402 = vpop.f32.mrb[0].mxu0
        %v3403 = vadd.f32 0.0, %v3402
        %3404 = vmatprep.mubr.f32.mxu0 0.0
        %3405 = vmatmul.mubr.f32.gmra.mrb[0].mxu0 %v2822
        %v3406 = vpop.f32.mrb[0].mxu0
        %v3407 = vadd.f32 0.0, %v3406
        %v3408 = vpop.f32.mrb[0].mxu0
        %v3409 = vadd.f32 0.0, %v3408
        %3410 = vdwg.mxu0
        %3411 = vmatprep.subr.mxu0 %v2870
        %3412 = vmatpush1.msra.mxu0 %v2867
        %3413 = vmatprep.subr.mxu0 0.0
        %3414 = vmatpush1.msra.mxu0 0.0
        %3415 = vmatprep.subr.mxu0 0.0
        %3416 = vmatpush1.msra.mxu0 0.0
        %3417 = vmatprep.subr.mxu0 0.0
        %3418 = vmatpush1.msra.mxu0 0.0
        %3419 = vmatprep.subr.mxu0 0.0
        %3420 = vmatpush1.msra.mxu0 0.0
        %3421 = vmatprep.subr.mxu0 0.0
        %3422 = vmatpush1.msra.mxu0 0.0
        %3423 = vmatprep.subr.mxu0 0.0
        %3424 = vmatpush1.msra.mxu0 0.0
        %3425 = vmatprep.subr.mxu0 0.0
        %3426 = vmatpush1.msra.mxu0 0.0
        %3427 = vmatprep.subr.mxu0 0.0
        %3428 = vmatpush1.msra.mxu0 0.0
        %3429 = vmatprep.subr.mxu0 0.0
        %3430 = vmatpush1.msra.mxu0 0.0
        %3431 = vmatprep.subr.mxu0 0.0
        %3432 = vmatpush1.msra.mxu0 0.0
        %3433 = vmatprep.subr.mxu0 0.0
        %3434 = vmatpush1.msra.mxu0 0.0
        %3435 = vmatprep.subr.mxu0 0.0
        %3436 = vmatpush1.msra.mxu0 0.0
        %3437 = vmatprep.subr.mxu0 0.0
        %3438 = vmatpush1.msra.mxu0 0.0
        %3439 = vmatprep.subr.mxu0 0.0
        %3440 = vmatpush1.msra.mxu0 0.0
        %3441 = vmatprep.subr.mxu0 0.0
        %3442 = vmatpush1.msra.mxu0 0.0
        %3443 = vmatprep.subr.mxu0 0.0
        %3444 = vmatpush1.msra.mxu0 0.0
        %3445 = vmatprep.subr.mxu0 0.0
        %3446 = vmatpush1.msra.mxu0 0.0
        %3447 = vmatprep.subr.mxu0 0.0
        %3448 = vmatpush1.msra.mxu0 0.0
        %3449 = vmatprep.subr.mxu0 0.0
        %3450 = vmatpush1.msra.mxu0 0.0
        %3451 = vmatprep.subr.mxu0 0.0
        %3452 = vmatpush1.msra.mxu0 0.0
        %3453 = vmatprep.subr.mxu0 0.0
        %3454 = vmatpush1.msra.mxu0 0.0
        %3455 = vmatprep.subr.mxu0 0.0
        %3456 = vmatpush1.msra.mxu0 0.0
        %3457 = vmatprep.subr.mxu0 0.0
        %3458 = vmatpush1.msra.mxu0 0.0
        %3459 = vmatprep.subr.mxu0 0.0
        %3460 = vmatpush1.msra.mxu0 0.0
        %3461 = vmatprep.subr.mxu0 0.0
        %3462 = vmatpush1.msra.mxu0 0.0
        %3463 = vmatprep.subr.mxu0 0.0
        %3464 = vmatpush1.msra.mxu0 0.0
        %3465 = vmatprep.subr.mxu0 0.0
        %3466 = vmatpush1.msra.mxu0 0.0
        %3467 = vmatprep.subr.mxu0 0.0
        %3468 = vmatpush1.msra.mxu0 0.0
        %3469 = vmatprep.subr.mxu0 0.0
        %3470 = vmatpush1.msra.mxu0 0.0
        %3471 = vmatprep.subr.mxu0 0.0
        %3472 = vmatpush1.msra.mxu0 0.0
        %3473 = vmatprep.subr.mxu0 0.0
        %3474 = vmatpush1.msra.mxu0 0.0
        %3475 = vmatprep.mubr.f32.mxu0 0.0
        %3476 = vmatmul.mubr.f32.gmra.mrb[0].mxu0 %v2819
        %v3477 = vpop.f32.mrb[0].mxu0
        %v3478 = vadd.f32 0.0, %v3477
        %v3479 = vpop.f32.mrb[0].mxu0
        %v3480 = vadd.f32 0.0, %v3479
        %3481 = vmatprep.mubr.f32.mxu0 0.0
        %3482 = vmatmul.mubr.f32.gmra.mrb[0].mxu0 %v2822
        %v3483 = vpop.f32.mrb[0].mxu0
        %v3484 = vadd.f32 0.0, %v3483
        %v3485 = vpop.f32.mrb[0].mxu0
        %v3486 = vadd.f32 0.0, %v3485
        %3487 = vdwg.mxu0
        %v3488 = vadd.f32 %v2700, %v2939
        %v3489 = vadd.f32 %v2701, %v2941
        %v3490 = vadd.f32 %v2702, %v3016
        %v3491 = vadd.f32 %v2703, %v3018
        %v3492 = vadd.f32 %v2704, %v3093
        %v3493 = vadd.f32 %v2705, %v3095
        %v3494 = vadd.f32 %v2706, %v3170
        %v3495 = vadd.f32 %v2707, %v3172
        %v3496 = vadd.f32 %v2708, %v3247
        %v3497 = vadd.f32 %v2709, %v3249
        %v3498 = vadd.f32 %v2710, %v3324
        %v3499 = vadd.f32 %v2711, %v3326
        %v3500 = vadd.f32 %v2712, %v3401
        %v3501 = vadd.f32 %v2713, %v3403
        %v3502 = vadd.f32 %v2714, %v3478
        %v3503 = vadd.f32 %v2715, %v3480
        %v3504 = vadd.f32 %v2716, %v2945
        %v3505 = vadd.f32 %v2717, %v2947
        %v3506 = vadd.f32 %v2718, %v3022
        %v3507 = vadd.f32 %v2719, %v3024
        %v3508 = vadd.f32 %v2720, %v3099
        %v3509 = vadd.f32 %v2721, %v3101
        %v3510 = vadd.f32 %v2722, %v3176
        %v3511 = vadd.f32 %v2723, %v3178
        %v3512 = vadd.f32 %v2724, %v3253
        %v3513 = vadd.f32 %v2725, %v3255
        %v3514 = vadd.f32 %v2726, %v3330
        %v3515 = vadd.f32 %v2727, %v3332
        %v3516 = vadd.f32 %v2728, %v3407
        %v3517 = vadd.f32 %v2729, %v3409
        %v3518 = vadd.f32 %v2730, %v3484
        %v3519 = vadd.f32 %v2731, %v3486
        %s3520 = scalar_lea.vmem %s0, 64
        %v3521 = vld [vmem:[%s3520] sm:$0xff]
        %v3522 = vld [vmem:[%s3520 + $0x8] sm:$0xff]
        %3523 = vrot.lane.b32.xlu0 %v447, 63
        %v3524 = vpop.permute.xlu0 %3523
        %3525 = vrot.lane.b32.xlu0 %v448, 63
        %v3526 = vpop.permute.xlu0 %3525
        %3527 = vrot.lane.b32.xlu0 %v449, 63
        %v3528 = vpop.permute.xlu0 %3527
        %3529 = vrot.lane.b32.xlu0 %v450, 63
        %v3530 = vpop.permute.xlu0 %3529
        %3531 = vrot.lane.b32.xlu0 %v451, 63
        %v3532 = vpop.permute.xlu0 %3531
        %3533 = vrot.lane.b32.xlu0 %v452, 63
        %v3534 = vpop.permute.xlu0 %3533
        %3535 = vrot.lane.b32.xlu0 %v453, 63
        %v3536 = vpop.permute.xlu0 %3535
        %3537 = vrot.lane.b32.xlu0 %v454, 63
        %v3538 = vpop.permute.xlu0 %3537
        %3539 = vrot.lane.b32.xlu0 %v455, 63
        %v3540 = vpop.permute.xlu0 %3539
        %3541 = vrot.lane.b32.xlu0 %v456, 63
        %v3542 = vpop.permute.xlu0 %3541
        %3543 = vrot.lane.b32.xlu0 %v457, 63
        %v3544 = vpop.permute.xlu0 %3543
        %3545 = vrot.lane.b32.xlu0 %v458, 63
        %v3546 = vpop.permute.xlu0 %3545
        %3547 = vrot.lane.b32.xlu0 %v459, 63
        %v3548 = vpop.permute.xlu0 %3547
        %3549 = vrot.lane.b32.xlu0 %v460, 63
        %v3550 = vpop.permute.xlu0 %3549
        %3551 = vrot.lane.b32.xlu0 %v461, 63
        %v3552 = vpop.permute.xlu0 %3551
        %3553 = vrot.lane.b32.xlu0 %v462, 63
        %v3554 = vpop.permute.xlu0 %3553
        %3555 = vrot.lane.b32.xlu0 %v514, 63
        %v3556 = vpop.permute.xlu0 %3555
        %vm3557 = vcmask 515072
        %v3558 = vsel %vm3557, %v3524, %v3526
        %v3559 = vsel %vm3557, %v3526, %v3528
        %v3560 = vsel %vm3557, %v3528, %v3530
        %v3561 = vsel %vm3557, %v3530, %v3532
        %v3562 = vsel %vm3557, %v3532, %v3534
        %v3563 = vsel %vm3557, %v3534, %v3536
        %v3564 = vsel %vm3557, %v3536, %v3538
        %v3565 = vsel %vm3557, %v3538, %v3540
        %v3566 = vsel %vm3557, %v3540, %v3542
        %v3567 = vsel %vm3557, %v3542, %v3544
        %v3568 = vsel %vm3557, %v3544, %v3546
        %v3569 = vsel %vm3557, %v3546, %v3548
        %v3570 = vsel %vm3557, %v3548, %v3550
        %v3571 = vsel %vm3557, %v3550, %v3552
        %v3572 = vsel %vm3557, %v3552, %v3554
        %v3573 = vsel %vm3557, %v3554, %v3556
        %v3575 = vsel %vm586, %v3521, 0
        %v3578 = vsel %vm586, %v3522, 0
        %v3580 = vsel %vm593, %v3558, 0
        %v3582 = vsel %vm593, %v3559, 0
        %v3584 = vsel %vm593, %v3560, 0
        %v3586 = vsel %vm593, %v3561, 0
        %v3588 = vsel %vm593, %v3562, 0
        %v3590 = vsel %vm593, %v3563, 0
        %v3592 = vsel %vm593, %v3564, 0
        %v3594 = vsel %vm593, %v3565, 0
        %v3596 = vsel %vm593, %v3566, 0
        %v3598 = vsel %vm593, %v3567, 0
        %v3600 = vsel %vm593, %v3568, 0
        %v3602 = vsel %vm593, %v3569, 0
        %v3604 = vsel %vm593, %v3570, 0
        %v3606 = vsel %vm593, %v3571, 0
        %v3608 = vsel %vm593, %v3572, 0
        %v3610 = vsel %vm593, %v3573, 0
        %3612 = vmatprep.subr.mxu0 %v3582
        %3613 = vmatpush1.msra.mxu0 %v3580
        %3614 = vmatprep.subr.mxu0 0.0
        %3615 = vmatpush1.msra.mxu0 0.0
        %3616 = vmatprep.subr.mxu0 0.0
        %3617 = vmatpush1.msra.mxu0 0.0
        %3618 = vmatprep.subr.mxu0 0.0
        %3619 = vmatpush1.msra.mxu0 0.0
        %3620 = vmatprep.subr.mxu0 0.0
        %3621 = vmatpush1.msra.mxu0 0.0
        %3622 = vmatprep.subr.mxu0 0.0
        %3623 = vmatpush1.msra.mxu0 0.0
        %3624 = vmatprep.subr.mxu0 0.0
        %3625 = vmatpush1.msra.mxu0 0.0
        %3626 = vmatprep.subr.mxu0 0.0
        %3627 = vmatpush1.msra.mxu0 0.0
        %3628 = vmatprep.subr.mxu0 0.0
        %3629 = vmatpush1.msra.mxu0 0.0
        %3630 = vmatprep.subr.mxu0 0.0
        %3631 = vmatpush1.msra.mxu0 0.0
        %3632 = vmatprep.subr.mxu0 0.0
        %3633 = vmatpush1.msra.mxu0 0.0
        %3634 = vmatprep.subr.mxu0 0.0
        %3635 = vmatpush1.msra.mxu0 0.0
        %3636 = vmatprep.subr.mxu0 0.0
        %3637 = vmatpush1.msra.mxu0 0.0
        %3638 = vmatprep.subr.mxu0 0.0
        %3639 = vmatpush1.msra.mxu0 0.0
        %3640 = vmatprep.subr.mxu0 0.0
        %3641 = vmatpush1.msra.mxu0 0.0
        %3642 = vmatprep.subr.mxu0 0.0
        %3643 = vmatpush1.msra.mxu0 0.0
        %3644 = vmatprep.subr.mxu0 0.0
        %3645 = vmatpush1.msra.mxu0 0.0
        %3646 = vmatprep.subr.mxu0 0.0
        %3647 = vmatpush1.msra.mxu0 0.0
        %3648 = vmatprep.subr.mxu0 0.0
        %3649 = vmatpush1.msra.mxu0 0.0
        %3650 = vmatprep.subr.mxu0 0.0
        %3651 = vmatpush1.msra.mxu0 0.0
        %3652 = vmatprep.subr.mxu0 0.0
        %3653 = vmatpush1.msra.mxu0 0.0
        %3654 = vmatprep.subr.mxu0 0.0
        %3655 = vmatpush1.msra.mxu0 0.0
        %3656 = vmatprep.subr.mxu0 0.0
        %3657 = vmatpush1.msra.mxu0 0.0
        %3658 = vmatprep.subr.mxu0 0.0
        %3659 = vmatpush1.msra.mxu0 0.0
        %3660 = vmatprep.subr.mxu0 0.0
        %3661 = vmatpush1.msra.mxu0 0.0
        %3662 = vmatprep.subr.mxu0 0.0
        %3663 = vmatpush1.msra.mxu0 0.0
        %3664 = vmatprep.subr.mxu0 0.0
        %3665 = vmatpush1.msra.mxu0 0.0
        %3666 = vmatprep.subr.mxu0 0.0
        %3667 = vmatpush1.msra.mxu0 0.0
        %3668 = vmatprep.subr.mxu0 0.0
        %3669 = vmatpush1.msra.mxu0 0.0
        %3670 = vmatprep.subr.mxu0 0.0
        %3671 = vmatpush1.msra.mxu0 0.0
        %3672 = vmatprep.subr.mxu0 0.0
        %3673 = vmatpush1.msra.mxu0 0.0
        %3674 = vmatprep.subr.mxu0 0.0
        %3675 = vmatpush1.msra.mxu0 0.0
        %3676 = vmatprep.mubr.f32.mxu0 0.0
        %3677 = vmatmul.mubr.f32.gmra.mrb[0].mxu0 %v3575
        %v3678 = vpop.f32.mrb[0].mxu0
        %v3679 = vadd.f32 0.0, %v3678
        %v3680 = vpop.f32.mrb[0].mxu0
        %v3681 = vadd.f32 0.0, %v3680
        %3682 = vmatprep.mubr.f32.mxu0 0.0
        %3683 = vmatmul.mubr.f32.gmra.mrb[0].mxu0 %v3578
        %v3684 = vpop.f32.mrb[0].mxu0
        %v3685 = vadd.f32 0.0, %v3684
        %v3686 = vpop.f32.mrb[0].mxu0
        %v3687 = vadd.f32 0.0, %v3686
        %3688 = vdwg.mxu0
        %3689 = vmatprep.subr.mxu0 %v3586
        %3690 = vmatpush1.msra.mxu0 %v3584
        %3691 = vmatprep.subr.mxu0 0.0
        %3692 = vmatpush1.msra.mxu0 0.0
        %3693 = vmatprep.subr.mxu0 0.0
        %3694 = vmatpush1.msra.mxu0 0.0
        %3695 = vmatprep.subr.mxu0 0.0
        %3696 = vmatpush1.msra.mxu0 0.0
        %3697 = vmatprep.subr.mxu0 0.0
        %3698 = vmatpush1.msra.mxu0 0.0
        %3699 = vmatprep.subr.mxu0 0.0
        %3700 = vmatpush1.msra.mxu0 0.0
        %3701 = vmatprep.subr.mxu0 0.0
        %3702 = vmatpush1.msra.mxu0 0.0
        %3703 = vmatprep.subr.mxu0 0.0
        %3704 = vmatpush1.msra.mxu0 0.0
        %3705 = vmatprep.subr.mxu0 0.0
        %3706 = vmatpush1.msra.mxu0 0.0
        %3707 = vmatprep.subr.mxu0 0.0
        %3708 = vmatpush1.msra.mxu0 0.0
        %3709 = vmatprep.subr.mxu0 0.0
        %3710 = vmatpush1.msra.mxu0 0.0
        %3711 = vmatprep.subr.mxu0 0.0
        %3712 = vmatpush1.msra.mxu0 0.0
        %3713 = vmatprep.subr.mxu0 0.0
        %3714 = vmatpush1.msra.mxu0 0.0
        %3715 = vmatprep.subr.mxu0 0.0
        %3716 = vmatpush1.msra.mxu0 0.0
        %3717 = vmatprep.subr.mxu0 0.0
        %3718 = vmatpush1.msra.mxu0 0.0
        %3719 = vmatprep.subr.mxu0 0.0
        %3720 = vmatpush1.msra.mxu0 0.0
        %3721 = vmatprep.subr.mxu0 0.0
        %3722 = vmatpush1.msra.mxu0 0.0
        %3723 = vmatprep.subr.mxu0 0.0
        %3724 = vmatpush1.msra.mxu0 0.0
        %3725 = vmatprep.subr.mxu0 0.0
        %3726 = vmatpush1.msra.mxu0 0.0
        %3727 = vmatprep.subr.mxu0 0.0
        %3728 = vmatpush1.msra.mxu0 0.0
        %3729 = vmatprep.subr.mxu0 0.0
        %3730 = vmatpush1.msra.mxu0 0.0
        %3731 = vmatprep.subr.mxu0 0.0
        %3732 = vmatpush1.msra.mxu0 0.0
        %3733 = vmatprep.subr.mxu0 0.0
        %3734 = vmatpush1.msra.mxu0 0.0
        %3735 = vmatprep.subr.mxu0 0.0
        %3736 = vmatpush1.msra.mxu0 0.0
        %3737 = vmatprep.subr.mxu0 0.0
        %3738 = vmatpush1.msra.mxu0 0.0
        %3739 = vmatprep.subr.mxu0 0.0
        %3740 = vmatpush1.msra.mxu0 0.0
        %3741 = vmatprep.subr.mxu0 0.0
        %3742 = vmatpush1.msra.mxu0 0.0
        %3743 = vmatprep.subr.mxu0 0.0
        %3744 = vmatpush1.msra.mxu0 0.0
        %3745 = vmatprep.subr.mxu0 0.0
        %3746 = vmatpush1.msra.mxu0 0.0
        %3747 = vmatprep.subr.mxu0 0.0
        %3748 = vmatpush1.msra.mxu0 0.0
        %3749 = vmatprep.subr.mxu0 0.0
        %3750 = vmatpush1.msra.mxu0 0.0
        %3751 = vmatprep.subr.mxu0 0.0
        %3752 = vmatpush1.msra.mxu0 0.0
        %3753 = vmatprep.mubr.f32.mxu0 0.0
        %3754 = vmatmul.mubr.f32.gmra.mrb[0].mxu0 %v3575
        %v3755 = vpop.f32.mrb[0].mxu0
        %v3756 = vadd.f32 0.0, %v3755
        %v3757 = vpop.f32.mrb[0].mxu0
        %v3758 = vadd.f32 0.0, %v3757
        %3759 = vmatprep.mubr.f32.mxu0 0.0
        %3760 = vmatmul.mubr.f32.gmra.mrb[0].mxu0 %v3578
        %v3761 = vpop.f32.mrb[0].mxu0
        %v3762 = vadd.f32 0.0, %v3761
        %v3763 = vpop.f32.mrb[0].mxu0
        %v3764 = vadd.f32 0.0, %v3763
        %3765 = vdwg.mxu0
        %3766 = vmatprep.subr.mxu0 %v3590
        %3767 = vmatpush1.msra.mxu0 %v3588
        %3768 = vmatprep.subr.mxu0 0.0
        %3769 = vmatpush1.msra.mxu0 0.0
        %3770 = vmatprep.subr.mxu0 0.0
        %3771 = vmatpush1.msra.mxu0 0.0
        %3772 = vmatprep.subr.mxu0 0.0
        %3773 = vmatpush1.msra.mxu0 0.0
        %3774 = vmatprep.subr.mxu0 0.0
        %3775 = vmatpush1.msra.mxu0 0.0
        %3776 = vmatprep.subr.mxu0 0.0
        %3777 = vmatpush1.msra.mxu0 0.0
        %3778 = vmatprep.subr.mxu0 0.0
        %3779 = vmatpush1.msra.mxu0 0.0
        %3780 = vmatprep.subr.mxu0 0.0
        %3781 = vmatpush1.msra.mxu0 0.0
        %3782 = vmatprep.subr.mxu0 0.0
        %3783 = vmatpush1.msra.mxu0 0.0
        %3784 = vmatprep.subr.mxu0 0.0
        %3785 = vmatpush1.msra.mxu0 0.0
        %3786 = vmatprep.subr.mxu0 0.0
        %3787 = vmatpush1.msra.mxu0 0.0
        %3788 = vmatprep.subr.mxu0 0.0
        %3789 = vmatpush1.msra.mxu0 0.0
        %3790 = vmatprep.subr.mxu0 0.0
        %3791 = vmatpush1.msra.mxu0 0.0
        %3792 = vmatprep.subr.mxu0 0.0
        %3793 = vmatpush1.msra.mxu0 0.0
        %3794 = vmatprep.subr.mxu0 0.0
        %3795 = vmatpush1.msra.mxu0 0.0
        %3796 = vmatprep.subr.mxu0 0.0
        %3797 = vmatpush1.msra.mxu0 0.0
        %3798 = vmatprep.subr.mxu0 0.0
        %3799 = vmatpush1.msra.mxu0 0.0
        %3800 = vmatprep.subr.mxu0 0.0
        %3801 = vmatpush1.msra.mxu0 0.0
        %3802 = vmatprep.subr.mxu0 0.0
        %3803 = vmatpush1.msra.mxu0 0.0
        %3804 = vmatprep.subr.mxu0 0.0
        %3805 = vmatpush1.msra.mxu0 0.0
        %3806 = vmatprep.subr.mxu0 0.0
        %3807 = vmatpush1.msra.mxu0 0.0
        %3808 = vmatprep.subr.mxu0 0.0
        %3809 = vmatpush1.msra.mxu0 0.0
        %3810 = vmatprep.subr.mxu0 0.0
        %3811 = vmatpush1.msra.mxu0 0.0
        %3812 = vmatprep.subr.mxu0 0.0
        %3813 = vmatpush1.msra.mxu0 0.0
        %3814 = vmatprep.subr.mxu0 0.0
        %3815 = vmatpush1.msra.mxu0 0.0
        %3816 = vmatprep.subr.mxu0 0.0
        %3817 = vmatpush1.msra.mxu0 0.0
        %3818 = vmatprep.subr.mxu0 0.0
        %3819 = vmatpush1.msra.mxu0 0.0
        %3820 = vmatprep.subr.mxu0 0.0
        %3821 = vmatpush1.msra.mxu0 0.0
        %3822 = vmatprep.subr.mxu0 0.0
        %3823 = vmatpush1.msra.mxu0 0.0
        %3824 = vmatprep.subr.mxu0 0.0
        %3825 = vmatpush1.msra.mxu0 0.0
        %3826 = vmatprep.subr.mxu0 0.0
        %3827 = vmatpush1.msra.mxu0 0.0
        %3828 = vmatprep.subr.mxu0 0.0
        %3829 = vmatpush1.msra.mxu0 0.0
        %3830 = vmatprep.mubr.f32.mxu0 0.0
        %3831 = vmatmul.mubr.f32.gmra.mrb[0].mxu0 %v3575
        %v3832 = vpop.f32.mrb[0].mxu0
        %v3833 = vadd.f32 0.0, %v3832
        %v3834 = vpop.f32.mrb[0].mxu0
        %v3835 = vadd.f32 0.0, %v3834
        %3836 = vmatprep.mubr.f32.mxu0 0.0
        %3837 = vmatmul.mubr.f32.gmra.mrb[0].mxu0 %v3578
        %v3838 = vpop.f32.mrb[0].mxu0
        %v3839 = vadd.f32 0.0, %v3838
        %v3840 = vpop.f32.mrb[0].mxu0
        %v3841 = vadd.f32 0.0, %v3840
        %3842 = vdwg.mxu0
        %3843 = vmatprep.subr.mxu0 %v3594
        %3844 = vmatpush1.msra.mxu0 %v3592
        %3845 = vmatprep.subr.mxu0 0.0
        %3846 = vmatpush1.msra.mxu0 0.0
        %3847 = vmatprep.subr.mxu0 0.0
        %3848 = vmatpush1.msra.mxu0 0.0
        %3849 = vmatprep.subr.mxu0 0.0
        %3850 = vmatpush1.msra.mxu0 0.0
        %3851 = vmatprep.subr.mxu0 0.0
        %3852 = vmatpush1.msra.mxu0 0.0
        %3853 = vmatprep.subr.mxu0 0.0
        %3854 = vmatpush1.msra.mxu0 0.0
        %3855 = vmatprep.subr.mxu0 0.0
        %3856 = vmatpush1.msra.mxu0 0.0
        %3857 = vmatprep.subr.mxu0 0.0
        %3858 = vmatpush1.msra.mxu0 0.0
        %3859 = vmatprep.subr.mxu0 0.0
        %3860 = vmatpush1.msra.mxu0 0.0
        %3861 = vmatprep.subr.mxu0 0.0
        %3862 = vmatpush1.msra.mxu0 0.0
        %3863 = vmatprep.subr.mxu0 0.0
        %3864 = vmatpush1.msra.mxu0 0.0
        %3865 = vmatprep.subr.mxu0 0.0
        %3866 = vmatpush1.msra.mxu0 0.0
        %3867 = vmatprep.subr.mxu0 0.0
        %3868 = vmatpush1.msra.mxu0 0.0
        %3869 = vmatprep.subr.mxu0 0.0
        %3870 = vmatpush1.msra.mxu0 0.0
        %3871 = vmatprep.subr.mxu0 0.0
        %3872 = vmatpush1.msra.mxu0 0.0
        %3873 = vmatprep.subr.mxu0 0.0
        %3874 = vmatpush1.msra.mxu0 0.0
        %3875 = vmatprep.subr.mxu0 0.0
        %3876 = vmatpush1.msra.mxu0 0.0
        %3877 = vmatprep.subr.mxu0 0.0
        %3878 = vmatpush1.msra.mxu0 0.0
        %3879 = vmatprep.subr.mxu0 0.0
        %3880 = vmatpush1.msra.mxu0 0.0
        %3881 = vmatprep.subr.mxu0 0.0
        %3882 = vmatpush1.msra.mxu0 0.0
        %3883 = vmatprep.subr.mxu0 0.0
        %3884 = vmatpush1.msra.mxu0 0.0
        %3885 = vmatprep.subr.mxu0 0.0
        %3886 = vmatpush1.msra.mxu0 0.0
        %3887 = vmatprep.subr.mxu0 0.0
        %3888 = vmatpush1.msra.mxu0 0.0
        %3889 = vmatprep.subr.mxu0 0.0
        %3890 = vmatpush1.msra.mxu0 0.0
        %3891 = vmatprep.subr.mxu0 0.0
        %3892 = vmatpush1.msra.mxu0 0.0
        %3893 = vmatprep.subr.mxu0 0.0
        %3894 = vmatpush1.msra.mxu0 0.0
        %3895 = vmatprep.subr.mxu0 0.0
        %3896 = vmatpush1.msra.mxu0 0.0
        %3897 = vmatprep.subr.mxu0 0.0
        %3898 = vmatpush1.msra.mxu0 0.0
        %3899 = vmatprep.subr.mxu0 0.0
        %3900 = vmatpush1.msra.mxu0 0.0
        %3901 = vmatprep.subr.mxu0 0.0
        %3902 = vmatpush1.msra.mxu0 0.0
        %3903 = vmatprep.subr.mxu0 0.0
        %3904 = vmatpush1.msra.mxu0 0.0
        %3905 = vmatprep.subr.mxu0 0.0
        %3906 = vmatpush1.msra.mxu0 0.0
        %3907 = vmatprep.mubr.f32.mxu0 0.0
        %3908 = vmatmul.mubr.f32.gmra.mrb[0].mxu0 %v3575
        %v3909 = vpop.f32.mrb[0].mxu0
        %v3910 = vadd.f32 0.0, %v3909
        %v3911 = vpop.f32.mrb[0].mxu0
        %v3912 = vadd.f32 0.0, %v3911
        %3913 = vmatprep.mubr.f32.mxu0 0.0
        %3914 = vmatmul.mubr.f32.gmra.mrb[0].mxu0 %v3578
        %v3915 = vpop.f32.mrb[0].mxu0
        %v3916 = vadd.f32 0.0, %v3915
        %v3917 = vpop.f32.mrb[0].mxu0
        %v3918 = vadd.f32 0.0, %v3917
        %3919 = vdwg.mxu0
        %3920 = vmatprep.subr.mxu0 %v3598
        %3921 = vmatpush1.msra.mxu0 %v3596
        %3922 = vmatprep.subr.mxu0 0.0
        %3923 = vmatpush1.msra.mxu0 0.0
        %3924 = vmatprep.subr.mxu0 0.0
        %3925 = vmatpush1.msra.mxu0 0.0
        %3926 = vmatprep.subr.mxu0 0.0
        %3927 = vmatpush1.msra.mxu0 0.0
        %3928 = vmatprep.subr.mxu0 0.0
        %3929 = vmatpush1.msra.mxu0 0.0
        %3930 = vmatprep.subr.mxu0 0.0
        %3931 = vmatpush1.msra.mxu0 0.0
        %3932 = vmatprep.subr.mxu0 0.0
        %3933 = vmatpush1.msra.mxu0 0.0
        %3934 = vmatprep.subr.mxu0 0.0
        %3935 = vmatpush1.msra.mxu0 0.0
        %3936 = vmatprep.subr.mxu0 0.0
        %3937 = vmatpush1.msra.mxu0 0.0
        %3938 = vmatprep.subr.mxu0 0.0
        %3939 = vmatpush1.msra.mxu0 0.0
        %3940 = vmatprep.subr.mxu0 0.0
        %3941 = vmatpush1.msra.mxu0 0.0
        %3942 = vmatprep.subr.mxu0 0.0
        %3943 = vmatpush1.msra.mxu0 0.0
        %3944 = vmatprep.subr.mxu0 0.0
        %3945 = vmatpush1.msra.mxu0 0.0
        %3946 = vmatprep.subr.mxu0 0.0
        %3947 = vmatpush1.msra.mxu0 0.0
        %3948 = vmatprep.subr.mxu0 0.0
        %3949 = vmatpush1.msra.mxu0 0.0
        %3950 = vmatprep.subr.mxu0 0.0
        %3951 = vmatpush1.msra.mxu0 0.0
        %3952 = vmatprep.subr.mxu0 0.0
        %3953 = vmatpush1.msra.mxu0 0.0
        %3954 = vmatprep.subr.mxu0 0.0
        %3955 = vmatpush1.msra.mxu0 0.0
        %3956 = vmatprep.subr.mxu0 0.0
        %3957 = vmatpush1.msra.mxu0 0.0
        %3958 = vmatprep.subr.mxu0 0.0
        %3959 = vmatpush1.msra.mxu0 0.0
        %3960 = vmatprep.subr.mxu0 0.0
        %3961 = vmatpush1.msra.mxu0 0.0
        %3962 = vmatprep.subr.mxu0 0.0
        %3963 = vmatpush1.msra.mxu0 0.0
        %3964 = vmatprep.subr.mxu0 0.0
        %3965 = vmatpush1.msra.mxu0 0.0
        %3966 = vmatprep.subr.mxu0 0.0
        %3967 = vmatpush1.msra.mxu0 0.0
        %3968 = vmatprep.subr.mxu0 0.0
        %3969 = vmatpush1.msra.mxu0 0.0
        %3970 = vmatprep.subr.mxu0 0.0
        %3971 = vmatpush1.msra.mxu0 0.0
        %3972 = vmatprep.subr.mxu0 0.0
        %3973 = vmatpush1.msra.mxu0 0.0
        %3974 = vmatprep.subr.mxu0 0.0
        %3975 = vmatpush1.msra.mxu0 0.0
        %3976 = vmatprep.subr.mxu0 0.0
        %3977 = vmatpush1.msra.mxu0 0.0
        %3978 = vmatprep.subr.mxu0 0.0
        %3979 = vmatpush1.msra.mxu0 0.0
        %3980 = vmatprep.subr.mxu0 0.0
        %3981 = vmatpush1.msra.mxu0 0.0
        %3982 = vmatprep.subr.mxu0 0.0
        %3983 = vmatpush1.msra.mxu0 0.0
        %3984 = vmatprep.mubr.f32.mxu0 0.0
        %3985 = vmatmul.mubr.f32.gmra.mrb[0].mxu0 %v3575
        %v3986 = vpop.f32.mrb[0].mxu0
        %v3987 = vadd.f32 0.0, %v3986
        %v3988 = vpop.f32.mrb[0].mxu0
        %v3989 = vadd.f32 0.0, %v3988
        %3990 = vmatprep.mubr.f32.mxu0 0.0
        %3991 = vmatmul.mubr.f32.gmra.mrb[0].mxu0 %v3578
        %v3992 = vpop.f32.mrb[0].mxu0
        %v3993 = vadd.f32 0.0, %v3992
        %v3994 = vpop.f32.mrb[0].mxu0
        %v3995 = vadd.f32 0.0, %v3994
        %3996 = vdwg.mxu0
        %3997 = vmatprep.subr.mxu0 %v3602
        %3998 = vmatpush1.msra.mxu0 %v3600
        %3999 = vmatprep.subr.mxu0 0.0
        %4000 = vmatpush1.msra.mxu0 0.0
        %4001 = vmatprep.subr.mxu0 0.0
        %4002 = vmatpush1.msra.mxu0 0.0
        %4003 = vmatprep.subr.mxu0 0.0
        %4004 = vmatpush1.msra.mxu0 0.0
        %4005 = vmatprep.subr.mxu0 0.0
        %4006 = vmatpush1.msra.mxu0 0.0
        %4007 = vmatprep.subr.mxu0 0.0
        %4008 = vmatpush1.msra.mxu0 0.0
        %4009 = vmatprep.subr.mxu0 0.0
        %4010 = vmatpush1.msra.mxu0 0.0
        %4011 = vmatprep.subr.mxu0 0.0
        %4012 = vmatpush1.msra.mxu0 0.0
        %4013 = vmatprep.subr.mxu0 0.0
        %4014 = vmatpush1.msra.mxu0 0.0
        %4015 = vmatprep.subr.mxu0 0.0
        %4016 = vmatpush1.msra.mxu0 0.0
        %4017 = vmatprep.subr.mxu0 0.0
        %4018 = vmatpush1.msra.mxu0 0.0
        %4019 = vmatprep.subr.mxu0 0.0
        %4020 = vmatpush1.msra.mxu0 0.0
        %4021 = vmatprep.subr.mxu0 0.0
        %4022 = vmatpush1.msra.mxu0 0.0
        %4023 = vmatprep.subr.mxu0 0.0
        %4024 = vmatpush1.msra.mxu0 0.0
        %4025 = vmatprep.subr.mxu0 0.0
        %4026 = vmatpush1.msra.mxu0 0.0
        %4027 = vmatprep.subr.mxu0 0.0
        %4028 = vmatpush1.msra.mxu0 0.0
        %4029 = vmatprep.subr.mxu0 0.0
        %4030 = vmatpush1.msra.mxu0 0.0
        %4031 = vmatprep.subr.mxu0 0.0
        %4032 = vmatpush1.msra.mxu0 0.0
        %4033 = vmatprep.subr.mxu0 0.0
        %4034 = vmatpush1.msra.mxu0 0.0
        %4035 = vmatprep.subr.mxu0 0.0
        %4036 = vmatpush1.msra.mxu0 0.0
        %4037 = vmatprep.subr.mxu0 0.0
        %4038 = vmatpush1.msra.mxu0 0.0
        %4039 = vmatprep.subr.mxu0 0.0
        %4040 = vmatpush1.msra.mxu0 0.0
        %4041 = vmatprep.subr.mxu0 0.0
        %4042 = vmatpush1.msra.mxu0 0.0
        %4043 = vmatprep.subr.mxu0 0.0
        %4044 = vmatpush1.msra.mxu0 0.0
        %4045 = vmatprep.subr.mxu0 0.0
        %4046 = vmatpush1.msra.mxu0 0.0
        %4047 = vmatprep.subr.mxu0 0.0
        %4048 = vmatpush1.msra.mxu0 0.0
        %4049 = vmatprep.subr.mxu0 0.0
        %4050 = vmatpush1.msra.mxu0 0.0
        %4051 = vmatprep.subr.mxu0 0.0
        %4052 = vmatpush1.msra.mxu0 0.0
        %4053 = vmatprep.subr.mxu0 0.0
        %4054 = vmatpush1.msra.mxu0 0.0
        %4055 = vmatprep.subr.mxu0 0.0
        %4056 = vmatpush1.msra.mxu0 0.0
        %4057 = vmatprep.subr.mxu0 0.0
        %4058 = vmatpush1.msra.mxu0 0.0
        %4059 = vmatprep.subr.mxu0 0.0
        %4060 = vmatpush1.msra.mxu0 0.0
        %4061 = vmatprep.mubr.f32.mxu0 0.0
        %4062 = vmatmul.mubr.f32.gmra.mrb[0].mxu0 %v3575
        %v4063 = vpop.f32.mrb[0].mxu0
        %v4064 = vadd.f32 0.0, %v4063
        %v4065 = vpop.f32.mrb[0].mxu0
        %v4066 = vadd.f32 0.0, %v4065
        %4067 = vmatprep.mubr.f32.mxu0 0.0
        %4068 = vmatmul.mubr.f32.gmra.mrb[0].mxu0 %v3578
        %v4069 = vpop.f32.mrb[0].mxu0
        %v4070 = vadd.f32 0.0, %v4069
        %v4071 = vpop.f32.mrb[0].mxu0
        %v4072 = vadd.f32 0.0, %v4071
        %4073 = vdwg.mxu0
        %4074 = vmatprep.subr.mxu0 %v3606
        %4075 = vmatpush1.msra.mxu0 %v3604
        %4076 = vmatprep.subr.mxu0 0.0
        %4077 = vmatpush1.msra.mxu0 0.0
        %4078 = vmatprep.subr.mxu0 0.0
        %4079 = vmatpush1.msra.mxu0 0.0
        %4080 = vmatprep.subr.mxu0 0.0
        %4081 = vmatpush1.msra.mxu0 0.0
        %4082 = vmatprep.subr.mxu0 0.0
        %4083 = vmatpush1.msra.mxu0 0.0
        %4084 = vmatprep.subr.mxu0 0.0
        %4085 = vmatpush1.msra.mxu0 0.0
        %4086 = vmatprep.subr.mxu0 0.0
        %4087 = vmatpush1.msra.mxu0 0.0
        %4088 = vmatprep.subr.mxu0 0.0
        %4089 = vmatpush1.msra.mxu0 0.0
        %4090 = vmatprep.subr.mxu0 0.0
        %4091 = vmatpush1.msra.mxu0 0.0
        %4092 = vmatprep.subr.mxu0 0.0
        %4093 = vmatpush1.msra.mxu0 0.0
        %4094 = vmatprep.subr.mxu0 0.0
        %4095 = vmatpush1.msra.mxu0 0.0
        %4096 = vmatprep.subr.mxu0 0.0
        %4097 = vmatpush1.msra.mxu0 0.0
        %4098 = vmatprep.subr.mxu0 0.0
        %4099 = vmatpush1.msra.mxu0 0.0
        %4100 = vmatprep.subr.mxu0 0.0
        %4101 = vmatpush1.msra.mxu0 0.0
        %4102 = vmatprep.subr.mxu0 0.0
        %4103 = vmatpush1.msra.mxu0 0.0
        %4104 = vmatprep.subr.mxu0 0.0
        %4105 = vmatpush1.msra.mxu0 0.0
        %4106 = vmatprep.subr.mxu0 0.0
        %4107 = vmatpush1.msra.mxu0 0.0
        %4108 = vmatprep.subr.mxu0 0.0
        %4109 = vmatpush1.msra.mxu0 0.0
        %4110 = vmatprep.subr.mxu0 0.0
        %4111 = vmatpush1.msra.mxu0 0.0
        %4112 = vmatprep.subr.mxu0 0.0
        %4113 = vmatpush1.msra.mxu0 0.0
        %4114 = vmatprep.subr.mxu0 0.0
        %4115 = vmatpush1.msra.mxu0 0.0
        %4116 = vmatprep.subr.mxu0 0.0
        %4117 = vmatpush1.msra.mxu0 0.0
        %4118 = vmatprep.subr.mxu0 0.0
        %4119 = vmatpush1.msra.mxu0 0.0
        %4120 = vmatprep.subr.mxu0 0.0
        %4121 = vmatpush1.msra.mxu0 0.0
        %4122 = vmatprep.subr.mxu0 0.0
        %4123 = vmatpush1.msra.mxu0 0.0
        %4124 = vmatprep.subr.mxu0 0.0
        %4125 = vmatpush1.msra.mxu0 0.0
        %4126 = vmatprep.subr.mxu0 0.0
        %4127 = vmatpush1.msra.mxu0 0.0
        %4128 = vmatprep.subr.mxu0 0.0
        %4129 = vmatpush1.msra.mxu0 0.0
        %4130 = vmatprep.subr.mxu0 0.0
        %4131 = vmatpush1.msra.mxu0 0.0
        %4132 = vmatprep.subr.mxu0 0.0
        %4133 = vmatpush1.msra.mxu0 0.0
        %4134 = vmatprep.subr.mxu0 0.0
        %4135 = vmatpush1.msra.mxu0 0.0
        %4136 = vmatprep.subr.mxu0 0.0
        %4137 = vmatpush1.msra.mxu0 0.0
        %4138 = vmatprep.mubr.f32.mxu0 0.0
        %4139 = vmatmul.mubr.f32.gmra.mrb[0].mxu0 %v3575
        %v4140 = vpop.f32.mrb[0].mxu0
        %v4141 = vadd.f32 0.0, %v4140
        %v4142 = vpop.f32.mrb[0].mxu0
        %v4143 = vadd.f32 0.0, %v4142
        %4144 = vmatprep.mubr.f32.mxu0 0.0
        %4145 = vmatmul.mubr.f32.gmra.mrb[0].mxu0 %v3578
        %v4146 = vpop.f32.mrb[0].mxu0
        %v4147 = vadd.f32 0.0, %v4146
        %v4148 = vpop.f32.mrb[0].mxu0
        %v4149 = vadd.f32 0.0, %v4148
        %4150 = vdwg.mxu0
        %4151 = vmatprep.subr.mxu0 %v3610
        %4152 = vmatpush1.msra.mxu0 %v3608
        %4153 = vmatprep.subr.mxu0 0.0
        %4154 = vmatpush1.msra.mxu0 0.0
        %4155 = vmatprep.subr.mxu0 0.0
        %4156 = vmatpush1.msra.mxu0 0.0
        %4157 = vmatprep.subr.mxu0 0.0
        %4158 = vmatpush1.msra.mxu0 0.0
        %4159 = vmatprep.subr.mxu0 0.0
        %4160 = vmatpush1.msra.mxu0 0.0
        %4161 = vmatprep.subr.mxu0 0.0
        %4162 = vmatpush1.msra.mxu0 0.0
        %4163 = vmatprep.subr.mxu0 0.0
        %4164 = vmatpush1.msra.mxu0 0.0
        %4165 = vmatprep.subr.mxu0 0.0
        %4166 = vmatpush1.msra.mxu0 0.0
        %4167 = vmatprep.subr.mxu0 0.0
        %4168 = vmatpush1.msra.mxu0 0.0
        %4169 = vmatprep.subr.mxu0 0.0
        %4170 = vmatpush1.msra.mxu0 0.0
        %4171 = vmatprep.subr.mxu0 0.0
        %4172 = vmatpush1.msra.mxu0 0.0
        %4173 = vmatprep.subr.mxu0 0.0
        %4174 = vmatpush1.msra.mxu0 0.0
        %4175 = vmatprep.subr.mxu0 0.0
        %4176 = vmatpush1.msra.mxu0 0.0
        %4177 = vmatprep.subr.mxu0 0.0
        %4178 = vmatpush1.msra.mxu0 0.0
        %4179 = vmatprep.subr.mxu0 0.0
        %4180 = vmatpush1.msra.mxu0 0.0
        %4181 = vmatprep.subr.mxu0 0.0
        %4182 = vmatpush1.msra.mxu0 0.0
        %4183 = vmatprep.subr.mxu0 0.0
        %4184 = vmatpush1.msra.mxu0 0.0
        %4185 = vmatprep.subr.mxu0 0.0
        %4186 = vmatpush1.msra.mxu0 0.0
        %4187 = vmatprep.subr.mxu0 0.0
        %4188 = vmatpush1.msra.mxu0 0.0
        %4189 = vmatprep.subr.mxu0 0.0
        %4190 = vmatpush1.msra.mxu0 0.0
        %4191 = vmatprep.subr.mxu0 0.0
        %4192 = vmatpush1.msra.mxu0 0.0
        %4193 = vmatprep.subr.mxu0 0.0
        %4194 = vmatpush1.msra.mxu0 0.0
        %4195 = vmatprep.subr.mxu0 0.0
        %4196 = vmatpush1.msra.mxu0 0.0
        %4197 = vmatprep.subr.mxu0 0.0
        %4198 = vmatpush1.msra.mxu0 0.0
        %4199 = vmatprep.subr.mxu0 0.0
        %4200 = vmatpush1.msra.mxu0 0.0
        %4201 = vmatprep.subr.mxu0 0.0
        %4202 = vmatpush1.msra.mxu0 0.0
        %4203 = vmatprep.subr.mxu0 0.0
        %4204 = vmatpush1.msra.mxu0 0.0
        %4205 = vmatprep.subr.mxu0 0.0
        %4206 = vmatpush1.msra.mxu0 0.0
        %4207 = vmatprep.subr.mxu0 0.0
        %4208 = vmatpush1.msra.mxu0 0.0
        %4209 = vmatprep.subr.mxu0 0.0
        %4210 = vmatpush1.msra.mxu0 0.0
        %4211 = vmatprep.subr.mxu0 0.0
        %4212 = vmatpush1.msra.mxu0 0.0
        %4213 = vmatprep.subr.mxu0 0.0
        %4214 = vmatpush1.msra.mxu0 0.0
        %4215 = vmatprep.mubr.f32.mxu0 0.0
        %4216 = vmatmul.mubr.f32.gmra.mrb[0].mxu0 %v3575
        %v4217 = vpop.f32.mrb[0].mxu0
        %v4218 = vadd.f32 0.0, %v4217
        %v4219 = vpop.f32.mrb[0].mxu0
        %v4220 = vadd.f32 0.0, %v4219
        %4221 = vmatprep.mubr.f32.mxu0 0.0
        %4222 = vmatmul.mubr.f32.gmra.mrb[0].mxu0 %v3578
        %v4223 = vpop.f32.mrb[0].mxu0
        %v4224 = vadd.f32 0.0, %v4223
        %v4225 = vpop.f32.mrb[0].mxu0
        %v4226 = vadd.f32 0.0, %v4225
        %4227 = vdwg.mxu0
        %v4228 = vadd.f32 %v3488, %v3679
        %v4229 = vadd.f32 %v3489, %v3681
        %v4230 = vadd.f32 %v3490, %v3756
        %v4231 = vadd.f32 %v3491, %v3758
        %v4232 = vadd.f32 %v3492, %v3833
        %v4233 = vadd.f32 %v3493, %v3835
        %v4234 = vadd.f32 %v3494, %v3910
        %v4235 = vadd.f32 %v3495, %v3912
        %v4236 = vadd.f32 %v3496, %v3987
        %v4237 = vadd.f32 %v3497, %v3989
        %v4238 = vadd.f32 %v3498, %v4064
        %v4239 = vadd.f32 %v3499, %v4066
        %v4240 = vadd.f32 %v3500, %v4141
        %v4241 = vadd.f32 %v3501, %v4143
        %v4242 = vadd.f32 %v3502, %v4218
        %v4243 = vadd.f32 %v3503, %v4220
        %v4244 = vadd.f32 %v3504, %v3685
        %v4245 = vadd.f32 %v3505, %v3687
        %v4246 = vadd.f32 %v3506, %v3762
        %v4247 = vadd.f32 %v3507, %v3764
        %v4248 = vadd.f32 %v3508, %v3839
        %v4249 = vadd.f32 %v3509, %v3841
        %v4250 = vadd.f32 %v3510, %v3916
        %v4251 = vadd.f32 %v3511, %v3918
        %v4252 = vadd.f32 %v3512, %v3993
        %v4253 = vadd.f32 %v3513, %v3995
        %v4254 = vadd.f32 %v3514, %v4070
        %v4255 = vadd.f32 %v3515, %v4072
        %v4256 = vadd.f32 %v3516, %v4147
        %v4257 = vadd.f32 %v3517, %v4149
        %v4258 = vadd.f32 %v3518, %v4224
        %v4259 = vadd.f32 %v3519, %v4226
        %4260 = vrot.lane.b32.xlu0 %v447, 62
        %v4261 = vpop.permute.xlu0 %4260
        %4262 = vrot.lane.b32.xlu0 %v448, 62
        %v4263 = vpop.permute.xlu0 %4262
        %4264 = vrot.lane.b32.xlu0 %v449, 62
        %v4265 = vpop.permute.xlu0 %4264
        %4266 = vrot.lane.b32.xlu0 %v450, 62
        %v4267 = vpop.permute.xlu0 %4266
        %4268 = vrot.lane.b32.xlu0 %v451, 62
        %v4269 = vpop.permute.xlu0 %4268
        %4270 = vrot.lane.b32.xlu0 %v452, 62
        %v4271 = vpop.permute.xlu0 %4270
        %4272 = vrot.lane.b32.xlu0 %v453, 62
        %v4273 = vpop.permute.xlu0 %4272
        %4274 = vrot.lane.b32.xlu0 %v454, 62
        %v4275 = vpop.permute.xlu0 %4274
        %4276 = vrot.lane.b32.xlu0 %v455, 62
        %v4277 = vpop.permute.xlu0 %4276
        %4278 = vrot.lane.b32.xlu0 %v456, 62
        %v4279 = vpop.permute.xlu0 %4278
        %4280 = vrot.lane.b32.xlu0 %v457, 62
        %v4281 = vpop.permute.xlu0 %4280
        %4282 = vrot.lane.b32.xlu0 %v458, 62
        %v4283 = vpop.permute.xlu0 %4282
        %4284 = vrot.lane.b32.xlu0 %v459, 62
        %v4285 = vpop.permute.xlu0 %4284
        %4286 = vrot.lane.b32.xlu0 %v460, 62
        %v4287 = vpop.permute.xlu0 %4286
        %4288 = vrot.lane.b32.xlu0 %v461, 62
        %v4289 = vpop.permute.xlu0 %4288
        %4290 = vrot.lane.b32.xlu0 %v462, 62
        %v4291 = vpop.permute.xlu0 %4290
        %4292 = vrot.lane.b32.xlu0 %v514, 62
        %v4293 = vpop.permute.xlu0 %4292
        %vm4294 = vcmask 506880
        %v4295 = vsel %vm4294, %v4261, %v4263
        %v4296 = vsel %vm4294, %v4263, %v4265
        %v4297 = vsel %vm4294, %v4265, %v4267
        %v4298 = vsel %vm4294, %v4267, %v4269
        %v4299 = vsel %vm4294, %v4269, %v4271
        %v4300 = vsel %vm4294, %v4271, %v4273
        %v4301 = vsel %vm4294, %v4273, %v4275
        %v4302 = vsel %vm4294, %v4275, %v4277
        %v4303 = vsel %vm4294, %v4277, %v4279
        %v4304 = vsel %vm4294, %v4279, %v4281
        %v4305 = vsel %vm4294, %v4281, %v4283
        %v4306 = vsel %vm4294, %v4283, %v4285
        %v4307 = vsel %vm4294, %v4285, %v4287
        %v4308 = vsel %vm4294, %v4287, %v4289
        %v4309 = vsel %vm4294, %v4289, %v4291
        %v4310 = vsel %vm4294, %v4291, %v4293
        %v4327 = vsel %vm1928, %v4295, 0.0
        %v4328 = vsel %vm1929, %v4296, 0.0
        %v4329 = vsel %vm1930, %v4297, 0.0
        %v4330 = vsel %vm1931, %v4298, 0.0
        %v4331 = vsel %vm1932, %v4299, 0.0
        %v4332 = vsel %vm1933, %v4300, 0.0
        %v4333 = vsel %vm1934, %v4301, 0.0
        %v4334 = vsel %vm1935, %v4302, 0.0
        %v4335 = vsel %vm1936, %v4303, 0.0
        %v4336 = vsel %vm1937, %v4304, 0.0
        %v4337 = vsel %vm1938, %v4305, 0.0
        %v4338 = vsel %vm1939, %v4306, 0.0
        %v4339 = vsel %vm1940, %v4307, 0.0
        %v4340 = vsel %vm1941, %v4308, 0.0
        %v4341 = vsel %vm1942, %v4309, 0.0
        %v4342 = vsel %vm1943, %v4310, 0.0
        %s4343 = scalar_lea.vmem %s0, 80
        %v4344 = vld [vmem:[%s4343] sm:$0xff]
        %v4345 = vld [vmem:[%s4343 + $0x8] sm:$0xff]
        %v4347 = vsel %vm586, %v4344, 0
        %v4350 = vsel %vm586, %v4345, 0
        %v4353 = vsel %vm593, %v4327, 0
        %v4356 = vsel %vm593, %v4328, 0
        %v4359 = vsel %vm593, %v4329, 0
        %v4362 = vsel %vm593, %v4330, 0
        %v4365 = vsel %vm593, %v4331, 0
        %v4368 = vsel %vm593, %v4332, 0
        %v4371 = vsel %vm593, %v4333, 0
        %v4374 = vsel %vm593, %v4334, 0
        %v4377 = vsel %vm593, %v4335, 0
        %v4380 = vsel %vm593, %v4336, 0
        %v4383 = vsel %vm593, %v4337, 0
        %v4386 = vsel %vm593, %v4338, 0
        %v4389 = vsel %vm593, %v4339, 0
        %v4392 = vsel %vm593, %v4340, 0
        %v4395 = vsel %vm593, %v4341, 0
        %v4398 = vsel %vm593, %v4342, 0
        %4400 = vmatprep.subr.mxu0 %v4356
        %4401 = vmatpush1.msra.mxu0 %v4353
        %4402 = vmatprep.subr.mxu0 0.0
        %4403 = vmatpush1.msra.mxu0 0.0
        %4404 = vmatprep.subr.mxu0 0.0
        %4405 = vmatpush1.msra.mxu0 0.0
        %4406 = vmatprep.subr.mxu0 0.0
        %4407 = vmatpush1.msra.mxu0 0.0
        %4408 = vmatprep.subr.mxu0 0.0
        %4409 = vmatpush1.msra.mxu0 0.0
        %4410 = vmatprep.subr.mxu0 0.0
        %4411 = vmatpush1.msra.mxu0 0.0
        %4412 = vmatprep.subr.mxu0 0.0
        %4413 = vmatpush1.msra.mxu0 0.0
        %4414 = vmatprep.subr.mxu0 0.0
        %4415 = vmatpush1.msra.mxu0 0.0
        %4416 = vmatprep.subr.mxu0 0.0
        %4417 = vmatpush1.msra.mxu0 0.0
        %4418 = vmatprep.subr.mxu0 0.0
        %4419 = vmatpush1.msra.mxu0 0.0
        %4420 = vmatprep.subr.mxu0 0.0
        %4421 = vmatpush1.msra.mxu0 0.0
        %4422 = vmatprep.subr.mxu0 0.0
        %4423 = vmatpush1.msra.mxu0 0.0
        %4424 = vmatprep.subr.mxu0 0.0
        %4425 = vmatpush1.msra.mxu0 0.0
        %4426 = vmatprep.subr.mxu0 0.0
        %4427 = vmatpush1.msra.mxu0 0.0
        %4428 = vmatprep.subr.mxu0 0.0
        %4429 = vmatpush1.msra.mxu0 0.0
        %4430 = vmatprep.subr.mxu0 0.0
        %4431 = vmatpush1.msra.mxu0 0.0
        %4432 = vmatprep.subr.mxu0 0.0
        %4433 = vmatpush1.msra.mxu0 0.0
        %4434 = vmatprep.subr.mxu0 0.0
        %4435 = vmatpush1.msra.mxu0 0.0
        %4436 = vmatprep.subr.mxu0 0.0
        %4437 = vmatpush1.msra.mxu0 0.0
        %4438 = vmatprep.subr.mxu0 0.0
        %4439 = vmatpush1.msra.mxu0 0.0
        %4440 = vmatprep.subr.mxu0 0.0
        %4441 = vmatpush1.msra.mxu0 0.0
        %4442 = vmatprep.subr.mxu0 0.0
        %4443 = vmatpush1.msra.mxu0 0.0
        %4444 = vmatprep.subr.mxu0 0.0
        %4445 = vmatpush1.msra.mxu0 0.0
        %4446 = vmatprep.subr.mxu0 0.0
        %4447 = vmatpush1.msra.mxu0 0.0
        %4448 = vmatprep.subr.mxu0 0.0
        %4449 = vmatpush1.msra.mxu0 0.0
        %4450 = vmatprep.subr.mxu0 0.0
        %4451 = vmatpush1.msra.mxu0 0.0
        %4452 = vmatprep.subr.mxu0 0.0
        %4453 = vmatpush1.msra.mxu0 0.0
        %4454 = vmatprep.subr.mxu0 0.0
        %4455 = vmatpush1.msra.mxu0 0.0
        %4456 = vmatprep.subr.mxu0 0.0
        %4457 = vmatpush1.msra.mxu0 0.0
        %4458 = vmatprep.subr.mxu0 0.0
        %4459 = vmatpush1.msra.mxu0 0.0
        %4460 = vmatprep.subr.mxu0 0.0
        %4461 = vmatpush1.msra.mxu0 0.0
        %4462 = vmatprep.subr.mxu0 0.0
        %4463 = vmatpush1.msra.mxu0 0.0
        %4464 = vmatprep.mubr.f32.mxu0 0.0
        %4465 = vmatmul.mubr.f32.gmra.mrb[0].mxu0 %v4347
        %v4466 = vpop.f32.mrb[0].mxu0
        %v4467 = vadd.f32 0.0, %v4466
        %v4468 = vpop.f32.mrb[0].mxu0
        %v4469 = vadd.f32 0.0, %v4468
        %4470 = vmatprep.mubr.f32.mxu0 0.0
        %4471 = vmatmul.mubr.f32.gmra.mrb[0].mxu0 %v4350
        %v4472 = vpop.f32.mrb[0].mxu0
        %v4473 = vadd.f32 0.0, %v4472
        %v4474 = vpop.f32.mrb[0].mxu0
        %v4475 = vadd.f32 0.0, %v4474
        %4476 = vdwg.mxu0
        %4477 = vmatprep.subr.mxu0 %v4362
        %4478 = vmatpush1.msra.mxu0 %v4359
        %4479 = vmatprep.subr.mxu0 0.0
        %4480 = vmatpush1.msra.mxu0 0.0
        %4481 = vmatprep.subr.mxu0 0.0
        %4482 = vmatpush1.msra.mxu0 0.0
        %4483 = vmatprep.subr.mxu0 0.0
        %4484 = vmatpush1.msra.mxu0 0.0
        %4485 = vmatprep.subr.mxu0 0.0
        %4486 = vmatpush1.msra.mxu0 0.0
        %4487 = vmatprep.subr.mxu0 0.0
        %4488 = vmatpush1.msra.mxu0 0.0
        %4489 = vmatprep.subr.mxu0 0.0
        %4490 = vmatpush1.msra.mxu0 0.0
        %4491 = vmatprep.subr.mxu0 0.0
        %4492 = vmatpush1.msra.mxu0 0.0
        %4493 = vmatprep.subr.mxu0 0.0
        %4494 = vmatpush1.msra.mxu0 0.0
        %4495 = vmatprep.subr.mxu0 0.0
        %4496 = vmatpush1.msra.mxu0 0.0
        %4497 = vmatprep.subr.mxu0 0.0
        %4498 = vmatpush1.msra.mxu0 0.0
        %4499 = vmatprep.subr.mxu0 0.0
        %4500 = vmatpush1.msra.mxu0 0.0
        %4501 = vmatprep.subr.mxu0 0.0
        %4502 = vmatpush1.msra.mxu0 0.0
        %4503 = vmatprep.subr.mxu0 0.0
        %4504 = vmatpush1.msra.mxu0 0.0
        %4505 = vmatprep.subr.mxu0 0.0
        %4506 = vmatpush1.msra.mxu0 0.0
        %4507 = vmatprep.subr.mxu0 0.0
        %4508 = vmatpush1.msra.mxu0 0.0
        %4509 = vmatprep.subr.mxu0 0.0
        %4510 = vmatpush1.msra.mxu0 0.0
        %4511 = vmatprep.subr.mxu0 0.0
        %4512 = vmatpush1.msra.mxu0 0.0
        %4513 = vmatprep.subr.mxu0 0.0
        %4514 = vmatpush1.msra.mxu0 0.0
        %4515 = vmatprep.subr.mxu0 0.0
        %4516 = vmatpush1.msra.mxu0 0.0
        %4517 = vmatprep.subr.mxu0 0.0
        %4518 = vmatpush1.msra.mxu0 0.0
        %4519 = vmatprep.subr.mxu0 0.0
        %4520 = vmatpush1.msra.mxu0 0.0
        %4521 = vmatprep.subr.mxu0 0.0
        %4522 = vmatpush1.msra.mxu0 0.0
        %4523 = vmatprep.subr.mxu0 0.0
        %4524 = vmatpush1.msra.mxu0 0.0
        %4525 = vmatprep.subr.mxu0 0.0
        %4526 = vmatpush1.msra.mxu0 0.0
        %4527 = vmatprep.subr.mxu0 0.0
        %4528 = vmatpush1.msra.mxu0 0.0
        %4529 = vmatprep.subr.mxu0 0.0
        %4530 = vmatpush1.msra.mxu0 0.0
        %4531 = vmatprep.subr.mxu0 0.0
        %4532 = vmatpush1.msra.mxu0 0.0
        %4533 = vmatprep.subr.mxu0 0.0
        %4534 = vmatpush1.msra.mxu0 0.0
        %4535 = vmatprep.subr.mxu0 0.0
        %4536 = vmatpush1.msra.mxu0 0.0
        %4537 = vmatprep.subr.mxu0 0.0
        %4538 = vmatpush1.msra.mxu0 0.0
        %4539 = vmatprep.subr.mxu0 0.0
        %4540 = vmatpush1.msra.mxu0 0.0
        %4541 = vmatprep.mubr.f32.mxu0 0.0
        %4542 = vmatmul.mubr.f32.gmra.mrb[0].mxu0 %v4347
        %v4543 = vpop.f32.mrb[0].mxu0
        %v4544 = vadd.f32 0.0, %v4543
        %v4545 = vpop.f32.mrb[0].mxu0
        %v4546 = vadd.f32 0.0, %v4545
        %4547 = vmatprep.mubr.f32.mxu0 0.0
        %4548 = vmatmul.mubr.f32.gmra.mrb[0].mxu0 %v4350
        %v4549 = vpop.f32.mrb[0].mxu0
        %v4550 = vadd.f32 0.0, %v4549
        %v4551 = vpop.f32.mrb[0].mxu0
        %v4552 = vadd.f32 0.0, %v4551
        %4553 = vdwg.mxu0
        %4554 = vmatprep.subr.mxu0 %v4368
        %4555 = vmatpush1.msra.mxu0 %v4365
        %4556 = vmatprep.subr.mxu0 0.0
        %4557 = vmatpush1.msra.mxu0 0.0
        %4558 = vmatprep.subr.mxu0 0.0
        %4559 = vmatpush1.msra.mxu0 0.0
        %4560 = vmatprep.subr.mxu0 0.0
        %4561 = vmatpush1.msra.mxu0 0.0
        %4562 = vmatprep.subr.mxu0 0.0
        %4563 = vmatpush1.msra.mxu0 0.0
        %4564 = vmatprep.subr.mxu0 0.0
        %4565 = vmatpush1.msra.mxu0 0.0
        %4566 = vmatprep.subr.mxu0 0.0
        %4567 = vmatpush1.msra.mxu0 0.0
        %4568 = vmatprep.subr.mxu0 0.0
        %4569 = vmatpush1.msra.mxu0 0.0
        %4570 = vmatprep.subr.mxu0 0.0
        %4571 = vmatpush1.msra.mxu0 0.0
        %4572 = vmatprep.subr.mxu0 0.0
        %4573 = vmatpush1.msra.mxu0 0.0
        %4574 = vmatprep.subr.mxu0 0.0
        %4575 = vmatpush1.msra.mxu0 0.0
        %4576 = vmatprep.subr.mxu0 0.0
        %4577 = vmatpush1.msra.mxu0 0.0
        %4578 = vmatprep.subr.mxu0 0.0
        %4579 = vmatpush1.msra.mxu0 0.0
        %4580 = vmatprep.subr.mxu0 0.0
        %4581 = vmatpush1.msra.mxu0 0.0
        %4582 = vmatprep.subr.mxu0 0.0
        %4583 = vmatpush1.msra.mxu0 0.0
        %4584 = vmatprep.subr.mxu0 0.0
        %4585 = vmatpush1.msra.mxu0 0.0
        %4586 = vmatprep.subr.mxu0 0.0
        %4587 = vmatpush1.msra.mxu0 0.0
        %4588 = vmatprep.subr.mxu0 0.0
        %4589 = vmatpush1.msra.mxu0 0.0
        %4590 = vmatprep.subr.mxu0 0.0
        %4591 = vmatpush1.msra.mxu0 0.0
        %4592 = vmatprep.subr.mxu0 0.0
        %4593 = vmatpush1.msra.mxu0 0.0
        %4594 = vmatprep.subr.mxu0 0.0
        %4595 = vmatpush1.msra.mxu0 0.0
        %4596 = vmatprep.subr.mxu0 0.0
        %4597 = vmatpush1.msra.mxu0 0.0
        %4598 = vmatprep.subr.mxu0 0.0
        %4599 = vmatpush1.msra.mxu0 0.0
        %4600 = vmatprep.subr.mxu0 0.0
        %4601 = vmatpush1.msra.mxu0 0.0
        %4602 = vmatprep.subr.mxu0 0.0
        %4603 = vmatpush1.msra.mxu0 0.0
        %4604 = vmatprep.subr.mxu0 0.0
        %4605 = vmatpush1.msra.mxu0 0.0
        %4606 = vmatprep.subr.mxu0 0.0
        %4607 = vmatpush1.msra.mxu0 0.0
        %4608 = vmatprep.subr.mxu0 0.0
        %4609 = vmatpush1.msra.mxu0 0.0
        %4610 = vmatprep.subr.mxu0 0.0
        %4611 = vmatpush1.msra.mxu0 0.0
        %4612 = vmatprep.subr.mxu0 0.0
        %4613 = vmatpush1.msra.mxu0 0.0
        %4614 = vmatprep.subr.mxu0 0.0
        %4615 = vmatpush1.msra.mxu0 0.0
        %4616 = vmatprep.subr.mxu0 0.0
        %4617 = vmatpush1.msra.mxu0 0.0
        %4618 = vmatprep.mubr.f32.mxu0 0.0
        %4619 = vmatmul.mubr.f32.gmra.mrb[0].mxu0 %v4347
        %v4620 = vpop.f32.mrb[0].mxu0
        %v4621 = vadd.f32 0.0, %v4620
        %v4622 = vpop.f32.mrb[0].mxu0
        %v4623 = vadd.f32 0.0, %v4622
        %4624 = vmatprep.mubr.f32.mxu0 0.0
        %4625 = vmatmul.mubr.f32.gmra.mrb[0].mxu0 %v4350
        %v4626 = vpop.f32.mrb[0].mxu0
        %v4627 = vadd.f32 0.0, %v4626
        %v4628 = vpop.f32.mrb[0].mxu0
        %v4629 = vadd.f32 0.0, %v4628
        %4630 = vdwg.mxu0
        %4631 = vmatprep.subr.mxu0 %v4374
        %4632 = vmatpush1.msra.mxu0 %v4371
        %4633 = vmatprep.subr.mxu0 0.0
        %4634 = vmatpush1.msra.mxu0 0.0
        %4635 = vmatprep.subr.mxu0 0.0
        %4636 = vmatpush1.msra.mxu0 0.0
        %4637 = vmatprep.subr.mxu0 0.0
        %4638 = vmatpush1.msra.mxu0 0.0
        %4639 = vmatprep.subr.mxu0 0.0
        %4640 = vmatpush1.msra.mxu0 0.0
        %4641 = vmatprep.subr.mxu0 0.0
        %4642 = vmatpush1.msra.mxu0 0.0
        %4643 = vmatprep.subr.mxu0 0.0
        %4644 = vmatpush1.msra.mxu0 0.0
        %4645 = vmatprep.subr.mxu0 0.0
        %4646 = vmatpush1.msra.mxu0 0.0
        %4647 = vmatprep.subr.mxu0 0.0
        %4648 = vmatpush1.msra.mxu0 0.0
        %4649 = vmatprep.subr.mxu0 0.0
        %4650 = vmatpush1.msra.mxu0 0.0
        %4651 = vmatprep.subr.mxu0 0.0
        %4652 = vmatpush1.msra.mxu0 0.0
        %4653 = vmatprep.subr.mxu0 0.0
        %4654 = vmatpush1.msra.mxu0 0.0
        %4655 = vmatprep.subr.mxu0 0.0
        %4656 = vmatpush1.msra.mxu0 0.0
        %4657 = vmatprep.subr.mxu0 0.0
        %4658 = vmatpush1.msra.mxu0 0.0
        %4659 = vmatprep.subr.mxu0 0.0
        %4660 = vmatpush1.msra.mxu0 0.0
        %4661 = vmatprep.subr.mxu0 0.0
        %4662 = vmatpush1.msra.mxu0 0.0
        %4663 = vmatprep.subr.mxu0 0.0
        %4664 = vmatpush1.msra.mxu0 0.0
        %4665 = vmatprep.subr.mxu0 0.0
        %4666 = vmatpush1.msra.mxu0 0.0
        %4667 = vmatprep.subr.mxu0 0.0
        %4668 = vmatpush1.msra.mxu0 0.0
        %4669 = vmatprep.subr.mxu0 0.0
        %4670 = vmatpush1.msra.mxu0 0.0
        %4671 = vmatprep.subr.mxu0 0.0
        %4672 = vmatpush1.msra.mxu0 0.0
        %4673 = vmatprep.subr.mxu0 0.0
        %4674 = vmatpush1.msra.mxu0 0.0
        %4675 = vmatprep.subr.mxu0 0.0
        %4676 = vmatpush1.msra.mxu0 0.0
        %4677 = vmatprep.subr.mxu0 0.0
        %4678 = vmatpush1.msra.mxu0 0.0
        %4679 = vmatprep.subr.mxu0 0.0
        %4680 = vmatpush1.msra.mxu0 0.0
        %4681 = vmatprep.subr.mxu0 0.0
        %4682 = vmatpush1.msra.mxu0 0.0
        %4683 = vmatprep.subr.mxu0 0.0
        %4684 = vmatpush1.msra.mxu0 0.0
        %4685 = vmatprep.subr.mxu0 0.0
        %4686 = vmatpush1.msra.mxu0 0.0
        %4687 = vmatprep.subr.mxu0 0.0
        %4688 = vmatpush1.msra.mxu0 0.0
        %4689 = vmatprep.subr.mxu0 0.0
        %4690 = vmatpush1.msra.mxu0 0.0
        %4691 = vmatprep.subr.mxu0 0.0
        %4692 = vmatpush1.msra.mxu0 0.0
        %4693 = vmatprep.subr.mxu0 0.0
        %4694 = vmatpush1.msra.mxu0 0.0
        %4695 = vmatprep.mubr.f32.mxu0 0.0
        %4696 = vmatmul.mubr.f32.gmra.mrb[0].mxu0 %v4347
        %v4697 = vpop.f32.mrb[0].mxu0
        %v4698 = vadd.f32 0.0, %v4697
        %v4699 = vpop.f32.mrb[0].mxu0
        %v4700 = vadd.f32 0.0, %v4699
        %4701 = vmatprep.mubr.f32.mxu0 0.0
        %4702 = vmatmul.mubr.f32.gmra.mrb[0].mxu0 %v4350
        %v4703 = vpop.f32.mrb[0].mxu0
        %v4704 = vadd.f32 0.0, %v4703
        %v4705 = vpop.f32.mrb[0].mxu0
        %v4706 = vadd.f32 0.0, %v4705
        %4707 = vdwg.mxu0
        %4708 = vmatprep.subr.mxu0 %v4380
        %4709 = vmatpush1.msra.mxu0 %v4377
        %4710 = vmatprep.subr.mxu0 0.0
        %4711 = vmatpush1.msra.mxu0 0.0
        %4712 = vmatprep.subr.mxu0 0.0
        %4713 = vmatpush1.msra.mxu0 0.0
        %4714 = vmatprep.subr.mxu0 0.0
        %4715 = vmatpush1.msra.mxu0 0.0
        %4716 = vmatprep.subr.mxu0 0.0
        %4717 = vmatpush1.msra.mxu0 0.0
        %4718 = vmatprep.subr.mxu0 0.0
        %4719 = vmatpush1.msra.mxu0 0.0
        %4720 = vmatprep.subr.mxu0 0.0
        %4721 = vmatpush1.msra.mxu0 0.0
        %4722 = vmatprep.subr.mxu0 0.0
        %4723 = vmatpush1.msra.mxu0 0.0
        %4724 = vmatprep.subr.mxu0 0.0
        %4725 = vmatpush1.msra.mxu0 0.0
        %4726 = vmatprep.subr.mxu0 0.0
        %4727 = vmatpush1.msra.mxu0 0.0
        %4728 = vmatprep.subr.mxu0 0.0
        %4729 = vmatpush1.msra.mxu0 0.0
        %4730 = vmatprep.subr.mxu0 0.0
        %4731 = vmatpush1.msra.mxu0 0.0
        %4732 = vmatprep.subr.mxu0 0.0
        %4733 = vmatpush1.msra.mxu0 0.0
        %4734 = vmatprep.subr.mxu0 0.0
        %4735 = vmatpush1.msra.mxu0 0.0
        %4736 = vmatprep.subr.mxu0 0.0
        %4737 = vmatpush1.msra.mxu0 0.0
        %4738 = vmatprep.subr.mxu0 0.0
        %4739 = vmatpush1.msra.mxu0 0.0
        %4740 = vmatprep.subr.mxu0 0.0
        %4741 = vmatpush1.msra.mxu0 0.0
        %4742 = vmatprep.subr.mxu0 0.0
        %4743 = vmatpush1.msra.mxu0 0.0
        %4744 = vmatprep.subr.mxu0 0.0
        %4745 = vmatpush1.msra.mxu0 0.0
        %4746 = vmatprep.subr.mxu0 0.0
        %4747 = vmatpush1.msra.mxu0 0.0
        %4748 = vmatprep.subr.mxu0 0.0
        %4749 = vmatpush1.msra.mxu0 0.0
        %4750 = vmatprep.subr.mxu0 0.0
        %4751 = vmatpush1.msra.mxu0 0.0
        %4752 = vmatprep.subr.mxu0 0.0
        %4753 = vmatpush1.msra.mxu0 0.0
        %4754 = vmatprep.subr.mxu0 0.0
        %4755 = vmatpush1.msra.mxu0 0.0
        %4756 = vmatprep.subr.mxu0 0.0
        %4757 = vmatpush1.msra.mxu0 0.0
        %4758 = vmatprep.subr.mxu0 0.0
        %4759 = vmatpush1.msra.mxu0 0.0
        %4760 = vmatprep.subr.mxu0 0.0
        %4761 = vmatpush1.msra.mxu0 0.0
        %4762 = vmatprep.subr.mxu0 0.0
        %4763 = vmatpush1.msra.mxu0 0.0
        %4764 = vmatprep.subr.mxu0 0.0
        %4765 = vmatpush1.msra.mxu0 0.0
        %4766 = vmatprep.subr.mxu0 0.0
        %4767 = vmatpush1.msra.mxu0 0.0
        %4768 = vmatprep.subr.mxu0 0.0
        %4769 = vmatpush1.msra.mxu0 0.0
        %4770 = vmatprep.subr.mxu0 0.0
        %4771 = vmatpush1.msra.mxu0 0.0
        %4772 = vmatprep.mubr.f32.mxu0 0.0
        %4773 = vmatmul.mubr.f32.gmra.mrb[0].mxu0 %v4347
        %v4774 = vpop.f32.mrb[0].mxu0
        %v4775 = vadd.f32 0.0, %v4774
        %v4776 = vpop.f32.mrb[0].mxu0
        %v4777 = vadd.f32 0.0, %v4776
        %4778 = vmatprep.mubr.f32.mxu0 0.0
        %4779 = vmatmul.mubr.f32.gmra.mrb[0].mxu0 %v4350
        %v4780 = vpop.f32.mrb[0].mxu0
        %v4781 = vadd.f32 0.0, %v4780
        %v4782 = vpop.f32.mrb[0].mxu0
        %v4783 = vadd.f32 0.0, %v4782
        %4784 = vdwg.mxu0
        %4785 = vmatprep.subr.mxu0 %v4386
        %4786 = vmatpush1.msra.mxu0 %v4383
        %4787 = vmatprep.subr.mxu0 0.0
        %4788 = vmatpush1.msra.mxu0 0.0
        %4789 = vmatprep.subr.mxu0 0.0
        %4790 = vmatpush1.msra.mxu0 0.0
        %4791 = vmatprep.subr.mxu0 0.0
        %4792 = vmatpush1.msra.mxu0 0.0
        %4793 = vmatprep.subr.mxu0 0.0
        %4794 = vmatpush1.msra.mxu0 0.0
        %4795 = vmatprep.subr.mxu0 0.0
        %4796 = vmatpush1.msra.mxu0 0.0
        %4797 = vmatprep.subr.mxu0 0.0
        %4798 = vmatpush1.msra.mxu0 0.0
        %4799 = vmatprep.subr.mxu0 0.0
        %4800 = vmatpush1.msra.mxu0 0.0
        %4801 = vmatprep.subr.mxu0 0.0
        %4802 = vmatpush1.msra.mxu0 0.0
        %4803 = vmatprep.subr.mxu0 0.0
        %4804 = vmatpush1.msra.mxu0 0.0
        %4805 = vmatprep.subr.mxu0 0.0
        %4806 = vmatpush1.msra.mxu0 0.0
        %4807 = vmatprep.subr.mxu0 0.0
        %4808 = vmatpush1.msra.mxu0 0.0
        %4809 = vmatprep.subr.mxu0 0.0
        %4810 = vmatpush1.msra.mxu0 0.0
        %4811 = vmatprep.subr.mxu0 0.0
        %4812 = vmatpush1.msra.mxu0 0.0
        %4813 = vmatprep.subr.mxu0 0.0
        %4814 = vmatpush1.msra.mxu0 0.0
        %4815 = vmatprep.subr.mxu0 0.0
        %4816 = vmatpush1.msra.mxu0 0.0
        %4817 = vmatprep.subr.mxu0 0.0
        %4818 = vmatpush1.msra.mxu0 0.0
        %4819 = vmatprep.subr.mxu0 0.0
        %4820 = vmatpush1.msra.mxu0 0.0
        %4821 = vmatprep.subr.mxu0 0.0
        %4822 = vmatpush1.msra.mxu0 0.0
        %4823 = vmatprep.subr.mxu0 0.0
        %4824 = vmatpush1.msra.mxu0 0.0
        %4825 = vmatprep.subr.mxu0 0.0
        %4826 = vmatpush1.msra.mxu0 0.0
        %4827 = vmatprep.subr.mxu0 0.0
        %4828 = vmatpush1.msra.mxu0 0.0
        %4829 = vmatprep.subr.mxu0 0.0
        %4830 = vmatpush1.msra.mxu0 0.0
        %4831 = vmatprep.subr.mxu0 0.0
        %4832 = vmatpush1.msra.mxu0 0.0
        %4833 = vmatprep.subr.mxu0 0.0
        %4834 = vmatpush1.msra.mxu0 0.0
        %4835 = vmatprep.subr.mxu0 0.0
        %4836 = vmatpush1.msra.mxu0 0.0
        %4837 = vmatprep.subr.mxu0 0.0
        %4838 = vmatpush1.msra.mxu0 0.0
        %4839 = vmatprep.subr.mxu0 0.0
        %4840 = vmatpush1.msra.mxu0 0.0
        %4841 = vmatprep.subr.mxu0 0.0
        %4842 = vmatpush1.msra.mxu0 0.0
        %4843 = vmatprep.subr.mxu0 0.0
        %4844 = vmatpush1.msra.mxu0 0.0
        %4845 = vmatprep.subr.mxu0 0.0
        %4846 = vmatpush1.msra.mxu0 0.0
        %4847 = vmatprep.subr.mxu0 0.0
        %4848 = vmatpush1.msra.mxu0 0.0
        %4849 = vmatprep.mubr.f32.mxu0 0.0
        %4850 = vmatmul.mubr.f32.gmra.mrb[0].mxu0 %v4347
        %v4851 = vpop.f32.mrb[0].mxu0
        %v4852 = vadd.f32 0.0, %v4851
        %v4853 = vpop.f32.mrb[0].mxu0
        %v4854 = vadd.f32 0.0, %v4853
        %4855 = vmatprep.mubr.f32.mxu0 0.0
        %4856 = vmatmul.mubr.f32.gmra.mrb[0].mxu0 %v4350
        %v4857 = vpop.f32.mrb[0].mxu0
        %v4858 = vadd.f32 0.0, %v4857
        %v4859 = vpop.f32.mrb[0].mxu0
        %v4860 = vadd.f32 0.0, %v4859
        %4861 = vdwg.mxu0
        %4862 = vmatprep.subr.mxu0 %v4392
        %4863 = vmatpush1.msra.mxu0 %v4389
        %4864 = vmatprep.subr.mxu0 0.0
        %4865 = vmatpush1.msra.mxu0 0.0
        %4866 = vmatprep.subr.mxu0 0.0
        %4867 = vmatpush1.msra.mxu0 0.0
        %4868 = vmatprep.subr.mxu0 0.0
        %4869 = vmatpush1.msra.mxu0 0.0
        %4870 = vmatprep.subr.mxu0 0.0
        %4871 = vmatpush1.msra.mxu0 0.0
        %4872 = vmatprep.subr.mxu0 0.0
        %4873 = vmatpush1.msra.mxu0 0.0
        %4874 = vmatprep.subr.mxu0 0.0
        %4875 = vmatpush1.msra.mxu0 0.0
        %4876 = vmatprep.subr.mxu0 0.0
        %4877 = vmatpush1.msra.mxu0 0.0
        %4878 = vmatprep.subr.mxu0 0.0
        %4879 = vmatpush1.msra.mxu0 0.0
        %4880 = vmatprep.subr.mxu0 0.0
        %4881 = vmatpush1.msra.mxu0 0.0
        %4882 = vmatprep.subr.mxu0 0.0
        %4883 = vmatpush1.msra.mxu0 0.0
        %4884 = vmatprep.subr.mxu0 0.0
        %4885 = vmatpush1.msra.mxu0 0.0
        %4886 = vmatprep.subr.mxu0 0.0
        %4887 = vmatpush1.msra.mxu0 0.0
        %4888 = vmatprep.subr.mxu0 0.0
        %4889 = vmatpush1.msra.mxu0 0.0
        %4890 = vmatprep.subr.mxu0 0.0
        %4891 = vmatpush1.msra.mxu0 0.0
        %4892 = vmatprep.subr.mxu0 0.0
        %4893 = vmatpush1.msra.mxu0 0.0
        %4894 = vmatprep.subr.mxu0 0.0
        %4895 = vmatpush1.msra.mxu0 0.0
        %4896 = vmatprep.subr.mxu0 0.0
        %4897 = vmatpush1.msra.mxu0 0.0
        %4898 = vmatprep.subr.mxu0 0.0
        %4899 = vmatpush1.msra.mxu0 0.0
        %4900 = vmatprep.subr.mxu0 0.0
        %4901 = vmatpush1.msra.mxu0 0.0
        %4902 = vmatprep.subr.mxu0 0.0
        %4903 = vmatpush1.msra.mxu0 0.0
        %4904 = vmatprep.subr.mxu0 0.0
        %4905 = vmatpush1.msra.mxu0 0.0
        %4906 = vmatprep.subr.mxu0 0.0
        %4907 = vmatpush1.msra.mxu0 0.0
        %4908 = vmatprep.subr.mxu0 0.0
        %4909 = vmatpush1.msra.mxu0 0.0
        %4910 = vmatprep.subr.mxu0 0.0
        %4911 = vmatpush1.msra.mxu0 0.0
        %4912 = vmatprep.subr.mxu0 0.0
        %4913 = vmatpush1.msra.mxu0 0.0
        %4914 = vmatprep.subr.mxu0 0.0
        %4915 = vmatpush1.msra.mxu0 0.0
        %4916 = vmatprep.subr.mxu0 0.0
        %4917 = vmatpush1.msra.mxu0 0.0
        %4918 = vmatprep.subr.mxu0 0.0
        %4919 = vmatpush1.msra.mxu0 0.0
        %4920 = vmatprep.subr.mxu0 0.0
        %4921 = vmatpush1.msra.mxu0 0.0
        %4922 = vmatprep.subr.mxu0 0.0
        %4923 = vmatpush1.msra.mxu0 0.0
        %4924 = vmatprep.subr.mxu0 0.0
        %4925 = vmatpush1.msra.mxu0 0.0
        %4926 = vmatprep.mubr.f32.mxu0 0.0
        %4927 = vmatmul.mubr.f32.gmra.mrb[0].mxu0 %v4347
        %v4928 = vpop.f32.mrb[0].mxu0
        %v4929 = vadd.f32 0.0, %v4928
        %v4930 = vpop.f32.mrb[0].mxu0
        %v4931 = vadd.f32 0.0, %v4930
        %4932 = vmatprep.mubr.f32.mxu0 0.0
        %4933 = vmatmul.mubr.f32.gmra.mrb[0].mxu0 %v4350
        %v4934 = vpop.f32.mrb[0].mxu0
        %v4935 = vadd.f32 0.0, %v4934
        %v4936 = vpop.f32.mrb[0].mxu0
        %v4937 = vadd.f32 0.0, %v4936
        %4938 = vdwg.mxu0
        %4939 = vmatprep.subr.mxu0 %v4398
        %4940 = vmatpush1.msra.mxu0 %v4395
        %4941 = vmatprep.subr.mxu0 0.0
        %4942 = vmatpush1.msra.mxu0 0.0
        %4943 = vmatprep.subr.mxu0 0.0
        %4944 = vmatpush1.msra.mxu0 0.0
        %4945 = vmatprep.subr.mxu0 0.0
        %4946 = vmatpush1.msra.mxu0 0.0
        %4947 = vmatprep.subr.mxu0 0.0
        %4948 = vmatpush1.msra.mxu0 0.0
        %4949 = vmatprep.subr.mxu0 0.0
        %4950 = vmatpush1.msra.mxu0 0.0
        %4951 = vmatprep.subr.mxu0 0.0
        %4952 = vmatpush1.msra.mxu0 0.0
        %4953 = vmatprep.subr.mxu0 0.0
        %4954 = vmatpush1.msra.mxu0 0.0
        %4955 = vmatprep.subr.mxu0 0.0
        %4956 = vmatpush1.msra.mxu0 0.0
        %4957 = vmatprep.subr.mxu0 0.0
        %4958 = vmatpush1.msra.mxu0 0.0
        %4959 = vmatprep.subr.mxu0 0.0
        %4960 = vmatpush1.msra.mxu0 0.0
        %4961 = vmatprep.subr.mxu0 0.0
        %4962 = vmatpush1.msra.mxu0 0.0
        %4963 = vmatprep.subr.mxu0 0.0
        %4964 = vmatpush1.msra.mxu0 0.0
        %4965 = vmatprep.subr.mxu0 0.0
        %4966 = vmatpush1.msra.mxu0 0.0
        %4967 = vmatprep.subr.mxu0 0.0
        %4968 = vmatpush1.msra.mxu0 0.0
        %4969 = vmatprep.subr.mxu0 0.0
        %4970 = vmatpush1.msra.mxu0 0.0
        %4971 = vmatprep.subr.mxu0 0.0
        %4972 = vmatpush1.msra.mxu0 0.0
        %4973 = vmatprep.subr.mxu0 0.0
        %4974 = vmatpush1.msra.mxu0 0.0
        %4975 = vmatprep.subr.mxu0 0.0
        %4976 = vmatpush1.msra.mxu0 0.0
        %4977 = vmatprep.subr.mxu0 0.0
        %4978 = vmatpush1.msra.mxu0 0.0
        %4979 = vmatprep.subr.mxu0 0.0
        %4980 = vmatpush1.msra.mxu0 0.0
        %4981 = vmatprep.subr.mxu0 0.0
        %4982 = vmatpush1.msra.mxu0 0.0
        %4983 = vmatprep.subr.mxu0 0.0
        %4984 = vmatpush1.msra.mxu0 0.0
        %4985 = vmatprep.subr.mxu0 0.0
        %4986 = vmatpush1.msra.mxu0 0.0
        %4987 = vmatprep.subr.mxu0 0.0
        %4988 = vmatpush1.msra.mxu0 0.0
        %4989 = vmatprep.subr.mxu0 0.0
        %4990 = vmatpush1.msra.mxu0 0.0
        %4991 = vmatprep.subr.mxu0 0.0
        %4992 = vmatpush1.msra.mxu0 0.0
        %4993 = vmatprep.subr.mxu0 0.0
        %4994 = vmatpush1.msra.mxu0 0.0
        %4995 = vmatprep.subr.mxu0 0.0
        %4996 = vmatpush1.msra.mxu0 0.0
        %4997 = vmatprep.subr.mxu0 0.0
        %4998 = vmatpush1.msra.mxu0 0.0
        %4999 = vmatprep.subr.mxu0 0.0
        %5000 = vmatpush1.msra.mxu0 0.0
        %5001 = vmatprep.subr.mxu0 0.0
        %5002 = vmatpush1.msra.mxu0 0.0
        %5003 = vmatprep.mubr.f32.mxu0 0.0
        %5004 = vmatmul.mubr.f32.gmra.mrb[0].mxu0 %v4347
        %v5005 = vpop.f32.mrb[0].mxu0
        %v5006 = vadd.f32 0.0, %v5005
        %v5007 = vpop.f32.mrb[0].mxu0
        %v5008 = vadd.f32 0.0, %v5007
        %5009 = vmatprep.mubr.f32.mxu0 0.0
        %5010 = vmatmul.mubr.f32.gmra.mrb[0].mxu0 %v4350
        %v5011 = vpop.f32.mrb[0].mxu0
        %v5012 = vadd.f32 0.0, %v5011
        %v5013 = vpop.f32.mrb[0].mxu0
        %v5014 = vadd.f32 0.0, %v5013
        %5015 = vdwg.mxu0
        %v5016 = vadd.f32 %v4228, %v4467
        %v5017 = vadd.f32 %v4229, %v4469
        %v5018 = vadd.f32 %v4230, %v4544
        %v5019 = vadd.f32 %v4231, %v4546
        %v5020 = vadd.f32 %v4232, %v4621
        %v5021 = vadd.f32 %v4233, %v4623
        %v5022 = vadd.f32 %v4234, %v4698
        %v5023 = vadd.f32 %v4235, %v4700
        %v5024 = vadd.f32 %v4236, %v4775
        %v5025 = vadd.f32 %v4237, %v4777
        %v5026 = vadd.f32 %v4238, %v4852
        %v5027 = vadd.f32 %v4239, %v4854
        %v5028 = vadd.f32 %v4240, %v4929
        %v5029 = vadd.f32 %v4241, %v4931
        %v5030 = vadd.f32 %v4242, %v5006
        %v5031 = vadd.f32 %v4243, %v5008
        %v5032 = vadd.f32 %v4244, %v4473
        %v5033 = vadd.f32 %v4245, %v4475
        %v5034 = vadd.f32 %v4246, %v4550
        %v5035 = vadd.f32 %v4247, %v4552
        %v5036 = vadd.f32 %v4248, %v4627
        %v5037 = vadd.f32 %v4249, %v4629
        %v5038 = vadd.f32 %v4250, %v4704
        %v5039 = vadd.f32 %v4251, %v4706
        %v5040 = vadd.f32 %v4252, %v4781
        %v5041 = vadd.f32 %v4253, %v4783
        %v5042 = vadd.f32 %v4254, %v4858
        %v5043 = vadd.f32 %v4255, %v4860
        %v5044 = vadd.f32 %v4256, %v4935
        %v5045 = vadd.f32 %v4257, %v4937
        %v5046 = vadd.f32 %v4258, %v5012
        %v5047 = vadd.f32 %v4259, %v5014
        %v5048 = vld [vmem:[%s196 + $0x4] sm:$0x77]
        %v5049 = vld [vmem:[%s196 + $0xc] sm:$0x77]
        %v5050 = vld [vmem:[%s196 + $0x14] sm:$0x77]
        %v5051 = vld [vmem:[%s196 + $0x1c] sm:$0x77]
        %v5052 = vld [vmem:[%s196 + $0x24] sm:$0x77]
        %v5053 = vld [vmem:[%s196 + $0x2c] sm:$0x77]
        %v5054 = vld [vmem:[%s196 + $0x34] sm:$0x77]
        %v5055 = vld [vmem:[%s196 + $0x3c] sm:$0x77]
        %v5056 = vunpack.c.l.bf16 %v5048
        %v5057 = vunpack.c.h.bf16 %v5048
        %v5058 = vunpack.c.l.bf16 %v5049
        %v5059 = vunpack.c.h.bf16 %v5049
        %v5060 = vunpack.c.l.bf16 %v5050
        %v5061 = vunpack.c.h.bf16 %v5050
        %v5062 = vunpack.c.l.bf16 %v5051
        %v5063 = vunpack.c.h.bf16 %v5051
        %v5064 = vunpack.c.l.bf16 %v5052
        %v5065 = vunpack.c.h.bf16 %v5052
        %v5066 = vunpack.c.l.bf16 %v5053
        %v5067 = vunpack.c.h.bf16 %v5053
        %v5068 = vunpack.c.l.bf16 %v5054
        %v5069 = vunpack.c.h.bf16 %v5054
        %v5070 = vunpack.c.l.bf16 %v5055
        %v5071 = vunpack.c.h.bf16 %v5055
        %v5072 = vsel %vm479, %v5056, 0.0
        %v5073 = vsel %vm480, %v5057, 0.0
        %v5074 = vsel %vm481, %v5058, 0.0
        %v5075 = vsel %vm482, %v5059, 0.0
        %v5076 = vsel %vm483, %v5060, 0.0
        %v5077 = vsel %vm484, %v5061, 0.0
        %v5078 = vsel %vm485, %v5062, 0.0
        %v5079 = vsel %vm486, %v5063, 0.0
        %v5080 = vsel %vm487, %v5064, 0.0
        %v5081 = vsel %vm488, %v5065, 0.0
        %v5082 = vsel %vm489, %v5066, 0.0
        %v5083 = vsel %vm490, %v5067, 0.0
        %v5084 = vsel %vm491, %v5068, 0.0
        %v5085 = vsel %vm492, %v5069, 0.0
        %v5086 = vsel %vm493, %v5070, 0.0
        %v5087 = vsel %vm494, %v5071, 0.0
        %s5088 = scalar_lea.vmem %s0, 96
        %v5089 = vld [vmem:[%s5088] sm:$0xff]
        %v5090 = vld [vmem:[%s5088 + $0x8] sm:$0xff]
        %v5092 = vsel %vm586, %v5089, 0
        %v5095 = vsel %vm586, %v5090, 0
        %v5098 = vsel %vm593, %v5072, 0
        %v5101 = vsel %vm593, %v5073, 0
        %v5104 = vsel %vm593, %v5074, 0
        %v5107 = vsel %vm593, %v5075, 0
        %v5110 = vsel %vm593, %v5076, 0
        %v5113 = vsel %vm593, %v5077, 0
        %v5116 = vsel %vm593, %v5078, 0
        %v5119 = vsel %vm593, %v5079, 0
        %v5122 = vsel %vm593, %v5080, 0
        %v5125 = vsel %vm593, %v5081, 0
        %v5128 = vsel %vm593, %v5082, 0
        %v5131 = vsel %vm593, %v5083, 0
        %v5134 = vsel %vm593, %v5084, 0
        %v5137 = vsel %vm593, %v5085, 0
        %v5140 = vsel %vm593, %v5086, 0
        %v5143 = vsel %vm593, %v5087, 0
        %5145 = vmatprep.subr.mxu0 %v5101
        %5146 = vmatpush1.msra.mxu0 %v5098
        %5147 = vmatprep.subr.mxu0 0.0
        %5148 = vmatpush1.msra.mxu0 0.0
        %5149 = vmatprep.subr.mxu0 0.0
        %5150 = vmatpush1.msra.mxu0 0.0
        %5151 = vmatprep.subr.mxu0 0.0
        %5152 = vmatpush1.msra.mxu0 0.0
        %5153 = vmatprep.subr.mxu0 0.0
        %5154 = vmatpush1.msra.mxu0 0.0
        %5155 = vmatprep.subr.mxu0 0.0
        %5156 = vmatpush1.msra.mxu0 0.0
        %5157 = vmatprep.subr.mxu0 0.0
        %5158 = vmatpush1.msra.mxu0 0.0
        %5159 = vmatprep.subr.mxu0 0.0
        %5160 = vmatpush1.msra.mxu0 0.0
        %5161 = vmatprep.subr.mxu0 0.0
        %5162 = vmatpush1.msra.mxu0 0.0
        %5163 = vmatprep.subr.mxu0 0.0
        %5164 = vmatpush1.msra.mxu0 0.0
        %5165 = vmatprep.subr.mxu0 0.0
        %5166 = vmatpush1.msra.mxu0 0.0
        %5167 = vmatprep.subr.mxu0 0.0
        %5168 = vmatpush1.msra.mxu0 0.0
        %5169 = vmatprep.subr.mxu0 0.0
        %5170 = vmatpush1.msra.mxu0 0.0
        %5171 = vmatprep.subr.mxu0 0.0
        %5172 = vmatpush1.msra.mxu0 0.0
        %5173 = vmatprep.subr.mxu0 0.0
        %5174 = vmatpush1.msra.mxu0 0.0
        %5175 = vmatprep.subr.mxu0 0.0
        %5176 = vmatpush1.msra.mxu0 0.0
        %5177 = vmatprep.subr.mxu0 0.0
        %5178 = vmatpush1.msra.mxu0 0.0
        %5179 = vmatprep.subr.mxu0 0.0
        %5180 = vmatpush1.msra.mxu0 0.0
        %5181 = vmatprep.subr.mxu0 0.0
        %5182 = vmatpush1.msra.mxu0 0.0
        %5183 = vmatprep.subr.mxu0 0.0
        %5184 = vmatpush1.msra.mxu0 0.0
        %5185 = vmatprep.subr.mxu0 0.0
        %5186 = vmatpush1.msra.mxu0 0.0
        %5187 = vmatprep.subr.mxu0 0.0
        %5188 = vmatpush1.msra.mxu0 0.0
        %5189 = vmatprep.subr.mxu0 0.0
        %5190 = vmatpush1.msra.mxu0 0.0
        %5191 = vmatprep.subr.mxu0 0.0
        %5192 = vmatpush1.msra.mxu0 0.0
        %5193 = vmatprep.subr.mxu0 0.0
        %5194 = vmatpush1.msra.mxu0 0.0
        %5195 = vmatprep.subr.mxu0 0.0
        %5196 = vmatpush1.msra.mxu0 0.0
        %5197 = vmatprep.subr.mxu0 0.0
        %5198 = vmatpush1.msra.mxu0 0.0
        %5199 = vmatprep.subr.mxu0 0.0
        %5200 = vmatpush1.msra.mxu0 0.0
        %5201 = vmatprep.subr.mxu0 0.0
        %5202 = vmatpush1.msra.mxu0 0.0
        %5203 = vmatprep.subr.mxu0 0.0
        %5204 = vmatpush1.msra.mxu0 0.0
        %5205 = vmatprep.subr.mxu0 0.0
        %5206 = vmatpush1.msra.mxu0 0.0
        %5207 = vmatprep.subr.mxu0 0.0
        %5208 = vmatpush1.msra.mxu0 0.0
        %5209 = vmatprep.mubr.f32.mxu0 0.0
        %5210 = vmatmul.mubr.f32.gmra.mrb[0].mxu0 %v5092
        %v5211 = vpop.f32.mrb[0].mxu0
        %v5212 = vadd.f32 0.0, %v5211
        %v5213 = vpop.f32.mrb[0].mxu0
        %v5214 = vadd.f32 0.0, %v5213
        %5215 = vmatprep.mubr.f32.mxu0 0.0
        %5216 = vmatmul.mubr.f32.gmra.mrb[0].mxu0 %v5095
        %v5217 = vpop.f32.mrb[0].mxu0
        %v5218 = vadd.f32 0.0, %v5217
        %v5219 = vpop.f32.mrb[0].mxu0
        %v5220 = vadd.f32 0.0, %v5219
        %5221 = vdwg.mxu0
        %5222 = vmatprep.subr.mxu0 %v5107
        %5223 = vmatpush1.msra.mxu0 %v5104
        %5224 = vmatprep.subr.mxu0 0.0
        %5225 = vmatpush1.msra.mxu0 0.0
        %5226 = vmatprep.subr.mxu0 0.0
        %5227 = vmatpush1.msra.mxu0 0.0
        %5228 = vmatprep.subr.mxu0 0.0
        %5229 = vmatpush1.msra.mxu0 0.0
        %5230 = vmatprep.subr.mxu0 0.0
        %5231 = vmatpush1.msra.mxu0 0.0
        %5232 = vmatprep.subr.mxu0 0.0
        %5233 = vmatpush1.msra.mxu0 0.0
        %5234 = vmatprep.subr.mxu0 0.0
        %5235 = vmatpush1.msra.mxu0 0.0
        %5236 = vmatprep.subr.mxu0 0.0
        %5237 = vmatpush1.msra.mxu0 0.0
        %5238 = vmatprep.subr.mxu0 0.0
        %5239 = vmatpush1.msra.mxu0 0.0
        %5240 = vmatprep.subr.mxu0 0.0
        %5241 = vmatpush1.msra.mxu0 0.0
        %5242 = vmatprep.subr.mxu0 0.0
        %5243 = vmatpush1.msra.mxu0 0.0
        %5244 = vmatprep.subr.mxu0 0.0
        %5245 = vmatpush1.msra.mxu0 0.0
        %5246 = vmatprep.subr.mxu0 0.0
        %5247 = vmatpush1.msra.mxu0 0.0
        %5248 = vmatprep.subr.mxu0 0.0
        %5249 = vmatpush1.msra.mxu0 0.0
        %5250 = vmatprep.subr.mxu0 0.0
        %5251 = vmatpush1.msra.mxu0 0.0
        %5252 = vmatprep.subr.mxu0 0.0
        %5253 = vmatpush1.msra.mxu0 0.0
        %5254 = vmatprep.subr.mxu0 0.0
        %5255 = vmatpush1.msra.mxu0 0.0
        %5256 = vmatprep.subr.mxu0 0.0
        %5257 = vmatpush1.msra.mxu0 0.0
        %5258 = vmatprep.subr.mxu0 0.0
        %5259 = vmatpush1.msra.mxu0 0.0
        %5260 = vmatprep.subr.mxu0 0.0
        %5261 = vmatpush1.msra.mxu0 0.0
        %5262 = vmatprep.subr.mxu0 0.0
        %5263 = vmatpush1.msra.mxu0 0.0
        %5264 = vmatprep.subr.mxu0 0.0
        %5265 = vmatpush1.msra.mxu0 0.0
        %5266 = vmatprep.subr.mxu0 0.0
        %5267 = vmatpush1.msra.mxu0 0.0
        %5268 = vmatprep.subr.mxu0 0.0
        %5269 = vmatpush1.msra.mxu0 0.0
        %5270 = vmatprep.subr.mxu0 0.0
        %5271 = vmatpush1.msra.mxu0 0.0
        %5272 = vmatprep.subr.mxu0 0.0
        %5273 = vmatpush1.msra.mxu0 0.0
        %5274 = vmatprep.subr.mxu0 0.0
        %5275 = vmatpush1.msra.mxu0 0.0
        %5276 = vmatprep.subr.mxu0 0.0
        %5277 = vmatpush1.msra.mxu0 0.0
        %5278 = vmatprep.subr.mxu0 0.0
        %5279 = vmatpush1.msra.mxu0 0.0
        %5280 = vmatprep.subr.mxu0 0.0
        %5281 = vmatpush1.msra.mxu0 0.0
        %5282 = vmatprep.subr.mxu0 0.0
        %5283 = vmatpush1.msra.mxu0 0.0
        %5284 = vmatprep.subr.mxu0 0.0
        %5285 = vmatpush1.msra.mxu0 0.0
        %5286 = vmatprep.mubr.f32.mxu0 0.0
        %5287 = vmatmul.mubr.f32.gmra.mrb[0].mxu0 %v5092
        %v5288 = vpop.f32.mrb[0].mxu0
        %v5289 = vadd.f32 0.0, %v5288
        %v5290 = vpop.f32.mrb[0].mxu0
        %v5291 = vadd.f32 0.0, %v5290
        %5292 = vmatprep.mubr.f32.mxu0 0.0
        %5293 = vmatmul.mubr.f32.gmra.mrb[0].mxu0 %v5095
        %v5294 = vpop.f32.mrb[0].mxu0
        %v5295 = vadd.f32 0.0, %v5294
        %v5296 = vpop.f32.mrb[0].mxu0
        %v5297 = vadd.f32 0.0, %v5296
        %5298 = vdwg.mxu0
        %5299 = vmatprep.subr.mxu0 %v5113
        %5300 = vmatpush1.msra.mxu0 %v5110
        %5301 = vmatprep.subr.mxu0 0.0
        %5302 = vmatpush1.msra.mxu0 0.0
        %5303 = vmatprep.subr.mxu0 0.0
        %5304 = vmatpush1.msra.mxu0 0.0
        %5305 = vmatprep.subr.mxu0 0.0
        %5306 = vmatpush1.msra.mxu0 0.0
        %5307 = vmatprep.subr.mxu0 0.0
        %5308 = vmatpush1.msra.mxu0 0.0
        %5309 = vmatprep.subr.mxu0 0.0
        %5310 = vmatpush1.msra.mxu0 0.0
        %5311 = vmatprep.subr.mxu0 0.0
        %5312 = vmatpush1.msra.mxu0 0.0
        %5313 = vmatprep.subr.mxu0 0.0
        %5314 = vmatpush1.msra.mxu0 0.0
        %5315 = vmatprep.subr.mxu0 0.0
        %5316 = vmatpush1.msra.mxu0 0.0
        %5317 = vmatprep.subr.mxu0 0.0
        %5318 = vmatpush1.msra.mxu0 0.0
        %5319 = vmatprep.subr.mxu0 0.0
        %5320 = vmatpush1.msra.mxu0 0.0
        %5321 = vmatprep.subr.mxu0 0.0
        %5322 = vmatpush1.msra.mxu0 0.0
        %5323 = vmatprep.subr.mxu0 0.0
        %5324 = vmatpush1.msra.mxu0 0.0
        %5325 = vmatprep.subr.mxu0 0.0
        %5326 = vmatpush1.msra.mxu0 0.0
        %5327 = vmatprep.subr.mxu0 0.0
        %5328 = vmatpush1.msra.mxu0 0.0
        %5329 = vmatprep.subr.mxu0 0.0
        %5330 = vmatpush1.msra.mxu0 0.0
        %5331 = vmatprep.subr.mxu0 0.0
        %5332 = vmatpush1.msra.mxu0 0.0
        %5333 = vmatprep.subr.mxu0 0.0
        %5334 = vmatpush1.msra.mxu0 0.0
        %5335 = vmatprep.subr.mxu0 0.0
        %5336 = vmatpush1.msra.mxu0 0.0
        %5337 = vmatprep.subr.mxu0 0.0
        %5338 = vmatpush1.msra.mxu0 0.0
        %5339 = vmatprep.subr.mxu0 0.0
        %5340 = vmatpush1.msra.mxu0 0.0
        %5341 = vmatprep.subr.mxu0 0.0
        %5342 = vmatpush1.msra.mxu0 0.0
        %5343 = vmatprep.subr.mxu0 0.0
        %5344 = vmatpush1.msra.mxu0 0.0
        %5345 = vmatprep.subr.mxu0 0.0
        %5346 = vmatpush1.msra.mxu0 0.0
        %5347 = vmatprep.subr.mxu0 0.0
        %5348 = vmatpush1.msra.mxu0 0.0
        %5349 = vmatprep.subr.mxu0 0.0
        %5350 = vmatpush1.msra.mxu0 0.0
        %5351 = vmatprep.subr.mxu0 0.0
        %5352 = vmatpush1.msra.mxu0 0.0
        %5353 = vmatprep.subr.mxu0 0.0
        %5354 = vmatpush1.msra.mxu0 0.0
        %5355 = vmatprep.subr.mxu0 0.0
        %5356 = vmatpush1.msra.mxu0 0.0
        %5357 = vmatprep.subr.mxu0 0.0
        %5358 = vmatpush1.msra.mxu0 0.0
        %5359 = vmatprep.subr.mxu0 0.0
        %5360 = vmatpush1.msra.mxu0 0.0
        %5361 = vmatprep.subr.mxu0 0.0
        %5362 = vmatpush1.msra.mxu0 0.0
        %5363 = vmatprep.mubr.f32.mxu0 0.0
        %5364 = vmatmul.mubr.f32.gmra.mrb[0].mxu0 %v5092
        %v5365 = vpop.f32.mrb[0].mxu0
        %v5366 = vadd.f32 0.0, %v5365
        %v5367 = vpop.f32.mrb[0].mxu0
        %v5368 = vadd.f32 0.0, %v5367
        %5369 = vmatprep.mubr.f32.mxu0 0.0
        %5370 = vmatmul.mubr.f32.gmra.mrb[0].mxu0 %v5095
        %v5371 = vpop.f32.mrb[0].mxu0
        %v5372 = vadd.f32 0.0, %v5371
        %v5373 = vpop.f32.mrb[0].mxu0
        %v5374 = vadd.f32 0.0, %v5373
        %5375 = vdwg.mxu0
        %5376 = vmatprep.subr.mxu0 %v5119
        %5377 = vmatpush1.msra.mxu0 %v5116
        %5378 = vmatprep.subr.mxu0 0.0
        %5379 = vmatpush1.msra.mxu0 0.0
        %5380 = vmatprep.subr.mxu0 0.0
        %5381 = vmatpush1.msra.mxu0 0.0
        %5382 = vmatprep.subr.mxu0 0.0
        %5383 = vmatpush1.msra.mxu0 0.0
        %5384 = vmatprep.subr.mxu0 0.0
        %5385 = vmatpush1.msra.mxu0 0.0
        %5386 = vmatprep.subr.mxu0 0.0
        %5387 = vmatpush1.msra.mxu0 0.0
        %5388 = vmatprep.subr.mxu0 0.0
        %5389 = vmatpush1.msra.mxu0 0.0
        %5390 = vmatprep.subr.mxu0 0.0
        %5391 = vmatpush1.msra.mxu0 0.0
        %5392 = vmatprep.subr.mxu0 0.0
        %5393 = vmatpush1.msra.mxu0 0.0
        %5394 = vmatprep.subr.mxu0 0.0
        %5395 = vmatpush1.msra.mxu0 0.0
        %5396 = vmatprep.subr.mxu0 0.0
        %5397 = vmatpush1.msra.mxu0 0.0
        %5398 = vmatprep.subr.mxu0 0.0
        %5399 = vmatpush1.msra.mxu0 0.0
        %5400 = vmatprep.subr.mxu0 0.0
        %5401 = vmatpush1.msra.mxu0 0.0
        %5402 = vmatprep.subr.mxu0 0.0
        %5403 = vmatpush1.msra.mxu0 0.0
        %5404 = vmatprep.subr.mxu0 0.0
        %5405 = vmatpush1.msra.mxu0 0.0
        %5406 = vmatprep.subr.mxu0 0.0
        %5407 = vmatpush1.msra.mxu0 0.0
        %5408 = vmatprep.subr.mxu0 0.0
        %5409 = vmatpush1.msra.mxu0 0.0
        %5410 = vmatprep.subr.mxu0 0.0
        %5411 = vmatpush1.msra.mxu0 0.0
        %5412 = vmatprep.subr.mxu0 0.0
        %5413 = vmatpush1.msra.mxu0 0.0
        %5414 = vmatprep.subr.mxu0 0.0
        %5415 = vmatpush1.msra.mxu0 0.0
        %5416 = vmatprep.subr.mxu0 0.0
        %5417 = vmatpush1.msra.mxu0 0.0
        %5418 = vmatprep.subr.mxu0 0.0
        %5419 = vmatpush1.msra.mxu0 0.0
        %5420 = vmatprep.subr.mxu0 0.0
        %5421 = vmatpush1.msra.mxu0 0.0
        %5422 = vmatprep.subr.mxu0 0.0
        %5423 = vmatpush1.msra.mxu0 0.0
        %5424 = vmatprep.subr.mxu0 0.0
        %5425 = vmatpush1.msra.mxu0 0.0
        %5426 = vmatprep.subr.mxu0 0.0
        %5427 = vmatpush1.msra.mxu0 0.0
        %5428 = vmatprep.subr.mxu0 0.0
        %5429 = vmatpush1.msra.mxu0 0.0
        %5430 = vmatprep.subr.mxu0 0.0
        %5431 = vmatpush1.msra.mxu0 0.0
        %5432 = vmatprep.subr.mxu0 0.0
        %5433 = vmatpush1.msra.mxu0 0.0
        %5434 = vmatprep.subr.mxu0 0.0
        %5435 = vmatpush1.msra.mxu0 0.0
        %5436 = vmatprep.subr.mxu0 0.0
        %5437 = vmatpush1.msra.mxu0 0.0
        %5438 = vmatprep.subr.mxu0 0.0
        %5439 = vmatpush1.msra.mxu0 0.0
        %5440 = vmatprep.mubr.f32.mxu0 0.0
        %5441 = vmatmul.mubr.f32.gmra.mrb[0].mxu0 %v5092
        %v5442 = vpop.f32.mrb[0].mxu0
        %v5443 = vadd.f32 0.0, %v5442
        %v5444 = vpop.f32.mrb[0].mxu0
        %v5445 = vadd.f32 0.0, %v5444
        %5446 = vmatprep.mubr.f32.mxu0 0.0
        %5447 = vmatmul.mubr.f32.gmra.mrb[0].mxu0 %v5095
        %v5448 = vpop.f32.mrb[0].mxu0
        %v5449 = vadd.f32 0.0, %v5448
        %v5450 = vpop.f32.mrb[0].mxu0
        %v5451 = vadd.f32 0.0, %v5450
        %5452 = vdwg.mxu0
        %5453 = vmatprep.subr.mxu0 %v5125
        %5454 = vmatpush1.msra.mxu0 %v5122
        %5455 = vmatprep.subr.mxu0 0.0
        %5456 = vmatpush1.msra.mxu0 0.0
        %5457 = vmatprep.subr.mxu0 0.0
        %5458 = vmatpush1.msra.mxu0 0.0
        %5459 = vmatprep.subr.mxu0 0.0
        %5460 = vmatpush1.msra.mxu0 0.0
        %5461 = vmatprep.subr.mxu0 0.0
        %5462 = vmatpush1.msra.mxu0 0.0
        %5463 = vmatprep.subr.mxu0 0.0
        %5464 = vmatpush1.msra.mxu0 0.0
        %5465 = vmatprep.subr.mxu0 0.0
        %5466 = vmatpush1.msra.mxu0 0.0
        %5467 = vmatprep.subr.mxu0 0.0
        %5468 = vmatpush1.msra.mxu0 0.0
        %5469 = vmatprep.subr.mxu0 0.0
        %5470 = vmatpush1.msra.mxu0 0.0
        %5471 = vmatprep.subr.mxu0 0.0
        %5472 = vmatpush1.msra.mxu0 0.0
        %5473 = vmatprep.subr.mxu0 0.0
        %5474 = vmatpush1.msra.mxu0 0.0
        %5475 = vmatprep.subr.mxu0 0.0
        %5476 = vmatpush1.msra.mxu0 0.0
        %5477 = vmatprep.subr.mxu0 0.0
        %5478 = vmatpush1.msra.mxu0 0.0
        %5479 = vmatprep.subr.mxu0 0.0
        %5480 = vmatpush1.msra.mxu0 0.0
        %5481 = vmatprep.subr.mxu0 0.0
        %5482 = vmatpush1.msra.mxu0 0.0
        %5483 = vmatprep.subr.mxu0 0.0
        %5484 = vmatpush1.msra.mxu0 0.0
        %5485 = vmatprep.subr.mxu0 0.0
        %5486 = vmatpush1.msra.mxu0 0.0
        %5487 = vmatprep.subr.mxu0 0.0
        %5488 = vmatpush1.msra.mxu0 0.0
        %5489 = vmatprep.subr.mxu0 0.0
        %5490 = vmatpush1.msra.mxu0 0.0
        %5491 = vmatprep.subr.mxu0 0.0
        %5492 = vmatpush1.msra.mxu0 0.0
        %5493 = vmatprep.subr.mxu0 0.0
        %5494 = vmatpush1.msra.mxu0 0.0
        %5495 = vmatprep.subr.mxu0 0.0
        %5496 = vmatpush1.msra.mxu0 0.0
        %5497 = vmatprep.subr.mxu0 0.0
        %5498 = vmatpush1.msra.mxu0 0.0
        %5499 = vmatprep.subr.mxu0 0.0
        %5500 = vmatpush1.msra.mxu0 0.0
        %5501 = vmatprep.subr.mxu0 0.0
        %5502 = vmatpush1.msra.mxu0 0.0
        %5503 = vmatprep.subr.mxu0 0.0
        %5504 = vmatpush1.msra.mxu0 0.0
        %5505 = vmatprep.subr.mxu0 0.0
        %5506 = vmatpush1.msra.mxu0 0.0
        %5507 = vmatprep.subr.mxu0 0.0
        %5508 = vmatpush1.msra.mxu0 0.0
        %5509 = vmatprep.subr.mxu0 0.0
        %5510 = vmatpush1.msra.mxu0 0.0
        %5511 = vmatprep.subr.mxu0 0.0
        %5512 = vmatpush1.msra.mxu0 0.0
        %5513 = vmatprep.subr.mxu0 0.0
        %5514 = vmatpush1.msra.mxu0 0.0
        %5515 = vmatprep.subr.mxu0 0.0
        %5516 = vmatpush1.msra.mxu0 0.0
        %5517 = vmatprep.mubr.f32.mxu0 0.0
        %5518 = vmatmul.mubr.f32.gmra.mrb[0].mxu0 %v5092
        %v5519 = vpop.f32.mrb[0].mxu0
        %v5520 = vadd.f32 0.0, %v5519
        %v5521 = vpop.f32.mrb[0].mxu0
        %v5522 = vadd.f32 0.0, %v5521
        %5523 = vmatprep.mubr.f32.mxu0 0.0
        %5524 = vmatmul.mubr.f32.gmra.mrb[0].mxu0 %v5095
        %v5525 = vpop.f32.mrb[0].mxu0
        %v5526 = vadd.f32 0.0, %v5525
        %v5527 = vpop.f32.mrb[0].mxu0
        %v5528 = vadd.f32 0.0, %v5527
        %5529 = vdwg.mxu0
        %5530 = vmatprep.subr.mxu0 %v5131
        %5531 = vmatpush1.msra.mxu0 %v5128
        %5532 = vmatprep.subr.mxu0 0.0
        %5533 = vmatpush1.msra.mxu0 0.0
        %5534 = vmatprep.subr.mxu0 0.0
        %5535 = vmatpush1.msra.mxu0 0.0
        %5536 = vmatprep.subr.mxu0 0.0
        %5537 = vmatpush1.msra.mxu0 0.0
        %5538 = vmatprep.subr.mxu0 0.0
        %5539 = vmatpush1.msra.mxu0 0.0
        %5540 = vmatprep.subr.mxu0 0.0
        %5541 = vmatpush1.msra.mxu0 0.0
        %5542 = vmatprep.subr.mxu0 0.0
        %5543 = vmatpush1.msra.mxu0 0.0
        %5544 = vmatprep.subr.mxu0 0.0
        %5545 = vmatpush1.msra.mxu0 0.0
        %5546 = vmatprep.subr.mxu0 0.0
        %5547 = vmatpush1.msra.mxu0 0.0
        %5548 = vmatprep.subr.mxu0 0.0
        %5549 = vmatpush1.msra.mxu0 0.0
        %5550 = vmatprep.subr.mxu0 0.0
        %5551 = vmatpush1.msra.mxu0 0.0
        %5552 = vmatprep.subr.mxu0 0.0
        %5553 = vmatpush1.msra.mxu0 0.0
        %5554 = vmatprep.subr.mxu0 0.0
        %5555 = vmatpush1.msra.mxu0 0.0
        %5556 = vmatprep.subr.mxu0 0.0
        %5557 = vmatpush1.msra.mxu0 0.0
        %5558 = vmatprep.subr.mxu0 0.0
        %5559 = vmatpush1.msra.mxu0 0.0
        %5560 = vmatprep.subr.mxu0 0.0
        %5561 = vmatpush1.msra.mxu0 0.0
        %5562 = vmatprep.subr.mxu0 0.0
        %5563 = vmatpush1.msra.mxu0 0.0
        %5564 = vmatprep.subr.mxu0 0.0
        %5565 = vmatpush1.msra.mxu0 0.0
        %5566 = vmatprep.subr.mxu0 0.0
        %5567 = vmatpush1.msra.mxu0 0.0
        %5568 = vmatprep.subr.mxu0 0.0
        %5569 = vmatpush1.msra.mxu0 0.0
        %5570 = vmatprep.subr.mxu0 0.0
        %5571 = vmatpush1.msra.mxu0 0.0
        %5572 = vmatprep.subr.mxu0 0.0
        %5573 = vmatpush1.msra.mxu0 0.0
        %5574 = vmatprep.subr.mxu0 0.0
        %5575 = vmatpush1.msra.mxu0 0.0
        %5576 = vmatprep.subr.mxu0 0.0
        %5577 = vmatpush1.msra.mxu0 0.0
        %5578 = vmatprep.subr.mxu0 0.0
        %5579 = vmatpush1.msra.mxu0 0.0
        %5580 = vmatprep.subr.mxu0 0.0
        %5581 = vmatpush1.msra.mxu0 0.0
        %5582 = vmatprep.subr.mxu0 0.0
        %5583 = vmatpush1.msra.mxu0 0.0
        %5584 = vmatprep.subr.mxu0 0.0
        %5585 = vmatpush1.msra.mxu0 0.0
        %5586 = vmatprep.subr.mxu0 0.0
        %5587 = vmatpush1.msra.mxu0 0.0
        %5588 = vmatprep.subr.mxu0 0.0
        %5589 = vmatpush1.msra.mxu0 0.0
        %5590 = vmatprep.subr.mxu0 0.0
        %5591 = vmatpush1.msra.mxu0 0.0
        %5592 = vmatprep.subr.mxu0 0.0
        %5593 = vmatpush1.msra.mxu0 0.0
        %5594 = vmatprep.mubr.f32.mxu0 0.0
        %5595 = vmatmul.mubr.f32.gmra.mrb[0].mxu0 %v5092
        %v5596 = vpop.f32.mrb[0].mxu0
        %v5597 = vadd.f32 0.0, %v5596
        %v5598 = vpop.f32.mrb[0].mxu0
        %v5599 = vadd.f32 0.0, %v5598
        %5600 = vmatprep.mubr.f32.mxu0 0.0
        %5601 = vmatmul.mubr.f32.gmra.mrb[0].mxu0 %v5095
        %v5602 = vpop.f32.mrb[0].mxu0
        %v5603 = vadd.f32 0.0, %v5602
        %v5604 = vpop.f32.mrb[0].mxu0
        %v5605 = vadd.f32 0.0, %v5604
        %5606 = vdwg.mxu0
        %5607 = vmatprep.subr.mxu0 %v5137
        %5608 = vmatpush1.msra.mxu0 %v5134
        %5609 = vmatprep.subr.mxu0 0.0
        %5610 = vmatpush1.msra.mxu0 0.0
        %5611 = vmatprep.subr.mxu0 0.0
        %5612 = vmatpush1.msra.mxu0 0.0
        %5613 = vmatprep.subr.mxu0 0.0
        %5614 = vmatpush1.msra.mxu0 0.0
        %5615 = vmatprep.subr.mxu0 0.0
        %5616 = vmatpush1.msra.mxu0 0.0
        %5617 = vmatprep.subr.mxu0 0.0
        %5618 = vmatpush1.msra.mxu0 0.0
        %5619 = vmatprep.subr.mxu0 0.0
        %5620 = vmatpush1.msra.mxu0 0.0
        %5621 = vmatprep.subr.mxu0 0.0
        %5622 = vmatpush1.msra.mxu0 0.0
        %5623 = vmatprep.subr.mxu0 0.0
        %5624 = vmatpush1.msra.mxu0 0.0
        %5625 = vmatprep.subr.mxu0 0.0
        %5626 = vmatpush1.msra.mxu0 0.0
        %5627 = vmatprep.subr.mxu0 0.0
        %5628 = vmatpush1.msra.mxu0 0.0
        %5629 = vmatprep.subr.mxu0 0.0
        %5630 = vmatpush1.msra.mxu0 0.0
        %5631 = vmatprep.subr.mxu0 0.0
        %5632 = vmatpush1.msra.mxu0 0.0
        %5633 = vmatprep.subr.mxu0 0.0
        %5634 = vmatpush1.msra.mxu0 0.0
        %5635 = vmatprep.subr.mxu0 0.0
        %5636 = vmatpush1.msra.mxu0 0.0
        %5637 = vmatprep.subr.mxu0 0.0
        %5638 = vmatpush1.msra.mxu0 0.0
        %5639 = vmatprep.subr.mxu0 0.0
        %5640 = vmatpush1.msra.mxu0 0.0
        %5641 = vmatprep.subr.mxu0 0.0
        %5642 = vmatpush1.msra.mxu0 0.0
        %5643 = vmatprep.subr.mxu0 0.0
        %5644 = vmatpush1.msra.mxu0 0.0
        %5645 = vmatprep.subr.mxu0 0.0
        %5646 = vmatpush1.msra.mxu0 0.0
        %5647 = vmatprep.subr.mxu0 0.0
        %5648 = vmatpush1.msra.mxu0 0.0
        %5649 = vmatprep.subr.mxu0 0.0
        %5650 = vmatpush1.msra.mxu0 0.0
        %5651 = vmatprep.subr.mxu0 0.0
        %5652 = vmatpush1.msra.mxu0 0.0
        %5653 = vmatprep.subr.mxu0 0.0
        %5654 = vmatpush1.msra.mxu0 0.0
        %5655 = vmatprep.subr.mxu0 0.0
        %5656 = vmatpush1.msra.mxu0 0.0
        %5657 = vmatprep.subr.mxu0 0.0
        %5658 = vmatpush1.msra.mxu0 0.0
        %5659 = vmatprep.subr.mxu0 0.0
        %5660 = vmatpush1.msra.mxu0 0.0
        %5661 = vmatprep.subr.mxu0 0.0
        %5662 = vmatpush1.msra.mxu0 0.0
        %5663 = vmatprep.subr.mxu0 0.0
        %5664 = vmatpush1.msra.mxu0 0.0
        %5665 = vmatprep.subr.mxu0 0.0
        %5666 = vmatpush1.msra.mxu0 0.0
        %5667 = vmatprep.subr.mxu0 0.0
        %5668 = vmatpush1.msra.mxu0 0.0
        %5669 = vmatprep.subr.mxu0 0.0
        %5670 = vmatpush1.msra.mxu0 0.0
        %5671 = vmatprep.mubr.f32.mxu0 0.0
        %5672 = vmatmul.mubr.f32.gmra.mrb[0].mxu0 %v5092
        %v5673 = vpop.f32.mrb[0].mxu0
        %v5674 = vadd.f32 0.0, %v5673
        %v5675 = vpop.f32.mrb[0].mxu0
        %v5676 = vadd.f32 0.0, %v5675
        %5677 = vmatprep.mubr.f32.mxu0 0.0
        %5678 = vmatmul.mubr.f32.gmra.mrb[0].mxu0 %v5095
        %v5679 = vpop.f32.mrb[0].mxu0
        %v5680 = vadd.f32 0.0, %v5679
        %v5681 = vpop.f32.mrb[0].mxu0
        %v5682 = vadd.f32 0.0, %v5681
        %5683 = vdwg.mxu0
        %5684 = vmatprep.subr.mxu0 %v5143
        %5685 = vmatpush1.msra.mxu0 %v5140
        %5686 = vmatprep.subr.mxu0 0.0
        %5687 = vmatpush1.msra.mxu0 0.0
        %5688 = vmatprep.subr.mxu0 0.0
        %5689 = vmatpush1.msra.mxu0 0.0
        %5690 = vmatprep.subr.mxu0 0.0
        %5691 = vmatpush1.msra.mxu0 0.0
        %5692 = vmatprep.subr.mxu0 0.0
        %5693 = vmatpush1.msra.mxu0 0.0
        %5694 = vmatprep.subr.mxu0 0.0
        %5695 = vmatpush1.msra.mxu0 0.0
        %5696 = vmatprep.subr.mxu0 0.0
        %5697 = vmatpush1.msra.mxu0 0.0
        %5698 = vmatprep.subr.mxu0 0.0
        %5699 = vmatpush1.msra.mxu0 0.0
        %5700 = vmatprep.subr.mxu0 0.0
        %5701 = vmatpush1.msra.mxu0 0.0
        %5702 = vmatprep.subr.mxu0 0.0
        %5703 = vmatpush1.msra.mxu0 0.0
        %5704 = vmatprep.subr.mxu0 0.0
        %5705 = vmatpush1.msra.mxu0 0.0
        %5706 = vmatprep.subr.mxu0 0.0
        %5707 = vmatpush1.msra.mxu0 0.0
        %5708 = vmatprep.subr.mxu0 0.0
        %5709 = vmatpush1.msra.mxu0 0.0
        %5710 = vmatprep.subr.mxu0 0.0
        %5711 = vmatpush1.msra.mxu0 0.0
        %5712 = vmatprep.subr.mxu0 0.0
        %5713 = vmatpush1.msra.mxu0 0.0
        %5714 = vmatprep.subr.mxu0 0.0
        %5715 = vmatpush1.msra.mxu0 0.0
        %5716 = vmatprep.subr.mxu0 0.0
        %5717 = vmatpush1.msra.mxu0 0.0
        %5718 = vmatprep.subr.mxu0 0.0
        %5719 = vmatpush1.msra.mxu0 0.0
        %5720 = vmatprep.subr.mxu0 0.0
        %5721 = vmatpush1.msra.mxu0 0.0
        %5722 = vmatprep.subr.mxu0 0.0
        %5723 = vmatpush1.msra.mxu0 0.0
        %5724 = vmatprep.subr.mxu0 0.0
        %5725 = vmatpush1.msra.mxu0 0.0
        %5726 = vmatprep.subr.mxu0 0.0
        %5727 = vmatpush1.msra.mxu0 0.0
        %5728 = vmatprep.subr.mxu0 0.0
        %5729 = vmatpush1.msra.mxu0 0.0
        %5730 = vmatprep.subr.mxu0 0.0
        %5731 = vmatpush1.msra.mxu0 0.0
        %5732 = vmatprep.subr.mxu0 0.0
        %5733 = vmatpush1.msra.mxu0 0.0
        %5734 = vmatprep.subr.mxu0 0.0
        %5735 = vmatpush1.msra.mxu0 0.0
        %5736 = vmatprep.subr.mxu0 0.0
        %5737 = vmatpush1.msra.mxu0 0.0
        %5738 = vmatprep.subr.mxu0 0.0
        %5739 = vmatpush1.msra.mxu0 0.0
        %5740 = vmatprep.subr.mxu0 0.0
        %5741 = vmatpush1.msra.mxu0 0.0
        %5742 = vmatprep.subr.mxu0 0.0
        %5743 = vmatpush1.msra.mxu0 0.0
        %5744 = vmatprep.subr.mxu0 0.0
        %5745 = vmatpush1.msra.mxu0 0.0
        %5746 = vmatprep.subr.mxu0 0.0
        %5747 = vmatpush1.msra.mxu0 0.0
        %5748 = vmatprep.mubr.f32.mxu0 0.0
        %5749 = vmatmul.mubr.f32.gmra.mrb[0].mxu0 %v5092
        %v5750 = vpop.f32.mrb[0].mxu0
        %v5751 = vadd.f32 0.0, %v5750
        %v5752 = vpop.f32.mrb[0].mxu0
        %v5753 = vadd.f32 0.0, %v5752
        %5754 = vmatprep.mubr.f32.mxu0 0.0
        %5755 = vmatmul.mubr.f32.gmra.mrb[0].mxu0 %v5095
        %v5756 = vpop.f32.mrb[0].mxu0
        %v5757 = vadd.f32 0.0, %v5756
        %v5758 = vpop.f32.mrb[0].mxu0
        %v5759 = vadd.f32 0.0, %v5758
        %5760 = vdwg.mxu0
        %v5761 = vadd.f32 %v5016, %v5212
        %v5762 = vadd.f32 %v5017, %v5214
        %v5763 = vadd.f32 %v5018, %v5289
        %v5764 = vadd.f32 %v5019, %v5291
        %v5765 = vadd.f32 %v5020, %v5366
        %v5766 = vadd.f32 %v5021, %v5368
        %v5767 = vadd.f32 %v5022, %v5443
        %v5768 = vadd.f32 %v5023, %v5445
        %v5769 = vadd.f32 %v5024, %v5520
        %v5770 = vadd.f32 %v5025, %v5522
        %v5771 = vadd.f32 %v5026, %v5597
        %v5772 = vadd.f32 %v5027, %v5599
        %v5773 = vadd.f32 %v5028, %v5674
        %v5774 = vadd.f32 %v5029, %v5676
        %v5775 = vadd.f32 %v5030, %v5751
        %v5776 = vadd.f32 %v5031, %v5753
        %v5777 = vadd.f32 %v5032, %v5218
        %v5778 = vadd.f32 %v5033, %v5220
        %v5779 = vadd.f32 %v5034, %v5295
        %v5780 = vadd.f32 %v5035, %v5297
        %v5781 = vadd.f32 %v5036, %v5372
        %v5782 = vadd.f32 %v5037, %v5374
        %v5783 = vadd.f32 %v5038, %v5449
        %v5784 = vadd.f32 %v5039, %v5451
        %v5785 = vadd.f32 %v5040, %v5526
        %v5786 = vadd.f32 %v5041, %v5528
        %v5787 = vadd.f32 %v5042, %v5603
        %v5788 = vadd.f32 %v5043, %v5605
        %v5789 = vadd.f32 %v5044, %v5680
        %v5790 = vadd.f32 %v5045, %v5682
        %v5791 = vadd.f32 %v5046, %v5757
        %v5792 = vadd.f32 %v5047, %v5759
        %v5793 = vld [vmem:[%s196 + $0x4] sm:$0x77]
        %v5794 = vld [vmem:[%s196 + $0xc] sm:$0x77]
        %v5795 = vld [vmem:[%s196 + $0x14] sm:$0x77]
        %v5796 = vld [vmem:[%s196 + $0x1c] sm:$0x77]
        %v5797 = vld [vmem:[%s196 + $0x24] sm:$0x77]
        %v5798 = vld [vmem:[%s196 + $0x2c] sm:$0x77]
        %v5799 = vld [vmem:[%s196 + $0x34] sm:$0x77]
        %v5800 = vld [vmem:[%s196 + $0x3c] sm:$0x77]
        %v5801 = vld [vmem:[%s196 + $0x44] sm:$0x7]
        %v5802 = vunpack.c.l.bf16 %v5793
        %v5803 = vunpack.c.h.bf16 %v5793
        %v5804 = vunpack.c.l.bf16 %v5794
        %v5805 = vunpack.c.h.bf16 %v5794
        %v5806 = vunpack.c.l.bf16 %v5795
        %v5807 = vunpack.c.h.bf16 %v5795
        %v5808 = vunpack.c.l.bf16 %v5796
        %v5809 = vunpack.c.h.bf16 %v5796
        %v5810 = vunpack.c.l.bf16 %v5797
        %v5811 = vunpack.c.h.bf16 %v5797
        %v5812 = vunpack.c.l.bf16 %v5798
        %v5813 = vunpack.c.h.bf16 %v5798
        %v5814 = vunpack.c.l.bf16 %v5799
        %v5815 = vunpack.c.h.bf16 %v5799
        %v5816 = vunpack.c.l.bf16 %v5800
        %v5817 = vunpack.c.h.bf16 %v5800
        %v5818 = vunpack.c.l.bf16 %v5801
        %s5819 = scalar_lea.vmem %s0, 112
        %v5820 = vld [vmem:[%s5819] sm:$0xff]
        %v5821 = vld [vmem:[%s5819 + $0x8] sm:$0xff]
        %5839 = vrot.lane.b32.xlu0 %v5802, 127
        %v5840 = vpop.permute.xlu0 %5839
        %5841 = vrot.lane.b32.xlu0 %v5803, 127
        %v5842 = vpop.permute.xlu0 %5841
        %5843 = vrot.lane.b32.xlu0 %v5804, 127
        %v5844 = vpop.permute.xlu0 %5843
        %5845 = vrot.lane.b32.xlu0 %v5805, 127
        %v5846 = vpop.permute.xlu0 %5845
        %5847 = vrot.lane.b32.xlu0 %v5806, 127
        %v5848 = vpop.permute.xlu0 %5847
        %5849 = vrot.lane.b32.xlu0 %v5807, 127
        %v5850 = vpop.permute.xlu0 %5849
        %5851 = vrot.lane.b32.xlu0 %v5808, 127
        %v5852 = vpop.permute.xlu0 %5851
        %5853 = vrot.lane.b32.xlu0 %v5809, 127
        %v5854 = vpop.permute.xlu0 %5853
        %5855 = vrot.lane.b32.xlu0 %v5810, 127
        %v5856 = vpop.permute.xlu0 %5855
        %5857 = vrot.lane.b32.xlu0 %v5811, 127
        %v5858 = vpop.permute.xlu0 %5857
        %5859 = vrot.lane.b32.xlu0 %v5812, 127
        %v5860 = vpop.permute.xlu0 %5859
        %5861 = vrot.lane.b32.xlu0 %v5813, 127
        %v5862 = vpop.permute.xlu0 %5861
        %5863 = vrot.lane.b32.xlu0 %v5814, 127
        %v5864 = vpop.permute.xlu0 %5863
        %5865 = vrot.lane.b32.xlu0 %v5815, 127
        %v5866 = vpop.permute.xlu0 %5865
        %5867 = vrot.lane.b32.xlu0 %v5816, 127
        %v5868 = vpop.permute.xlu0 %5867
        %5869 = vrot.lane.b32.xlu0 %v5817, 127
        %v5870 = vpop.permute.xlu0 %5869
        %5871 = vrot.lane.b32.xlu0 %v5818, 127
        %v5872 = vpop.permute.xlu0 %5871
        %v5873 = vsel %vm569, %v5840, %v5842
        %v5874 = vsel %vm569, %v5842, %v5844
        %v5875 = vsel %vm569, %v5844, %v5846
        %v5876 = vsel %vm569, %v5846, %v5848
        %v5877 = vsel %vm569, %v5848, %v5850
        %v5878 = vsel %vm569, %v5850, %v5852
        %v5879 = vsel %vm569, %v5852, %v5854
        %v5880 = vsel %vm569, %v5854, %v5856
        %v5881 = vsel %vm569, %v5856, %v5858
        %v5882 = vsel %vm569, %v5858, %v5860
        %v5883 = vsel %vm569, %v5860, %v5862
        %v5884 = vsel %vm569, %v5862, %v5864
        %v5885 = vsel %vm569, %v5864, %v5866
        %v5886 = vsel %vm569, %v5866, %v5868
        %v5887 = vsel %vm569, %v5868, %v5870
        %v5888 = vsel %vm569, %v5870, %v5872
        %v5890 = vsel %vm586, %v5820, 0
        %v5893 = vsel %vm586, %v5821, 0
        %v5895 = vsel %vm593, %v5873, 0
        %v5897 = vsel %vm593, %v5874, 0
        %v5899 = vsel %vm593, %v5875, 0
        %v5901 = vsel %vm593, %v5876, 0
        %v5903 = vsel %vm593, %v5877, 0
        %v5905 = vsel %vm593, %v5878, 0
        %v5907 = vsel %vm593, %v5879, 0
        %v5909 = vsel %vm593, %v5880, 0
        %v5911 = vsel %vm593, %v5881, 0
        %v5913 = vsel %vm593, %v5882, 0
        %v5915 = vsel %vm593, %v5883, 0
        %v5917 = vsel %vm593, %v5884, 0
        %v5919 = vsel %vm593, %v5885, 0
        %v5921 = vsel %vm593, %v5886, 0
        %v5923 = vsel %vm593, %v5887, 0
        %v5925 = vsel %vm593, %v5888, 0
        %5927 = vmatprep.subr.mxu0 %v5897
        %5928 = vmatpush1.msra.mxu0 %v5895
        %5929 = vmatprep.subr.mxu0 0.0
        %5930 = vmatpush1.msra.mxu0 0.0
        %5931 = vmatprep.subr.mxu0 0.0
        %5932 = vmatpush1.msra.mxu0 0.0
        %5933 = vmatprep.subr.mxu0 0.0
        %5934 = vmatpush1.msra.mxu0 0.0
        %5935 = vmatprep.subr.mxu0 0.0
        %5936 = vmatpush1.msra.mxu0 0.0
        %5937 = vmatprep.subr.mxu0 0.0
        %5938 = vmatpush1.msra.mxu0 0.0
        %5939 = vmatprep.subr.mxu0 0.0
        %5940 = vmatpush1.msra.mxu0 0.0
        %5941 = vmatprep.subr.mxu0 0.0
        %5942 = vmatpush1.msra.mxu0 0.0
        %5943 = vmatprep.subr.mxu0 0.0
        %5944 = vmatpush1.msra.mxu0 0.0
        %5945 = vmatprep.subr.mxu0 0.0
        %5946 = vmatpush1.msra.mxu0 0.0
        %5947 = vmatprep.subr.mxu0 0.0
        %5948 = vmatpush1.msra.mxu0 0.0
        %5949 = vmatprep.subr.mxu0 0.0
        %5950 = vmatpush1.msra.mxu0 0.0
        %5951 = vmatprep.subr.mxu0 0.0
        %5952 = vmatpush1.msra.mxu0 0.0
        %5953 = vmatprep.subr.mxu0 0.0
        %5954 = vmatpush1.msra.mxu0 0.0
        %5955 = vmatprep.subr.mxu0 0.0
        %5956 = vmatpush1.msra.mxu0 0.0
        %5957 = vmatprep.subr.mxu0 0.0
        %5958 = vmatpush1.msra.mxu0 0.0
        %5959 = vmatprep.subr.mxu0 0.0
        %5960 = vmatpush1.msra.mxu0 0.0
        %5961 = vmatprep.subr.mxu0 0.0
        %5962 = vmatpush1.msra.mxu0 0.0
        %5963 = vmatprep.subr.mxu0 0.0
        %5964 = vmatpush1.msra.mxu0 0.0
        %5965 = vmatprep.subr.mxu0 0.0
        %5966 = vmatpush1.msra.mxu0 0.0
        %5967 = vmatprep.subr.mxu0 0.0
        %5968 = vmatpush1.msra.mxu0 0.0
        %5969 = vmatprep.subr.mxu0 0.0
        %5970 = vmatpush1.msra.mxu0 0.0
        %5971 = vmatprep.subr.mxu0 0.0
        %5972 = vmatpush1.msra.mxu0 0.0
        %5973 = vmatprep.subr.mxu0 0.0
        %5974 = vmatpush1.msra.mxu0 0.0
        %5975 = vmatprep.subr.mxu0 0.0
        %5976 = vmatpush1.msra.mxu0 0.0
        %5977 = vmatprep.subr.mxu0 0.0
        %5978 = vmatpush1.msra.mxu0 0.0
        %5979 = vmatprep.subr.mxu0 0.0
        %5980 = vmatpush1.msra.mxu0 0.0
        %5981 = vmatprep.subr.mxu0 0.0
        %5982 = vmatpush1.msra.mxu0 0.0
        %5983 = vmatprep.subr.mxu0 0.0
        %5984 = vmatpush1.msra.mxu0 0.0
        %5985 = vmatprep.subr.mxu0 0.0
        %5986 = vmatpush1.msra.mxu0 0.0
        %5987 = vmatprep.subr.mxu0 0.0
        %5988 = vmatpush1.msra.mxu0 0.0
        %5989 = vmatprep.subr.mxu0 0.0
        %5990 = vmatpush1.msra.mxu0 0.0
        %5991 = vmatprep.mubr.f32.mxu0 0.0
        %5992 = vmatmul.mubr.f32.gmra.mrb[0].mxu0 %v5890
        %v5993 = vpop.f32.mrb[0].mxu0
        %v5994 = vadd.f32 0.0, %v5993
        %v5995 = vpop.f32.mrb[0].mxu0
        %v5996 = vadd.f32 0.0, %v5995
        %5997 = vmatprep.mubr.f32.mxu0 0.0
        %5998 = vmatmul.mubr.f32.gmra.mrb[0].mxu0 %v5893
        %v5999 = vpop.f32.mrb[0].mxu0
        %v6000 = vadd.f32 0.0, %v5999
        %v6001 = vpop.f32.mrb[0].mxu0
        %v6002 = vadd.f32 0.0, %v6001
        %6003 = vdwg.mxu0
        %6004 = vmatprep.subr.mxu0 %v5901
        %6005 = vmatpush1.msra.mxu0 %v5899
        %6006 = vmatprep.subr.mxu0 0.0
        %6007 = vmatpush1.msra.mxu0 0.0
        %6008 = vmatprep.subr.mxu0 0.0
        %6009 = vmatpush1.msra.mxu0 0.0
        %6010 = vmatprep.subr.mxu0 0.0
        %6011 = vmatpush1.msra.mxu0 0.0
        %6012 = vmatprep.subr.mxu0 0.0
        %6013 = vmatpush1.msra.mxu0 0.0
        %6014 = vmatprep.subr.mxu0 0.0
        %6015 = vmatpush1.msra.mxu0 0.0
        %6016 = vmatprep.subr.mxu0 0.0
        %6017 = vmatpush1.msra.mxu0 0.0
        %6018 = vmatprep.subr.mxu0 0.0
        %6019 = vmatpush1.msra.mxu0 0.0
        %6020 = vmatprep.subr.mxu0 0.0
        %6021 = vmatpush1.msra.mxu0 0.0
        %6022 = vmatprep.subr.mxu0 0.0
        %6023 = vmatpush1.msra.mxu0 0.0
        %6024 = vmatprep.subr.mxu0 0.0
        %6025 = vmatpush1.msra.mxu0 0.0
        %6026 = vmatprep.subr.mxu0 0.0
        %6027 = vmatpush1.msra.mxu0 0.0
        %6028 = vmatprep.subr.mxu0 0.0
        %6029 = vmatpush1.msra.mxu0 0.0
        %6030 = vmatprep.subr.mxu0 0.0
        %6031 = vmatpush1.msra.mxu0 0.0
        %6032 = vmatprep.subr.mxu0 0.0
        %6033 = vmatpush1.msra.mxu0 0.0
        %6034 = vmatprep.subr.mxu0 0.0
        %6035 = vmatpush1.msra.mxu0 0.0
        %6036 = vmatprep.subr.mxu0 0.0
        %6037 = vmatpush1.msra.mxu0 0.0
        %6038 = vmatprep.subr.mxu0 0.0
        %6039 = vmatpush1.msra.mxu0 0.0
        %6040 = vmatprep.subr.mxu0 0.0
        %6041 = vmatpush1.msra.mxu0 0.0
        %6042 = vmatprep.subr.mxu0 0.0
        %6043 = vmatpush1.msra.mxu0 0.0
        %6044 = vmatprep.subr.mxu0 0.0
        %6045 = vmatpush1.msra.mxu0 0.0
        %6046 = vmatprep.subr.mxu0 0.0
        %6047 = vmatpush1.msra.mxu0 0.0
        %6048 = vmatprep.subr.mxu0 0.0
        %6049 = vmatpush1.msra.mxu0 0.0
        %6050 = vmatprep.subr.mxu0 0.0
        %6051 = vmatpush1.msra.mxu0 0.0
        %6052 = vmatprep.subr.mxu0 0.0
        %6053 = vmatpush1.msra.mxu0 0.0
        %6054 = vmatprep.subr.mxu0 0.0
        %6055 = vmatpush1.msra.mxu0 0.0
        %6056 = vmatprep.subr.mxu0 0.0
        %6057 = vmatpush1.msra.mxu0 0.0
        %6058 = vmatprep.subr.mxu0 0.0
        %6059 = vmatpush1.msra.mxu0 0.0
        %6060 = vmatprep.subr.mxu0 0.0
        %6061 = vmatpush1.msra.mxu0 0.0
        %6062 = vmatprep.subr.mxu0 0.0
        %6063 = vmatpush1.msra.mxu0 0.0
        %6064 = vmatprep.subr.mxu0 0.0
        %6065 = vmatpush1.msra.mxu0 0.0
        %6066 = vmatprep.subr.mxu0 0.0
        %6067 = vmatpush1.msra.mxu0 0.0
        %6068 = vmatprep.mubr.f32.mxu0 0.0
        %6069 = vmatmul.mubr.f32.gmra.mrb[0].mxu0 %v5890
        %v6070 = vpop.f32.mrb[0].mxu0
        %v6071 = vadd.f32 0.0, %v6070
        %v6072 = vpop.f32.mrb[0].mxu0
        %v6073 = vadd.f32 0.0, %v6072
        %6074 = vmatprep.mubr.f32.mxu0 0.0
        %6075 = vmatmul.mubr.f32.gmra.mrb[0].mxu0 %v5893
        %v6076 = vpop.f32.mrb[0].mxu0
        %v6077 = vadd.f32 0.0, %v6076
        %v6078 = vpop.f32.mrb[0].mxu0
        %v6079 = vadd.f32 0.0, %v6078
        %6080 = vdwg.mxu0
        %6081 = vmatprep.subr.mxu0 %v5905
        %6082 = vmatpush1.msra.mxu0 %v5903
        %6083 = vmatprep.subr.mxu0 0.0
        %6084 = vmatpush1.msra.mxu0 0.0
        %6085 = vmatprep.subr.mxu0 0.0
        %6086 = vmatpush1.msra.mxu0 0.0
        %6087 = vmatprep.subr.mxu0 0.0
        %6088 = vmatpush1.msra.mxu0 0.0
        %6089 = vmatprep.subr.mxu0 0.0
        %6090 = vmatpush1.msra.mxu0 0.0
        %6091 = vmatprep.subr.mxu0 0.0
        %6092 = vmatpush1.msra.mxu0 0.0
        %6093 = vmatprep.subr.mxu0 0.0
        %6094 = vmatpush1.msra.mxu0 0.0
        %6095 = vmatprep.subr.mxu0 0.0
        %6096 = vmatpush1.msra.mxu0 0.0
        %6097 = vmatprep.subr.mxu0 0.0
        %6098 = vmatpush1.msra.mxu0 0.0
        %6099 = vmatprep.subr.mxu0 0.0
        %6100 = vmatpush1.msra.mxu0 0.0
        %6101 = vmatprep.subr.mxu0 0.0
        %6102 = vmatpush1.msra.mxu0 0.0
        %6103 = vmatprep.subr.mxu0 0.0
        %6104 = vmatpush1.msra.mxu0 0.0
        %6105 = vmatprep.subr.mxu0 0.0
        %6106 = vmatpush1.msra.mxu0 0.0
        %6107 = vmatprep.subr.mxu0 0.0
        %6108 = vmatpush1.msra.mxu0 0.0
        %6109 = vmatprep.subr.mxu0 0.0
        %6110 = vmatpush1.msra.mxu0 0.0
        %6111 = vmatprep.subr.mxu0 0.0
        %6112 = vmatpush1.msra.mxu0 0.0
        %6113 = vmatprep.subr.mxu0 0.0
        %6114 = vmatpush1.msra.mxu0 0.0
        %6115 = vmatprep.subr.mxu0 0.0
        %6116 = vmatpush1.msra.mxu0 0.0
        %6117 = vmatprep.subr.mxu0 0.0
        %6118 = vmatpush1.msra.mxu0 0.0
        %6119 = vmatprep.subr.mxu0 0.0
        %6120 = vmatpush1.msra.mxu0 0.0
        %6121 = vmatprep.subr.mxu0 0.0
        %6122 = vmatpush1.msra.mxu0 0.0
        %6123 = vmatprep.subr.mxu0 0.0
        %6124 = vmatpush1.msra.mxu0 0.0
        %6125 = vmatprep.subr.mxu0 0.0
        %6126 = vmatpush1.msra.mxu0 0.0
        %6127 = vmatprep.subr.mxu0 0.0
        %6128 = vmatpush1.msra.mxu0 0.0
        %6129 = vmatprep.subr.mxu0 0.0
        %6130 = vmatpush1.msra.mxu0 0.0
        %6131 = vmatprep.subr.mxu0 0.0
        %6132 = vmatpush1.msra.mxu0 0.0
        %6133 = vmatprep.subr.mxu0 0.0
        %6134 = vmatpush1.msra.mxu0 0.0
        %6135 = vmatprep.subr.mxu0 0.0
        %6136 = vmatpush1.msra.mxu0 0.0
        %6137 = vmatprep.subr.mxu0 0.0
        %6138 = vmatpush1.msra.mxu0 0.0
        %6139 = vmatprep.subr.mxu0 0.0
        %6140 = vmatpush1.msra.mxu0 0.0
        %6141 = vmatprep.subr.mxu0 0.0
        %6142 = vmatpush1.msra.mxu0 0.0
        %6143 = vmatprep.subr.mxu0 0.0
        %6144 = vmatpush1.msra.mxu0 0.0
        %6145 = vmatprep.mubr.f32.mxu0 0.0
        %6146 = vmatmul.mubr.f32.gmra.mrb[0].mxu0 %v5890
        %v6147 = vpop.f32.mrb[0].mxu0
        %v6148 = vadd.f32 0.0, %v6147
        %v6149 = vpop.f32.mrb[0].mxu0
        %v6150 = vadd.f32 0.0, %v6149
        %6151 = vmatprep.mubr.f32.mxu0 0.0
        %6152 = vmatmul.mubr.f32.gmra.mrb[0].mxu0 %v5893
        %v6153 = vpop.f32.mrb[0].mxu0
        %v6154 = vadd.f32 0.0, %v6153
        %v6155 = vpop.f32.mrb[0].mxu0
        %v6156 = vadd.f32 0.0, %v6155
        %6157 = vdwg.mxu0
        %6158 = vmatprep.subr.mxu0 %v5909
        %6159 = vmatpush1.msra.mxu0 %v5907
        %6160 = vmatprep.subr.mxu0 0.0
        %6161 = vmatpush1.msra.mxu0 0.0
        %6162 = vmatprep.subr.mxu0 0.0
        %6163 = vmatpush1.msra.mxu0 0.0
        %6164 = vmatprep.subr.mxu0 0.0
        %6165 = vmatpush1.msra.mxu0 0.0
        %6166 = vmatprep.subr.mxu0 0.0
        %6167 = vmatpush1.msra.mxu0 0.0
        %6168 = vmatprep.subr.mxu0 0.0
        %6169 = vmatpush1.msra.mxu0 0.0
        %6170 = vmatprep.subr.mxu0 0.0
        %6171 = vmatpush1.msra.mxu0 0.0
        %6172 = vmatprep.subr.mxu0 0.0
        %6173 = vmatpush1.msra.mxu0 0.0
        %6174 = vmatprep.subr.mxu0 0.0
        %6175 = vmatpush1.msra.mxu0 0.0
        %6176 = vmatprep.subr.mxu0 0.0
        %6177 = vmatpush1.msra.mxu0 0.0
        %6178 = vmatprep.subr.mxu0 0.0
        %6179 = vmatpush1.msra.mxu0 0.0
        %6180 = vmatprep.subr.mxu0 0.0
        %6181 = vmatpush1.msra.mxu0 0.0
        %6182 = vmatprep.subr.mxu0 0.0
        %6183 = vmatpush1.msra.mxu0 0.0
        %6184 = vmatprep.subr.mxu0 0.0
        %6185 = vmatpush1.msra.mxu0 0.0
        %6186 = vmatprep.subr.mxu0 0.0
        %6187 = vmatpush1.msra.mxu0 0.0
        %6188 = vmatprep.subr.mxu0 0.0
        %6189 = vmatpush1.msra.mxu0 0.0
        %6190 = vmatprep.subr.mxu0 0.0
        %6191 = vmatpush1.msra.mxu0 0.0
        %6192 = vmatprep.subr.mxu0 0.0
        %6193 = vmatpush1.msra.mxu0 0.0
        %6194 = vmatprep.subr.mxu0 0.0
        %6195 = vmatpush1.msra.mxu0 0.0
        %6196 = vmatprep.subr.mxu0 0.0
        %6197 = vmatpush1.msra.mxu0 0.0
        %6198 = vmatprep.subr.mxu0 0.0
        %6199 = vmatpush1.msra.mxu0 0.0
        %6200 = vmatprep.subr.mxu0 0.0
        %6201 = vmatpush1.msra.mxu0 0.0
        %6202 = vmatprep.subr.mxu0 0.0
        %6203 = vmatpush1.msra.mxu0 0.0
        %6204 = vmatprep.subr.mxu0 0.0
        %6205 = vmatpush1.msra.mxu0 0.0
        %6206 = vmatprep.subr.mxu0 0.0
        %6207 = vmatpush1.msra.mxu0 0.0
        %6208 = vmatprep.subr.mxu0 0.0
        %6209 = vmatpush1.msra.mxu0 0.0
        %6210 = vmatprep.subr.mxu0 0.0
        %6211 = vmatpush1.msra.mxu0 0.0
        %6212 = vmatprep.subr.mxu0 0.0
        %6213 = vmatpush1.msra.mxu0 0.0
        %6214 = vmatprep.subr.mxu0 0.0
        %6215 = vmatpush1.msra.mxu0 0.0
        %6216 = vmatprep.subr.mxu0 0.0
        %6217 = vmatpush1.msra.mxu0 0.0
        %6218 = vmatprep.subr.mxu0 0.0
        %6219 = vmatpush1.msra.mxu0 0.0
        %6220 = vmatprep.subr.mxu0 0.0
        %6221 = vmatpush1.msra.mxu0 0.0
        %6222 = vmatprep.mubr.f32.mxu0 0.0
        %6223 = vmatmul.mubr.f32.gmra.mrb[0].mxu0 %v5890
        %v6224 = vpop.f32.mrb[0].mxu0
        %v6225 = vadd.f32 0.0, %v6224
        %v6226 = vpop.f32.mrb[0].mxu0
        %v6227 = vadd.f32 0.0, %v6226
        %6228 = vmatprep.mubr.f32.mxu0 0.0
        %6229 = vmatmul.mubr.f32.gmra.mrb[0].mxu0 %v5893
        %v6230 = vpop.f32.mrb[0].mxu0
        %v6231 = vadd.f32 0.0, %v6230
        %v6232 = vpop.f32.mrb[0].mxu0
        %v6233 = vadd.f32 0.0, %v6232
        %6234 = vdwg.mxu0
        %6235 = vmatprep.subr.mxu0 %v5913
        %6236 = vmatpush1.msra.mxu0 %v5911
        %6237 = vmatprep.subr.mxu0 0.0
        %6238 = vmatpush1.msra.mxu0 0.0
        %6239 = vmatprep.subr.mxu0 0.0
        %6240 = vmatpush1.msra.mxu0 0.0
        %6241 = vmatprep.subr.mxu0 0.0
        %6242 = vmatpush1.msra.mxu0 0.0
        %6243 = vmatprep.subr.mxu0 0.0
        %6244 = vmatpush1.msra.mxu0 0.0
        %6245 = vmatprep.subr.mxu0 0.0
        %6246 = vmatpush1.msra.mxu0 0.0
        %6247 = vmatprep.subr.mxu0 0.0
        %6248 = vmatpush1.msra.mxu0 0.0
        %6249 = vmatprep.subr.mxu0 0.0
        %6250 = vmatpush1.msra.mxu0 0.0
        %6251 = vmatprep.subr.mxu0 0.0
        %6252 = vmatpush1.msra.mxu0 0.0
        %6253 = vmatprep.subr.mxu0 0.0
        %6254 = vmatpush1.msra.mxu0 0.0
        %6255 = vmatprep.subr.mxu0 0.0
        %6256 = vmatpush1.msra.mxu0 0.0
        %6257 = vmatprep.subr.mxu0 0.0
        %6258 = vmatpush1.msra.mxu0 0.0
        %6259 = vmatprep.subr.mxu0 0.0
        %6260 = vmatpush1.msra.mxu0 0.0
        %6261 = vmatprep.subr.mxu0 0.0
        %6262 = vmatpush1.msra.mxu0 0.0
        %6263 = vmatprep.subr.mxu0 0.0
        %6264 = vmatpush1.msra.mxu0 0.0
        %6265 = vmatprep.subr.mxu0 0.0
        %6266 = vmatpush1.msra.mxu0 0.0
        %6267 = vmatprep.subr.mxu0 0.0
        %6268 = vmatpush1.msra.mxu0 0.0
        %6269 = vmatprep.subr.mxu0 0.0
        %6270 = vmatpush1.msra.mxu0 0.0
        %6271 = vmatprep.subr.mxu0 0.0
        %6272 = vmatpush1.msra.mxu0 0.0
        %6273 = vmatprep.subr.mxu0 0.0
        %6274 = vmatpush1.msra.mxu0 0.0
        %6275 = vmatprep.subr.mxu0 0.0
        %6276 = vmatpush1.msra.mxu0 0.0
        %6277 = vmatprep.subr.mxu0 0.0
        %6278 = vmatpush1.msra.mxu0 0.0
        %6279 = vmatprep.subr.mxu0 0.0
        %6280 = vmatpush1.msra.mxu0 0.0
        %6281 = vmatprep.subr.mxu0 0.0
        %6282 = vmatpush1.msra.mxu0 0.0
        %6283 = vmatprep.subr.mxu0 0.0
        %6284 = vmatpush1.msra.mxu0 0.0
        %6285 = vmatprep.subr.mxu0 0.0
        %6286 = vmatpush1.msra.mxu0 0.0
        %6287 = vmatprep.subr.mxu0 0.0
        %6288 = vmatpush1.msra.mxu0 0.0
        %6289 = vmatprep.subr.mxu0 0.0
        %6290 = vmatpush1.msra.mxu0 0.0
        %6291 = vmatprep.subr.mxu0 0.0
        %6292 = vmatpush1.msra.mxu0 0.0
        %6293 = vmatprep.subr.mxu0 0.0
        %6294 = vmatpush1.msra.mxu0 0.0
        %6295 = vmatprep.subr.mxu0 0.0
        %6296 = vmatpush1.msra.mxu0 0.0
        %6297 = vmatprep.subr.mxu0 0.0
        %6298 = vmatpush1.msra.mxu0 0.0
        %6299 = vmatprep.mubr.f32.mxu0 0.0
        %6300 = vmatmul.mubr.f32.gmra.mrb[0].mxu0 %v5890
        %v6301 = vpop.f32.mrb[0].mxu0
        %v6302 = vadd.f32 0.0, %v6301
        %v6303 = vpop.f32.mrb[0].mxu0
        %v6304 = vadd.f32 0.0, %v6303
        %6305 = vmatprep.mubr.f32.mxu0 0.0
        %6306 = vmatmul.mubr.f32.gmra.mrb[0].mxu0 %v5893
        %v6307 = vpop.f32.mrb[0].mxu0
        %v6308 = vadd.f32 0.0, %v6307
        %v6309 = vpop.f32.mrb[0].mxu0
        %v6310 = vadd.f32 0.0, %v6309
        %6311 = vdwg.mxu0
        %6312 = vmatprep.subr.mxu0 %v5917
        %6313 = vmatpush1.msra.mxu0 %v5915
        %6314 = vmatprep.subr.mxu0 0.0
        %6315 = vmatpush1.msra.mxu0 0.0
        %6316 = vmatprep.subr.mxu0 0.0
        %6317 = vmatpush1.msra.mxu0 0.0
        %6318 = vmatprep.subr.mxu0 0.0
        %6319 = vmatpush1.msra.mxu0 0.0
        %6320 = vmatprep.subr.mxu0 0.0
        %6321 = vmatpush1.msra.mxu0 0.0
        %6322 = vmatprep.subr.mxu0 0.0
        %6323 = vmatpush1.msra.mxu0 0.0
        %6324 = vmatprep.subr.mxu0 0.0
        %6325 = vmatpush1.msra.mxu0 0.0
        %6326 = vmatprep.subr.mxu0 0.0
        %6327 = vmatpush1.msra.mxu0 0.0
        %6328 = vmatprep.subr.mxu0 0.0
        %6329 = vmatpush1.msra.mxu0 0.0
        %6330 = vmatprep.subr.mxu0 0.0
        %6331 = vmatpush1.msra.mxu0 0.0
        %6332 = vmatprep.subr.mxu0 0.0
        %6333 = vmatpush1.msra.mxu0 0.0
        %6334 = vmatprep.subr.mxu0 0.0
        %6335 = vmatpush1.msra.mxu0 0.0
        %6336 = vmatprep.subr.mxu0 0.0
        %6337 = vmatpush1.msra.mxu0 0.0
        %6338 = vmatprep.subr.mxu0 0.0
        %6339 = vmatpush1.msra.mxu0 0.0
        %6340 = vmatprep.subr.mxu0 0.0
        %6341 = vmatpush1.msra.mxu0 0.0
        %6342 = vmatprep.subr.mxu0 0.0
        %6343 = vmatpush1.msra.mxu0 0.0
        %6344 = vmatprep.subr.mxu0 0.0
        %6345 = vmatpush1.msra.mxu0 0.0
        %6346 = vmatprep.subr.mxu0 0.0
        %6347 = vmatpush1.msra.mxu0 0.0
        %6348 = vmatprep.subr.mxu0 0.0
        %6349 = vmatpush1.msra.mxu0 0.0
        %6350 = vmatprep.subr.mxu0 0.0
        %6351 = vmatpush1.msra.mxu0 0.0
        %6352 = vmatprep.subr.mxu0 0.0
        %6353 = vmatpush1.msra.mxu0 0.0
        %6354 = vmatprep.subr.mxu0 0.0
        %6355 = vmatpush1.msra.mxu0 0.0
        %6356 = vmatprep.subr.mxu0 0.0
        %6357 = vmatpush1.msra.mxu0 0.0
        %6358 = vmatprep.subr.mxu0 0.0
        %6359 = vmatpush1.msra.mxu0 0.0
        %6360 = vmatprep.subr.mxu0 0.0
        %6361 = vmatpush1.msra.mxu0 0.0
        %6362 = vmatprep.subr.mxu0 0.0
        %6363 = vmatpush1.msra.mxu0 0.0
        %6364 = vmatprep.subr.mxu0 0.0
        %6365 = vmatpush1.msra.mxu0 0.0
        %6366 = vmatprep.subr.mxu0 0.0
        %6367 = vmatpush1.msra.mxu0 0.0
        %6368 = vmatprep.subr.mxu0 0.0
        %6369 = vmatpush1.msra.mxu0 0.0
        %6370 = vmatprep.subr.mxu0 0.0
        %6371 = vmatpush1.msra.mxu0 0.0
        %6372 = vmatprep.subr.mxu0 0.0
        %6373 = vmatpush1.msra.mxu0 0.0
        %6374 = vmatprep.subr.mxu0 0.0
        %6375 = vmatpush1.msra.mxu0 0.0
        %6376 = vmatprep.mubr.f32.mxu0 0.0
        %6377 = vmatmul.mubr.f32.gmra.mrb[0].mxu0 %v5890
        %v6378 = vpop.f32.mrb[0].mxu0
        %v6379 = vadd.f32 0.0, %v6378
        %v6380 = vpop.f32.mrb[0].mxu0
        %v6381 = vadd.f32 0.0, %v6380
        %6382 = vmatprep.mubr.f32.mxu0 0.0
        %6383 = vmatmul.mubr.f32.gmra.mrb[0].mxu0 %v5893
        %v6384 = vpop.f32.mrb[0].mxu0
        %v6385 = vadd.f32 0.0, %v6384
        %v6386 = vpop.f32.mrb[0].mxu0
        %v6387 = vadd.f32 0.0, %v6386
        %6388 = vdwg.mxu0
        %6389 = vmatprep.subr.mxu0 %v5921
        %6390 = vmatpush1.msra.mxu0 %v5919
        %6391 = vmatprep.subr.mxu0 0.0
        %6392 = vmatpush1.msra.mxu0 0.0
        %6393 = vmatprep.subr.mxu0 0.0
        %6394 = vmatpush1.msra.mxu0 0.0
        %6395 = vmatprep.subr.mxu0 0.0
        %6396 = vmatpush1.msra.mxu0 0.0
        %6397 = vmatprep.subr.mxu0 0.0
        %6398 = vmatpush1.msra.mxu0 0.0
        %6399 = vmatprep.subr.mxu0 0.0
        %6400 = vmatpush1.msra.mxu0 0.0
        %6401 = vmatprep.subr.mxu0 0.0
        %6402 = vmatpush1.msra.mxu0 0.0
        %6403 = vmatprep.subr.mxu0 0.0
        %6404 = vmatpush1.msra.mxu0 0.0
        %6405 = vmatprep.subr.mxu0 0.0
        %6406 = vmatpush1.msra.mxu0 0.0
        %6407 = vmatprep.subr.mxu0 0.0
        %6408 = vmatpush1.msra.mxu0 0.0
        %6409 = vmatprep.subr.mxu0 0.0
        %6410 = vmatpush1.msra.mxu0 0.0
        %6411 = vmatprep.subr.mxu0 0.0
        %6412 = vmatpush1.msra.mxu0 0.0
        %6413 = vmatprep.subr.mxu0 0.0
        %6414 = vmatpush1.msra.mxu0 0.0
        %6415 = vmatprep.subr.mxu0 0.0
        %6416 = vmatpush1.msra.mxu0 0.0
        %6417 = vmatprep.subr.mxu0 0.0
        %6418 = vmatpush1.msra.mxu0 0.0
        %6419 = vmatprep.subr.mxu0 0.0
        %6420 = vmatpush1.msra.mxu0 0.0
        %6421 = vmatprep.subr.mxu0 0.0
        %6422 = vmatpush1.msra.mxu0 0.0
        %6423 = vmatprep.subr.mxu0 0.0
        %6424 = vmatpush1.msra.mxu0 0.0
        %6425 = vmatprep.subr.mxu0 0.0
        %6426 = vmatpush1.msra.mxu0 0.0
        %6427 = vmatprep.subr.mxu0 0.0
        %6428 = vmatpush1.msra.mxu0 0.0
        %6429 = vmatprep.subr.mxu0 0.0
        %6430 = vmatpush1.msra.mxu0 0.0
        %6431 = vmatprep.subr.mxu0 0.0
        %6432 = vmatpush1.msra.mxu0 0.0
        %6433 = vmatprep.subr.mxu0 0.0
        %6434 = vmatpush1.msra.mxu0 0.0
        %6435 = vmatprep.subr.mxu0 0.0
        %6436 = vmatpush1.msra.mxu0 0.0
        %6437 = vmatprep.subr.mxu0 0.0
        %6438 = vmatpush1.msra.mxu0 0.0
        %6439 = vmatprep.subr.mxu0 0.0
        %6440 = vmatpush1.msra.mxu0 0.0
        %6441 = vmatprep.subr.mxu0 0.0
        %6442 = vmatpush1.msra.mxu0 0.0
        %6443 = vmatprep.subr.mxu0 0.0
        %6444 = vmatpush1.msra.mxu0 0.0
        %6445 = vmatprep.subr.mxu0 0.0
        %6446 = vmatpush1.msra.mxu0 0.0
        %6447 = vmatprep.subr.mxu0 0.0
        %6448 = vmatpush1.msra.mxu0 0.0
        %6449 = vmatprep.subr.mxu0 0.0
        %6450 = vmatpush1.msra.mxu0 0.0
        %6451 = vmatprep.subr.mxu0 0.0
        %6452 = vmatpush1.msra.mxu0 0.0
        %6453 = vmatprep.mubr.f32.mxu0 0.0
        %6454 = vmatmul.mubr.f32.gmra.mrb[0].mxu0 %v5890
        %v6455 = vpop.f32.mrb[0].mxu0
        %v6456 = vadd.f32 0.0, %v6455
        %v6457 = vpop.f32.mrb[0].mxu0
        %v6458 = vadd.f32 0.0, %v6457
        %6459 = vmatprep.mubr.f32.mxu0 0.0
        %6460 = vmatmul.mubr.f32.gmra.mrb[0].mxu0 %v5893
        %v6461 = vpop.f32.mrb[0].mxu0
        %v6462 = vadd.f32 0.0, %v6461
        %v6463 = vpop.f32.mrb[0].mxu0
        %v6464 = vadd.f32 0.0, %v6463
        %6465 = vdwg.mxu0
        %6466 = vmatprep.subr.mxu0 %v5925
        %6467 = vmatpush1.msra.mxu0 %v5923
        %6468 = vmatprep.subr.mxu0 0.0
        %6469 = vmatpush1.msra.mxu0 0.0
        %6470 = vmatprep.subr.mxu0 0.0
        %6471 = vmatpush1.msra.mxu0 0.0
        %6472 = vmatprep.subr.mxu0 0.0
        %6473 = vmatpush1.msra.mxu0 0.0
        %6474 = vmatprep.subr.mxu0 0.0
        %6475 = vmatpush1.msra.mxu0 0.0
        %6476 = vmatprep.subr.mxu0 0.0
        %6477 = vmatpush1.msra.mxu0 0.0
        %6478 = vmatprep.subr.mxu0 0.0
        %6479 = vmatpush1.msra.mxu0 0.0
        %6480 = vmatprep.subr.mxu0 0.0
        %6481 = vmatpush1.msra.mxu0 0.0
        %6482 = vmatprep.subr.mxu0 0.0
        %6483 = vmatpush1.msra.mxu0 0.0
        %6484 = vmatprep.subr.mxu0 0.0
        %6485 = vmatpush1.msra.mxu0 0.0
        %6486 = vmatprep.subr.mxu0 0.0
        %6487 = vmatpush1.msra.mxu0 0.0
        %6488 = vmatprep.subr.mxu0 0.0
        %6489 = vmatpush1.msra.mxu0 0.0
        %6490 = vmatprep.subr.mxu0 0.0
        %6491 = vmatpush1.msra.mxu0 0.0
        %6492 = vmatprep.subr.mxu0 0.0
        %6493 = vmatpush1.msra.mxu0 0.0
        %6494 = vmatprep.subr.mxu0 0.0
        %6495 = vmatpush1.msra.mxu0 0.0
        %6496 = vmatprep.subr.mxu0 0.0
        %6497 = vmatpush1.msra.mxu0 0.0
        %6498 = vmatprep.subr.mxu0 0.0
        %6499 = vmatpush1.msra.mxu0 0.0
        %6500 = vmatprep.subr.mxu0 0.0
        %6501 = vmatpush1.msra.mxu0 0.0
        %6502 = vmatprep.subr.mxu0 0.0
        %6503 = vmatpush1.msra.mxu0 0.0
        %6504 = vmatprep.subr.mxu0 0.0
        %6505 = vmatpush1.msra.mxu0 0.0
        %6506 = vmatprep.subr.mxu0 0.0
        %6507 = vmatpush1.msra.mxu0 0.0
        %6508 = vmatprep.subr.mxu0 0.0
        %6509 = vmatpush1.msra.mxu0 0.0
        %6510 = vmatprep.subr.mxu0 0.0
        %6511 = vmatpush1.msra.mxu0 0.0
        %6512 = vmatprep.subr.mxu0 0.0
        %6513 = vmatpush1.msra.mxu0 0.0
        %6514 = vmatprep.subr.mxu0 0.0
        %6515 = vmatpush1.msra.mxu0 0.0
        %6516 = vmatprep.subr.mxu0 0.0
        %6517 = vmatpush1.msra.mxu0 0.0
        %6518 = vmatprep.subr.mxu0 0.0
        %6519 = vmatpush1.msra.mxu0 0.0
        %6520 = vmatprep.subr.mxu0 0.0
        %6521 = vmatpush1.msra.mxu0 0.0
        %6522 = vmatprep.subr.mxu0 0.0
        %6523 = vmatpush1.msra.mxu0 0.0
        %6524 = vmatprep.subr.mxu0 0.0
        %6525 = vmatpush1.msra.mxu0 0.0
        %6526 = vmatprep.subr.mxu0 0.0
        %6527 = vmatpush1.msra.mxu0 0.0
        %6528 = vmatprep.subr.mxu0 0.0
        %6529 = vmatpush1.msra.mxu0 0.0
        %6530 = vmatprep.mubr.f32.mxu0 0.0
        %6531 = vmatmul.mubr.f32.gmra.mrb[0].mxu0 %v5890
        %v6532 = vpop.f32.mrb[0].mxu0
        %v6533 = vadd.f32 0.0, %v6532
        %v6534 = vpop.f32.mrb[0].mxu0
        %v6535 = vadd.f32 0.0, %v6534
        %6536 = vmatprep.mubr.f32.mxu0 0.0
        %6537 = vmatmul.mubr.f32.gmra.mrb[0].mxu0 %v5893
        %v6538 = vpop.f32.mrb[0].mxu0
        %v6539 = vadd.f32 0.0, %v6538
        %v6540 = vpop.f32.mrb[0].mxu0
        %v6541 = vadd.f32 0.0, %v6540
        %6542 = vdwg.mxu0
        %v6543 = vadd.f32 %v5761, %v5994
        %v6544 = vadd.f32 %v5762, %v5996
        %v6545 = vadd.f32 %v5763, %v6071
        %v6546 = vadd.f32 %v5764, %v6073
        %v6547 = vadd.f32 %v5765, %v6148
        %v6548 = vadd.f32 %v5766, %v6150
        %v6549 = vadd.f32 %v5767, %v6225
        %v6550 = vadd.f32 %v5768, %v6227
        %v6551 = vadd.f32 %v5769, %v6302
        %v6552 = vadd.f32 %v5770, %v6304
        %v6553 = vadd.f32 %v5771, %v6379
        %v6554 = vadd.f32 %v5772, %v6381
        %v6555 = vadd.f32 %v5773, %v6456
        %v6556 = vadd.f32 %v5774, %v6458
        %v6557 = vadd.f32 %v5775, %v6533
        %v6558 = vadd.f32 %v5776, %v6535
        %v6559 = vadd.f32 %v5777, %v6000
        %v6560 = vadd.f32 %v5778, %v6002
        %v6561 = vadd.f32 %v5779, %v6077
        %v6562 = vadd.f32 %v5780, %v6079
        %v6563 = vadd.f32 %v5781, %v6154
        %v6564 = vadd.f32 %v5782, %v6156
        %v6565 = vadd.f32 %v5783, %v6231
        %v6566 = vadd.f32 %v5784, %v6233
        %v6567 = vadd.f32 %v5785, %v6308
        %v6568 = vadd.f32 %v5786, %v6310
        %v6569 = vadd.f32 %v5787, %v6385
        %v6570 = vadd.f32 %v5788, %v6387
        %v6571 = vadd.f32 %v5789, %v6462
        %v6572 = vadd.f32 %v5790, %v6464
        %v6573 = vadd.f32 %v5791, %v6539
        %v6574 = vadd.f32 %v5792, %v6541
        %6575 = vrot.lane.b32.xlu0 %v5802, 126
        %v6576 = vpop.permute.xlu0 %6575
        %6577 = vrot.lane.b32.xlu0 %v5803, 126
        %v6578 = vpop.permute.xlu0 %6577
        %6579 = vrot.lane.b32.xlu0 %v5804, 126
        %v6580 = vpop.permute.xlu0 %6579
        %6581 = vrot.lane.b32.xlu0 %v5805, 126
        %v6582 = vpop.permute.xlu0 %6581
        %6583 = vrot.lane.b32.xlu0 %v5806, 126
        %v6584 = vpop.permute.xlu0 %6583
        %6585 = vrot.lane.b32.xlu0 %v5807, 126
        %v6586 = vpop.permute.xlu0 %6585
        %6587 = vrot.lane.b32.xlu0 %v5808, 126
        %v6588 = vpop.permute.xlu0 %6587
        %6589 = vrot.lane.b32.xlu0 %v5809, 126
        %v6590 = vpop.permute.xlu0 %6589
        %6591 = vrot.lane.b32.xlu0 %v5810, 126
        %v6592 = vpop.permute.xlu0 %6591
        %6593 = vrot.lane.b32.xlu0 %v5811, 126
        %v6594 = vpop.permute.xlu0 %6593
        %6595 = vrot.lane.b32.xlu0 %v5812, 126
        %v6596 = vpop.permute.xlu0 %6595
        %6597 = vrot.lane.b32.xlu0 %v5813, 126
        %v6598 = vpop.permute.xlu0 %6597
        %6599 = vrot.lane.b32.xlu0 %v5814, 126
        %v6600 = vpop.permute.xlu0 %6599
        %6601 = vrot.lane.b32.xlu0 %v5815, 126
        %v6602 = vpop.permute.xlu0 %6601
        %6603 = vrot.lane.b32.xlu0 %v5816, 126
        %v6604 = vpop.permute.xlu0 %6603
        %6605 = vrot.lane.b32.xlu0 %v5817, 126
        %v6606 = vpop.permute.xlu0 %6605
        %6607 = vrot.lane.b32.xlu0 %v5818, 126
        %v6608 = vpop.permute.xlu0 %6607
        %v6609 = vsel %vm1978, %v6576, %v6578
        %v6610 = vsel %vm1978, %v6578, %v6580
        %v6611 = vsel %vm1978, %v6580, %v6582
        %v6612 = vsel %vm1978, %v6582, %v6584
        %v6613 = vsel %vm1978, %v6584, %v6586
        %v6614 = vsel %vm1978, %v6586, %v6588
        %v6615 = vsel %vm1978, %v6588, %v6590
        %v6616 = vsel %vm1978, %v6590, %v6592
        %v6617 = vsel %vm1978, %v6592, %v6594
        %v6618 = vsel %vm1978, %v6594, %v6596
        %v6619 = vsel %vm1978, %v6596, %v6598
        %v6620 = vsel %vm1978, %v6598, %v6600
        %v6621 = vsel %vm1978, %v6600, %v6602
        %v6622 = vsel %vm1978, %v6602, %v6604
        %v6623 = vsel %vm1978, %v6604, %v6606
        %v6624 = vsel %vm1978, %v6606, %v6608
        %v6641 = vsel %vm1928, %v6609, 0.0
        %v6642 = vsel %vm1929, %v6610, 0.0
        %v6643 = vsel %vm1930, %v6611, 0.0
        %v6644 = vsel %vm1931, %v6612, 0.0
        %v6645 = vsel %vm1932, %v6613, 0.0
        %v6646 = vsel %vm1933, %v6614, 0.0
        %v6647 = vsel %vm1934, %v6615, 0.0
        %v6648 = vsel %vm1935, %v6616, 0.0
        %v6649 = vsel %vm1936, %v6617, 0.0
        %v6650 = vsel %vm1937, %v6618, 0.0
        %v6651 = vsel %vm1938, %v6619, 0.0
        %v6652 = vsel %vm1939, %v6620, 0.0
        %v6653 = vsel %vm1940, %v6621, 0.0
        %v6654 = vsel %vm1941, %v6622, 0.0
        %v6655 = vsel %vm1942, %v6623, 0.0
        %v6656 = vsel %vm1943, %v6624, 0.0
        %s6657 = scalar_lea.vmem %s0, 128
        %v6658 = vld [vmem:[%s6657] sm:$0xff]
        %v6659 = vld [vmem:[%s6657 + $0x8] sm:$0xff]
        %v6661 = vsel %vm586, %v6658, 0
        %v6664 = vsel %vm586, %v6659, 0
        %v6667 = vsel %vm593, %v6641, 0
        %v6670 = vsel %vm593, %v6642, 0
        %v6673 = vsel %vm593, %v6643, 0
        %v6676 = vsel %vm593, %v6644, 0
        %v6679 = vsel %vm593, %v6645, 0
        %v6682 = vsel %vm593, %v6646, 0
        %v6685 = vsel %vm593, %v6647, 0
        %v6688 = vsel %vm593, %v6648, 0
        %v6691 = vsel %vm593, %v6649, 0
        %v6694 = vsel %vm593, %v6650, 0
        %v6697 = vsel %vm593, %v6651, 0
        %v6700 = vsel %vm593, %v6652, 0
        %v6703 = vsel %vm593, %v6653, 0
        %v6706 = vsel %vm593, %v6654, 0
        %v6709 = vsel %vm593, %v6655, 0
        %v6712 = vsel %vm593, %v6656, 0
        %6714 = vmatprep.subr.mxu0 %v6670
        %6715 = vmatpush1.msra.mxu0 %v6667
        %6716 = vmatprep.subr.mxu0 0.0
        %6717 = vmatpush1.msra.mxu0 0.0
        %6718 = vmatprep.subr.mxu0 0.0
        %6719 = vmatpush1.msra.mxu0 0.0
        %6720 = vmatprep.subr.mxu0 0.0
        %6721 = vmatpush1.msra.mxu0 0.0
        %6722 = vmatprep.subr.mxu0 0.0
        %6723 = vmatpush1.msra.mxu0 0.0
        %6724 = vmatprep.subr.mxu0 0.0
        %6725 = vmatpush1.msra.mxu0 0.0
        %6726 = vmatprep.subr.mxu0 0.0
        %6727 = vmatpush1.msra.mxu0 0.0
        %6728 = vmatprep.subr.mxu0 0.0
        %6729 = vmatpush1.msra.mxu0 0.0
        %6730 = vmatprep.subr.mxu0 0.0
        %6731 = vmatpush1.msra.mxu0 0.0
        %6732 = vmatprep.subr.mxu0 0.0
        %6733 = vmatpush1.msra.mxu0 0.0
        %6734 = vmatprep.subr.mxu0 0.0
        %6735 = vmatpush1.msra.mxu0 0.0
        %6736 = vmatprep.subr.mxu0 0.0
        %6737 = vmatpush1.msra.mxu0 0.0
        %6738 = vmatprep.subr.mxu0 0.0
        %6739 = vmatpush1.msra.mxu0 0.0
        %6740 = vmatprep.subr.mxu0 0.0
        %6741 = vmatpush1.msra.mxu0 0.0
        %6742 = vmatprep.subr.mxu0 0.0
        %6743 = vmatpush1.msra.mxu0 0.0
        %6744 = vmatprep.subr.mxu0 0.0
        %6745 = vmatpush1.msra.mxu0 0.0
        %6746 = vmatprep.subr.mxu0 0.0
        %6747 = vmatpush1.msra.mxu0 0.0
        %6748 = vmatprep.subr.mxu0 0.0
        %6749 = vmatpush1.msra.mxu0 0.0
        %6750 = vmatprep.subr.mxu0 0.0
        %6751 = vmatpush1.msra.mxu0 0.0
        %6752 = vmatprep.subr.mxu0 0.0
        %6753 = vmatpush1.msra.mxu0 0.0
        %6754 = vmatprep.subr.mxu0 0.0
        %6755 = vmatpush1.msra.mxu0 0.0
        %6756 = vmatprep.subr.mxu0 0.0
        %6757 = vmatpush1.msra.mxu0 0.0
        %6758 = vmatprep.subr.mxu0 0.0
        %6759 = vmatpush1.msra.mxu0 0.0
        %6760 = vmatprep.subr.mxu0 0.0
        %6761 = vmatpush1.msra.mxu0 0.0
        %6762 = vmatprep.subr.mxu0 0.0
        %6763 = vmatpush1.msra.mxu0 0.0
        %6764 = vmatprep.subr.mxu0 0.0
        %6765 = vmatpush1.msra.mxu0 0.0
        %6766 = vmatprep.subr.mxu0 0.0
        %6767 = vmatpush1.msra.mxu0 0.0
        %6768 = vmatprep.subr.mxu0 0.0
        %6769 = vmatpush1.msra.mxu0 0.0
        %6770 = vmatprep.subr.mxu0 0.0
        %6771 = vmatpush1.msra.mxu0 0.0
        %6772 = vmatprep.subr.mxu0 0.0
        %6773 = vmatpush1.msra.mxu0 0.0
        %6774 = vmatprep.subr.mxu0 0.0
        %6775 = vmatpush1.msra.mxu0 0.0
        %6776 = vmatprep.subr.mxu0 0.0
        %6777 = vmatpush1.msra.mxu0 0.0
        %6778 = vmatprep.mubr.f32.mxu0 0.0
        %6779 = vmatmul.mubr.f32.gmra.mrb[0].mxu0 %v6661
        %v6780 = vpop.f32.mrb[0].mxu0
        %v6781 = vadd.f32 0.0, %v6780
        %v6782 = vpop.f32.mrb[0].mxu0
        %v6783 = vadd.f32 0.0, %v6782
        %6784 = vmatprep.mubr.f32.mxu0 0.0
        %6785 = vmatmul.mubr.f32.gmra.mrb[0].mxu0 %v6664
        %v6786 = vpop.f32.mrb[0].mxu0
        %v6787 = vadd.f32 0.0, %v6786
        %v6788 = vpop.f32.mrb[0].mxu0
        %v6789 = vadd.f32 0.0, %v6788
        %6790 = vdwg.mxu0
        %6791 = vmatprep.subr.mxu0 %v6676
        %6792 = vmatpush1.msra.mxu0 %v6673
        %6793 = vmatprep.subr.mxu0 0.0
        %6794 = vmatpush1.msra.mxu0 0.0
        %6795 = vmatprep.subr.mxu0 0.0
        %6796 = vmatpush1.msra.mxu0 0.0
        %6797 = vmatprep.subr.mxu0 0.0
        %6798 = vmatpush1.msra.mxu0 0.0
        %6799 = vmatprep.subr.mxu0 0.0
        %6800 = vmatpush1.msra.mxu0 0.0
        %6801 = vmatprep.subr.mxu0 0.0
        %6802 = vmatpush1.msra.mxu0 0.0
        %6803 = vmatprep.subr.mxu0 0.0
        %6804 = vmatpush1.msra.mxu0 0.0
        %6805 = vmatprep.subr.mxu0 0.0
        %6806 = vmatpush1.msra.mxu0 0.0
        %6807 = vmatprep.subr.mxu0 0.0
        %6808 = vmatpush1.msra.mxu0 0.0
        %6809 = vmatprep.subr.mxu0 0.0
        %6810 = vmatpush1.msra.mxu0 0.0
        %6811 = vmatprep.subr.mxu0 0.0
        %6812 = vmatpush1.msra.mxu0 0.0
        %6813 = vmatprep.subr.mxu0 0.0
        %6814 = vmatpush1.msra.mxu0 0.0
        %6815 = vmatprep.subr.mxu0 0.0
        %6816 = vmatpush1.msra.mxu0 0.0
        %6817 = vmatprep.subr.mxu0 0.0
        %6818 = vmatpush1.msra.mxu0 0.0
        %6819 = vmatprep.subr.mxu0 0.0
        %6820 = vmatpush1.msra.mxu0 0.0
        %6821 = vmatprep.subr.mxu0 0.0
        %6822 = vmatpush1.msra.mxu0 0.0
        %6823 = vmatprep.subr.mxu0 0.0
        %6824 = vmatpush1.msra.mxu0 0.0
        %6825 = vmatprep.subr.mxu0 0.0
        %6826 = vmatpush1.msra.mxu0 0.0
        %6827 = vmatprep.subr.mxu0 0.0
        %6828 = vmatpush1.msra.mxu0 0.0
        %6829 = vmatprep.subr.mxu0 0.0
        %6830 = vmatpush1.msra.mxu0 0.0
        %6831 = vmatprep.subr.mxu0 0.0
        %6832 = vmatpush1.msra.mxu0 0.0
        %6833 = vmatprep.subr.mxu0 0.0
        %6834 = vmatpush1.msra.mxu0 0.0
        %6835 = vmatprep.subr.mxu0 0.0
        %6836 = vmatpush1.msra.mxu0 0.0
        %6837 = vmatprep.subr.mxu0 0.0
        %6838 = vmatpush1.msra.mxu0 0.0
        %6839 = vmatprep.subr.mxu0 0.0
        %6840 = vmatpush1.msra.mxu0 0.0
        %6841 = vmatprep.subr.mxu0 0.0
        %6842 = vmatpush1.msra.mxu0 0.0
        %6843 = vmatprep.subr.mxu0 0.0
        %6844 = vmatpush1.msra.mxu0 0.0
        %6845 = vmatprep.subr.mxu0 0.0
        %6846 = vmatpush1.msra.mxu0 0.0
        %6847 = vmatprep.subr.mxu0 0.0
        %6848 = vmatpush1.msra.mxu0 0.0
        %6849 = vmatprep.subr.mxu0 0.0
        %6850 = vmatpush1.msra.mxu0 0.0
        %6851 = vmatprep.subr.mxu0 0.0
        %6852 = vmatpush1.msra.mxu0 0.0
        %6853 = vmatprep.subr.mxu0 0.0
        %6854 = vmatpush1.msra.mxu0 0.0
        %6855 = vmatprep.mubr.f32.mxu0 0.0
        %6856 = vmatmul.mubr.f32.gmra.mrb[0].mxu0 %v6661
        %v6857 = vpop.f32.mrb[0].mxu0
        %v6858 = vadd.f32 0.0, %v6857
        %v6859 = vpop.f32.mrb[0].mxu0
        %v6860 = vadd.f32 0.0, %v6859
        %6861 = vmatprep.mubr.f32.mxu0 0.0
        %6862 = vmatmul.mubr.f32.gmra.mrb[0].mxu0 %v6664
        %v6863 = vpop.f32.mrb[0].mxu0
        %v6864 = vadd.f32 0.0, %v6863
        %v6865 = vpop.f32.mrb[0].mxu0
        %v6866 = vadd.f32 0.0, %v6865
        %6867 = vdwg.mxu0
        %6868 = vmatprep.subr.mxu0 %v6682
        %6869 = vmatpush1.msra.mxu0 %v6679
        %6870 = vmatprep.subr.mxu0 0.0
        %6871 = vmatpush1.msra.mxu0 0.0
        %6872 = vmatprep.subr.mxu0 0.0
        %6873 = vmatpush1.msra.mxu0 0.0
        %6874 = vmatprep.subr.mxu0 0.0
        %6875 = vmatpush1.msra.mxu0 0.0
        %6876 = vmatprep.subr.mxu0 0.0
        %6877 = vmatpush1.msra.mxu0 0.0
        %6878 = vmatprep.subr.mxu0 0.0
        %6879 = vmatpush1.msra.mxu0 0.0
        %6880 = vmatprep.subr.mxu0 0.0
        %6881 = vmatpush1.msra.mxu0 0.0
        %6882 = vmatprep.subr.mxu0 0.0
        %6883 = vmatpush1.msra.mxu0 0.0
        %6884 = vmatprep.subr.mxu0 0.0
        %6885 = vmatpush1.msra.mxu0 0.0
        %6886 = vmatprep.subr.mxu0 0.0
        %6887 = vmatpush1.msra.mxu0 0.0
        %6888 = vmatprep.subr.mxu0 0.0
        %6889 = vmatpush1.msra.mxu0 0.0
        %6890 = vmatprep.subr.mxu0 0.0
        %6891 = vmatpush1.msra.mxu0 0.0
        %6892 = vmatprep.subr.mxu0 0.0
        %6893 = vmatpush1.msra.mxu0 0.0
        %6894 = vmatprep.subr.mxu0 0.0
        %6895 = vmatpush1.msra.mxu0 0.0
        %6896 = vmatprep.subr.mxu0 0.0
        %6897 = vmatpush1.msra.mxu0 0.0
        %6898 = vmatprep.subr.mxu0 0.0
        %6899 = vmatpush1.msra.mxu0 0.0
        %6900 = vmatprep.subr.mxu0 0.0
        %6901 = vmatpush1.msra.mxu0 0.0
        %6902 = vmatprep.subr.mxu0 0.0
        %6903 = vmatpush1.msra.mxu0 0.0
        %6904 = vmatprep.subr.mxu0 0.0
        %6905 = vmatpush1.msra.mxu0 0.0
        %6906 = vmatprep.subr.mxu0 0.0
        %6907 = vmatpush1.msra.mxu0 0.0
        %6908 = vmatprep.subr.mxu0 0.0
        %6909 = vmatpush1.msra.mxu0 0.0
        %6910 = vmatprep.subr.mxu0 0.0
        %6911 = vmatpush1.msra.mxu0 0.0
        %6912 = vmatprep.subr.mxu0 0.0
        %6913 = vmatpush1.msra.mxu0 0.0
        %6914 = vmatprep.subr.mxu0 0.0
        %6915 = vmatpush1.msra.mxu0 0.0
        %6916 = vmatprep.subr.mxu0 0.0
        %6917 = vmatpush1.msra.mxu0 0.0
        %6918 = vmatprep.subr.mxu0 0.0
        %6919 = vmatpush1.msra.mxu0 0.0
        %6920 = vmatprep.subr.mxu0 0.0
        %6921 = vmatpush1.msra.mxu0 0.0
        %6922 = vmatprep.subr.mxu0 0.0
        %6923 = vmatpush1.msra.mxu0 0.0
        %6924 = vmatprep.subr.mxu0 0.0
        %6925 = vmatpush1.msra.mxu0 0.0
        %6926 = vmatprep.subr.mxu0 0.0
        %6927 = vmatpush1.msra.mxu0 0.0
        %6928 = vmatprep.subr.mxu0 0.0
        %6929 = vmatpush1.msra.mxu0 0.0
        %6930 = vmatprep.subr.mxu0 0.0
        %6931 = vmatpush1.msra.mxu0 0.0
        %6932 = vmatprep.mubr.f32.mxu0 0.0
        %6933 = vmatmul.mubr.f32.gmra.mrb[0].mxu0 %v6661
        %v6934 = vpop.f32.mrb[0].mxu0
        %v6935 = vadd.f32 0.0, %v6934
        %v6936 = vpop.f32.mrb[0].mxu0
        %v6937 = vadd.f32 0.0, %v6936
        %6938 = vmatprep.mubr.f32.mxu0 0.0
        %6939 = vmatmul.mubr.f32.gmra.mrb[0].mxu0 %v6664
        %v6940 = vpop.f32.mrb[0].mxu0
        %v6941 = vadd.f32 0.0, %v6940
        %v6942 = vpop.f32.mrb[0].mxu0
        %v6943 = vadd.f32 0.0, %v6942
        %6944 = vdwg.mxu0
        %6945 = vmatprep.subr.mxu0 %v6688
        %6946 = vmatpush1.msra.mxu0 %v6685
        %6947 = vmatprep.subr.mxu0 0.0
        %6948 = vmatpush1.msra.mxu0 0.0
        %6949 = vmatprep.subr.mxu0 0.0
        %6950 = vmatpush1.msra.mxu0 0.0
        %6951 = vmatprep.subr.mxu0 0.0
        %6952 = vmatpush1.msra.mxu0 0.0
        %6953 = vmatprep.subr.mxu0 0.0
        %6954 = vmatpush1.msra.mxu0 0.0
        %6955 = vmatprep.subr.mxu0 0.0
        %6956 = vmatpush1.msra.mxu0 0.0
        %6957 = vmatprep.subr.mxu0 0.0
        %6958 = vmatpush1.msra.mxu0 0.0
        %6959 = vmatprep.subr.mxu0 0.0
        %6960 = vmatpush1.msra.mxu0 0.0
        %6961 = vmatprep.subr.mxu0 0.0
        %6962 = vmatpush1.msra.mxu0 0.0
        %6963 = vmatprep.subr.mxu0 0.0
        %6964 = vmatpush1.msra.mxu0 0.0
        %6965 = vmatprep.subr.mxu0 0.0
        %6966 = vmatpush1.msra.mxu0 0.0
        %6967 = vmatprep.subr.mxu0 0.0
        %6968 = vmatpush1.msra.mxu0 0.0
        %6969 = vmatprep.subr.mxu0 0.0
        %6970 = vmatpush1.msra.mxu0 0.0
        %6971 = vmatprep.subr.mxu0 0.0
        %6972 = vmatpush1.msra.mxu0 0.0
        %6973 = vmatprep.subr.mxu0 0.0
        %6974 = vmatpush1.msra.mxu0 0.0
        %6975 = vmatprep.subr.mxu0 0.0
        %6976 = vmatpush1.msra.mxu0 0.0
        %6977 = vmatprep.subr.mxu0 0.0
        %6978 = vmatpush1.msra.mxu0 0.0
        %6979 = vmatprep.subr.mxu0 0.0
        %6980 = vmatpush1.msra.mxu0 0.0
        %6981 = vmatprep.subr.mxu0 0.0
        %6982 = vmatpush1.msra.mxu0 0.0
        %6983 = vmatprep.subr.mxu0 0.0
        %6984 = vmatpush1.msra.mxu0 0.0
        %6985 = vmatprep.subr.mxu0 0.0
        %6986 = vmatpush1.msra.mxu0 0.0
        %6987 = vmatprep.subr.mxu0 0.0
        %6988 = vmatpush1.msra.mxu0 0.0
        %6989 = vmatprep.subr.mxu0 0.0
        %6990 = vmatpush1.msra.mxu0 0.0
        %6991 = vmatprep.subr.mxu0 0.0
        %6992 = vmatpush1.msra.mxu0 0.0
        %6993 = vmatprep.subr.mxu0 0.0
        %6994 = vmatpush1.msra.mxu0 0.0
        %6995 = vmatprep.subr.mxu0 0.0
        %6996 = vmatpush1.msra.mxu0 0.0
        %6997 = vmatprep.subr.mxu0 0.0
        %6998 = vmatpush1.msra.mxu0 0.0
        %6999 = vmatprep.subr.mxu0 0.0
        %7000 = vmatpush1.msra.mxu0 0.0
        %7001 = vmatprep.subr.mxu0 0.0
        %7002 = vmatpush1.msra.mxu0 0.0
        %7003 = vmatprep.subr.mxu0 0.0
        %7004 = vmatpush1.msra.mxu0 0.0
        %7005 = vmatprep.subr.mxu0 0.0
        %7006 = vmatpush1.msra.mxu0 0.0
        %7007 = vmatprep.subr.mxu0 0.0
        %7008 = vmatpush1.msra.mxu0 0.0
        %7009 = vmatprep.mubr.f32.mxu0 0.0
        %7010 = vmatmul.mubr.f32.gmra.mrb[0].mxu0 %v6661
        %v7011 = vpop.f32.mrb[0].mxu0
        %v7012 = vadd.f32 0.0, %v7011
        %v7013 = vpop.f32.mrb[0].mxu0
        %v7014 = vadd.f32 0.0, %v7013
        %7015 = vmatprep.mubr.f32.mxu0 0.0
        %7016 = vmatmul.mubr.f32.gmra.mrb[0].mxu0 %v6664
        %v7017 = vpop.f32.mrb[0].mxu0
        %v7018 = vadd.f32 0.0, %v7017
        %v7019 = vpop.f32.mrb[0].mxu0
        %v7020 = vadd.f32 0.0, %v7019
        %7021 = vdwg.mxu0
        %7022 = vmatprep.subr.mxu0 %v6694
        %7023 = vmatpush1.msra.mxu0 %v6691
        %7024 = vmatprep.subr.mxu0 0.0
        %7025 = vmatpush1.msra.mxu0 0.0
        %7026 = vmatprep.subr.mxu0 0.0
        %7027 = vmatpush1.msra.mxu0 0.0
        %7028 = vmatprep.subr.mxu0 0.0
        %7029 = vmatpush1.msra.mxu0 0.0
        %7030 = vmatprep.subr.mxu0 0.0
        %7031 = vmatpush1.msra.mxu0 0.0
        %7032 = vmatprep.subr.mxu0 0.0
        %7033 = vmatpush1.msra.mxu0 0.0
        %7034 = vmatprep.subr.mxu0 0.0
        %7035 = vmatpush1.msra.mxu0 0.0
        %7036 = vmatprep.subr.mxu0 0.0
        %7037 = vmatpush1.msra.mxu0 0.0
        %7038 = vmatprep.subr.mxu0 0.0
        %7039 = vmatpush1.msra.mxu0 0.0
        %7040 = vmatprep.subr.mxu0 0.0
        %7041 = vmatpush1.msra.mxu0 0.0
        %7042 = vmatprep.subr.mxu0 0.0
        %7043 = vmatpush1.msra.mxu0 0.0
        %7044 = vmatprep.subr.mxu0 0.0
        %7045 = vmatpush1.msra.mxu0 0.0
        %7046 = vmatprep.subr.mxu0 0.0
        %7047 = vmatpush1.msra.mxu0 0.0
        %7048 = vmatprep.subr.mxu0 0.0
        %7049 = vmatpush1.msra.mxu0 0.0
        %7050 = vmatprep.subr.mxu0 0.0
        %7051 = vmatpush1.msra.mxu0 0.0
        %7052 = vmatprep.subr.mxu0 0.0
        %7053 = vmatpush1.msra.mxu0 0.0
        %7054 = vmatprep.subr.mxu0 0.0
        %7055 = vmatpush1.msra.mxu0 0.0
        %7056 = vmatprep.subr.mxu0 0.0
        %7057 = vmatpush1.msra.mxu0 0.0
        %7058 = vmatprep.subr.mxu0 0.0
        %7059 = vmatpush1.msra.mxu0 0.0
        %7060 = vmatprep.subr.mxu0 0.0
        %7061 = vmatpush1.msra.mxu0 0.0
        %7062 = vmatprep.subr.mxu0 0.0
        %7063 = vmatpush1.msra.mxu0 0.0
        %7064 = vmatprep.subr.mxu0 0.0
        %7065 = vmatpush1.msra.mxu0 0.0
        %7066 = vmatprep.subr.mxu0 0.0
        %7067 = vmatpush1.msra.mxu0 0.0
        %7068 = vmatprep.subr.mxu0 0.0
        %7069 = vmatpush1.msra.mxu0 0.0
        %7070 = vmatprep.subr.mxu0 0.0
        %7071 = vmatpush1.msra.mxu0 0.0
        %7072 = vmatprep.subr.mxu0 0.0
        %7073 = vmatpush1.msra.mxu0 0.0
        %7074 = vmatprep.subr.mxu0 0.0
        %7075 = vmatpush1.msra.mxu0 0.0
        %7076 = vmatprep.subr.mxu0 0.0
        %7077 = vmatpush1.msra.mxu0 0.0
        %7078 = vmatprep.subr.mxu0 0.0
        %7079 = vmatpush1.msra.mxu0 0.0
        %7080 = vmatprep.subr.mxu0 0.0
        %7081 = vmatpush1.msra.mxu0 0.0
        %7082 = vmatprep.subr.mxu0 0.0
        %7083 = vmatpush1.msra.mxu0 0.0
        %7084 = vmatprep.subr.mxu0 0.0
        %7085 = vmatpush1.msra.mxu0 0.0
        %7086 = vmatprep.mubr.f32.mxu0 0.0
        %7087 = vmatmul.mubr.f32.gmra.mrb[0].mxu0 %v6661
        %v7088 = vpop.f32.mrb[0].mxu0
        %v7089 = vadd.f32 0.0, %v7088
        %v7090 = vpop.f32.mrb[0].mxu0
        %v7091 = vadd.f32 0.0, %v7090
        %7092 = vmatprep.mubr.f32.mxu0 0.0
        %7093 = vmatmul.mubr.f32.gmra.mrb[0].mxu0 %v6664
        %v7094 = vpop.f32.mrb[0].mxu0
        %v7095 = vadd.f32 0.0, %v7094
        %v7096 = vpop.f32.mrb[0].mxu0
        %v7097 = vadd.f32 0.0, %v7096
        %7098 = vdwg.mxu0
        %7099 = vmatprep.subr.mxu0 %v6700
        %7100 = vmatpush1.msra.mxu0 %v6697
        %7101 = vmatprep.subr.mxu0 0.0
        %7102 = vmatpush1.msra.mxu0 0.0
        %7103 = vmatprep.subr.mxu0 0.0
        %7104 = vmatpush1.msra.mxu0 0.0
        %7105 = vmatprep.subr.mxu0 0.0
        %7106 = vmatpush1.msra.mxu0 0.0
        %7107 = vmatprep.subr.mxu0 0.0
        %7108 = vmatpush1.msra.mxu0 0.0
        %7109 = vmatprep.subr.mxu0 0.0
        %7110 = vmatpush1.msra.mxu0 0.0
        %7111 = vmatprep.subr.mxu0 0.0
        %7112 = vmatpush1.msra.mxu0 0.0
        %7113 = vmatprep.subr.mxu0 0.0
        %7114 = vmatpush1.msra.mxu0 0.0
        %7115 = vmatprep.subr.mxu0 0.0
        %7116 = vmatpush1.msra.mxu0 0.0
        %7117 = vmatprep.subr.mxu0 0.0
        %7118 = vmatpush1.msra.mxu0 0.0
        %7119 = vmatprep.subr.mxu0 0.0
        %7120 = vmatpush1.msra.mxu0 0.0
        %7121 = vmatprep.subr.mxu0 0.0
        %7122 = vmatpush1.msra.mxu0 0.0
        %7123 = vmatprep.subr.mxu0 0.0
        %7124 = vmatpush1.msra.mxu0 0.0
        %7125 = vmatprep.subr.mxu0 0.0
        %7126 = vmatpush1.msra.mxu0 0.0
        %7127 = vmatprep.subr.mxu0 0.0
        %7128 = vmatpush1.msra.mxu0 0.0
        %7129 = vmatprep.subr.mxu0 0.0
        %7130 = vmatpush1.msra.mxu0 0.0
        %7131 = vmatprep.subr.mxu0 0.0
        %7132 = vmatpush1.msra.mxu0 0.0
        %7133 = vmatprep.subr.mxu0 0.0
        %7134 = vmatpush1.msra.mxu0 0.0
        %7135 = vmatprep.subr.mxu0 0.0
        %7136 = vmatpush1.msra.mxu0 0.0
        %7137 = vmatprep.subr.mxu0 0.0
        %7138 = vmatpush1.msra.mxu0 0.0
        %7139 = vmatprep.subr.mxu0 0.0
        %7140 = vmatpush1.msra.mxu0 0.0
        %7141 = vmatprep.subr.mxu0 0.0
        %7142 = vmatpush1.msra.mxu0 0.0
        %7143 = vmatprep.subr.mxu0 0.0
        %7144 = vmatpush1.msra.mxu0 0.0
        %7145 = vmatprep.subr.mxu0 0.0
        %7146 = vmatpush1.msra.mxu0 0.0
        %7147 = vmatprep.subr.mxu0 0.0
        %7148 = vmatpush1.msra.mxu0 0.0
        %7149 = vmatprep.subr.mxu0 0.0
        %7150 = vmatpush1.msra.mxu0 0.0
        %7151 = vmatprep.subr.mxu0 0.0
        %7152 = vmatpush1.msra.mxu0 0.0
        %7153 = vmatprep.subr.mxu0 0.0
        %7154 = vmatpush1.msra.mxu0 0.0
        %7155 = vmatprep.subr.mxu0 0.0
        %7156 = vmatpush1.msra.mxu0 0.0
        %7157 = vmatprep.subr.mxu0 0.0
        %7158 = vmatpush1.msra.mxu0 0.0
        %7159 = vmatprep.subr.mxu0 0.0
        %7160 = vmatpush1.msra.mxu0 0.0
        %7161 = vmatprep.subr.mxu0 0.0
        %7162 = vmatpush1.msra.mxu0 0.0
        %7163 = vmatprep.mubr.f32.mxu0 0.0
        %7164 = vmatmul.mubr.f32.gmra.mrb[0].mxu0 %v6661
        %v7165 = vpop.f32.mrb[0].mxu0
        %v7166 = vadd.f32 0.0, %v7165
        %v7167 = vpop.f32.mrb[0].mxu0
        %v7168 = vadd.f32 0.0, %v7167
        %7169 = vmatprep.mubr.f32.mxu0 0.0
        %7170 = vmatmul.mubr.f32.gmra.mrb[0].mxu0 %v6664
        %v7171 = vpop.f32.mrb[0].mxu0
        %v7172 = vadd.f32 0.0, %v7171
        %v7173 = vpop.f32.mrb[0].mxu0
        %v7174 = vadd.f32 0.0, %v7173
        %7175 = vdwg.mxu0
        %7176 = vmatprep.subr.mxu0 %v6706
        %7177 = vmatpush1.msra.mxu0 %v6703
        %7178 = vmatprep.subr.mxu0 0.0
        %7179 = vmatpush1.msra.mxu0 0.0
        %7180 = vmatprep.subr.mxu0 0.0
        %7181 = vmatpush1.msra.mxu0 0.0
        %7182 = vmatprep.subr.mxu0 0.0
        %7183 = vmatpush1.msra.mxu0 0.0
        %7184 = vmatprep.subr.mxu0 0.0
        %7185 = vmatpush1.msra.mxu0 0.0
        %7186 = vmatprep.subr.mxu0 0.0
        %7187 = vmatpush1.msra.mxu0 0.0
        %7188 = vmatprep.subr.mxu0 0.0
        %7189 = vmatpush1.msra.mxu0 0.0
        %7190 = vmatprep.subr.mxu0 0.0
        %7191 = vmatpush1.msra.mxu0 0.0
        %7192 = vmatprep.subr.mxu0 0.0
        %7193 = vmatpush1.msra.mxu0 0.0
        %7194 = vmatprep.subr.mxu0 0.0
        %7195 = vmatpush1.msra.mxu0 0.0
        %7196 = vmatprep.subr.mxu0 0.0
        %7197 = vmatpush1.msra.mxu0 0.0
        %7198 = vmatprep.subr.mxu0 0.0
        %7199 = vmatpush1.msra.mxu0 0.0
        %7200 = vmatprep.subr.mxu0 0.0
        %7201 = vmatpush1.msra.mxu0 0.0
        %7202 = vmatprep.subr.mxu0 0.0
        %7203 = vmatpush1.msra.mxu0 0.0
        %7204 = vmatprep.subr.mxu0 0.0
        %7205 = vmatpush1.msra.mxu0 0.0
        %7206 = vmatprep.subr.mxu0 0.0
        %7207 = vmatpush1.msra.mxu0 0.0
        %7208 = vmatprep.subr.mxu0 0.0
        %7209 = vmatpush1.msra.mxu0 0.0
        %7210 = vmatprep.subr.mxu0 0.0
        %7211 = vmatpush1.msra.mxu0 0.0
        %7212 = vmatprep.subr.mxu0 0.0
        %7213 = vmatpush1.msra.mxu0 0.0
        %7214 = vmatprep.subr.mxu0 0.0
        %7215 = vmatpush1.msra.mxu0 0.0
        %7216 = vmatprep.subr.mxu0 0.0
        %7217 = vmatpush1.msra.mxu0 0.0
        %7218 = vmatprep.subr.mxu0 0.0
        %7219 = vmatpush1.msra.mxu0 0.0
        %7220 = vmatprep.subr.mxu0 0.0
        %7221 = vmatpush1.msra.mxu0 0.0
        %7222 = vmatprep.subr.mxu0 0.0
        %7223 = vmatpush1.msra.mxu0 0.0
        %7224 = vmatprep.subr.mxu0 0.0
        %7225 = vmatpush1.msra.mxu0 0.0
        %7226 = vmatprep.subr.mxu0 0.0
        %7227 = vmatpush1.msra.mxu0 0.0
        %7228 = vmatprep.subr.mxu0 0.0
        %7229 = vmatpush1.msra.mxu0 0.0
        %7230 = vmatprep.subr.mxu0 0.0
        %7231 = vmatpush1.msra.mxu0 0.0
        %7232 = vmatprep.subr.mxu0 0.0
        %7233 = vmatpush1.msra.mxu0 0.0
        %7234 = vmatprep.subr.mxu0 0.0
        %7235 = vmatpush1.msra.mxu0 0.0
        %7236 = vmatprep.subr.mxu0 0.0
        %7237 = vmatpush1.msra.mxu0 0.0
        %7238 = vmatprep.subr.mxu0 0.0
        %7239 = vmatpush1.msra.mxu0 0.0
        %7240 = vmatprep.mubr.f32.mxu0 0.0
        %7241 = vmatmul.mubr.f32.gmra.mrb[0].mxu0 %v6661
        %v7242 = vpop.f32.mrb[0].mxu0
        %v7243 = vadd.f32 0.0, %v7242
        %v7244 = vpop.f32.mrb[0].mxu0
        %v7245 = vadd.f32 0.0, %v7244
        %7246 = vmatprep.mubr.f32.mxu0 0.0
        %7247 = vmatmul.mubr.f32.gmra.mrb[0].mxu0 %v6664
        %v7248 = vpop.f32.mrb[0].mxu0
        %v7249 = vadd.f32 0.0, %v7248
        %v7250 = vpop.f32.mrb[0].mxu0
        %v7251 = vadd.f32 0.0, %v7250
        %7252 = vdwg.mxu0
        %7253 = vmatprep.subr.mxu0 %v6712
        %7254 = vmatpush1.msra.mxu0 %v6709
        %7255 = vmatprep.subr.mxu0 0.0
        %7256 = vmatpush1.msra.mxu0 0.0
        %7257 = vmatprep.subr.mxu0 0.0
        %7258 = vmatpush1.msra.mxu0 0.0
        %7259 = vmatprep.subr.mxu0 0.0
        %7260 = vmatpush1.msra.mxu0 0.0
        %7261 = vmatprep.subr.mxu0 0.0
        %7262 = vmatpush1.msra.mxu0 0.0
        %7263 = vmatprep.subr.mxu0 0.0
        %7264 = vmatpush1.msra.mxu0 0.0
        %7265 = vmatprep.subr.mxu0 0.0
        %7266 = vmatpush1.msra.mxu0 0.0
        %7267 = vmatprep.subr.mxu0 0.0
        %7268 = vmatpush1.msra.mxu0 0.0
        %7269 = vmatprep.subr.mxu0 0.0
        %7270 = vmatpush1.msra.mxu0 0.0
        %7271 = vmatprep.subr.mxu0 0.0
        %7272 = vmatpush1.msra.mxu0 0.0
        %7273 = vmatprep.subr.mxu0 0.0
        %7274 = vmatpush1.msra.mxu0 0.0
        %7275 = vmatprep.subr.mxu0 0.0
        %7276 = vmatpush1.msra.mxu0 0.0
        %7277 = vmatprep.subr.mxu0 0.0
        %7278 = vmatpush1.msra.mxu0 0.0
        %7279 = vmatprep.subr.mxu0 0.0
        %7280 = vmatpush1.msra.mxu0 0.0
        %7281 = vmatprep.subr.mxu0 0.0
        %7282 = vmatpush1.msra.mxu0 0.0
        %7283 = vmatprep.subr.mxu0 0.0
        %7284 = vmatpush1.msra.mxu0 0.0
        %7285 = vmatprep.subr.mxu0 0.0
        %7286 = vmatpush1.msra.mxu0 0.0
        %7287 = vmatprep.subr.mxu0 0.0
        %7288 = vmatpush1.msra.mxu0 0.0
        %7289 = vmatprep.subr.mxu0 0.0
        %7290 = vmatpush1.msra.mxu0 0.0
        %7291 = vmatprep.subr.mxu0 0.0
        %7292 = vmatpush1.msra.mxu0 0.0
        %7293 = vmatprep.subr.mxu0 0.0
        %7294 = vmatpush1.msra.mxu0 0.0
        %7295 = vmatprep.subr.mxu0 0.0
        %7296 = vmatpush1.msra.mxu0 0.0
        %7297 = vmatprep.subr.mxu0 0.0
        %7298 = vmatpush1.msra.mxu0 0.0
        %7299 = vmatprep.subr.mxu0 0.0
        %7300 = vmatpush1.msra.mxu0 0.0
        %7301 = vmatprep.subr.mxu0 0.0
        %7302 = vmatpush1.msra.mxu0 0.0
        %7303 = vmatprep.subr.mxu0 0.0
        %7304 = vmatpush1.msra.mxu0 0.0
        %7305 = vmatprep.subr.mxu0 0.0
        %7306 = vmatpush1.msra.mxu0 0.0
        %7307 = vmatprep.subr.mxu0 0.0
        %7308 = vmatpush1.msra.mxu0 0.0
        %7309 = vmatprep.subr.mxu0 0.0
        %7310 = vmatpush1.msra.mxu0 0.0
        %7311 = vmatprep.subr.mxu0 0.0
        %7312 = vmatpush1.msra.mxu0 0.0
        %7313 = vmatprep.subr.mxu0 0.0
        %7314 = vmatpush1.msra.mxu0 0.0
        %7315 = vmatprep.subr.mxu0 0.0
        %7316 = vmatpush1.msra.mxu0 0.0
        %7317 = vmatprep.mubr.f32.mxu0 0.0
        %7318 = vmatmul.mubr.f32.gmra.mrb[0].mxu0 %v6661
        %v7319 = vpop.f32.mrb[0].mxu0
        %v7320 = vadd.f32 0.0, %v7319
        %v7321 = vpop.f32.mrb[0].mxu0
        %v7322 = vadd.f32 0.0, %v7321
        %7323 = vmatprep.mubr.f32.mxu0 0.0
        %7324 = vmatmul.mubr.f32.gmra.mrb[0].mxu0 %v6664
        %v7325 = vpop.f32.mrb[0].mxu0
        %v7326 = vadd.f32 0.0, %v7325
        %v7327 = vpop.f32.mrb[0].mxu0
        %v7328 = vadd.f32 0.0, %v7327
        %7329 = vdwg.mxu0
        %v7330 = vadd.f32 %v6543, %v6781
        %v7331 = vadd.f32 %v6544, %v6783
        %v7332 = vadd.f32 %v6545, %v6858
        %v7333 = vadd.f32 %v6546, %v6860
        %v7334 = vadd.f32 %v6547, %v6935
        %v7335 = vadd.f32 %v6548, %v6937
        %v7336 = vadd.f32 %v6549, %v7012
        %v7337 = vadd.f32 %v6550, %v7014
        %v7338 = vadd.f32 %v6551, %v7089
        %v7339 = vadd.f32 %v6552, %v7091
        %v7340 = vadd.f32 %v6553, %v7166
        %v7341 = vadd.f32 %v6554, %v7168
        %v7342 = vadd.f32 %v6555, %v7243
        %v7343 = vadd.f32 %v6556, %v7245
        %v7344 = vadd.f32 %v6557, %v7320
        %v7345 = vadd.f32 %v6558, %v7322
        %v7346 = vadd.f32 %v6559, %v6787
        %v7347 = vadd.f32 %v6560, %v6789
        %v7348 = vadd.f32 %v6561, %v6864
        %v7349 = vadd.f32 %v6562, %v6866
        %v7350 = vadd.f32 %v6563, %v6941
        %v7351 = vadd.f32 %v6564, %v6943
        %v7352 = vadd.f32 %v6565, %v7018
        %v7353 = vadd.f32 %v6566, %v7020
        %v7354 = vadd.f32 %v6567, %v7095
        %v7355 = vadd.f32 %v6568, %v7097
        %v7356 = vadd.f32 %v6569, %v7172
        %v7357 = vadd.f32 %v6570, %v7174
        %v7358 = vadd.f32 %v6571, %v7249
        %v7359 = vadd.f32 %v6572, %v7251
        %v7360 = vadd.f32 %v6573, %v7326
        %v7361 = vadd.f32 %v6574, %v7328
        %v7362 = vld [vmem:[%s1] sm:$0xff]
        %v7363 = vld [vmem:[%s1 + $0x8] sm:$0xff]
        %7365 = vset.pattern.permute.xlu0 0
        %7366 = vperm.xlu0 %7365, %v7362
        %v7367 = vpop.permute.xlu0 %7366
        %7370 = vset.pattern.permute.xlu0 0
        %7371 = vperm.xlu0 %7370, %v7363
        %v7372 = vpop.permute.xlu0 %7371
        %v7374 = vadd.f32 %v7330, %v7367
        %v7375 = vadd.f32 %v7331, %v7367
        %v7376 = vadd.f32 %v7332, %v7367
        %v7377 = vadd.f32 %v7333, %v7367
        %v7378 = vadd.f32 %v7334, %v7367
        %v7379 = vadd.f32 %v7335, %v7367
        %v7380 = vadd.f32 %v7336, %v7367
        %v7381 = vadd.f32 %v7337, %v7367
        %v7382 = vadd.f32 %v7338, %v7367
        %v7383 = vadd.f32 %v7339, %v7367
        %v7384 = vadd.f32 %v7340, %v7367
        %v7385 = vadd.f32 %v7341, %v7367
        %v7386 = vadd.f32 %v7342, %v7367
        %v7387 = vadd.f32 %v7343, %v7367
        %v7388 = vadd.f32 %v7344, %v7367
        %v7389 = vadd.f32 %v7345, %v7367
        %v7390 = vadd.f32 %v7346, %v7372
        %v7391 = vadd.f32 %v7347, %v7372
        %v7392 = vadd.f32 %v7348, %v7372
        %v7393 = vadd.f32 %v7349, %v7372
        %v7394 = vadd.f32 %v7350, %v7372
        %v7395 = vadd.f32 %v7351, %v7372
        %v7396 = vadd.f32 %v7352, %v7372
        %v7397 = vadd.f32 %v7353, %v7372
        %v7398 = vadd.f32 %v7354, %v7372
        %v7399 = vadd.f32 %v7355, %v7372
        %v7400 = vadd.f32 %v7356, %v7372
        %v7401 = vadd.f32 %v7357, %v7372
        %v7402 = vadd.f32 %v7358, %v7372
        %v7403 = vadd.f32 %v7359, %v7372
        %v7404 = vadd.f32 %v7360, %v7372
        %v7405 = vadd.f32 %v7361, %v7372
        %v7406 = vmul.f32 %v7374, 0.2
        %v7407 = vmul.f32 %v7375, 0.2
        %v7408 = vmul.f32 %v7376, 0.2
        %v7409 = vmul.f32 %v7377, 0.2
        %v7410 = vmul.f32 %v7378, 0.2
        %v7411 = vmul.f32 %v7379, 0.2
        %v7412 = vmul.f32 %v7380, 0.2
        %v7413 = vmul.f32 %v7381, 0.2
        %v7414 = vmul.f32 %v7382, 0.2
        %v7415 = vmul.f32 %v7383, 0.2
        %v7416 = vmul.f32 %v7384, 0.2
        %v7417 = vmul.f32 %v7385, 0.2
        %v7418 = vmul.f32 %v7386, 0.2
        %v7419 = vmul.f32 %v7387, 0.2
        %v7420 = vmul.f32 %v7388, 0.2
        %v7421 = vmul.f32 %v7389, 0.2
        %v7422 = vmul.f32 %v7390, 0.2
        %v7423 = vmul.f32 %v7391, 0.2
        %v7424 = vmul.f32 %v7392, 0.2
        %v7425 = vmul.f32 %v7393, 0.2
        %v7426 = vmul.f32 %v7394, 0.2
        %v7427 = vmul.f32 %v7395, 0.2
        %v7428 = vmul.f32 %v7396, 0.2
        %v7429 = vmul.f32 %v7397, 0.2
        %v7430 = vmul.f32 %v7398, 0.2
        %v7431 = vmul.f32 %v7399, 0.2
        %v7432 = vmul.f32 %v7400, 0.2
        %v7433 = vmul.f32 %v7401, 0.2
        %v7434 = vmul.f32 %v7402, 0.2
        %v7435 = vmul.f32 %v7403, 0.2
        %v7436 = vmul.f32 %v7404, 0.2
        %v7437 = vmul.f32 %v7405, 0.2
        %v7438 = vmax.f32 %v7374, %v7406
        %v7439 = vmax.f32 %v7375, %v7407
        %v7440 = vmax.f32 %v7376, %v7408
        %v7441 = vmax.f32 %v7377, %v7409
        %v7442 = vmax.f32 %v7378, %v7410
        %v7443 = vmax.f32 %v7379, %v7411
        %v7444 = vmax.f32 %v7380, %v7412
        %v7445 = vmax.f32 %v7381, %v7413
        %v7446 = vmax.f32 %v7382, %v7414
        %v7447 = vmax.f32 %v7383, %v7415
        %v7448 = vmax.f32 %v7384, %v7416
        %v7449 = vmax.f32 %v7385, %v7417
        %v7450 = vmax.f32 %v7386, %v7418
        %v7451 = vmax.f32 %v7387, %v7419
        %v7452 = vmax.f32 %v7388, %v7420
        %v7453 = vmax.f32 %v7389, %v7421
        %v7454 = vmax.f32 %v7390, %v7422
        %v7455 = vmax.f32 %v7391, %v7423
        %v7456 = vmax.f32 %v7392, %v7424
        %v7457 = vmax.f32 %v7393, %v7425
        %v7458 = vmax.f32 %v7394, %v7426
        %v7459 = vmax.f32 %v7395, %v7427
        %v7460 = vmax.f32 %v7396, %v7428
        %v7461 = vmax.f32 %v7397, %v7429
        %v7462 = vmax.f32 %v7398, %v7430
        %v7463 = vmax.f32 %v7399, %v7431
        %v7464 = vmax.f32 %v7400, %v7432
        %v7465 = vmax.f32 %v7401, %v7433
        %v7466 = vmax.f32 %v7402, %v7434
        %v7467 = vmax.f32 %v7403, %v7435
        %v7468 = vmax.f32 %v7404, %v7436
        %v7469 = vmax.f32 %v7405, %v7437
        %v7470 = vpack.c.bf16 %v7454, %v7438
        %v7471 = vpack.c.bf16 %v7455, %v7439
        %v7472 = vpack.c.bf16 %v7456, %v7440
        %v7473 = vpack.c.bf16 %v7457, %v7441
        %v7474 = vpack.c.bf16 %v7458, %v7442
        %v7475 = vpack.c.bf16 %v7459, %v7443
        %v7476 = vpack.c.bf16 %v7460, %v7444
        %v7477 = vpack.c.bf16 %v7461, %v7445
        %v7478 = vpack.c.bf16 %v7462, %v7446
        %v7479 = vpack.c.bf16 %v7463, %v7447
        %v7480 = vpack.c.bf16 %v7464, %v7448
        %v7481 = vpack.c.bf16 %v7465, %v7449
        %v7482 = vpack.c.bf16 %v7466, %v7450
        %v7483 = vpack.c.bf16 %v7467, %v7451
        %v7484 = vpack.c.bf16 %v7468, %v7452
        %v7485 = vpack.c.bf16 %v7469, %v7453
        %v7502 = vunpack.c.l.b16 %v7470
        %v7503 = vunpack.c.l.b16 %v7471
        %v7504 = vunpack.c.l.b16 %v7472
        %v7505 = vunpack.c.l.b16 %v7473
        %v7506 = vunpack.c.l.b16 %v7474
        %v7507 = vunpack.c.l.b16 %v7475
        %v7508 = vunpack.c.l.b16 %v7476
        %v7509 = vunpack.c.l.b16 %v7477
        %v7510 = vunpack.c.l.b16 %v7478
        %v7511 = vunpack.c.l.b16 %v7479
        %v7512 = vunpack.c.l.b16 %v7480
        %v7513 = vunpack.c.l.b16 %v7481
        %v7514 = vunpack.c.l.b16 %v7482
        %v7515 = vunpack.c.l.b16 %v7483
        %v7516 = vunpack.c.l.b16 %v7484
        %v7517 = vunpack.c.l.b16 %v7485
        %v7518 = vunpack.c.h.b16 %v7470
        %v7519 = vunpack.c.h.b16 %v7471
        %v7520 = vunpack.c.h.b16 %v7472
        %v7521 = vunpack.c.h.b16 %v7473
        %v7522 = vunpack.c.h.b16 %v7474
        %v7523 = vunpack.c.h.b16 %v7475
        %v7524 = vunpack.c.h.b16 %v7476
        %v7525 = vunpack.c.h.b16 %v7477
        %v7526 = vunpack.c.h.b16 %v7478
        %v7527 = vunpack.c.h.b16 %v7479
        %v7528 = vunpack.c.h.b16 %v7480
        %v7529 = vunpack.c.h.b16 %v7481
        %v7530 = vunpack.c.h.b16 %v7482
        %v7531 = vunpack.c.h.b16 %v7483
        %v7532 = vunpack.c.h.b16 %v7484
        %v7533 = vunpack.c.h.b16 %v7485
        %v7534 = vpack.c.b16 %v7503, %v7502
        %v7535 = vpack.c.b16 %v7505, %v7504
        %v7536 = vpack.c.b16 %v7507, %v7506
        %v7537 = vpack.c.b16 %v7509, %v7508
        %v7538 = vpack.c.b16 %v7511, %v7510
        %v7539 = vpack.c.b16 %v7513, %v7512
        %v7540 = vpack.c.b16 %v7515, %v7514
        %v7541 = vpack.c.b16 %v7517, %v7516
        %v7542 = vpack.c.b16 %v7519, %v7518
        %v7543 = vpack.c.b16 %v7521, %v7520
        %v7544 = vpack.c.b16 %v7523, %v7522
        %v7545 = vpack.c.b16 %v7525, %v7524
        %v7546 = vpack.c.b16 %v7527, %v7526
        %v7547 = vpack.c.b16 %v7529, %v7528
        %v7548 = vpack.c.b16 %v7531, %v7530
        %v7549 = vpack.c.b16 %v7533, %v7532
        %7566 = vst [vmem:[%s187] sm:$0xff] %v7534
        %7567 = vst [vmem:[%s187 + $0x8] sm:$0xff] %v7535
        %7568 = vst [vmem:[%s187 + $0x10] sm:$0xff] %v7536
        %7569 = vst [vmem:[%s187 + $0x18] sm:$0xff] %v7537
        %7570 = vst [vmem:[%s187 + $0x20] sm:$0xff] %v7538
        %7571 = vst [vmem:[%s187 + $0x28] sm:$0xff] %v7539
        %7572 = vst [vmem:[%s187 + $0x30] sm:$0xff] %v7540
        %7573 = vst [vmem:[%s187 + $0x38] sm:$0xff] %v7541
        %7574 = vst [vmem:[%s187 + $0x40] sm:$0xff] %v7542
        %7575 = vst [vmem:[%s187 + $0x48] sm:$0xff] %v7543
        %7576 = vst [vmem:[%s187 + $0x50] sm:$0xff] %v7544
        %7577 = vst [vmem:[%s187 + $0x58] sm:$0xff] %v7545
        %7578 = vst [vmem:[%s187 + $0x60] sm:$0xff] %v7546
        %7579 = vst [vmem:[%s187 + $0x68] sm:$0xff] %v7547
        %7580 = vst [vmem:[%s187 + $0x70] sm:$0xff] %v7548
        %7581 = vst [vmem:[%s187 + $0x78] sm:$0xff] %v7549
        %s7582 = sand.u32 %s109, 1
        %s7583 = scalar_lea.sflag [#allocation3], %s7582
        %s7584 = sand.u32 %s109, 1
        %s7585 = smul.addr %s7584, 128
        %s7586 = scalar_lea.vmem [#allocation2], %s7585
        // Predicated region
        $region33: #{tpu_custom_call.1} parent=31 // pred_check
          %p7587 = pneg %p119
        $region34: #{tpu_custom_call.1} parent=31 // pred_check_branch
          %7589 = sbr.rel (%p7587) target = $region36
        $region35: #{tpu_custom_call.1} parent=31 // pred_region
          %s7590 = smul.u32 16, %s22
          %s7592 = ssub.s32 2048, 2048
          %7593 = vsyncadd %s7583, %s7592
          %s7594 = smul.addr %s21, 64
          %s7595 = sadd.s32 %s7590, %s7594
          %s7596 = smul.addr %s7595, 64
          %s7597 = scalar_lea.hbm %s3, %s7596
          %s7598 = sshll.u32 %s7586, 4
          %s7599 = int_to_ptr.vmem [resolvable:$true] %s7598
          %7604 = dma.vmem_to_hbm [thread:$0]  %s7599, 2048, %s7597, %s7583, 1024, 2048, 64
        $region36: #{tpu_custom_call.1} parent=31 // pred_fallthru
          _
      $region32: #{tpu_custom_call.1} parent=5 // pred_fallthru
        _
      %p7605 = scmp.le.s32.totalorder 2, %s12
      // Predicated region
      $region37: #{tpu_custom_call.1} parent=5 // pred_check
        %p7606 = pneg %p7605
      $region38: #{tpu_custom_call.1} parent=5 // pred_check_branch
        %7608 = sbr.rel (%p7606) target = $region40
      $region39: #{tpu_custom_call.1} parent=5 // pred_region
        %s7609 = ssub.s32 %s12, 2
        // Predicated region
        $region41: #{tpu_custom_call.1} parent=39 // pred_check
          %p7610 = pneg %p125
        $region42: #{tpu_custom_call.1} parent=39 // pred_check_branch
          %7612 = sbr.rel (%p7610) target = $region44
        $region43: #{tpu_custom_call.1} parent=39 // pred_region
          %s7613 = sand.u32 %s110, 1
          %s7614 = scalar_lea.sflag [#allocation3], %s7613
          %s7615 = sand.u32 %s110, 1
          %s7616 = smul.addr %s7615, 128
          %s7617 = scalar_lea.vmem [#allocation2], %s7616
          %7618 = dma.done %s7614, 2048
        $region44: #{tpu_custom_call.1} parent=39 // pred_fallthru
          _
      $region40: #{tpu_custom_call.1} parent=5 // pred_fallthru
        _
    $region6: #{tpu_custom_call.1} parent=1 // loop_footer
      %s16 = sadd.s32 1, %s12
    $region7: #{tpu_custom_call.1} parent=1 // loop_footer_branch
      %11 = sbr.rel target = $region3
    $region8: #{tpu_custom_call.1} parent=1 // loop_exit
      _
    %7619 = vsyncpa [#allocation3], 1
    %s7620 = scalar_lea.sflag [#allocation3], 1
    %7621 = vsyncpa %s7620, 1

</llo_original>
